<compile_context>
chip_gen: v5e
topology: v5e:2x2
jax: 0.10.0
libtpu: 0.0.40
codegen_flags: <defaults>
</compile_context>

<pallas_src>
import functools

import jax
import jax.numpy as jnp
from jax.experimental import pallas as pl
from jax.experimental.pallas import tpu as pltpu

_MXU_DTYPE = jnp.bfloat16   # matmul operand dtype (accumulation stays f32)


# ----------------------------------------------------------------------------
# Fused kernel: embeddings-LN -> N encoder layers -> biLSTM head, Bt rows/step
# ----------------------------------------------------------------------------
def _fused_bert_lstm_kernel(
    # per-block activations
    emb_ref,      # (Bt, S, H)  summed embeddings (word + pos + type), f32
    bias_ref,     # (Bt, 1, S)  additive attention bias (0 attend / -1e9 pad), f32
    # embedding LayerNorm
    eg_ref, eb_ref,                         # (1, H) f32
    # encoder layers stacked over the (static) layer axis L
    wqkv_ref, bqkv_ref,                     # (L, H, 3H) bf16, (L, 1, 3H) f32 (Q scaled)
    woh_ref, bo_ref,                        # (L, heads, dh, H) bf16, (L, 1, H) f32
    ln1g_ref, ln1b_ref,                     # (L, 1, H) f32
    wi_ref, bi_ref,                         # (L, H, I) bf16, (L, 1, I) f32
    wo2_ref, bo2_ref,                       # (L, I, H) bf16, (L, 1, H) f32
    ln2g_ref, ln2b_ref,                     # (L, 1, H) f32
    # biLSTM head
    lwi_f_ref, lwh_f_ref, lb_f_ref,         # (H, 4hh) bf16, (hh, 4hh) bf16, (1, 4hh) f32
    lwi_b_ref, lb_b_ref,                    # (H, 4hh) bf16, (1, 4hh) f32
    # output
    o_ref,        # (Bt, 1, 2*hh)
    *, bt, seq, hidden, heads, hh, n_layers, eps,
):
    dh = hidden // heads
    rows = bt * seq

    def mm(a, w_bf16):                      # a @ w : bf16 operands, f32 accumulate
        return jnp.dot(a.astype(_MXU_DTYPE), w_bf16,
                       preferred_element_type=jnp.float32)

    def bmm(eq, a, b):                      # row-batched (leading batch dim) einsum
        return jnp.einsum(eq, a.astype(_MXU_DTYPE), b.astype(_MXU_DTYPE),
                          preferred_element_type=jnp.float32)

    def layernorm(x, g, b):                 # over last (hidden) axis, f32 stats
        mu = jnp.mean(x, axis=-1, keepdims=True)
        var = jnp.mean(jnp.square(x - mu), axis=-1, keepdims=True)
        return (x - mu) * jax.lax.rsqrt(var + eps) * g + b

    kbias = bias_ref[...]                                       # (Bt, 1, S)
    hf = layernorm(emb_ref[...].reshape(rows, hidden),
                   eg_ref[...], eb_ref[...])                    # (Bt*S, H)

    # ----------------- BERT encoder (all layers fused, VMEM-resident) --------
    for l in range(n_layers):                # static layer loop (toy L)
        qkv = mm(hf, wqkv_ref[l]) + bqkv_ref[l]                 # (Bt*S, 3H)
        qkv3 = qkv.reshape(bt, seq, 3 * hidden)
        wo_l = woh_ref[l]                                       # (heads, dh, H) bf16
        attn = jnp.zeros((rows, hidden), jnp.float32)
        for hd in range(heads):              # static; row-batched per-head attention
            q_h = qkv3[:, :, hd * dh:(hd + 1) * dh]
            k_h = qkv3[:, :, hidden + hd * dh:hidden + (hd + 1) * dh]
            v_h = qkv3[:, :, 2 * hidden + hd * dh:2 * hidden + (hd + 1) * dh]
            s_h = bmm('bqd,bkd->bqk', q_h, k_h) + kbias         # (Bt, S, S); scale folded
            s_h = s_h - jnp.max(s_h, axis=-1, keepdims=True)
            p_h = jnp.exp(s_h)
            p_h = p_h * pl.reciprocal(jnp.sum(p_h, axis=-1, keepdims=True),
                                      approx=True)
            ctx_h = bmm('bqk,bkd->bqd', p_h, v_h)               # (Bt, S, dh)
            # accumulate into the output projection (no concat of per-head slabs)
            attn = attn + mm(ctx_h.reshape(rows, dh), wo_l[hd])
        attn = attn + bo_ref[l]
        h1 = layernorm(attn + hf, ln1g_ref[l], ln1b_ref[l])
        # TODO(synk): HF BERT default GELU is exact erf; tanh approximation used here.
        inter = jax.nn.gelu(mm(h1, wi_ref[l]) + bi_ref[l], approximate=True)
        ffn = mm(inter, wo2_ref[l]) + bo2_ref[l]
        hf = layernorm(ffn + h1, ln2g_ref[l], ln2b_ref[l])

    # -------------- biLSTM -> last timestep -> dropout(eval) -> tanh ---------
    # forward direction: input projection hoisted out of the serial recurrence
    gx = (mm(hf, lwi_f_ref[...]) + lb_f_ref[...]).reshape(bt, seq, 4 * hh)
    wh_f = lwh_f_ref[...]                                        # (hh, 4hh), fused gates

    h_t = jnp.zeros((bt, hh), jnp.float32)
    c_t = jnp.zeros((bt, hh), jnp.float32)
    # Static unroll is fine at S=8; switch to lax.fori_loop(..., unroll=small) at S>=128.
    for t in range(seq):
        g = gx[:, t, :] + mm(h_t, wh_f)      # ONE (Bt,hh)@(hh,4hh) recurrent matmul
        i_g = jax.nn.sigmoid(g[:, 0 * hh:1 * hh])
        f_g = jax.nn.sigmoid(g[:, 1 * hh:2 * hh])
        g_g = jnp.tanh(g[:, 2 * hh:3 * hh])
        o_g = jax.nn.sigmoid(g[:, 3 * hh:4 * hh])
        c_t = f_g * c_t + i_g * g_g
        h_t = o_g * jnp.tanh(c_t)

    # Reverse direction at the LAST timestep == exactly one step from zero state,
    # so its recurrent weights (wh_b) contribute nothing to out[:, -1, hh:].
    x_last = hf.reshape(bt, seq, hidden)[:, seq - 1, :]          # (Bt, H)
    gb = mm(x_last, lwi_b_ref[...]) + lb_b_ref[...]              # (Bt, 4hh)
    i_b = jax.nn.sigmoid(gb[:, 0 * hh:1 * hh])
    g_b = jnp.tanh(gb[:, 2 * hh:3 * hh])
    o_b = jax.nn.sigmoid(gb[:, 3 * hh:4 * hh])
    h_b = o_b * jnp.tanh(i_b * g_b)

    # TODO(synk): dropout(p=0.3) is stochastic at train time; eval-mode identity here.
    out = jnp.tanh(jnp.concatenate([h_t, h_b], axis=-1))         # (Bt, 2hh)
    o_ref[...] = out.reshape(bt, 1, 2 * hh).astype(o_ref.dtype)


# ----------------------------------------------------------------------------
# Parameter init (deterministic, synthetic) — raw, PyTorch-like layout
# ----------------------------------------------------------------------------
def init_params(key, vocab=100, hidden=32, heads=4, n_layers=2, intermediate=64,
                max_pos=8, hh=16):
    keys = iter(jax.random.split(key, 128))

    def nrm(shape):
        return jax.random.normal(next(keys), shape, jnp.float32) * 0.02

    params = {
        "cfg": dict(hidden=hidden, heads=heads, hh=hh,
                    intermediate=intermediate, n_layers=n_layers),
        "word_emb": nrm((vocab, hidden)),
        "pos_emb": nrm((max_pos, hidden)),
        "type_emb": nrm((2, hidden)),
        "emb_ln_g": jnp.ones((hidden,), jnp.float32),
        "emb_ln_b": jnp.zeros((hidden,), jnp.float32),
        "layers": [],
    }
    for _ in range(n_layers):
        params["layers"].append(dict(
            wq=nrm((hidden, hidden)), bq=jnp.zeros((hidden,), jnp.float32),
            wk=nrm((hidden, hidden)), bk=jnp.zeros((hidden,), jnp.float32),
            wv=nrm((hidden, hidden)), bv=jnp.zeros((hidden,), jnp.float32),
            wo=nrm((hidden, hidden)), bo=jnp.zeros((hidden,), jnp.float32),
            ln1_g=jnp.ones((hidden,), jnp.float32),
            ln1_b=jnp.zeros((hidden,), jnp.float32),
            wi=nrm((hidden, intermediate)), bi=jnp.zeros((intermediate,), jnp.float32),
            wo2=nrm((intermediate, hidden)), bo2=jnp.zeros((hidden,), jnp.float32),
            ln2_g=jnp.ones((hidden,), jnp.float32),
            ln2_b=jnp.zeros((hidden,), jnp.float32),
        ))
    # biLSTM weights (PyTorch (4*hh, in) stored pre-transposed; b_ih + b_hh folded).
    params["lstm"] = dict(
        wi_f=nrm((hidden, 4 * hh)), wh_f=nrm((hh, 4 * hh)), b_f=nrm((1, 4 * hh)),
        wi_b=nrm((hidden, 4 * hh)), wh_b=nrm((hh, 4 * hh)), b_b=nrm((1, 4 * hh)),
    )
    return params


# ----------------------------------------------------------------------------
# One-time packing: stack per-layer weights, fuse QKV, fold attn scale, bf16 cast
# ----------------------------------------------------------------------------
def pack_params(params):
    cfg = params["cfg"]
    hidden, heads = cfg["hidden"], cfg["heads"]
    dh = hidden // heads
    scale = 1.0 / (dh ** 0.5)
    layers = params["layers"]

    def stackl(fn, dtype):
        return jnp.stack([fn(l) for l in layers]).astype(dtype)

    lstm = params["lstm"]
    return dict(
        cfg=cfg,
        word_emb=params["word_emb"],
        pos_emb=params["pos_emb"],
        type_emb=params["type_emb"],
        eg=params["emb_ln_g"][None, :],
        eb=params["emb_ln_b"][None, :],
        # 1/sqrt(dh) folded into the Q columns of the fused QKV weight + bias
        wqkv=stackl(lambda l: jnp.concatenate(
            [l["wq"] * scale, l["wk"], l["wv"]], axis=1), _MXU_DTYPE),
        bqkv=stackl(lambda l: jnp.concatenate(
            [l["bq"] * scale, l["bk"], l["bv"]])[None, :], jnp.float32),
        woh=stackl(lambda l: l["wo"].reshape(heads, dh, hidden), _MXU_DTYPE),
        bo=stackl(lambda l: l["bo"][None, :], jnp.float32),
        ln1g=stackl(lambda l: l["ln1_g"][None, :], jnp.float32),
        ln1b=stackl(lambda l: l["ln1_b"][None, :], jnp.float32),
        wi=stackl(lambda l: l["wi"], _MXU_DTYPE),
        bi=stackl(lambda l: l["bi"][None, :], jnp.float32),
        wo2=stackl(lambda l: l["wo2"], _MXU_DTYPE),
        bo2=stackl(lambda l: l["bo2"][None, :], jnp.float32),
        ln2g=stackl(lambda l: l["ln2_g"][None, :], jnp.float32),
        ln2b=stackl(lambda l: l["ln2_b"][None, :], jnp.float32),
        lwi_f=lstm["wi_f"].astype(_MXU_DTYPE),
        lwh_f=lstm["wh_f"].astype(_MXU_DTYPE),
        lb_f=lstm["b_f"].astype(jnp.float32),
        lwi_b=lstm["wi_b"].astype(_MXU_DTYPE),
        lb_b=lstm["b_b"].astype(jnp.float32),
    )


# ----------------------------------------------------------------------------
# Forward wrapper
# ----------------------------------------------------------------------------
def bert_feature_extractor(packed, input_ids, attention_mask, *, block_b=8):
    cfg = packed["cfg"]
    hidden, heads, hh = cfg["hidden"], cfg["heads"], cfg["hh"]
    n_layers = cfg["n_layers"]
    b, s = input_ids.shape
    bt = min(block_b, b)
    assert b % bt == 0, "batch must be divisible by the per-step batch block"

    # glue: embedding gather + bias; everything else in-kernel
    emb = (packed["word_emb"][input_ids]
           + packed["pos_emb"][jnp.arange(s)][None, :, :]
           + packed["type_emb"][0][None, None, :]).astype(jnp.float32)       # (B,S,H)
    att_bias = ((1.0 - attention_mask.astype(jnp.float32)) * -1e9
                ).reshape(b, 1, s)                                           # (B,1,S)

    weight_args = (
        packed["eg"], packed["eb"],
        packed["wqkv"], packed["bqkv"], packed["woh"], packed["bo"],
        packed["ln1g"], packed["ln1b"],
        packed["wi"], packed["bi"], packed["wo2"], packed["bo2"],
        packed["ln2g"], packed["ln2b"],
        packed["lwi_f"], packed["lwh_f"], packed["lb_f"],
        packed["lwi_b"], packed["lb_b"],
    )

    def _const_spec(a):                  # whole-array block, same for every grid step
        nd = a.ndim
        return pl.BlockSpec(a.shape, lambda i, _nd=nd: (0,) * _nd)

    in_specs = (
        [pl.BlockSpec((bt, s, hidden), lambda i: (i, 0, 0)),
         pl.BlockSpec((bt, 1, s), lambda i: (i, 0, 0))]
        + [_const_spec(a) for a in weight_args]
    )

    # TODO(synk): for real BERT sizes add a layer grid axis ("arbitrary") with per-layer
    # weight BlockSpecs and a VMEM h-scratch (init at l==0, biLSTM at l==L-1) so layer
    # weights stream through VMEM instead of all residing at once.
    out = pl.pallas_call(
        functools.partial(_fused_bert_lstm_kernel, bt=bt, seq=s, hidden=hidden,
                          heads=heads, hh=hh, n_layers=n_layers, eps=1e-12),
        out_shape=jax.ShapeDtypeStruct((b, 1, 2 * hh), jnp.float32),
        grid=(b // bt,),
        in_specs=in_specs,
        out_specs=pl.BlockSpec((bt, 1, 2 * hh), lambda i: (i, 0, 0)),
        compiler_params=pltpu.CompilerParams(
            dimension_semantics=("parallel",)),   # batch blocks shard across TCs on v7x
    )(emb, att_bias, *weight_args)
    return out.reshape(b, 2 * hh)


# ----------------------------------------------------------------------------
if __name__ == "__main__":
    key = jax.random.PRNGKey(0)
    k_params, k_ids = jax.random.split(key)

    B, S = 8, 8            # batch, max_seq_len
    VOCAB, HIDDEN, HEADS, LAYERS, INTER = 100, 32, 4, 2, 64
    HALF = 16              # output_features_size_half -> output size 32
    BT = 4                 # batch rows per grid step -> grid=(2,)

    params = init_params(k_params, vocab=VOCAB, hidden=HIDDEN, heads=HEADS,
                         n_layers=LAYERS, intermediate=INTER, max_pos=S, hh=HALF)
    packed = pack_params(params)          # one-time packing, hoisted out of forward

    input_ids = jax.random.randint(k_ids, (B, S), 0, VOCAB, dtype=jnp.int32)
    attention_mask = (jnp.ones((B, S), jnp.float32)
                      .at[1, 6:].set(0.0)
                      .at[5, 4:].set(0.0))          # two padded rows

    out = bert_feature_extractor(packed, input_ids, attention_mask, block_b=BT)
    out = jax.block_until_ready(out)

    assert out.shape == (B, 2 * HALF), out.shape
    assert bool(jnp.all(jnp.isfinite(out)))
    print("KERNEL_OK")
</pallas_src>

<mosaic_0001>
module attributes {stable_mosaic.version = 11 : i64} {
  func.func @_fused_bert_lstm_kernel(%arg0: i32, %arg1: memref<4x8x32xf32, #tpu.memory_space<vmem>>, %arg2: memref<4x1x8xf32, #tpu.memory_space<vmem>>, %arg3: memref<1x32xf32, #tpu.memory_space<vmem>>, %arg4: memref<1x32xf32, #tpu.memory_space<vmem>>, %arg5: memref<2x32x96xbf16, #tpu.memory_space<vmem>>, %arg6: memref<2x1x96xf32, #tpu.memory_space<vmem>>, %arg7: memref<2x4x8x32xbf16, #tpu.memory_space<vmem>>, %arg8: memref<2x1x32xf32, #tpu.memory_space<vmem>>, %arg9: memref<2x1x32xf32, #tpu.memory_space<vmem>>, %arg10: memref<2x1x32xf32, #tpu.memory_space<vmem>>, %arg11: memref<2x32x64xbf16, #tpu.memory_space<vmem>>, %arg12: memref<2x1x64xf32, #tpu.memory_space<vmem>>, %arg13: memref<2x64x32xbf16, #tpu.memory_space<vmem>>, %arg14: memref<2x1x32xf32, #tpu.memory_space<vmem>>, %arg15: memref<2x1x32xf32, #tpu.memory_space<vmem>>, %arg16: memref<2x1x32xf32, #tpu.memory_space<vmem>>, %arg17: memref<32x64xbf16, #tpu.memory_space<vmem>>, %arg18: memref<16x64xbf16, #tpu.memory_space<vmem>>, %arg19: memref<1x64xf32, #tpu.memory_space<vmem>>, %arg20: memref<32x64xbf16, #tpu.memory_space<vmem>>, %arg21: memref<1x64xf32, #tpu.memory_space<vmem>>, %arg22: memref<4x1x32xf32, #tpu.memory_space<vmem>>) attributes {dimension_semantics = [#tpu.dimension_semantics<parallel>], iteration_bounds = array<i64: 2>, scalar_prefetch = 0 : i64, scratch_operands = 0 : i64, tpu.core_type = #tpu.core_type<tc>, window_params = [{transform_indices = @transform_0, window_bounds = array<i64: 4, 8, 32>}, {transform_indices = @transform_1, window_bounds = array<i64: 4, 1, 8>}, {pipeline_mode = #tpu.pipeline_mode<synchronous>, transform_indices = @transform_2, window_bounds = array<i64: 1, 32>}, {pipeline_mode = #tpu.pipeline_mode<synchronous>, transform_indices = @transform_3, window_bounds = array<i64: 1, 32>}, {pipeline_mode = #tpu.pipeline_mode<synchronous>, transform_indices = @transform_4, window_bounds = array<i64: 2, 32, 96>}, {pipeline_mode = #tpu.pipeline_mode<synchronous>, transform_indices = @transform_5, window_bounds = array<i64: 2, 1, 96>}, {pipeline_mode = #tpu.pipeline_mode<synchronous>, transform_indices = @transform_6, window_bounds = array<i64: 2, 4, 8, 32>}, {pipeline_mode = #tpu.pipeline_mode<synchronous>, transform_indices = @transform_7, window_bounds = array<i64: 2, 1, 32>}, {pipeline_mode = #tpu.pipeline_mode<synchronous>, transform_indices = @transform_8, window_bounds = array<i64: 2, 1, 32>}, {pipeline_mode = #tpu.pipeline_mode<synchronous>, transform_indices = @transform_9, window_bounds = array<i64: 2, 1, 32>}, {pipeline_mode = #tpu.pipeline_mode<synchronous>, transform_indices = @transform_10, window_bounds = array<i64: 2, 32, 64>}, {pipeline_mode = #tpu.pipeline_mode<synchronous>, transform_indices = @transform_11, window_bounds = array<i64: 2, 1, 64>}, {pipeline_mode = #tpu.pipeline_mode<synchronous>, transform_indices = @transform_12, window_bounds = array<i64: 2, 64, 32>}, {pipeline_mode = #tpu.pipeline_mode<synchronous>, transform_indices = @transform_13, window_bounds = array<i64: 2, 1, 32>}, {pipeline_mode = #tpu.pipeline_mode<synchronous>, transform_indices = @transform_14, window_bounds = array<i64: 2, 1, 32>}, {pipeline_mode = #tpu.pipeline_mode<synchronous>, transform_indices = @transform_15, window_bounds = array<i64: 2, 1, 32>}, {pipeline_mode = #tpu.pipeline_mode<synchronous>, transform_indices = @transform_16, window_bounds = array<i64: 32, 64>}, {pipeline_mode = #tpu.pipeline_mode<synchronous>, transform_indices = @transform_17, window_bounds = array<i64: 16, 64>}, {pipeline_mode = #tpu.pipeline_mode<synchronous>, transform_indices = @transform_18, window_bounds = array<i64: 1, 64>}, {pipeline_mode = #tpu.pipeline_mode<synchronous>, transform_indices = @transform_19, window_bounds = array<i64: 32, 64>}, {pipeline_mode = #tpu.pipeline_mode<synchronous>, transform_indices = @transform_20, window_bounds = array<i64: 1, 64>}, {transform_indices = @transform_21, window_bounds = array<i64: 4, 1, 32>}]} {
    %c0 = arith.constant 0 : index
    %c0_0 = arith.constant 0 : index
    %c0_1 = arith.constant 0 : index
    %0 = vector.load %arg2[%c0, %c0_0, %c0_1] : memref<4x1x8xf32, #tpu.memory_space<vmem>>, vector<4x1x8xf32>
    %c0_2 = arith.constant 0 : index
    %c0_3 = arith.constant 0 : index
    %c0_4 = arith.constant 0 : index
    %1 = vector.load %arg1[%c0_2, %c0_3, %c0_4] : memref<4x8x32xf32, #tpu.memory_space<vmem>>, vector<4x8x32xf32>
    %2 = vector.shape_cast %1 : vector<4x8x32xf32> to vector<32x32xf32>
    %c0_5 = arith.constant 0 : index
    %c0_6 = arith.constant 0 : index
    %3 = vector.load %arg3[%c0_5, %c0_6] : memref<1x32xf32, #tpu.memory_space<vmem>>, vector<1x32xf32>
    %c0_7 = arith.constant 0 : index
    %c0_8 = arith.constant 0 : index
    %4 = vector.load %arg4[%c0_7, %c0_8] : memref<1x32xf32, #tpu.memory_space<vmem>>, vector<1x32xf32>
    %cst = arith.constant dense<0.000000e+00> : vector<32xf32>
    %5 = vector.multi_reduction <add>, %2, %cst [1] : vector<32x32xf32> to vector<32xf32>
    %6 = vector.shape_cast %5 : vector<32xf32> to vector<32x1xf32>
    %cst_9 = arith.constant 3.200000e+01 : f32
    %7 = vector.broadcast %cst_9 : f32 to vector<32x1xf32>
    %8 = arith.divf %6, %7 : vector<32x1xf32>
    %9 = vector.broadcast %8 : vector<32x1xf32> to vector<32x32xf32>
    %10 = arith.subf %2, %9 : vector<32x32xf32>
    %11 = arith.mulf %10, %10 : vector<32x32xf32>
    %cst_10 = arith.constant dense<0.000000e+00> : vector<32xf32>
    %12 = vector.multi_reduction <add>, %11, %cst_10 [1] : vector<32x32xf32> to vector<32xf32>
    %13 = vector.shape_cast %12 : vector<32xf32> to vector<32x1xf32>
    %cst_11 = arith.constant 3.200000e+01 : f32
    %14 = vector.broadcast %cst_11 : f32 to vector<32x1xf32>
    %15 = arith.divf %13, %14 : vector<32x1xf32>
    %16 = vector.broadcast %8 : vector<32x1xf32> to vector<32x32xf32>
    %17 = arith.subf %2, %16 : vector<32x32xf32>
    %cst_12 = arith.constant 9.99999996E-13 : f32
    %18 = vector.broadcast %cst_12 : f32 to vector<32x1xf32>
    %19 = arith.addf %15, %18 : vector<32x1xf32>
    %20 = math.rsqrt %19 : vector<32x1xf32>
    %21 = vector.broadcast %20 : vector<32x1xf32> to vector<32x32xf32>
    %22 = arith.mulf %17, %21 : vector<32x32xf32>
    %23 = vector.broadcast %3 : vector<1x32xf32> to vector<32x32xf32>
    %24 = arith.mulf %22, %23 : vector<32x32xf32>
    %25 = vector.broadcast %4 : vector<1x32xf32> to vector<32x32xf32>
    %26 = arith.addf %24, %25 : vector<32x32xf32>
    %c0_13 = arith.constant 0 : index
    %c0_14 = arith.constant 0 : index
    %c0_15 = arith.constant 0 : index
    %27 = vector.load %arg5[%c0_13, %c0_14, %c0_15] : memref<2x32x96xbf16, #tpu.memory_space<vmem>>, vector<1x32x96xbf16>
    %28 = vector.shape_cast %27 : vector<1x32x96xbf16> to vector<32x96xbf16>
    %29 = arith.truncf %26 : vector<32x32xf32> to vector<32x32xbf16>
    %cst_16 = arith.constant dense<0.000000e+00> : vector<32x96xf32>
    %30 = tpu.matmul %29, %28, %cst_16 {dimension_numbers = #tpu.dot_dimension_numbers<[1], [0], [0], [1], [0, 0, 1, 1], [], []>} : vector<32x32xbf16>, vector<32x96xbf16>, vector<32x96xf32> -> vector<32x96xf32>
    %c0_17 = arith.constant 0 : index
    %c0_18 = arith.constant 0 : index
    %c0_19 = arith.constant 0 : index
    %31 = vector.load %arg6[%c0_17, %c0_18, %c0_19] : memref<2x1x96xf32, #tpu.memory_space<vmem>>, vector<1x1x96xf32>
    %32 = vector.shape_cast %31 : vector<1x1x96xf32> to vector<1x96xf32>
    %33 = vector.broadcast %32 : vector<1x96xf32> to vector<32x96xf32>
    %34 = arith.addf %30, %33 : vector<32x96xf32>
    %35 = vector.shape_cast %34 : vector<32x96xf32> to vector<4x8x96xf32>
    %c0_20 = arith.constant 0 : index
    %c0_21 = arith.constant 0 : index
    %c0_22 = arith.constant 0 : index
    %c0_23 = arith.constant 0 : index
    %36 = vector.load %arg7[%c0_20, %c0_21, %c0_22, %c0_23] : memref<2x4x8x32xbf16, #tpu.memory_space<vmem>>, vector<1x4x8x32xbf16>
    %37 = vector.shape_cast %36 : vector<1x4x8x32xbf16> to vector<4x8x32xbf16>
    %cst_24 = arith.constant 0.000000e+00 : f32
    %38 = vector.broadcast %cst_24 : f32 to vector<32x32xf32>
    %39 = vector.extract_strided_slice %35 {offsets = [0, 0, 0], sizes = [4, 8, 8], strides = [1, 1, 1]} : vector<4x8x96xf32> to vector<4x8x8xf32>
    %40 = vector.extract_strided_slice %35 {offsets = [0, 0, 32], sizes = [4, 8, 8], strides = [1, 1, 1]} : vector<4x8x96xf32> to vector<4x8x8xf32>
    %41 = vector.extract_strided_slice %35 {offsets = [0, 0, 64], sizes = [4, 8, 8], strides = [1, 1, 1]} : vector<4x8x96xf32> to vector<4x8x8xf32>
    %42 = arith.truncf %39 : vector<4x8x8xf32> to vector<4x8x8xbf16>
    %43 = arith.truncf %40 : vector<4x8x8xf32> to vector<4x8x8xbf16>
    "tpu.trace_start"() <{level = 10 : i32, message = "bqd,bkd->bqk"}> : () -> ()
    %cst_25 = arith.constant dense<0.000000e+00> : vector<4x8x8xf32>
    %44 = tpu.matmul %42, %43, %cst_25 {dimension_numbers = #tpu.dot_dimension_numbers<[2], [2], [1], [1], [0, 0, 0, 1, 1, 1], [0], [0]>} : vector<4x8x8xbf16>, vector<4x8x8xbf16>, vector<4x8x8xf32> -> vector<4x8x8xf32>
    "tpu.trace_stop"() : () -> ()
    %45 = vector.broadcast %0 : vector<4x1x8xf32> to vector<4x8x8xf32>
    %46 = arith.addf %44, %45 : vector<4x8x8xf32>
    %cst_26 = arith.constant dense<0xFF800000> : vector<4x8xf32>
    %47 = vector.multi_reduction <maximumf>, %46, %cst_26 [2] : vector<4x8x8xf32> to vector<4x8xf32>
    %48 = vector.shape_cast %47 : vector<4x8xf32> to vector<4x8x1xf32>
    %49 = vector.broadcast %48 : vector<4x8x1xf32> to vector<4x8x8xf32>
    %50 = arith.subf %46, %49 : vector<4x8x8xf32>
    %51 = math.exp %50 : vector<4x8x8xf32>
    %cst_27 = arith.constant dense<0.000000e+00> : vector<4x8xf32>
    %52 = vector.multi_reduction <add>, %51, %cst_27 [2] : vector<4x8x8xf32> to vector<4x8xf32>
    %53 = vector.shape_cast %52 : vector<4x8xf32> to vector<4x8x1xf32>
    %54 = tpu.reciprocal %53 {approx = true} : vector<4x8x1xf32> -> vector<4x8x1xf32>
    %55 = vector.broadcast %54 : vector<4x8x1xf32> to vector<4x8x8xf32>
    %56 = arith.mulf %51, %55 : vector<4x8x8xf32>
    %57 = arith.truncf %56 : vector<4x8x8xf32> to vector<4x8x8xbf16>
    %58 = arith.truncf %41 : vector<4x8x8xf32> to vector<4x8x8xbf16>
    "tpu.trace_start"() <{level = 10 : i32, message = "bqk,bkd->bqd"}> : () -> ()
    %cst_28 = arith.constant dense<0.000000e+00> : vector<4x8x8xf32>
    %59 = tpu.matmul %57, %58, %cst_28 {dimension_numbers = #tpu.dot_dimension_numbers<[2], [1], [1], [2], [0, 0, 0, 1, 1, 2], [0], [0]>} : vector<4x8x8xbf16>, vector<4x8x8xbf16>, vector<4x8x8xf32> -> vector<4x8x8xf32>
    "tpu.trace_stop"() : () -> ()
    %60 = vector.shape_cast %59 : vector<4x8x8xf32> to vector<32x8xf32>
    %61 = vector.extract_strided_slice %37 {offsets = [0, 0, 0], sizes = [1, 8, 32], strides = [1, 1, 1]} : vector<4x8x32xbf16> to vector<1x8x32xbf16>
    %62 = vector.shape_cast %61 : vector<1x8x32xbf16> to vector<8x32xbf16>
    %63 = arith.truncf %60 : vector<32x8xf32> to vector<32x8xbf16>
    %cst_29 = arith.constant dense<0.000000e+00> : vector<32x32xf32>
    %64 = tpu.matmul %63, %62, %cst_29 {dimension_numbers = #tpu.dot_dimension_numbers<[1], [0], [0], [1], [0, 0, 1, 1], [], []>} : vector<32x8xbf16>, vector<8x32xbf16>, vector<32x32xf32> -> vector<32x32xf32>
    %65 = arith.addf %38, %64 : vector<32x32xf32>
    %66 = vector.extract_strided_slice %35 {offsets = [0, 0, 8], sizes = [4, 8, 8], strides = [1, 1, 1]} : vector<4x8x96xf32> to vector<4x8x8xf32>
    %67 = vector.extract_strided_slice %35 {offsets = [0, 0, 40], sizes = [4, 8, 8], strides = [1, 1, 1]} : vector<4x8x96xf32> to vector<4x8x8xf32>
    %68 = vector.extract_strided_slice %35 {offsets = [0, 0, 72], sizes = [4, 8, 8], strides = [1, 1, 1]} : vector<4x8x96xf32> to vector<4x8x8xf32>
    %69 = arith.truncf %66 : vector<4x8x8xf32> to vector<4x8x8xbf16>
    %70 = arith.truncf %67 : vector<4x8x8xf32> to vector<4x8x8xbf16>
    "tpu.trace_start"() <{level = 10 : i32, message = "bqd,bkd->bqk"}> : () -> ()
    %cst_30 = arith.constant dense<0.000000e+00> : vector<4x8x8xf32>
    %71 = tpu.matmul %69, %70, %cst_30 {dimension_numbers = #tpu.dot_dimension_numbers<[2], [2], [1], [1], [0, 0, 0, 1, 1, 1], [0], [0]>} : vector<4x8x8xbf16>, vector<4x8x8xbf16>, vector<4x8x8xf32> -> vector<4x8x8xf32>
    "tpu.trace_stop"() : () -> ()
    %72 = vector.broadcast %0 : vector<4x1x8xf32> to vector<4x8x8xf32>
    %73 = arith.addf %71, %72 : vector<4x8x8xf32>
    %cst_31 = arith.constant dense<0xFF800000> : vector<4x8xf32>
    %74 = vector.multi_reduction <maximumf>, %73, %cst_31 [2] : vector<4x8x8xf32> to vector<4x8xf32>
    %75 = vector.shape_cast %74 : vector<4x8xf32> to vector<4x8x1xf32>
    %76 = vector.broadcast %75 : vector<4x8x1xf32> to vector<4x8x8xf32>
    %77 = arith.subf %73, %76 : vector<4x8x8xf32>
    %78 = math.exp %77 : vector<4x8x8xf32>
    %cst_32 = arith.constant dense<0.000000e+00> : vector<4x8xf32>
    %79 = vector.multi_reduction <add>, %78, %cst_32 [2] : vector<4x8x8xf32> to vector<4x8xf32>
    %80 = vector.shape_cast %79 : vector<4x8xf32> to vector<4x8x1xf32>
    %81 = tpu.reciprocal %80 {approx = true} : vector<4x8x1xf32> -> vector<4x8x1xf32>
    %82 = vector.broadcast %81 : vector<4x8x1xf32> to vector<4x8x8xf32>
    %83 = arith.mulf %78, %82 : vector<4x8x8xf32>
    %84 = arith.truncf %83 : vector<4x8x8xf32> to vector<4x8x8xbf16>
    %85 = arith.truncf %68 : vector<4x8x8xf32> to vector<4x8x8xbf16>
    "tpu.trace_start"() <{level = 10 : i32, message = "bqk,bkd->bqd"}> : () -> ()
    %cst_33 = arith.constant dense<0.000000e+00> : vector<4x8x8xf32>
    %86 = tpu.matmul %84, %85, %cst_33 {dimension_numbers = #tpu.dot_dimension_numbers<[2], [1], [1], [2], [0, 0, 0, 1, 1, 2], [0], [0]>} : vector<4x8x8xbf16>, vector<4x8x8xbf16>, vector<4x8x8xf32> -> vector<4x8x8xf32>
    "tpu.trace_stop"() : () -> ()
    %87 = vector.shape_cast %86 : vector<4x8x8xf32> to vector<32x8xf32>
    %88 = vector.extract_strided_slice %37 {offsets = [1, 0, 0], sizes = [1, 8, 32], strides = [1, 1, 1]} : vector<4x8x32xbf16> to vector<1x8x32xbf16>
    %89 = vector.shape_cast %88 : vector<1x8x32xbf16> to vector<8x32xbf16>
    %90 = arith.truncf %87 : vector<32x8xf32> to vector<32x8xbf16>
    %cst_34 = arith.constant dense<0.000000e+00> : vector<32x32xf32>
    %91 = tpu.matmul %90, %89, %cst_34 {dimension_numbers = #tpu.dot_dimension_numbers<[1], [0], [0], [1], [0, 0, 1, 1], [], []>} : vector<32x8xbf16>, vector<8x32xbf16>, vector<32x32xf32> -> vector<32x32xf32>
    %92 = arith.addf %65, %91 : vector<32x32xf32>
    %93 = vector.extract_strided_slice %35 {offsets = [0, 0, 16], sizes = [4, 8, 8], strides = [1, 1, 1]} : vector<4x8x96xf32> to vector<4x8x8xf32>
    %94 = vector.extract_strided_slice %35 {offsets = [0, 0, 48], sizes = [4, 8, 8], strides = [1, 1, 1]} : vector<4x8x96xf32> to vector<4x8x8xf32>
    %95 = vector.extract_strided_slice %35 {offsets = [0, 0, 80], sizes = [4, 8, 8], strides = [1, 1, 1]} : vector<4x8x96xf32> to vector<4x8x8xf32>
    %96 = arith.truncf %93 : vector<4x8x8xf32> to vector<4x8x8xbf16>
    %97 = arith.truncf %94 : vector<4x8x8xf32> to vector<4x8x8xbf16>
    "tpu.trace_start"() <{level = 10 : i32, message = "bqd,bkd->bqk"}> : () -> ()
    %cst_35 = arith.constant dense<0.000000e+00> : vector<4x8x8xf32>
    %98 = tpu.matmul %96, %97, %cst_35 {dimension_numbers = #tpu.dot_dimension_numbers<[2], [2], [1], [1], [0, 0, 0, 1, 1, 1], [0], [0]>} : vector<4x8x8xbf16>, vector<4x8x8xbf16>, vector<4x8x8xf32> -> vector<4x8x8xf32>
    "tpu.trace_stop"() : () -> ()
    %99 = vector.broadcast %0 : vector<4x1x8xf32> to vector<4x8x8xf32>
    %100 = arith.addf %98, %99 : vector<4x8x8xf32>
    %cst_36 = arith.constant dense<0xFF800000> : vector<4x8xf32>
    %101 = vector.multi_reduction <maximumf>, %100, %cst_36 [2] : vector<4x8x8xf32> to vector<4x8xf32>
    %102 = vector.shape_cast %101 : vector<4x8xf32> to vector<4x8x1xf32>
    %103 = vector.broadcast %102 : vector<4x8x1xf32> to vector<4x8x8xf32>
    %104 = arith.subf %100, %103 : vector<4x8x8xf32>
    %105 = math.exp %104 : vector<4x8x8xf32>
    %cst_37 = arith.constant dense<0.000000e+00> : vector<4x8xf32>
    %106 = vector.multi_reduction <add>, %105, %cst_37 [2] : vector<4x8x8xf32> to vector<4x8xf32>
    %107 = vector.shape_cast %106 : vector<4x8xf32> to vector<4x8x1xf32>
    %108 = tpu.reciprocal %107 {approx = true} : vector<4x8x1xf32> -> vector<4x8x1xf32>
    %109 = vector.broadcast %108 : vector<4x8x1xf32> to vector<4x8x8xf32>
    %110 = arith.mulf %105, %109 : vector<4x8x8xf32>
    %111 = arith.truncf %110 : vector<4x8x8xf32> to vector<4x8x8xbf16>
    %112 = arith.truncf %95 : vector<4x8x8xf32> to vector<4x8x8xbf16>
    "tpu.trace_start"() <{level = 10 : i32, message = "bqk,bkd->bqd"}> : () -> ()
    %cst_38 = arith.constant dense<0.000000e+00> : vector<4x8x8xf32>
    %113 = tpu.matmul %111, %112, %cst_38 {dimension_numbers = #tpu.dot_dimension_numbers<[2], [1], [1], [2], [0, 0, 0, 1, 1, 2], [0], [0]>} : vector<4x8x8xbf16>, vector<4x8x8xbf16>, vector<4x8x8xf32> -> vector<4x8x8xf32>
    "tpu.trace_stop"() : () -> ()
    %114 = vector.shape_cast %113 : vector<4x8x8xf32> to vector<32x8xf32>
    %115 = vector.extract_strided_slice %37 {offsets = [2, 0, 0], sizes = [1, 8, 32], strides = [1, 1, 1]} : vector<4x8x32xbf16> to vector<1x8x32xbf16>
    %116 = vector.shape_cast %115 : vector<1x8x32xbf16> to vector<8x32xbf16>
    %117 = arith.truncf %114 : vector<32x8xf32> to vector<32x8xbf16>
    %cst_39 = arith.constant dense<0.000000e+00> : vector<32x32xf32>
    %118 = tpu.matmul %117, %116, %cst_39 {dimension_numbers = #tpu.dot_dimension_numbers<[1], [0], [0], [1], [0, 0, 1, 1], [], []>} : vector<32x8xbf16>, vector<8x32xbf16>, vector<32x32xf32> -> vector<32x32xf32>
    %119 = arith.addf %92, %118 : vector<32x32xf32>
    %120 = vector.extract_strided_slice %35 {offsets = [0, 0, 24], sizes = [4, 8, 8], strides = [1, 1, 1]} : vector<4x8x96xf32> to vector<4x8x8xf32>
    %121 = vector.extract_strided_slice %35 {offsets = [0, 0, 56], sizes = [4, 8, 8], strides = [1, 1, 1]} : vector<4x8x96xf32> to vector<4x8x8xf32>
    %122 = vector.extract_strided_slice %35 {offsets = [0, 0, 88], sizes = [4, 8, 8], strides = [1, 1, 1]} : vector<4x8x96xf32> to vector<4x8x8xf32>
    %123 = arith.truncf %120 : vector<4x8x8xf32> to vector<4x8x8xbf16>
    %124 = arith.truncf %121 : vector<4x8x8xf32> to vector<4x8x8xbf16>
    "tpu.trace_start"() <{level = 10 : i32, message = "bqd,bkd->bqk"}> : () -> ()
    %cst_40 = arith.constant dense<0.000000e+00> : vector<4x8x8xf32>
    %125 = tpu.matmul %123, %124, %cst_40 {dimension_numbers = #tpu.dot_dimension_numbers<[2], [2], [1], [1], [0, 0, 0, 1, 1, 1], [0], [0]>} : vector<4x8x8xbf16>, vector<4x8x8xbf16>, vector<4x8x8xf32> -> vector<4x8x8xf32>
    "tpu.trace_stop"() : () -> ()
    %126 = vector.broadcast %0 : vector<4x1x8xf32> to vector<4x8x8xf32>
    %127 = arith.addf %125, %126 : vector<4x8x8xf32>
    %cst_41 = arith.constant dense<0xFF800000> : vector<4x8xf32>
    %128 = vector.multi_reduction <maximumf>, %127, %cst_41 [2] : vector<4x8x8xf32> to vector<4x8xf32>
    %129 = vector.shape_cast %128 : vector<4x8xf32> to vector<4x8x1xf32>
    %130 = vector.broadcast %129 : vector<4x8x1xf32> to vector<4x8x8xf32>
    %131 = arith.subf %127, %130 : vector<4x8x8xf32>
    %132 = math.exp %131 : vector<4x8x8xf32>
    %cst_42 = arith.constant dense<0.000000e+00> : vector<4x8xf32>
    %133 = vector.multi_reduction <add>, %132, %cst_42 [2] : vector<4x8x8xf32> to vector<4x8xf32>
    %134 = vector.shape_cast %133 : vector<4x8xf32> to vector<4x8x1xf32>
    %135 = tpu.reciprocal %134 {approx = true} : vector<4x8x1xf32> -> vector<4x8x1xf32>
    %136 = vector.broadcast %135 : vector<4x8x1xf32> to vector<4x8x8xf32>
    %137 = arith.mulf %132, %136 : vector<4x8x8xf32>
    %138 = arith.truncf %137 : vector<4x8x8xf32> to vector<4x8x8xbf16>
    %139 = arith.truncf %122 : vector<4x8x8xf32> to vector<4x8x8xbf16>
    "tpu.trace_start"() <{level = 10 : i32, message = "bqk,bkd->bqd"}> : () -> ()
    %cst_43 = arith.constant dense<0.000000e+00> : vector<4x8x8xf32>
    %140 = tpu.matmul %138, %139, %cst_43 {dimension_numbers = #tpu.dot_dimension_numbers<[2], [1], [1], [2], [0, 0, 0, 1, 1, 2], [0], [0]>} : vector<4x8x8xbf16>, vector<4x8x8xbf16>, vector<4x8x8xf32> -> vector<4x8x8xf32>
    "tpu.trace_stop"() : () -> ()
    %141 = vector.shape_cast %140 : vector<4x8x8xf32> to vector<32x8xf32>
    %142 = vector.extract_strided_slice %37 {offsets = [3, 0, 0], sizes = [1, 8, 32], strides = [1, 1, 1]} : vector<4x8x32xbf16> to vector<1x8x32xbf16>
    %143 = vector.shape_cast %142 : vector<1x8x32xbf16> to vector<8x32xbf16>
    %144 = arith.truncf %141 : vector<32x8xf32> to vector<32x8xbf16>
    %cst_44 = arith.constant dense<0.000000e+00> : vector<32x32xf32>
    %145 = tpu.matmul %144, %143, %cst_44 {dimension_numbers = #tpu.dot_dimension_numbers<[1], [0], [0], [1], [0, 0, 1, 1], [], []>} : vector<32x8xbf16>, vector<8x32xbf16>, vector<32x32xf32> -> vector<32x32xf32>
    %146 = arith.addf %119, %145 : vector<32x32xf32>
    %c0_45 = arith.constant 0 : index
    %c0_46 = arith.constant 0 : index
    %c0_47 = arith.constant 0 : index
    %147 = vector.load %arg8[%c0_45, %c0_46, %c0_47] : memref<2x1x32xf32, #tpu.memory_space<vmem>>, vector<1x1x32xf32>
    %148 = vector.shape_cast %147 : vector<1x1x32xf32> to vector<1x32xf32>
    %149 = vector.broadcast %148 : vector<1x32xf32> to vector<32x32xf32>
    %150 = arith.addf %146, %149 : vector<32x32xf32>
    %151 = arith.addf %150, %26 : vector<32x32xf32>
    %c0_48 = arith.constant 0 : index
    %c0_49 = arith.constant 0 : index
    %c0_50 = arith.constant 0 : index
    %152 = vector.load %arg9[%c0_48, %c0_49, %c0_50] : memref<2x1x32xf32, #tpu.memory_space<vmem>>, vector<1x1x32xf32>
    %153 = vector.shape_cast %152 : vector<1x1x32xf32> to vector<1x32xf32>
    %c0_51 = arith.constant 0 : index
    %c0_52 = arith.constant 0 : index
    %c0_53 = arith.constant 0 : index
    %154 = vector.load %arg10[%c0_51, %c0_52, %c0_53] : memref<2x1x32xf32, #tpu.memory_space<vmem>>, vector<1x1x32xf32>
    %155 = vector.shape_cast %154 : vector<1x1x32xf32> to vector<1x32xf32>
    %cst_54 = arith.constant dense<0.000000e+00> : vector<32xf32>
    %156 = vector.multi_reduction <add>, %151, %cst_54 [1] : vector<32x32xf32> to vector<32xf32>
    %157 = vector.shape_cast %156 : vector<32xf32> to vector<32x1xf32>
    %cst_55 = arith.constant 3.200000e+01 : f32
    %158 = vector.broadcast %cst_55 : f32 to vector<32x1xf32>
    %159 = arith.divf %157, %158 : vector<32x1xf32>
    %160 = vector.broadcast %159 : vector<32x1xf32> to vector<32x32xf32>
    %161 = arith.subf %151, %160 : vector<32x32xf32>
    %162 = arith.mulf %161, %161 : vector<32x32xf32>
    %cst_56 = arith.constant dense<0.000000e+00> : vector<32xf32>
    %163 = vector.multi_reduction <add>, %162, %cst_56 [1] : vector<32x32xf32> to vector<32xf32>
    %164 = vector.shape_cast %163 : vector<32xf32> to vector<32x1xf32>
    %cst_57 = arith.constant 3.200000e+01 : f32
    %165 = vector.broadcast %cst_57 : f32 to vector<32x1xf32>
    %166 = arith.divf %164, %165 : vector<32x1xf32>
    %167 = vector.broadcast %159 : vector<32x1xf32> to vector<32x32xf32>
    %168 = arith.subf %151, %167 : vector<32x32xf32>
    %cst_58 = arith.constant 9.99999996E-13 : f32
    %169 = vector.broadcast %cst_58 : f32 to vector<32x1xf32>
    %170 = arith.addf %166, %169 : vector<32x1xf32>
    %171 = math.rsqrt %170 : vector<32x1xf32>
    %172 = vector.broadcast %171 : vector<32x1xf32> to vector<32x32xf32>
    %173 = arith.mulf %168, %172 : vector<32x32xf32>
    %174 = vector.broadcast %153 : vector<1x32xf32> to vector<32x32xf32>
    %175 = arith.mulf %173, %174 : vector<32x32xf32>
    %176 = vector.broadcast %155 : vector<1x32xf32> to vector<32x32xf32>
    %177 = arith.addf %175, %176 : vector<32x32xf32>
    %c0_59 = arith.constant 0 : index
    %c0_60 = arith.constant 0 : index
    %c0_61 = arith.constant 0 : index
    %178 = vector.load %arg11[%c0_59, %c0_60, %c0_61] : memref<2x32x64xbf16, #tpu.memory_space<vmem>>, vector<1x32x64xbf16>
    %179 = vector.shape_cast %178 : vector<1x32x64xbf16> to vector<32x64xbf16>
    %180 = arith.truncf %177 : vector<32x32xf32> to vector<32x32xbf16>
    %cst_62 = arith.constant dense<0.000000e+00> : vector<32x64xf32>
    %181 = tpu.matmul %180, %179, %cst_62 {dimension_numbers = #tpu.dot_dimension_numbers<[1], [0], [0], [1], [0, 0, 1, 1], [], []>} : vector<32x32xbf16>, vector<32x64xbf16>, vector<32x64xf32> -> vector<32x64xf32>
    %c0_63 = arith.constant 0 : index
    %c0_64 = arith.constant 0 : index
    %c0_65 = arith.constant 0 : index
    %182 = vector.load %arg12[%c0_63, %c0_64, %c0_65] : memref<2x1x64xf32, #tpu.memory_space<vmem>>, vector<1x1x64xf32>
    %183 = vector.shape_cast %182 : vector<1x1x64xf32> to vector<1x64xf32>
    %184 = vector.broadcast %183 : vector<1x64xf32> to vector<32x64xf32>
    %185 = arith.addf %181, %184 : vector<32x64xf32>
    %186 = arith.mulf %185, %185 : vector<32x64xf32>
    %187 = arith.mulf %185, %186 : vector<32x64xf32>
    %cst_66 = arith.constant 4.471500e-02 : f32
    %188 = vector.broadcast %cst_66 : f32 to vector<32x64xf32>
    %189 = arith.mulf %188, %187 : vector<32x64xf32>
    %190 = arith.addf %185, %189 : vector<32x64xf32>
    %cst_67 = arith.constant 0.797884583 : f32
    %191 = vector.broadcast %cst_67 : f32 to vector<32x64xf32>
    %192 = arith.mulf %191, %190 : vector<32x64xf32>
    %193 = math.tanh %192 : vector<32x64xf32>
    %cst_68 = arith.constant 1.000000e+00 : f32
    %194 = vector.broadcast %cst_68 : f32 to vector<32x64xf32>
    %195 = arith.addf %194, %193 : vector<32x64xf32>
    %cst_69 = arith.constant 5.000000e-01 : f32
    %196 = vector.broadcast %cst_69 : f32 to vector<32x64xf32>
    %197 = arith.mulf %196, %195 : vector<32x64xf32>
    %198 = arith.mulf %185, %197 : vector<32x64xf32>
    %c0_70 = arith.constant 0 : index
    %c0_71 = arith.constant 0 : index
    %c0_72 = arith.constant 0 : index
    %199 = vector.load %arg13[%c0_70, %c0_71, %c0_72] : memref<2x64x32xbf16, #tpu.memory_space<vmem>>, vector<1x64x32xbf16>
    %200 = vector.shape_cast %199 : vector<1x64x32xbf16> to vector<64x32xbf16>
    %201 = arith.truncf %198 : vector<32x64xf32> to vector<32x64xbf16>
    %cst_73 = arith.constant dense<0.000000e+00> : vector<32x32xf32>
    %202 = tpu.matmul %201, %200, %cst_73 {dimension_numbers = #tpu.dot_dimension_numbers<[1], [0], [0], [1], [0, 0, 1, 1], [], []>} : vector<32x64xbf16>, vector<64x32xbf16>, vector<32x32xf32> -> vector<32x32xf32>
    %c0_74 = arith.constant 0 : index
    %c0_75 = arith.constant 0 : index
    %c0_76 = arith.constant 0 : index
    %203 = vector.load %arg14[%c0_74, %c0_75, %c0_76] : memref<2x1x32xf32, #tpu.memory_space<vmem>>, vector<1x1x32xf32>
    %204 = vector.shape_cast %203 : vector<1x1x32xf32> to vector<1x32xf32>
    %205 = vector.broadcast %204 : vector<1x32xf32> to vector<32x32xf32>
    %206 = arith.addf %202, %205 : vector<32x32xf32>
    %207 = arith.addf %206, %177 : vector<32x32xf32>
    %c0_77 = arith.constant 0 : index
    %c0_78 = arith.constant 0 : index
    %c0_79 = arith.constant 0 : index
    %208 = vector.load %arg15[%c0_77, %c0_78, %c0_79] : memref<2x1x32xf32, #tpu.memory_space<vmem>>, vector<1x1x32xf32>
    %209 = vector.shape_cast %208 : vector<1x1x32xf32> to vector<1x32xf32>
    %c0_80 = arith.constant 0 : index
    %c0_81 = arith.constant 0 : index
    %c0_82 = arith.constant 0 : index
    %210 = vector.load %arg16[%c0_80, %c0_81, %c0_82] : memref<2x1x32xf32, #tpu.memory_space<vmem>>, vector<1x1x32xf32>
    %211 = vector.shape_cast %210 : vector<1x1x32xf32> to vector<1x32xf32>
    %cst_83 = arith.constant dense<0.000000e+00> : vector<32xf32>
    %212 = vector.multi_reduction <add>, %207, %cst_83 [1] : vector<32x32xf32> to vector<32xf32>
    %213 = vector.shape_cast %212 : vector<32xf32> to vector<32x1xf32>
    %cst_84 = arith.constant 3.200000e+01 : f32
    %214 = vector.broadcast %cst_84 : f32 to vector<32x1xf32>
    %215 = arith.divf %213, %214 : vector<32x1xf32>
    %216 = vector.broadcast %215 : vector<32x1xf32> to vector<32x32xf32>
    %217 = arith.subf %207, %216 : vector<32x32xf32>
    %218 = arith.mulf %217, %217 : vector<32x32xf32>
    %cst_85 = arith.constant dense<0.000000e+00> : vector<32xf32>
    %219 = vector.multi_reduction <add>, %218, %cst_85 [1] : vector<32x32xf32> to vector<32xf32>
    %220 = vector.shape_cast %219 : vector<32xf32> to vector<32x1xf32>
    %cst_86 = arith.constant 3.200000e+01 : f32
    %221 = vector.broadcast %cst_86 : f32 to vector<32x1xf32>
    %222 = arith.divf %220, %221 : vector<32x1xf32>
    %223 = vector.broadcast %215 : vector<32x1xf32> to vector<32x32xf32>
    %224 = arith.subf %207, %223 : vector<32x32xf32>
    %cst_87 = arith.constant 9.99999996E-13 : f32
    %225 = vector.broadcast %cst_87 : f32 to vector<32x1xf32>
    %226 = arith.addf %222, %225 : vector<32x1xf32>
    %227 = math.rsqrt %226 : vector<32x1xf32>
    %228 = vector.broadcast %227 : vector<32x1xf32> to vector<32x32xf32>
    %229 = arith.mulf %224, %228 : vector<32x32xf32>
    %230 = vector.broadcast %209 : vector<1x32xf32> to vector<32x32xf32>
    %231 = arith.mulf %229, %230 : vector<32x32xf32>
    %232 = vector.broadcast %211 : vector<1x32xf32> to vector<32x32xf32>
    %233 = arith.addf %231, %232 : vector<32x32xf32>
    %c1 = arith.constant 1 : index
    %c0_88 = arith.constant 0 : index
    %c0_89 = arith.constant 0 : index
    %234 = vector.load %arg5[%c1, %c0_88, %c0_89] : memref<2x32x96xbf16, #tpu.memory_space<vmem>>, vector<1x32x96xbf16>
    %235 = vector.shape_cast %234 : vector<1x32x96xbf16> to vector<32x96xbf16>
    %236 = arith.truncf %233 : vector<32x32xf32> to vector<32x32xbf16>
    %cst_90 = arith.constant dense<0.000000e+00> : vector<32x96xf32>
    %237 = tpu.matmul %236, %235, %cst_90 {dimension_numbers = #tpu.dot_dimension_numbers<[1], [0], [0], [1], [0, 0, 1, 1], [], []>} : vector<32x32xbf16>, vector<32x96xbf16>, vector<32x96xf32> -> vector<32x96xf32>
    %c1_91 = arith.constant 1 : index
    %c0_92 = arith.constant 0 : index
    %c0_93 = arith.constant 0 : index
    %238 = vector.load %arg6[%c1_91, %c0_92, %c0_93] : memref<2x1x96xf32, #tpu.memory_space<vmem>>, vector<1x1x96xf32>
    %239 = vector.shape_cast %238 : vector<1x1x96xf32> to vector<1x96xf32>
    %240 = vector.broadcast %239 : vector<1x96xf32> to vector<32x96xf32>
    %241 = arith.addf %237, %240 : vector<32x96xf32>
    %242 = vector.shape_cast %241 : vector<32x96xf32> to vector<4x8x96xf32>
    %c1_94 = arith.constant 1 : index
    %c0_95 = arith.constant 0 : index
    %c0_96 = arith.constant 0 : index
    %c0_97 = arith.constant 0 : index
    %243 = vector.load %arg7[%c1_94, %c0_95, %c0_96, %c0_97] : memref<2x4x8x32xbf16, #tpu.memory_space<vmem>>, vector<1x4x8x32xbf16>
    %244 = vector.shape_cast %243 : vector<1x4x8x32xbf16> to vector<4x8x32xbf16>
    %cst_98 = arith.constant 0.000000e+00 : f32
    %245 = vector.broadcast %cst_98 : f32 to vector<32x32xf32>
    %246 = vector.extract_strided_slice %242 {offsets = [0, 0, 0], sizes = [4, 8, 8], strides = [1, 1, 1]} : vector<4x8x96xf32> to vector<4x8x8xf32>
    %247 = vector.extract_strided_slice %242 {offsets = [0, 0, 32], sizes = [4, 8, 8], strides = [1, 1, 1]} : vector<4x8x96xf32> to vector<4x8x8xf32>
    %248 = vector.extract_strided_slice %242 {offsets = [0, 0, 64], sizes = [4, 8, 8], strides = [1, 1, 1]} : vector<4x8x96xf32> to vector<4x8x8xf32>
    %249 = arith.truncf %246 : vector<4x8x8xf32> to vector<4x8x8xbf16>
    %250 = arith.truncf %247 : vector<4x8x8xf32> to vector<4x8x8xbf16>
    "tpu.trace_start"() <{level = 10 : i32, message = "bqd,bkd->bqk"}> : () -> ()
    %cst_99 = arith.constant dense<0.000000e+00> : vector<4x8x8xf32>
    %251 = tpu.matmul %249, %250, %cst_99 {dimension_numbers = #tpu.dot_dimension_numbers<[2], [2], [1], [1], [0, 0, 0, 1, 1, 1], [0], [0]>} : vector<4x8x8xbf16>, vector<4x8x8xbf16>, vector<4x8x8xf32> -> vector<4x8x8xf32>
    "tpu.trace_stop"() : () -> ()
    %252 = vector.broadcast %0 : vector<4x1x8xf32> to vector<4x8x8xf32>
    %253 = arith.addf %251, %252 : vector<4x8x8xf32>
    %cst_100 = arith.constant dense<0xFF800000> : vector<4x8xf32>
    %254 = vector.multi_reduction <maximumf>, %253, %cst_100 [2] : vector<4x8x8xf32> to vector<4x8xf32>
    %255 = vector.shape_cast %254 : vector<4x8xf32> to vector<4x8x1xf32>
    %256 = vector.broadcast %255 : vector<4x8x1xf32> to vector<4x8x8xf32>
    %257 = arith.subf %253, %256 : vector<4x8x8xf32>
    %258 = math.exp %257 : vector<4x8x8xf32>
    %cst_101 = arith.constant dense<0.000000e+00> : vector<4x8xf32>
    %259 = vector.multi_reduction <add>, %258, %cst_101 [2] : vector<4x8x8xf32> to vector<4x8xf32>
    %260 = vector.shape_cast %259 : vector<4x8xf32> to vector<4x8x1xf32>
    %261 = tpu.reciprocal %260 {approx = true} : vector<4x8x1xf32> -> vector<4x8x1xf32>
    %262 = vector.broadcast %261 : vector<4x8x1xf32> to vector<4x8x8xf32>
    %263 = arith.mulf %258, %262 : vector<4x8x8xf32>
    %264 = arith.truncf %263 : vector<4x8x8xf32> to vector<4x8x8xbf16>
    %265 = arith.truncf %248 : vector<4x8x8xf32> to vector<4x8x8xbf16>
    "tpu.trace_start"() <{level = 10 : i32, message = "bqk,bkd->bqd"}> : () -> ()
    %cst_102 = arith.constant dense<0.000000e+00> : vector<4x8x8xf32>
    %266 = tpu.matmul %264, %265, %cst_102 {dimension_numbers = #tpu.dot_dimension_numbers<[2], [1], [1], [2], [0, 0, 0, 1, 1, 2], [0], [0]>} : vector<4x8x8xbf16>, vector<4x8x8xbf16>, vector<4x8x8xf32> -> vector<4x8x8xf32>
    "tpu.trace_stop"() : () -> ()
    %267 = vector.shape_cast %266 : vector<4x8x8xf32> to vector<32x8xf32>
    %268 = vector.extract_strided_slice %244 {offsets = [0, 0, 0], sizes = [1, 8, 32], strides = [1, 1, 1]} : vector<4x8x32xbf16> to vector<1x8x32xbf16>
    %269 = vector.shape_cast %268 : vector<1x8x32xbf16> to vector<8x32xbf16>
    %270 = arith.truncf %267 : vector<32x8xf32> to vector<32x8xbf16>
    %cst_103 = arith.constant dense<0.000000e+00> : vector<32x32xf32>
    %271 = tpu.matmul %270, %269, %cst_103 {dimension_numbers = #tpu.dot_dimension_numbers<[1], [0], [0], [1], [0, 0, 1, 1], [], []>} : vector<32x8xbf16>, vector<8x32xbf16>, vector<32x32xf32> -> vector<32x32xf32>
    %272 = arith.addf %245, %271 : vector<32x32xf32>
    %273 = vector.extract_strided_slice %242 {offsets = [0, 0, 8], sizes = [4, 8, 8], strides = [1, 1, 1]} : vector<4x8x96xf32> to vector<4x8x8xf32>
    %274 = vector.extract_strided_slice %242 {offsets = [0, 0, 40], sizes = [4, 8, 8], strides = [1, 1, 1]} : vector<4x8x96xf32> to vector<4x8x8xf32>
    %275 = vector.extract_strided_slice %242 {offsets = [0, 0, 72], sizes = [4, 8, 8], strides = [1, 1, 1]} : vector<4x8x96xf32> to vector<4x8x8xf32>
    %276 = arith.truncf %273 : vector<4x8x8xf32> to vector<4x8x8xbf16>
    %277 = arith.truncf %274 : vector<4x8x8xf32> to vector<4x8x8xbf16>
    "tpu.trace_start"() <{level = 10 : i32, message = "bqd,bkd->bqk"}> : () -> ()
    %cst_104 = arith.constant dense<0.000000e+00> : vector<4x8x8xf32>
    %278 = tpu.matmul %276, %277, %cst_104 {dimension_numbers = #tpu.dot_dimension_numbers<[2], [2], [1], [1], [0, 0, 0, 1, 1, 1], [0], [0]>} : vector<4x8x8xbf16>, vector<4x8x8xbf16>, vector<4x8x8xf32> -> vector<4x8x8xf32>
    "tpu.trace_stop"() : () -> ()
    %279 = vector.broadcast %0 : vector<4x1x8xf32> to vector<4x8x8xf32>
    %280 = arith.addf %278, %279 : vector<4x8x8xf32>
    %cst_105 = arith.constant dense<0xFF800000> : vector<4x8xf32>
    %281 = vector.multi_reduction <maximumf>, %280, %cst_105 [2] : vector<4x8x8xf32> to vector<4x8xf32>
    %282 = vector.shape_cast %281 : vector<4x8xf32> to vector<4x8x1xf32>
    %283 = vector.broadcast %282 : vector<4x8x1xf32> to vector<4x8x8xf32>
    %284 = arith.subf %280, %283 : vector<4x8x8xf32>
    %285 = math.exp %284 : vector<4x8x8xf32>
    %cst_106 = arith.constant dense<0.000000e+00> : vector<4x8xf32>
    %286 = vector.multi_reduction <add>, %285, %cst_106 [2] : vector<4x8x8xf32> to vector<4x8xf32>
    %287 = vector.shape_cast %286 : vector<4x8xf32> to vector<4x8x1xf32>
    %288 = tpu.reciprocal %287 {approx = true} : vector<4x8x1xf32> -> vector<4x8x1xf32>
    %289 = vector.broadcast %288 : vector<4x8x1xf32> to vector<4x8x8xf32>
    %290 = arith.mulf %285, %289 : vector<4x8x8xf32>
    %291 = arith.truncf %290 : vector<4x8x8xf32> to vector<4x8x8xbf16>
    %292 = arith.truncf %275 : vector<4x8x8xf32> to vector<4x8x8xbf16>
    "tpu.trace_start"() <{level = 10 : i32, message = "bqk,bkd->bqd"}> : () -> ()
    %cst_107 = arith.constant dense<0.000000e+00> : vector<4x8x8xf32>
    %293 = tpu.matmul %291, %292, %cst_107 {dimension_numbers = #tpu.dot_dimension_numbers<[2], [1], [1], [2], [0, 0, 0, 1, 1, 2], [0], [0]>} : vector<4x8x8xbf16>, vector<4x8x8xbf16>, vector<4x8x8xf32> -> vector<4x8x8xf32>
    "tpu.trace_stop"() : () -> ()
    %294 = vector.shape_cast %293 : vector<4x8x8xf32> to vector<32x8xf32>
    %295 = vector.extract_strided_slice %244 {offsets = [1, 0, 0], sizes = [1, 8, 32], strides = [1, 1, 1]} : vector<4x8x32xbf16> to vector<1x8x32xbf16>
    %296 = vector.shape_cast %295 : vector<1x8x32xbf16> to vector<8x32xbf16>
    %297 = arith.truncf %294 : vector<32x8xf32> to vector<32x8xbf16>
    %cst_108 = arith.constant dense<0.000000e+00> : vector<32x32xf32>
    %298 = tpu.matmul %297, %296, %cst_108 {dimension_numbers = #tpu.dot_dimension_numbers<[1], [0], [0], [1], [0, 0, 1, 1], [], []>} : vector<32x8xbf16>, vector<8x32xbf16>, vector<32x32xf32> -> vector<32x32xf32>
    %299 = arith.addf %272, %298 : vector<32x32xf32>
    %300 = vector.extract_strided_slice %242 {offsets = [0, 0, 16], sizes = [4, 8, 8], strides = [1, 1, 1]} : vector<4x8x96xf32> to vector<4x8x8xf32>
    %301 = vector.extract_strided_slice %242 {offsets = [0, 0, 48], sizes = [4, 8, 8], strides = [1, 1, 1]} : vector<4x8x96xf32> to vector<4x8x8xf32>
    %302 = vector.extract_strided_slice %242 {offsets = [0, 0, 80], sizes = [4, 8, 8], strides = [1, 1, 1]} : vector<4x8x96xf32> to vector<4x8x8xf32>
    %303 = arith.truncf %300 : vector<4x8x8xf32> to vector<4x8x8xbf16>
    %304 = arith.truncf %301 : vector<4x8x8xf32> to vector<4x8x8xbf16>
    "tpu.trace_start"() <{level = 10 : i32, message = "bqd,bkd->bqk"}> : () -> ()
    %cst_109 = arith.constant dense<0.000000e+00> : vector<4x8x8xf32>
    %305 = tpu.matmul %303, %304, %cst_109 {dimension_numbers = #tpu.dot_dimension_numbers<[2], [2], [1], [1], [0, 0, 0, 1, 1, 1], [0], [0]>} : vector<4x8x8xbf16>, vector<4x8x8xbf16>, vector<4x8x8xf32> -> vector<4x8x8xf32>
    "tpu.trace_stop"() : () -> ()
    %306 = vector.broadcast %0 : vector<4x1x8xf32> to vector<4x8x8xf32>
    %307 = arith.addf %305, %306 : vector<4x8x8xf32>
    %cst_110 = arith.constant dense<0xFF800000> : vector<4x8xf32>
    %308 = vector.multi_reduction <maximumf>, %307, %cst_110 [2] : vector<4x8x8xf32> to vector<4x8xf32>
    %309 = vector.shape_cast %308 : vector<4x8xf32> to vector<4x8x1xf32>
    %310 = vector.broadcast %309 : vector<4x8x1xf32> to vector<4x8x8xf32>
    %311 = arith.subf %307, %310 : vector<4x8x8xf32>
    %312 = math.exp %311 : vector<4x8x8xf32>
    %cst_111 = arith.constant dense<0.000000e+00> : vector<4x8xf32>
    %313 = vector.multi_reduction <add>, %312, %cst_111 [2] : vector<4x8x8xf32> to vector<4x8xf32>
    %314 = vector.shape_cast %313 : vector<4x8xf32> to vector<4x8x1xf32>
    %315 = tpu.reciprocal %314 {approx = true} : vector<4x8x1xf32> -> vector<4x8x1xf32>
    %316 = vector.broadcast %315 : vector<4x8x1xf32> to vector<4x8x8xf32>
    %317 = arith.mulf %312, %316 : vector<4x8x8xf32>
    %318 = arith.truncf %317 : vector<4x8x8xf32> to vector<4x8x8xbf16>
    %319 = arith.truncf %302 : vector<4x8x8xf32> to vector<4x8x8xbf16>
    "tpu.trace_start"() <{level = 10 : i32, message = "bqk,bkd->bqd"}> : () -> ()
    %cst_112 = arith.constant dense<0.000000e+00> : vector<4x8x8xf32>
    %320 = tpu.matmul %318, %319, %cst_112 {dimension_numbers = #tpu.dot_dimension_numbers<[2], [1], [1], [2], [0, 0, 0, 1, 1, 2], [0], [0]>} : vector<4x8x8xbf16>, vector<4x8x8xbf16>, vector<4x8x8xf32> -> vector<4x8x8xf32>
    "tpu.trace_stop"() : () -> ()
    %321 = vector.shape_cast %320 : vector<4x8x8xf32> to vector<32x8xf32>
    %322 = vector.extract_strided_slice %244 {offsets = [2, 0, 0], sizes = [1, 8, 32], strides = [1, 1, 1]} : vector<4x8x32xbf16> to vector<1x8x32xbf16>
    %323 = vector.shape_cast %322 : vector<1x8x32xbf16> to vector<8x32xbf16>
    %324 = arith.truncf %321 : vector<32x8xf32> to vector<32x8xbf16>
    %cst_113 = arith.constant dense<0.000000e+00> : vector<32x32xf32>
    %325 = tpu.matmul %324, %323, %cst_113 {dimension_numbers = #tpu.dot_dimension_numbers<[1], [0], [0], [1], [0, 0, 1, 1], [], []>} : vector<32x8xbf16>, vector<8x32xbf16>, vector<32x32xf32> -> vector<32x32xf32>
    %326 = arith.addf %299, %325 : vector<32x32xf32>
    %327 = vector.extract_strided_slice %242 {offsets = [0, 0, 24], sizes = [4, 8, 8], strides = [1, 1, 1]} : vector<4x8x96xf32> to vector<4x8x8xf32>
    %328 = vector.extract_strided_slice %242 {offsets = [0, 0, 56], sizes = [4, 8, 8], strides = [1, 1, 1]} : vector<4x8x96xf32> to vector<4x8x8xf32>
    %329 = vector.extract_strided_slice %242 {offsets = [0, 0, 88], sizes = [4, 8, 8], strides = [1, 1, 1]} : vector<4x8x96xf32> to vector<4x8x8xf32>
    %330 = arith.truncf %327 : vector<4x8x8xf32> to vector<4x8x8xbf16>
    %331 = arith.truncf %328 : vector<4x8x8xf32> to vector<4x8x8xbf16>
    "tpu.trace_start"() <{level = 10 : i32, message = "bqd,bkd->bqk"}> : () -> ()
    %cst_114 = arith.constant dense<0.000000e+00> : vector<4x8x8xf32>
    %332 = tpu.matmul %330, %331, %cst_114 {dimension_numbers = #tpu.dot_dimension_numbers<[2], [2], [1], [1], [0, 0, 0, 1, 1, 1], [0], [0]>} : vector<4x8x8xbf16>, vector<4x8x8xbf16>, vector<4x8x8xf32> -> vector<4x8x8xf32>
    "tpu.trace_stop"() : () -> ()
    %333 = vector.broadcast %0 : vector<4x1x8xf32> to vector<4x8x8xf32>
    %334 = arith.addf %332, %333 : vector<4x8x8xf32>
    %cst_115 = arith.constant dense<0xFF800000> : vector<4x8xf32>
    %335 = vector.multi_reduction <maximumf>, %334, %cst_115 [2] : vector<4x8x8xf32> to vector<4x8xf32>
    %336 = vector.shape_cast %335 : vector<4x8xf32> to vector<4x8x1xf32>
    %337 = vector.broadcast %336 : vector<4x8x1xf32> to vector<4x8x8xf32>
    %338 = arith.subf %334, %337 : vector<4x8x8xf32>
    %339 = math.exp %338 : vector<4x8x8xf32>
    %cst_116 = arith.constant dense<0.000000e+00> : vector<4x8xf32>
    %340 = vector.multi_reduction <add>, %339, %cst_116 [2] : vector<4x8x8xf32> to vector<4x8xf32>
    %341 = vector.shape_cast %340 : vector<4x8xf32> to vector<4x8x1xf32>
    %342 = tpu.reciprocal %341 {approx = true} : vector<4x8x1xf32> -> vector<4x8x1xf32>
    %343 = vector.broadcast %342 : vector<4x8x1xf32> to vector<4x8x8xf32>
    %344 = arith.mulf %339, %343 : vector<4x8x8xf32>
    %345 = arith.truncf %344 : vector<4x8x8xf32> to vector<4x8x8xbf16>
    %346 = arith.truncf %329 : vector<4x8x8xf32> to vector<4x8x8xbf16>
    "tpu.trace_start"() <{level = 10 : i32, message = "bqk,bkd->bqd"}> : () -> ()
    %cst_117 = arith.constant dense<0.000000e+00> : vector<4x8x8xf32>
    %347 = tpu.matmul %345, %346, %cst_117 {dimension_numbers = #tpu.dot_dimension_numbers<[2], [1], [1], [2], [0, 0, 0, 1, 1, 2], [0], [0]>} : vector<4x8x8xbf16>, vector<4x8x8xbf16>, vector<4x8x8xf32> -> vector<4x8x8xf32>
    "tpu.trace_stop"() : () -> ()
    %348 = vector.shape_cast %347 : vector<4x8x8xf32> to vector<32x8xf32>
    %349 = vector.extract_strided_slice %244 {offsets = [3, 0, 0], sizes = [1, 8, 32], strides = [1, 1, 1]} : vector<4x8x32xbf16> to vector<1x8x32xbf16>
    %350 = vector.shape_cast %349 : vector<1x8x32xbf16> to vector<8x32xbf16>
    %351 = arith.truncf %348 : vector<32x8xf32> to vector<32x8xbf16>
    %cst_118 = arith.constant dense<0.000000e+00> : vector<32x32xf32>
    %352 = tpu.matmul %351, %350, %cst_118 {dimension_numbers = #tpu.dot_dimension_numbers<[1], [0], [0], [1], [0, 0, 1, 1], [], []>} : vector<32x8xbf16>, vector<8x32xbf16>, vector<32x32xf32> -> vector<32x32xf32>
    %353 = arith.addf %326, %352 : vector<32x32xf32>
    %c1_119 = arith.constant 1 : index
    %c0_120 = arith.constant 0 : index
    %c0_121 = arith.constant 0 : index
    %354 = vector.load %arg8[%c1_119, %c0_120, %c0_121] : memref<2x1x32xf32, #tpu.memory_space<vmem>>, vector<1x1x32xf32>
    %355 = vector.shape_cast %354 : vector<1x1x32xf32> to vector<1x32xf32>
    %356 = vector.broadcast %355 : vector<1x32xf32> to vector<32x32xf32>
    %357 = arith.addf %353, %356 : vector<32x32xf32>
    %358 = arith.addf %357, %233 : vector<32x32xf32>
    %c1_122 = arith.constant 1 : index
    %c0_123 = arith.constant 0 : index
    %c0_124 = arith.constant 0 : index
    %359 = vector.load %arg9[%c1_122, %c0_123, %c0_124] : memref<2x1x32xf32, #tpu.memory_space<vmem>>, vector<1x1x32xf32>
    %360 = vector.shape_cast %359 : vector<1x1x32xf32> to vector<1x32xf32>
    %c1_125 = arith.constant 1 : index
    %c0_126 = arith.constant 0 : index
    %c0_127 = arith.constant 0 : index
    %361 = vector.load %arg10[%c1_125, %c0_126, %c0_127] : memref<2x1x32xf32, #tpu.memory_space<vmem>>, vector<1x1x32xf32>
    %362 = vector.shape_cast %361 : vector<1x1x32xf32> to vector<1x32xf32>
    %cst_128 = arith.constant dense<0.000000e+00> : vector<32xf32>
    %363 = vector.multi_reduction <add>, %358, %cst_128 [1] : vector<32x32xf32> to vector<32xf32>
    %364 = vector.shape_cast %363 : vector<32xf32> to vector<32x1xf32>
    %cst_129 = arith.constant 3.200000e+01 : f32
    %365 = vector.broadcast %cst_129 : f32 to vector<32x1xf32>
    %366 = arith.divf %364, %365 : vector<32x1xf32>
    %367 = vector.broadcast %366 : vector<32x1xf32> to vector<32x32xf32>
    %368 = arith.subf %358, %367 : vector<32x32xf32>
    %369 = arith.mulf %368, %368 : vector<32x32xf32>
    %cst_130 = arith.constant dense<0.000000e+00> : vector<32xf32>
    %370 = vector.multi_reduction <add>, %369, %cst_130 [1] : vector<32x32xf32> to vector<32xf32>
    %371 = vector.shape_cast %370 : vector<32xf32> to vector<32x1xf32>
    %cst_131 = arith.constant 3.200000e+01 : f32
    %372 = vector.broadcast %cst_131 : f32 to vector<32x1xf32>
    %373 = arith.divf %371, %372 : vector<32x1xf32>
    %374 = vector.broadcast %366 : vector<32x1xf32> to vector<32x32xf32>
    %375 = arith.subf %358, %374 : vector<32x32xf32>
    %cst_132 = arith.constant 9.99999996E-13 : f32
    %376 = vector.broadcast %cst_132 : f32 to vector<32x1xf32>
    %377 = arith.addf %373, %376 : vector<32x1xf32>
    %378 = math.rsqrt %377 : vector<32x1xf32>
    %379 = vector.broadcast %378 : vector<32x1xf32> to vector<32x32xf32>
    %380 = arith.mulf %375, %379 : vector<32x32xf32>
    %381 = vector.broadcast %360 : vector<1x32xf32> to vector<32x32xf32>
    %382 = arith.mulf %380, %381 : vector<32x32xf32>
    %383 = vector.broadcast %362 : vector<1x32xf32> to vector<32x32xf32>
    %384 = arith.addf %382, %383 : vector<32x32xf32>
    %c1_133 = arith.constant 1 : index
    %c0_134 = arith.constant 0 : index
    %c0_135 = arith.constant 0 : index
    %385 = vector.load %arg11[%c1_133, %c0_134, %c0_135] : memref<2x32x64xbf16, #tpu.memory_space<vmem>>, vector<1x32x64xbf16>
    %386 = vector.shape_cast %385 : vector<1x32x64xbf16> to vector<32x64xbf16>
    %387 = arith.truncf %384 : vector<32x32xf32> to vector<32x32xbf16>
    %cst_136 = arith.constant dense<0.000000e+00> : vector<32x64xf32>
    %388 = tpu.matmul %387, %386, %cst_136 {dimension_numbers = #tpu.dot_dimension_numbers<[1], [0], [0], [1], [0, 0, 1, 1], [], []>} : vector<32x32xbf16>, vector<32x64xbf16>, vector<32x64xf32> -> vector<32x64xf32>
    %c1_137 = arith.constant 1 : index
    %c0_138 = arith.constant 0 : index
    %c0_139 = arith.constant 0 : index
    %389 = vector.load %arg12[%c1_137, %c0_138, %c0_139] : memref<2x1x64xf32, #tpu.memory_space<vmem>>, vector<1x1x64xf32>
    %390 = vector.shape_cast %389 : vector<1x1x64xf32> to vector<1x64xf32>
    %391 = vector.broadcast %390 : vector<1x64xf32> to vector<32x64xf32>
    %392 = arith.addf %388, %391 : vector<32x64xf32>
    %393 = arith.mulf %392, %392 : vector<32x64xf32>
    %394 = arith.mulf %392, %393 : vector<32x64xf32>
    %cst_140 = arith.constant 4.471500e-02 : f32
    %395 = vector.broadcast %cst_140 : f32 to vector<32x64xf32>
    %396 = arith.mulf %395, %394 : vector<32x64xf32>
    %397 = arith.addf %392, %396 : vector<32x64xf32>
    %cst_141 = arith.constant 0.797884583 : f32
    %398 = vector.broadcast %cst_141 : f32 to vector<32x64xf32>
    %399 = arith.mulf %398, %397 : vector<32x64xf32>
    %400 = math.tanh %399 : vector<32x64xf32>
    %cst_142 = arith.constant 1.000000e+00 : f32
    %401 = vector.broadcast %cst_142 : f32 to vector<32x64xf32>
    %402 = arith.addf %401, %400 : vector<32x64xf32>
    %cst_143 = arith.constant 5.000000e-01 : f32
    %403 = vector.broadcast %cst_143 : f32 to vector<32x64xf32>
    %404 = arith.mulf %403, %402 : vector<32x64xf32>
    %405 = arith.mulf %392, %404 : vector<32x64xf32>
    %c1_144 = arith.constant 1 : index
    %c0_145 = arith.constant 0 : index
    %c0_146 = arith.constant 0 : index
    %406 = vector.load %arg13[%c1_144, %c0_145, %c0_146] : memref<2x64x32xbf16, #tpu.memory_space<vmem>>, vector<1x64x32xbf16>
    %407 = vector.shape_cast %406 : vector<1x64x32xbf16> to vector<64x32xbf16>
    %408 = arith.truncf %405 : vector<32x64xf32> to vector<32x64xbf16>
    %cst_147 = arith.constant dense<0.000000e+00> : vector<32x32xf32>
    %409 = tpu.matmul %408, %407, %cst_147 {dimension_numbers = #tpu.dot_dimension_numbers<[1], [0], [0], [1], [0, 0, 1, 1], [], []>} : vector<32x64xbf16>, vector<64x32xbf16>, vector<32x32xf32> -> vector<32x32xf32>
    %c1_148 = arith.constant 1 : index
    %c0_149 = arith.constant 0 : index
    %c0_150 = arith.constant 0 : index
    %410 = vector.load %arg14[%c1_148, %c0_149, %c0_150] : memref<2x1x32xf32, #tpu.memory_space<vmem>>, vector<1x1x32xf32>
    %411 = vector.shape_cast %410 : vector<1x1x32xf32> to vector<1x32xf32>
    %412 = vector.broadcast %411 : vector<1x32xf32> to vector<32x32xf32>
    %413 = arith.addf %409, %412 : vector<32x32xf32>
    %414 = arith.addf %413, %384 : vector<32x32xf32>
    %c1_151 = arith.constant 1 : index
    %c0_152 = arith.constant 0 : index
    %c0_153 = arith.constant 0 : index
    %415 = vector.load %arg15[%c1_151, %c0_152, %c0_153] : memref<2x1x32xf32, #tpu.memory_space<vmem>>, vector<1x1x32xf32>
    %416 = vector.shape_cast %415 : vector<1x1x32xf32> to vector<1x32xf32>
    %c1_154 = arith.constant 1 : index
    %c0_155 = arith.constant 0 : index
    %c0_156 = arith.constant 0 : index
    %417 = vector.load %arg16[%c1_154, %c0_155, %c0_156] : memref<2x1x32xf32, #tpu.memory_space<vmem>>, vector<1x1x32xf32>
    %418 = vector.shape_cast %417 : vector<1x1x32xf32> to vector<1x32xf32>
    %cst_157 = arith.constant dense<0.000000e+00> : vector<32xf32>
    %419 = vector.multi_reduction <add>, %414, %cst_157 [1] : vector<32x32xf32> to vector<32xf32>
    %420 = vector.shape_cast %419 : vector<32xf32> to vector<32x1xf32>
    %cst_158 = arith.constant 3.200000e+01 : f32
    %421 = vector.broadcast %cst_158 : f32 to vector<32x1xf32>
    %422 = arith.divf %420, %421 : vector<32x1xf32>
    %423 = vector.broadcast %422 : vector<32x1xf32> to vector<32x32xf32>
    %424 = arith.subf %414, %423 : vector<32x32xf32>
    %425 = arith.mulf %424, %424 : vector<32x32xf32>
    %cst_159 = arith.constant dense<0.000000e+00> : vector<32xf32>
    %426 = vector.multi_reduction <add>, %425, %cst_159 [1] : vector<32x32xf32> to vector<32xf32>
    %427 = vector.shape_cast %426 : vector<32xf32> to vector<32x1xf32>
    %cst_160 = arith.constant 3.200000e+01 : f32
    %428 = vector.broadcast %cst_160 : f32 to vector<32x1xf32>
    %429 = arith.divf %427, %428 : vector<32x1xf32>
    %430 = vector.broadcast %422 : vector<32x1xf32> to vector<32x32xf32>
    %431 = arith.subf %414, %430 : vector<32x32xf32>
    %cst_161 = arith.constant 9.99999996E-13 : f32
    %432 = vector.broadcast %cst_161 : f32 to vector<32x1xf32>
    %433 = arith.addf %429, %432 : vector<32x1xf32>
    %434 = math.rsqrt %433 : vector<32x1xf32>
    %435 = vector.broadcast %434 : vector<32x1xf32> to vector<32x32xf32>
    %436 = arith.mulf %431, %435 : vector<32x32xf32>
    %437 = vector.broadcast %416 : vector<1x32xf32> to vector<32x32xf32>
    %438 = arith.mulf %436, %437 : vector<32x32xf32>
    %439 = vector.broadcast %418 : vector<1x32xf32> to vector<32x32xf32>
    %440 = arith.addf %438, %439 : vector<32x32xf32>
    %c0_162 = arith.constant 0 : index
    %c0_163 = arith.constant 0 : index
    %441 = vector.load %arg17[%c0_162, %c0_163] : memref<32x64xbf16, #tpu.memory_space<vmem>>, vector<32x64xbf16>
    %442 = arith.truncf %440 : vector<32x32xf32> to vector<32x32xbf16>
    %cst_164 = arith.constant dense<0.000000e+00> : vector<32x64xf32>
    %443 = tpu.matmul %442, %441, %cst_164 {dimension_numbers = #tpu.dot_dimension_numbers<[1], [0], [0], [1], [0, 0, 1, 1], [], []>} : vector<32x32xbf16>, vector<32x64xbf16>, vector<32x64xf32> -> vector<32x64xf32>
    %c0_165 = arith.constant 0 : index
    %c0_166 = arith.constant 0 : index
    %444 = vector.load %arg19[%c0_165, %c0_166] : memref<1x64xf32, #tpu.memory_space<vmem>>, vector<1x64xf32>
    %445 = vector.broadcast %444 : vector<1x64xf32> to vector<32x64xf32>
    %446 = arith.addf %443, %445 : vector<32x64xf32>
    %447 = vector.shape_cast %446 : vector<32x64xf32> to vector<4x8x64xf32>
    %c0_167 = arith.constant 0 : index
    %c0_168 = arith.constant 0 : index
    %448 = vector.load %arg18[%c0_167, %c0_168] : memref<16x64xbf16, #tpu.memory_space<vmem>>, vector<16x64xbf16>
    %cst_169 = arith.constant 0.000000e+00 : f32
    %449 = vector.broadcast %cst_169 : f32 to vector<4x16xf32>
    %cst_170 = arith.constant 0.000000e+00 : f32
    %450 = vector.broadcast %cst_170 : f32 to vector<4x16xf32>
    %451 = vector.extract_strided_slice %447 {offsets = [0, 0, 0], sizes = [4, 1, 64], strides = [1, 1, 1]} : vector<4x8x64xf32> to vector<4x1x64xf32>
    %452 = vector.shape_cast %451 : vector<4x1x64xf32> to vector<4x64xf32>
    %453 = arith.truncf %449 : vector<4x16xf32> to vector<4x16xbf16>
    %cst_171 = arith.constant dense<0.000000e+00> : vector<4x64xf32>
    %454 = tpu.matmul %453, %448, %cst_171 {dimension_numbers = #tpu.dot_dimension_numbers<[1], [0], [0], [1], [0, 0, 1, 1], [], []>} : vector<4x16xbf16>, vector<16x64xbf16>, vector<4x64xf32> -> vector<4x64xf32>
    %455 = arith.addf %452, %454 : vector<4x64xf32>
    %456 = vector.extract_strided_slice %455 {offsets = [0, 0], sizes = [4, 16], strides = [1, 1]} : vector<4x64xf32> to vector<4x16xf32>
    %457 = arith.negf %456 : vector<4x16xf32>
    %458 = math.exp %457 : vector<4x16xf32>
    %cst_172 = arith.constant 1.000000e+00 : f32
    %459 = vector.broadcast %cst_172 : f32 to vector<4x16xf32>
    %460 = arith.addf %459, %458 : vector<4x16xf32>
    %461 = arith.divf %459, %460 : vector<4x16xf32>
    %462 = vector.extract_strided_slice %455 {offsets = [0, 16], sizes = [4, 16], strides = [1, 1]} : vector<4x64xf32> to vector<4x16xf32>
    %463 = arith.negf %462 : vector<4x16xf32>
    %464 = math.exp %463 : vector<4x16xf32>
    %cst_173 = arith.constant 1.000000e+00 : f32
    %465 = vector.broadcast %cst_173 : f32 to vector<4x16xf32>
    %466 = arith.addf %465, %464 : vector<4x16xf32>
    %467 = arith.divf %465, %466 : vector<4x16xf32>
    %468 = vector.extract_strided_slice %455 {offsets = [0, 32], sizes = [4, 16], strides = [1, 1]} : vector<4x64xf32> to vector<4x16xf32>
    %469 = math.tanh %468 : vector<4x16xf32>
    %470 = vector.extract_strided_slice %455 {offsets = [0, 48], sizes = [4, 16], strides = [1, 1]} : vector<4x64xf32> to vector<4x16xf32>
    %471 = arith.negf %470 : vector<4x16xf32>
    %472 = math.exp %471 : vector<4x16xf32>
    %cst_174 = arith.constant 1.000000e+00 : f32
    %473 = vector.broadcast %cst_174 : f32 to vector<4x16xf32>
    %474 = arith.addf %473, %472 : vector<4x16xf32>
    %475 = arith.divf %473, %474 : vector<4x16xf32>
    %476 = arith.mulf %467, %450 : vector<4x16xf32>
    %477 = arith.mulf %461, %469 : vector<4x16xf32>
    %478 = arith.addf %476, %477 : vector<4x16xf32>
    %479 = math.tanh %478 : vector<4x16xf32>
    %480 = arith.mulf %475, %479 : vector<4x16xf32>
    %481 = vector.extract_strided_slice %447 {offsets = [0, 1, 0], sizes = [4, 1, 64], strides = [1, 1, 1]} : vector<4x8x64xf32> to vector<4x1x64xf32>
    %482 = vector.shape_cast %481 : vector<4x1x64xf32> to vector<4x64xf32>
    %483 = arith.truncf %480 : vector<4x16xf32> to vector<4x16xbf16>
    %cst_175 = arith.constant dense<0.000000e+00> : vector<4x64xf32>
    %484 = tpu.matmul %483, %448, %cst_175 {dimension_numbers = #tpu.dot_dimension_numbers<[1], [0], [0], [1], [0, 0, 1, 1], [], []>} : vector<4x16xbf16>, vector<16x64xbf16>, vector<4x64xf32> -> vector<4x64xf32>
    %485 = arith.addf %482, %484 : vector<4x64xf32>
    %486 = vector.extract_strided_slice %485 {offsets = [0, 0], sizes = [4, 16], strides = [1, 1]} : vector<4x64xf32> to vector<4x16xf32>
    %487 = arith.negf %486 : vector<4x16xf32>
    %488 = math.exp %487 : vector<4x16xf32>
    %cst_176 = arith.constant 1.000000e+00 : f32
    %489 = vector.broadcast %cst_176 : f32 to vector<4x16xf32>
    %490 = arith.addf %489, %488 : vector<4x16xf32>
    %491 = arith.divf %489, %490 : vector<4x16xf32>
    %492 = vector.extract_strided_slice %485 {offsets = [0, 16], sizes = [4, 16], strides = [1, 1]} : vector<4x64xf32> to vector<4x16xf32>
    %493 = arith.negf %492 : vector<4x16xf32>
    %494 = math.exp %493 : vector<4x16xf32>
    %cst_177 = arith.constant 1.000000e+00 : f32
    %495 = vector.broadcast %cst_177 : f32 to vector<4x16xf32>
    %496 = arith.addf %495, %494 : vector<4x16xf32>
    %497 = arith.divf %495, %496 : vector<4x16xf32>
    %498 = vector.extract_strided_slice %485 {offsets = [0, 32], sizes = [4, 16], strides = [1, 1]} : vector<4x64xf32> to vector<4x16xf32>
    %499 = math.tanh %498 : vector<4x16xf32>
    %500 = vector.extract_strided_slice %485 {offsets = [0, 48], sizes = [4, 16], strides = [1, 1]} : vector<4x64xf32> to vector<4x16xf32>
    %501 = arith.negf %500 : vector<4x16xf32>
    %502 = math.exp %501 : vector<4x16xf32>
    %cst_178 = arith.constant 1.000000e+00 : f32
    %503 = vector.broadcast %cst_178 : f32 to vector<4x16xf32>
    %504 = arith.addf %503, %502 : vector<4x16xf32>
    %505 = arith.divf %503, %504 : vector<4x16xf32>
    %506 = arith.mulf %497, %478 : vector<4x16xf32>
    %507 = arith.mulf %491, %499 : vector<4x16xf32>
    %508 = arith.addf %506, %507 : vector<4x16xf32>
    %509 = math.tanh %508 : vector<4x16xf32>
    %510 = arith.mulf %505, %509 : vector<4x16xf32>
    %511 = vector.extract_strided_slice %447 {offsets = [0, 2, 0], sizes = [4, 1, 64], strides = [1, 1, 1]} : vector<4x8x64xf32> to vector<4x1x64xf32>
    %512 = vector.shape_cast %511 : vector<4x1x64xf32> to vector<4x64xf32>
    %513 = arith.truncf %510 : vector<4x16xf32> to vector<4x16xbf16>
    %cst_179 = arith.constant dense<0.000000e+00> : vector<4x64xf32>
    %514 = tpu.matmul %513, %448, %cst_179 {dimension_numbers = #tpu.dot_dimension_numbers<[1], [0], [0], [1], [0, 0, 1, 1], [], []>} : vector<4x16xbf16>, vector<16x64xbf16>, vector<4x64xf32> -> vector<4x64xf32>
    %515 = arith.addf %512, %514 : vector<4x64xf32>
    %516 = vector.extract_strided_slice %515 {offsets = [0, 0], sizes = [4, 16], strides = [1, 1]} : vector<4x64xf32> to vector<4x16xf32>
    %517 = arith.negf %516 : vector<4x16xf32>
    %518 = math.exp %517 : vector<4x16xf32>
    %cst_180 = arith.constant 1.000000e+00 : f32
    %519 = vector.broadcast %cst_180 : f32 to vector<4x16xf32>
    %520 = arith.addf %519, %518 : vector<4x16xf32>
    %521 = arith.divf %519, %520 : vector<4x16xf32>
    %522 = vector.extract_strided_slice %515 {offsets = [0, 16], sizes = [4, 16], strides = [1, 1]} : vector<4x64xf32> to vector<4x16xf32>
    %523 = arith.negf %522 : vector<4x16xf32>
    %524 = math.exp %523 : vector<4x16xf32>
    %cst_181 = arith.constant 1.000000e+00 : f32
    %525 = vector.broadcast %cst_181 : f32 to vector<4x16xf32>
    %526 = arith.addf %525, %524 : vector<4x16xf32>
    %527 = arith.divf %525, %526 : vector<4x16xf32>
    %528 = vector.extract_strided_slice %515 {offsets = [0, 32], sizes = [4, 16], strides = [1, 1]} : vector<4x64xf32> to vector<4x16xf32>
    %529 = math.tanh %528 : vector<4x16xf32>
    %530 = vector.extract_strided_slice %515 {offsets = [0, 48], sizes = [4, 16], strides = [1, 1]} : vector<4x64xf32> to vector<4x16xf32>
    %531 = arith.negf %530 : vector<4x16xf32>
    %532 = math.exp %531 : vector<4x16xf32>
    %cst_182 = arith.constant 1.000000e+00 : f32
    %533 = vector.broadcast %cst_182 : f32 to vector<4x16xf32>
    %534 = arith.addf %533, %532 : vector<4x16xf32>
    %535 = arith.divf %533, %534 : vector<4x16xf32>
    %536 = arith.mulf %527, %508 : vector<4x16xf32>
    %537 = arith.mulf %521, %529 : vector<4x16xf32>
    %538 = arith.addf %536, %537 : vector<4x16xf32>
    %539 = math.tanh %538 : vector<4x16xf32>
    %540 = arith.mulf %535, %539 : vector<4x16xf32>
    %541 = vector.extract_strided_slice %447 {offsets = [0, 3, 0], sizes = [4, 1, 64], strides = [1, 1, 1]} : vector<4x8x64xf32> to vector<4x1x64xf32>
    %542 = vector.shape_cast %541 : vector<4x1x64xf32> to vector<4x64xf32>
    %543 = arith.truncf %540 : vector<4x16xf32> to vector<4x16xbf16>
    %cst_183 = arith.constant dense<0.000000e+00> : vector<4x64xf32>
    %544 = tpu.matmul %543, %448, %cst_183 {dimension_numbers = #tpu.dot_dimension_numbers<[1], [0], [0], [1], [0, 0, 1, 1], [], []>} : vector<4x16xbf16>, vector<16x64xbf16>, vector<4x64xf32> -> vector<4x64xf32>
    %545 = arith.addf %542, %544 : vector<4x64xf32>
    %546 = vector.extract_strided_slice %545 {offsets = [0, 0], sizes = [4, 16], strides = [1, 1]} : vector<4x64xf32> to vector<4x16xf32>
    %547 = arith.negf %546 : vector<4x16xf32>
    %548 = math.exp %547 : vector<4x16xf32>
    %cst_184 = arith.constant 1.000000e+00 : f32
    %549 = vector.broadcast %cst_184 : f32 to vector<4x16xf32>
    %550 = arith.addf %549, %548 : vector<4x16xf32>
    %551 = arith.divf %549, %550 : vector<4x16xf32>
    %552 = vector.extract_strided_slice %545 {offsets = [0, 16], sizes = [4, 16], strides = [1, 1]} : vector<4x64xf32> to vector<4x16xf32>
    %553 = arith.negf %552 : vector<4x16xf32>
    %554 = math.exp %553 : vector<4x16xf32>
    %cst_185 = arith.constant 1.000000e+00 : f32
    %555 = vector.broadcast %cst_185 : f32 to vector<4x16xf32>
    %556 = arith.addf %555, %554 : vector<4x16xf32>
    %557 = arith.divf %555, %556 : vector<4x16xf32>
    %558 = vector.extract_strided_slice %545 {offsets = [0, 32], sizes = [4, 16], strides = [1, 1]} : vector<4x64xf32> to vector<4x16xf32>
    %559 = math.tanh %558 : vector<4x16xf32>
    %560 = vector.extract_strided_slice %545 {offsets = [0, 48], sizes = [4, 16], strides = [1, 1]} : vector<4x64xf32> to vector<4x16xf32>
    %561 = arith.negf %560 : vector<4x16xf32>
    %562 = math.exp %561 : vector<4x16xf32>
    %cst_186 = arith.constant 1.000000e+00 : f32
    %563 = vector.broadcast %cst_186 : f32 to vector<4x16xf32>
    %564 = arith.addf %563, %562 : vector<4x16xf32>
    %565 = arith.divf %563, %564 : vector<4x16xf32>
    %566 = arith.mulf %557, %538 : vector<4x16xf32>
    %567 = arith.mulf %551, %559 : vector<4x16xf32>
    %568 = arith.addf %566, %567 : vector<4x16xf32>
    %569 = math.tanh %568 : vector<4x16xf32>
    %570 = arith.mulf %565, %569 : vector<4x16xf32>
    %571 = vector.extract_strided_slice %447 {offsets = [0, 4, 0], sizes = [4, 1, 64], strides = [1, 1, 1]} : vector<4x8x64xf32> to vector<4x1x64xf32>
    %572 = vector.shape_cast %571 : vector<4x1x64xf32> to vector<4x64xf32>
    %573 = arith.truncf %570 : vector<4x16xf32> to vector<4x16xbf16>
    %cst_187 = arith.constant dense<0.000000e+00> : vector<4x64xf32>
    %574 = tpu.matmul %573, %448, %cst_187 {dimension_numbers = #tpu.dot_dimension_numbers<[1], [0], [0], [1], [0, 0, 1, 1], [], []>} : vector<4x16xbf16>, vector<16x64xbf16>, vector<4x64xf32> -> vector<4x64xf32>
    %575 = arith.addf %572, %574 : vector<4x64xf32>
    %576 = vector.extract_strided_slice %575 {offsets = [0, 0], sizes = [4, 16], strides = [1, 1]} : vector<4x64xf32> to vector<4x16xf32>
    %577 = arith.negf %576 : vector<4x16xf32>
    %578 = math.exp %577 : vector<4x16xf32>
    %cst_188 = arith.constant 1.000000e+00 : f32
    %579 = vector.broadcast %cst_188 : f32 to vector<4x16xf32>
    %580 = arith.addf %579, %578 : vector<4x16xf32>
    %581 = arith.divf %579, %580 : vector<4x16xf32>
    %582 = vector.extract_strided_slice %575 {offsets = [0, 16], sizes = [4, 16], strides = [1, 1]} : vector<4x64xf32> to vector<4x16xf32>
    %583 = arith.negf %582 : vector<4x16xf32>
    %584 = math.exp %583 : vector<4x16xf32>
    %cst_189 = arith.constant 1.000000e+00 : f32
    %585 = vector.broadcast %cst_189 : f32 to vector<4x16xf32>
    %586 = arith.addf %585, %584 : vector<4x16xf32>
    %587 = arith.divf %585, %586 : vector<4x16xf32>
    %588 = vector.extract_strided_slice %575 {offsets = [0, 32], sizes = [4, 16], strides = [1, 1]} : vector<4x64xf32> to vector<4x16xf32>
    %589 = math.tanh %588 : vector<4x16xf32>
    %590 = vector.extract_strided_slice %575 {offsets = [0, 48], sizes = [4, 16], strides = [1, 1]} : vector<4x64xf32> to vector<4x16xf32>
    %591 = arith.negf %590 : vector<4x16xf32>
    %592 = math.exp %591 : vector<4x16xf32>
    %cst_190 = arith.constant 1.000000e+00 : f32
    %593 = vector.broadcast %cst_190 : f32 to vector<4x16xf32>
    %594 = arith.addf %593, %592 : vector<4x16xf32>
    %595 = arith.divf %593, %594 : vector<4x16xf32>
    %596 = arith.mulf %587, %568 : vector<4x16xf32>
    %597 = arith.mulf %581, %589 : vector<4x16xf32>
    %598 = arith.addf %596, %597 : vector<4x16xf32>
    %599 = math.tanh %598 : vector<4x16xf32>
    %600 = arith.mulf %595, %599 : vector<4x16xf32>
    %601 = vector.extract_strided_slice %447 {offsets = [0, 5, 0], sizes = [4, 1, 64], strides = [1, 1, 1]} : vector<4x8x64xf32> to vector<4x1x64xf32>
    %602 = vector.shape_cast %601 : vector<4x1x64xf32> to vector<4x64xf32>
    %603 = arith.truncf %600 : vector<4x16xf32> to vector<4x16xbf16>
    %cst_191 = arith.constant dense<0.000000e+00> : vector<4x64xf32>
    %604 = tpu.matmul %603, %448, %cst_191 {dimension_numbers = #tpu.dot_dimension_numbers<[1], [0], [0], [1], [0, 0, 1, 1], [], []>} : vector<4x16xbf16>, vector<16x64xbf16>, vector<4x64xf32> -> vector<4x64xf32>
    %605 = arith.addf %602, %604 : vector<4x64xf32>
    %606 = vector.extract_strided_slice %605 {offsets = [0, 0], sizes = [4, 16], strides = [1, 1]} : vector<4x64xf32> to vector<4x16xf32>
    %607 = arith.negf %606 : vector<4x16xf32>
    %608 = math.exp %607 : vector<4x16xf32>
    %cst_192 = arith.constant 1.000000e+00 : f32
    %609 = vector.broadcast %cst_192 : f32 to vector<4x16xf32>
    %610 = arith.addf %609, %608 : vector<4x16xf32>
    %611 = arith.divf %609, %610 : vector<4x16xf32>
    %612 = vector.extract_strided_slice %605 {offsets = [0, 16], sizes = [4, 16], strides = [1, 1]} : vector<4x64xf32> to vector<4x16xf32>
    %613 = arith.negf %612 : vector<4x16xf32>
    %614 = math.exp %613 : vector<4x16xf32>
    %cst_193 = arith.constant 1.000000e+00 : f32
    %615 = vector.broadcast %cst_193 : f32 to vector<4x16xf32>
    %616 = arith.addf %615, %614 : vector<4x16xf32>
    %617 = arith.divf %615, %616 : vector<4x16xf32>
    %618 = vector.extract_strided_slice %605 {offsets = [0, 32], sizes = [4, 16], strides = [1, 1]} : vector<4x64xf32> to vector<4x16xf32>
    %619 = math.tanh %618 : vector<4x16xf32>
    %620 = vector.extract_strided_slice %605 {offsets = [0, 48], sizes = [4, 16], strides = [1, 1]} : vector<4x64xf32> to vector<4x16xf32>
    %621 = arith.negf %620 : vector<4x16xf32>
    %622 = math.exp %621 : vector<4x16xf32>
    %cst_194 = arith.constant 1.000000e+00 : f32
    %623 = vector.broadcast %cst_194 : f32 to vector<4x16xf32>
    %624 = arith.addf %623, %622 : vector<4x16xf32>
    %625 = arith.divf %623, %624 : vector<4x16xf32>
    %626 = arith.mulf %617, %598 : vector<4x16xf32>
    %627 = arith.mulf %611, %619 : vector<4x16xf32>
    %628 = arith.addf %626, %627 : vector<4x16xf32>
    %629 = math.tanh %628 : vector<4x16xf32>
    %630 = arith.mulf %625, %629 : vector<4x16xf32>
    %631 = vector.extract_strided_slice %447 {offsets = [0, 6, 0], sizes = [4, 1, 64], strides = [1, 1, 1]} : vector<4x8x64xf32> to vector<4x1x64xf32>
    %632 = vector.shape_cast %631 : vector<4x1x64xf32> to vector<4x64xf32>
    %633 = arith.truncf %630 : vector<4x16xf32> to vector<4x16xbf16>
    %cst_195 = arith.constant dense<0.000000e+00> : vector<4x64xf32>
    %634 = tpu.matmul %633, %448, %cst_195 {dimension_numbers = #tpu.dot_dimension_numbers<[1], [0], [0], [1], [0, 0, 1, 1], [], []>} : vector<4x16xbf16>, vector<16x64xbf16>, vector<4x64xf32> -> vector<4x64xf32>
    %635 = arith.addf %632, %634 : vector<4x64xf32>
    %636 = vector.extract_strided_slice %635 {offsets = [0, 0], sizes = [4, 16], strides = [1, 1]} : vector<4x64xf32> to vector<4x16xf32>
    %637 = arith.negf %636 : vector<4x16xf32>
    %638 = math.exp %637 : vector<4x16xf32>
    %cst_196 = arith.constant 1.000000e+00 : f32
    %639 = vector.broadcast %cst_196 : f32 to vector<4x16xf32>
    %640 = arith.addf %639, %638 : vector<4x16xf32>
    %641 = arith.divf %639, %640 : vector<4x16xf32>
    %642 = vector.extract_strided_slice %635 {offsets = [0, 16], sizes = [4, 16], strides = [1, 1]} : vector<4x64xf32> to vector<4x16xf32>
    %643 = arith.negf %642 : vector<4x16xf32>
    %644 = math.exp %643 : vector<4x16xf32>
    %cst_197 = arith.constant 1.000000e+00 : f32
    %645 = vector.broadcast %cst_197 : f32 to vector<4x16xf32>
    %646 = arith.addf %645, %644 : vector<4x16xf32>
    %647 = arith.divf %645, %646 : vector<4x16xf32>
    %648 = vector.extract_strided_slice %635 {offsets = [0, 32], sizes = [4, 16], strides = [1, 1]} : vector<4x64xf32> to vector<4x16xf32>
    %649 = math.tanh %648 : vector<4x16xf32>
    %650 = vector.extract_strided_slice %635 {offsets = [0, 48], sizes = [4, 16], strides = [1, 1]} : vector<4x64xf32> to vector<4x16xf32>
    %651 = arith.negf %650 : vector<4x16xf32>
    %652 = math.exp %651 : vector<4x16xf32>
    %cst_198 = arith.constant 1.000000e+00 : f32
    %653 = vector.broadcast %cst_198 : f32 to vector<4x16xf32>
    %654 = arith.addf %653, %652 : vector<4x16xf32>
    %655 = arith.divf %653, %654 : vector<4x16xf32>
    %656 = arith.mulf %647, %628 : vector<4x16xf32>
    %657 = arith.mulf %641, %649 : vector<4x16xf32>
    %658 = arith.addf %656, %657 : vector<4x16xf32>
    %659 = math.tanh %658 : vector<4x16xf32>
    %660 = arith.mulf %655, %659 : vector<4x16xf32>
    %661 = vector.extract_strided_slice %447 {offsets = [0, 7, 0], sizes = [4, 1, 64], strides = [1, 1, 1]} : vector<4x8x64xf32> to vector<4x1x64xf32>
    %662 = vector.shape_cast %661 : vector<4x1x64xf32> to vector<4x64xf32>
    %663 = arith.truncf %660 : vector<4x16xf32> to vector<4x16xbf16>
    %cst_199 = arith.constant dense<0.000000e+00> : vector<4x64xf32>
    %664 = tpu.matmul %663, %448, %cst_199 {dimension_numbers = #tpu.dot_dimension_numbers<[1], [0], [0], [1], [0, 0, 1, 1], [], []>} : vector<4x16xbf16>, vector<16x64xbf16>, vector<4x64xf32> -> vector<4x64xf32>
    %665 = arith.addf %662, %664 : vector<4x64xf32>
    %666 = vector.extract_strided_slice %665 {offsets = [0, 0], sizes = [4, 16], strides = [1, 1]} : vector<4x64xf32> to vector<4x16xf32>
    %667 = arith.negf %666 : vector<4x16xf32>
    %668 = math.exp %667 : vector<4x16xf32>
    %cst_200 = arith.constant 1.000000e+00 : f32
    %669 = vector.broadcast %cst_200 : f32 to vector<4x16xf32>
    %670 = arith.addf %669, %668 : vector<4x16xf32>
    %671 = arith.divf %669, %670 : vector<4x16xf32>
    %672 = vector.extract_strided_slice %665 {offsets = [0, 16], sizes = [4, 16], strides = [1, 1]} : vector<4x64xf32> to vector<4x16xf32>
    %673 = arith.negf %672 : vector<4x16xf32>
    %674 = math.exp %673 : vector<4x16xf32>
    %cst_201 = arith.constant 1.000000e+00 : f32
    %675 = vector.broadcast %cst_201 : f32 to vector<4x16xf32>
    %676 = arith.addf %675, %674 : vector<4x16xf32>
    %677 = arith.divf %675, %676 : vector<4x16xf32>
    %678 = vector.extract_strided_slice %665 {offsets = [0, 32], sizes = [4, 16], strides = [1, 1]} : vector<4x64xf32> to vector<4x16xf32>
    %679 = math.tanh %678 : vector<4x16xf32>
    %680 = vector.extract_strided_slice %665 {offsets = [0, 48], sizes = [4, 16], strides = [1, 1]} : vector<4x64xf32> to vector<4x16xf32>
    %681 = arith.negf %680 : vector<4x16xf32>
    %682 = math.exp %681 : vector<4x16xf32>
    %cst_202 = arith.constant 1.000000e+00 : f32
    %683 = vector.broadcast %cst_202 : f32 to vector<4x16xf32>
    %684 = arith.addf %683, %682 : vector<4x16xf32>
    %685 = arith.divf %683, %684 : vector<4x16xf32>
    %686 = arith.mulf %677, %658 : vector<4x16xf32>
    %687 = arith.mulf %671, %679 : vector<4x16xf32>
    %688 = arith.addf %686, %687 : vector<4x16xf32>
    %689 = math.tanh %688 : vector<4x16xf32>
    %690 = arith.mulf %685, %689 : vector<4x16xf32>
    %691 = vector.shape_cast %440 : vector<32x32xf32> to vector<4x8x32xf32>
    %692 = vector.extract_strided_slice %691 {offsets = [0, 7, 0], sizes = [4, 1, 32], strides = [1, 1, 1]} : vector<4x8x32xf32> to vector<4x1x32xf32>
    %693 = vector.shape_cast %692 : vector<4x1x32xf32> to vector<4x32xf32>
    %c0_203 = arith.constant 0 : index
    %c0_204 = arith.constant 0 : index
    %694 = vector.load %arg20[%c0_203, %c0_204] : memref<32x64xbf16, #tpu.memory_space<vmem>>, vector<32x64xbf16>
    %695 = arith.truncf %693 : vector<4x32xf32> to vector<4x32xbf16>
    %cst_205 = arith.constant dense<0.000000e+00> : vector<4x64xf32>
    %696 = tpu.matmul %695, %694, %cst_205 {dimension_numbers = #tpu.dot_dimension_numbers<[1], [0], [0], [1], [0, 0, 1, 1], [], []>} : vector<4x32xbf16>, vector<32x64xbf16>, vector<4x64xf32> -> vector<4x64xf32>
    %c0_206 = arith.constant 0 : index
    %c0_207 = arith.constant 0 : index
    %697 = vector.load %arg21[%c0_206, %c0_207] : memref<1x64xf32, #tpu.memory_space<vmem>>, vector<1x64xf32>
    %698 = vector.broadcast %697 : vector<1x64xf32> to vector<4x64xf32>
    %699 = arith.addf %696, %698 : vector<4x64xf32>
    %700 = vector.extract_strided_slice %699 {offsets = [0, 0], sizes = [4, 16], strides = [1, 1]} : vector<4x64xf32> to vector<4x16xf32>
    %701 = arith.negf %700 : vector<4x16xf32>
    %702 = math.exp %701 : vector<4x16xf32>
    %cst_208 = arith.constant 1.000000e+00 : f32
    %703 = vector.broadcast %cst_208 : f32 to vector<4x16xf32>
    %704 = arith.addf %703, %702 : vector<4x16xf32>
    %705 = arith.divf %703, %704 : vector<4x16xf32>
    %706 = vector.extract_strided_slice %699 {offsets = [0, 32], sizes = [4, 16], strides = [1, 1]} : vector<4x64xf32> to vector<4x16xf32>
    %707 = math.tanh %706 : vector<4x16xf32>
    %708 = vector.extract_strided_slice %699 {offsets = [0, 48], sizes = [4, 16], strides = [1, 1]} : vector<4x64xf32> to vector<4x16xf32>
    %709 = arith.negf %708 : vector<4x16xf32>
    %710 = math.exp %709 : vector<4x16xf32>
    %cst_209 = arith.constant 1.000000e+00 : f32
    %711 = vector.broadcast %cst_209 : f32 to vector<4x16xf32>
    %712 = arith.addf %711, %710 : vector<4x16xf32>
    %713 = arith.divf %711, %712 : vector<4x16xf32>
    %714 = arith.mulf %705, %707 : vector<4x16xf32>
    %715 = math.tanh %714 : vector<4x16xf32>
    %716 = arith.mulf %713, %715 : vector<4x16xf32>
    %717 = tpu.concatenate %690, %716 in 1 : vector<4x16xf32>, vector<4x16xf32> -> vector<4x32xf32>
    %718 = math.tanh %717 : vector<4x32xf32>
    %719 = vector.shape_cast %718 : vector<4x32xf32> to vector<4x1x32xf32>
    %c0_210 = arith.constant 0 : index
    %c0_211 = arith.constant 0 : index
    %c0_212 = arith.constant 0 : index
    %720 = vector.load %arg22[%c0_210, %c0_211, %c0_212] : memref<4x1x32xf32, #tpu.memory_space<vmem>>, vector<4x1x32xf32>
    tpu.vector_store %arg22[%c0_210, %c0_211, %c0_212], %719 {strides = array<i32>} : memref<4x1x32xf32, #tpu.memory_space<vmem>>, vector<4x1x32xf32>,
    return
  }
  func.func @transform_0(%arg0: i32) -> (i32, i32, i32) {
    %c0_i32 = arith.constant 0 : i32
    %c0_i32_0 = arith.constant 0 : i32
    %c0_i32_1 = arith.constant 0 : i32
    return %arg0, %c0_i32, %c0_i32_0 : i32, i32, i32
  }
  func.func @transform_1(%arg0: i32) -> (i32, i32, i32) {
    %c0_i32 = arith.constant 0 : i32
    %c0_i32_0 = arith.constant 0 : i32
    %c0_i32_1 = arith.constant 0 : i32
    return %arg0, %c0_i32, %c0_i32_0 : i32, i32, i32
  }
  func.func @transform_2(%arg0: i32) -> (i32, i32) {
    %c0_i32 = arith.constant 0 : i32
    %c0_i32_0 = arith.constant 0 : i32
    %c0_i32_1 = arith.constant 0 : i32
    return %c0_i32, %c0_i32_0 : i32, i32
  }
  func.func @transform_3(%arg0: i32) -> (i32, i32) {
    %c0_i32 = arith.constant 0 : i32
    %c0_i32_0 = arith.constant 0 : i32
    %c0_i32_1 = arith.constant 0 : i32
    return %c0_i32, %c0_i32_0 : i32, i32
  }
  func.func @transform_4(%arg0: i32) -> (i32, i32, i32) {
    %c0_i32 = arith.constant 0 : i32
    %c0_i32_0 = arith.constant 0 : i32
    %c0_i32_1 = arith.constant 0 : i32
    %c0_i32_2 = arith.constant 0 : i32
    return %c0_i32, %c0_i32_0, %c0_i32_1 : i32, i32, i32
  }
  func.func @transform_5(%arg0: i32) -> (i32, i32, i32) {
    %c0_i32 = arith.constant 0 : i32
    %c0_i32_0 = arith.constant 0 : i32
    %c0_i32_1 = arith.constant 0 : i32
    %c0_i32_2 = arith.constant 0 : i32
    return %c0_i32, %c0_i32_0, %c0_i32_1 : i32, i32, i32
  }
  func.func @transform_6(%arg0: i32) -> (i32, i32, i32, i32) {
    %c0_i32 = arith.constant 0 : i32
    %c0_i32_0 = arith.constant 0 : i32
    %c0_i32_1 = arith.constant 0 : i32
    %c0_i32_2 = arith.constant 0 : i32
    %c0_i32_3 = arith.constant 0 : i32
    return %c0_i32, %c0_i32_0, %c0_i32_1, %c0_i32_2 : i32, i32, i32, i32
  }
  func.func @transform_7(%arg0: i32) -> (i32, i32, i32) {
    %c0_i32 = arith.constant 0 : i32
    %c0_i32_0 = arith.constant 0 : i32
    %c0_i32_1 = arith.constant 0 : i32
    %c0_i32_2 = arith.constant 0 : i32
    return %c0_i32, %c0_i32_0, %c0_i32_1 : i32, i32, i32
  }
  func.func @transform_8(%arg0: i32) -> (i32, i32, i32) {
    %c0_i32 = arith.constant 0 : i32
    %c0_i32_0 = arith.constant 0 : i32
    %c0_i32_1 = arith.constant 0 : i32
    %c0_i32_2 = arith.constant 0 : i32
    return %c0_i32, %c0_i32_0, %c0_i32_1 : i32, i32, i32
  }
  func.func @transform_9(%arg0: i32) -> (i32, i32, i32) {
    %c0_i32 = arith.constant 0 : i32
    %c0_i32_0 = arith.constant 0 : i32
    %c0_i32_1 = arith.constant 0 : i32
    %c0_i32_2 = arith.constant 0 : i32
    return %c0_i32, %c0_i32_0, %c0_i32_1 : i32, i32, i32
  }
  func.func @transform_10(%arg0: i32) -> (i32, i32, i32) {
    %c0_i32 = arith.constant 0 : i32
    %c0_i32_0 = arith.constant 0 : i32
    %c0_i32_1 = arith.constant 0 : i32
    %c0_i32_2 = arith.constant 0 : i32
    return %c0_i32, %c0_i32_0, %c0_i32_1 : i32, i32, i32
  }
  func.func @transform_11(%arg0: i32) -> (i32, i32, i32) {
    %c0_i32 = arith.constant 0 : i32
    %c0_i32_0 = arith.constant 0 : i32
    %c0_i32_1 = arith.constant 0 : i32
    %c0_i32_2 = arith.constant 0 : i32
    return %c0_i32, %c0_i32_0, %c0_i32_1 : i32, i32, i32
  }
  func.func @transform_12(%arg0: i32) -> (i32, i32, i32) {
    %c0_i32 = arith.constant 0 : i32
    %c0_i32_0 = arith.constant 0 : i32
    %c0_i32_1 = arith.constant 0 : i32
    %c0_i32_2 = arith.constant 0 : i32
    return %c0_i32, %c0_i32_0, %c0_i32_1 : i32, i32, i32
  }
  func.func @transform_13(%arg0: i32) -> (i32, i32, i32) {
    %c0_i32 = arith.constant 0 : i32
    %c0_i32_0 = arith.constant 0 : i32
    %c0_i32_1 = arith.constant 0 : i32
    %c0_i32_2 = arith.constant 0 : i32
    return %c0_i32, %c0_i32_0, %c0_i32_1 : i32, i32, i32
  }
  func.func @transform_14(%arg0: i32) -> (i32, i32, i32) {
    %c0_i32 = arith.constant 0 : i32
    %c0_i32_0 = arith.constant 0 : i32
    %c0_i32_1 = arith.constant 0 : i32
    %c0_i32_2 = arith.constant 0 : i32
    return %c0_i32, %c0_i32_0, %c0_i32_1 : i32, i32, i32
  }
  func.func @transform_15(%arg0: i32) -> (i32, i32, i32) {
    %c0_i32 = arith.constant 0 : i32
    %c0_i32_0 = arith.constant 0 : i32
    %c0_i32_1 = arith.constant 0 : i32
    %c0_i32_2 = arith.constant 0 : i32
    return %c0_i32, %c0_i32_0, %c0_i32_1 : i32, i32, i32
  }
  func.func @transform_16(%arg0: i32) -> (i32, i32) {
    %c0_i32 = arith.constant 0 : i32
    %c0_i32_0 = arith.constant 0 : i32
    %c0_i32_1 = arith.constant 0 : i32
    return %c0_i32, %c0_i32_0 : i32, i32
  }
  func.func @transform_17(%arg0: i32) -> (i32, i32) {
    %c0_i32 = arith.constant 0 : i32
    %c0_i32_0 = arith.constant 0 : i32
    %c0_i32_1 = arith.constant 0 : i32
    return %c0_i32, %c0_i32_0 : i32, i32
  }
  func.func @transform_18(%arg0: i32) -> (i32, i32) {
    %c0_i32 = arith.constant 0 : i32
    %c0_i32_0 = arith.constant 0 : i32
    %c0_i32_1 = arith.constant 0 : i32
    return %c0_i32, %c0_i32_0 : i32, i32
  }
  func.func @transform_19(%arg0: i32) -> (i32, i32) {
    %c0_i32 = arith.constant 0 : i32
    %c0_i32_0 = arith.constant 0 : i32
    %c0_i32_1 = arith.constant 0 : i32
    return %c0_i32, %c0_i32_0 : i32, i32
  }
  func.func @transform_20(%arg0: i32) -> (i32, i32) {
    %c0_i32 = arith.constant 0 : i32
    %c0_i32_0 = arith.constant 0 : i32
    %c0_i32_1 = arith.constant 0 : i32
    return %c0_i32, %c0_i32_0 : i32, i32
  }
  func.func @transform_21(%arg0: i32) -> (i32, i32, i32) {
    %c0_i32 = arith.constant 0 : i32
    %c0_i32_0 = arith.constant 0 : i32
    %c0_i32_1 = arith.constant 0 : i32
    return %arg0, %c0_i32, %c0_i32_0 : i32, i32, i32
  }
}

</mosaic_0001>

<llo_original>
// kernel: tpu_custom_call.1
$region0: #{tpu_custom_call.1}
  #allocation0 [shape = 'u32[]', space=smem, size = 0x4, offset = 0x4, fixed_abs, tag = 'smem constant byte address 0x4 - core index']
  #allocation1 [shape = 'u32[72,128]{1,0:T(1,128)}', space=vmem, size = 0x9000, scoped, tag = 'internal scratch']
  %s0 = inlined_call_operand.vmem [shape: f32[8,8,32], index: 0, kind: input, shape index: {}]
  %s1 = inlined_call_operand.hbm [shape: f32[8,1,8], index: 1, kind: input, shape index: {}]
  %s2 = inlined_call_operand.vmem [shape: f32[1,32], index: 2, kind: input, shape index: {}]
  %s3 = inlined_call_operand.hbm [shape: f32[1,32], index: 3, kind: input, shape index: {}]
  %s4 = inlined_call_operand.vmem [shape: bf16[2,32,96], index: 4, kind: input, shape index: {}]
  %s5 = inlined_call_operand.hbm [shape: f32[2,1,96], index: 5, kind: input, shape index: {}]
  %s6 = inlined_call_operand.hbm [shape: bf16[2,4,8,32], index: 6, kind: input, shape index: {}]
  %s7 = inlined_call_operand.hbm [shape: f32[2,1,32], index: 7, kind: input, shape index: {}]
  %s8 = inlined_call_operand.hbm [shape: f32[2,1,32], index: 8, kind: input, shape index: {}]
  %s9 = inlined_call_operand.hbm [shape: f32[2,1,32], index: 9, kind: input, shape index: {}]
  %s10 = inlined_call_operand.hbm [shape: bf16[2,32,64], index: 10, kind: input, shape index: {}]
  %s11 = inlined_call_operand.hbm [shape: f32[2,1,64], index: 11, kind: input, shape index: {}]
  %s12 = inlined_call_operand.vmem [shape: bf16[2,64,32], index: 12, kind: input, shape index: {}]
  %s13 = inlined_call_operand.hbm [shape: f32[2,1,32], index: 13, kind: input, shape index: {}]
  %s14 = inlined_call_operand.hbm [shape: f32[2,1,32], index: 14, kind: input, shape index: {}]
  %s15 = inlined_call_operand.hbm [shape: f32[2,1,32], index: 15, kind: input, shape index: {}]
  %s16 = inlined_call_operand.hbm [shape: bf16[32,64], index: 16, kind: input, shape index: {}]
  %s17 = inlined_call_operand.hbm [shape: bf16[16,64], index: 17, kind: input, shape index: {}]
  %s18 = inlined_call_operand.hbm [shape: f32[1,64], index: 18, kind: input, shape index: {}]
  %s19 = inlined_call_operand.vmem [shape: bf16[32,64], index: 19, kind: input, shape index: {}]
  %s20 = inlined_call_operand.vmem [shape: f32[1,64], index: 20, kind: input, shape index: {}]
  %s21 = inlined_call_operand.hbm [shape: f32[8,1,32], index: 21, kind: output, shape index: {}]
  %s22 = sld [smem:[#allocation0]]
  $region177: #{tpu_custom_call.1} parent=0
    _
  %s24 = ssub.s32 1, %s22
  %s25 = scalar_select 0, %s24, %s22
  $region1: #{tpu_custom_call.1} parent=0
    #allocation2 [shape = 'u8[4096]{0}', space=vmem, size = 0x1000, scoped, tag = 'input window, operand 1']
    #allocation3 [shape = 's32[2]{0}', space=sflag, size = 0x8, scoped, tag = 'scoped memory for tpu_custom_call.1']
    #allocation4 [shape = 's32[2]{0}', space=sflag, size = 0x8, scoped, tag = 'scoped memory for tpu_custom_call.1']
    #allocation5 [shape = 'u8[512]{0}', space=vmem, size = 0x400, scoped, tag = 'input window, operand 3, single buffered']
    #allocation6 [shape = 's32[1]{0}', space=sflag, size = 0x4, scoped, tag = 'scoped memory for tpu_custom_call.1']
    #allocation7 [shape = 'u8[1024]{0}', space=vmem, size = 0x400, scoped, tag = 'input window, operand 5, single buffered']
    #allocation8 [shape = 'u8[16384]{0}', space=vmem, size = 0x4000, scoped, tag = 'input window, operand 6, single buffered']
    #allocation9 [shape = 's32[1]{0}', space=sflag, size = 0x4, scoped, tag = 'scoped memory for tpu_custom_call.1']
    #allocation10 [shape = 'u8[1024]{0}', space=vmem, size = 0x400, scoped, tag = 'input window, operand 7, single buffered']
    #allocation11 [shape = 'u8[1024]{0}', space=vmem, size = 0x400, scoped, tag = 'input window, operand 8, single buffered']
    #allocation12 [shape = 's32[1]{0}', space=sflag, size = 0x4, scoped, tag = 'scoped memory for tpu_custom_call.1']
    #allocation13 [shape = 'u8[1024]{0}', space=vmem, size = 0x400, scoped, tag = 'input window, operand 9, single buffered']
    #allocation14 [shape = 'u8[16384]{0}', space=vmem, size = 0x4000, scoped, tag = 'input window, operand 10, single buffered']
    #allocation15 [shape = 's32[1]{0}', space=sflag, size = 0x4, scoped, tag = 'scoped memory for tpu_custom_call.1']
    #allocation16 [shape = 'u8[1024]{0}', space=vmem, size = 0x400, scoped, tag = 'input window, operand 11, single buffered']
    #allocation17 [shape = 'u8[1024]{0}', space=vmem, size = 0x400, scoped, tag = 'input window, operand 13, single buffered']
    #allocation18 [shape = 's32[1]{0}', space=sflag, size = 0x4, scoped, tag = 'scoped memory for tpu_custom_call.1']
    #allocation19 [shape = 'u8[1024]{0}', space=vmem, size = 0x400, scoped, tag = 'input window, operand 14, single buffered']
    #allocation20 [shape = 'u8[1024]{0}', space=vmem, size = 0x400, scoped, tag = 'input window, operand 15, single buffered']
    #allocation21 [shape = 's32[1]{0}', space=sflag, size = 0x4, scoped, tag = 'scoped memory for tpu_custom_call.1']
    #allocation22 [shape = 'u8[8192]{0}', space=vmem, size = 0x2000, scoped, tag = 'input window, operand 16, single buffered']
    #allocation23 [shape = 'u8[4096]{0}', space=vmem, size = 0x1000, scoped, tag = 'input window, operand 17, single buffered']
    #allocation24 [shape = 's32[1]{0}', space=sflag, size = 0x4, scoped, tag = 'scoped memory for tpu_custom_call.1']
    #allocation25 [shape = 'u8[512]{0}', space=vmem, size = 0x400, scoped, tag = 'input window, operand 18, single buffered']
    #allocation26 [shape = 'u8[4096]{0}', space=vmem, size = 0x1000, scoped, tag = 'output window, operand 0']
    %26 = vsyncpa [#allocation3], 0
    %s27 = scalar_lea.sflag [#allocation3], 1
    %28 = vsyncpa %s27, 0
    %29 = vsyncpa [#allocation6], 0
    %30 = vsyncpa [#allocation9], 0
    %31 = vsyncpa [#allocation12], 0
    %32 = vsyncpa [#allocation15], 0
    %33 = vsyncpa [#allocation18], 0
    %34 = vsyncpa [#allocation21], 0
    %35 = vsyncpa [#allocation24], 0
    %36 = vsyncpa [#allocation4], 0
    %s37 = scalar_lea.sflag [#allocation4], 1
    %38 = vsyncpa %s37, 0
    loop: start=0, step=1, limit=4
    $region2: #{tpu_custom_call.1} parent=1 // loop_pre_header
      _
    $region3: #{tpu_custom_call.1} parent=1 // loop_header
      %s40 = sphi 0, %s44
      %p41 = scmp.ge.s32.totalorder %s40, 4
      %s50 = sphi 0, %s52
      %s53 = sphi 0, %s50
      %s54 = sphi 0, %s53
      %s70 = sphi 0, %s54
      %s76 = sphi 0, %s78
      %s79 = sphi 0, %s76
      %s80 = sphi 0, %s79
      %s96 = sphi 0, %s80
      %s100 = sphi 0, %s100
      %s102 = sphi 0, %s100
      %s103 = sphi 0, %s102
      %s117 = sphi 0, %s103
      %s121 = sphi 0, %s121
      %s123 = sphi 0, %s121
      %s124 = sphi 0, %s123
      %s138 = sphi 0, %s124
      %s142 = sphi 0, %s142
      %s144 = sphi 0, %s142
      %s145 = sphi 0, %s144
      %s159 = sphi 0, %s145
      %s163 = sphi 0, %s163
      %s165 = sphi 0, %s163
      %s166 = sphi 0, %s165
      %s180 = sphi 0, %s166
      %s184 = sphi 0, %s184
      %s186 = sphi 0, %s184
      %s187 = sphi 0, %s186
      %s201 = sphi 0, %s187
      %s205 = sphi 0, %s205
      %s207 = sphi 0, %s205
      %s208 = sphi 0, %s207
      %s222 = sphi 0, %s208
      %s226 = sphi 0, %s226
      %s228 = sphi 0, %s226
      %s229 = sphi 0, %s228
      %s243 = sphi 0, %s229
      %s247 = sphi 0, %s247
      %s249 = sphi 0, %s247
      %s250 = sphi 0, %s249
      %s264 = sphi 0, %s250
      %s268 = sphi 0, %s268
      %s270 = sphi 0, %s268
      %s271 = sphi 0, %s270
      %s285 = sphi 0, %s271
      %s289 = sphi 0, %s289
      %s291 = sphi 0, %s289
      %s292 = sphi 0, %s291
      %s306 = sphi 0, %s292
      %s310 = sphi 0, %s310
      %s312 = sphi 0, %s310
      %s313 = sphi 0, %s312
      %s327 = sphi 0, %s313
      %s331 = sphi 0, %s331
      %s333 = sphi 0, %s331
      %s334 = sphi 0, %s333
      %s348 = sphi 0, %s334
      %s352 = sphi 0, %s352
      %s354 = sphi 0, %s352
      %s355 = sphi 0, %s354
      %s369 = sphi 0, %s355
      %s373 = sphi 0, %s373
      %s375 = sphi 0, %s373
      %s376 = sphi 0, %s375
      %s390 = sphi 0, %s376
      %s394 = sphi 0, %s394
      %s396 = sphi 0, %s394
      %s397 = sphi 0, %s396
      %s411 = sphi 0, %s397
      %s415 = sphi 0, %s415
      %s417 = sphi 0, %s415
      %s418 = sphi 0, %s417
      %s432 = sphi 0, %s418
      %s436 = sphi 0, %s436
      %s438 = sphi 0, %s436
      %s439 = sphi 0, %s438
      %s453 = sphi 0, %s439
      %s457 = sphi 0, %s457
      %s459 = sphi 0, %s457
      %s460 = sphi 0, %s459
      %s474 = sphi 0, %s460
      %s478 = sphi 0, %s478
      %s480 = sphi 0, %s478
      %s481 = sphi 0, %s480
      %s495 = sphi 0, %s481
      %s501 = sphi 0, %s503
      %s504 = sphi 0, %s501
      %s505 = sphi 0, %s504
      %s521 = sphi 0, %s505
    $region4: #{tpu_custom_call.1} parent=1 // loop_header_branch
      %43 = sbr.rel (%p41) target = $region8
    $region5: #{tpu_custom_call.1} parent=1 // loop_body
      %s45 = ssub.s32 %s40, 1
      %s46 = ssub.s32 %s40, 2
      %s47 = sadd.s32 %s40, 1
      %s48 = ssub.s32 %s40, %s47
      %p49 = scmp.eq.s32.totalorder %s48, 0
      %s51 = sadd.s32 %s50, 1
      %s52 = scalar_select %p49, %s50, %s51
      %p55 = pneg %p49
      %p56 = scmp.eq.s32.totalorder %s40, 1
      %p57 = por %p55, %p56
      %p58 = scmp.ne.s32.totalorder %s50, %s53
      %p59 = scmp.eq.s32.totalorder %s40, 0
      %p60 = por %p58, %p59
      %p61 = scmp.ne.s32.totalorder %s50, %s53
      %p62 = scmp.eq.s32.totalorder %s45, 1
      %p63 = por %p61, %p62
      %p64 = scmp.ne.s32.totalorder %s53, %s54
      %p65 = scmp.eq.s32.totalorder %s45, 0
      %p66 = por %p64, %p65
      %p67 = scmp.ne.s32.totalorder %s53, %s54
      %p68 = scmp.eq.s32.totalorder %s46, 1
      %p69 = por %p67, %p68
      %p71 = scmp.ne.s32.totalorder %s54, %s70
      %p72 = scmp.eq.s32.totalorder %s46, 0
      %p73 = por %p71, %p72
      %s74 = ssub.s32 %s40, %s47
      %p75 = scmp.eq.s32.totalorder %s74, 0
      %s77 = sadd.s32 %s76, 1
      %s78 = scalar_select %p75, %s76, %s77
      %p81 = pneg %p75
      %p82 = scmp.eq.s32.totalorder %s40, 1
      %p83 = por %p81, %p82
      %p84 = scmp.ne.s32.totalorder %s76, %s79
      %p85 = scmp.eq.s32.totalorder %s40, 0
      %p86 = por %p84, %p85
      %p87 = scmp.ne.s32.totalorder %s76, %s79
      %p88 = scmp.eq.s32.totalorder %s45, 1
      %p89 = por %p87, %p88
      %p90 = scmp.ne.s32.totalorder %s79, %s80
      %p91 = scmp.eq.s32.totalorder %s45, 0
      %p92 = por %p90, %p91
      %p93 = scmp.ne.s32.totalorder %s79, %s80
      %p94 = scmp.eq.s32.totalorder %s46, 1
      %p95 = por %p93, %p94
      %p97 = scmp.ne.s32.totalorder %s80, %s96
      %p98 = scmp.eq.s32.totalorder %s46, 0
      %p99 = por %p97, %p98
      %s101 = sadd.s32 %s100, 1
      %p104 = scmp.eq.s32.totalorder %s40, 1
      %p105 = scmp.ne.s32.totalorder %s100, %s102
      %p106 = scmp.eq.s32.totalorder %s40, 0
      %p107 = por %p105, %p106
      %p108 = scmp.ne.s32.totalorder %s100, %s102
      %p109 = scmp.eq.s32.totalorder %s45, 1
      %p110 = por %p108, %p109
      %p111 = scmp.ne.s32.totalorder %s102, %s103
      %p112 = scmp.eq.s32.totalorder %s45, 0
      %p113 = por %p111, %p112
      %p114 = scmp.ne.s32.totalorder %s102, %s103
      %p115 = scmp.eq.s32.totalorder %s46, 1
      %p116 = por %p114, %p115
      %p118 = scmp.ne.s32.totalorder %s103, %s117
      %p119 = scmp.eq.s32.totalorder %s46, 0
      %p120 = por %p118, %p119
      %s122 = sadd.s32 %s121, 1
      %p125 = scmp.eq.s32.totalorder %s40, 1
      %p126 = scmp.ne.s32.totalorder %s121, %s123
      %p127 = scmp.eq.s32.totalorder %s40, 0
      %p128 = por %p126, %p127
      %p129 = scmp.ne.s32.totalorder %s121, %s123
      %p130 = scmp.eq.s32.totalorder %s45, 1
      %p131 = por %p129, %p130
      %p132 = scmp.ne.s32.totalorder %s123, %s124
      %p133 = scmp.eq.s32.totalorder %s45, 0
      %p134 = por %p132, %p133
      %p135 = scmp.ne.s32.totalorder %s123, %s124
      %p136 = scmp.eq.s32.totalorder %s46, 1
      %p137 = por %p135, %p136
      %p139 = scmp.ne.s32.totalorder %s124, %s138
      %p140 = scmp.eq.s32.totalorder %s46, 0
      %p141 = por %p139, %p140
      %s143 = sadd.s32 %s142, 1
      %p146 = scmp.eq.s32.totalorder %s40, 1
      %p147 = scmp.ne.s32.totalorder %s142, %s144
      %p148 = scmp.eq.s32.totalorder %s40, 0
      %p149 = por %p147, %p148
      %p150 = scmp.ne.s32.totalorder %s142, %s144
      %p151 = scmp.eq.s32.totalorder %s45, 1
      %p152 = por %p150, %p151
      %p153 = scmp.ne.s32.totalorder %s144, %s145
      %p154 = scmp.eq.s32.totalorder %s45, 0
      %p155 = por %p153, %p154
      %p156 = scmp.ne.s32.totalorder %s144, %s145
      %p157 = scmp.eq.s32.totalorder %s46, 1
      %p158 = por %p156, %p157
      %p160 = scmp.ne.s32.totalorder %s145, %s159
      %p161 = scmp.eq.s32.totalorder %s46, 0
      %p162 = por %p160, %p161
      %s164 = sadd.s32 %s163, 1
      %p167 = scmp.eq.s32.totalorder %s40, 1
      %p168 = scmp.ne.s32.totalorder %s163, %s165
      %p169 = scmp.eq.s32.totalorder %s40, 0
      %p170 = por %p168, %p169
      %p171 = scmp.ne.s32.totalorder %s163, %s165
      %p172 = scmp.eq.s32.totalorder %s45, 1
      %p173 = por %p171, %p172
      %p174 = scmp.ne.s32.totalorder %s165, %s166
      %p175 = scmp.eq.s32.totalorder %s45, 0
      %p176 = por %p174, %p175
      %p177 = scmp.ne.s32.totalorder %s165, %s166
      %p178 = scmp.eq.s32.totalorder %s46, 1
      %p179 = por %p177, %p178
      %p181 = scmp.ne.s32.totalorder %s166, %s180
      %p182 = scmp.eq.s32.totalorder %s46, 0
      %p183 = por %p181, %p182
      %s185 = sadd.s32 %s184, 1
      %p188 = scmp.eq.s32.totalorder %s40, 1
      %p189 = scmp.ne.s32.totalorder %s184, %s186
      %p190 = scmp.eq.s32.totalorder %s40, 0
      %p191 = por %p189, %p190
      %p192 = scmp.ne.s32.totalorder %s184, %s186
      %p193 = scmp.eq.s32.totalorder %s45, 1
      %p194 = por %p192, %p193
      %p195 = scmp.ne.s32.totalorder %s186, %s187
      %p196 = scmp.eq.s32.totalorder %s45, 0
      %p197 = por %p195, %p196
      %p198 = scmp.ne.s32.totalorder %s186, %s187
      %p199 = scmp.eq.s32.totalorder %s46, 1
      %p200 = por %p198, %p199
      %p202 = scmp.ne.s32.totalorder %s187, %s201
      %p203 = scmp.eq.s32.totalorder %s46, 0
      %p204 = por %p202, %p203
      %s206 = sadd.s32 %s205, 1
      %p209 = scmp.eq.s32.totalorder %s40, 1
      %p210 = scmp.ne.s32.totalorder %s205, %s207
      %p211 = scmp.eq.s32.totalorder %s40, 0
      %p212 = por %p210, %p211
      %p213 = scmp.ne.s32.totalorder %s205, %s207
      %p214 = scmp.eq.s32.totalorder %s45, 1
      %p215 = por %p213, %p214
      %p216 = scmp.ne.s32.totalorder %s207, %s208
      %p217 = scmp.eq.s32.totalorder %s45, 0
      %p218 = por %p216, %p217
      %p219 = scmp.ne.s32.totalorder %s207, %s208
      %p220 = scmp.eq.s32.totalorder %s46, 1
      %p221 = por %p219, %p220
      %p223 = scmp.ne.s32.totalorder %s208, %s222
      %p224 = scmp.eq.s32.totalorder %s46, 0
      %p225 = por %p223, %p224
      %s227 = sadd.s32 %s226, 1
      %p230 = scmp.eq.s32.totalorder %s40, 1
      %p231 = scmp.ne.s32.totalorder %s226, %s228
      %p232 = scmp.eq.s32.totalorder %s40, 0
      %p233 = por %p231, %p232
      %p234 = scmp.ne.s32.totalorder %s226, %s228
      %p235 = scmp.eq.s32.totalorder %s45, 1
      %p236 = por %p234, %p235
      %p237 = scmp.ne.s32.totalorder %s228, %s229
      %p238 = scmp.eq.s32.totalorder %s45, 0
      %p239 = por %p237, %p238
      %p240 = scmp.ne.s32.totalorder %s228, %s229
      %p241 = scmp.eq.s32.totalorder %s46, 1
      %p242 = por %p240, %p241
      %p244 = scmp.ne.s32.totalorder %s229, %s243
      %p245 = scmp.eq.s32.totalorder %s46, 0
      %p246 = por %p244, %p245
      %s248 = sadd.s32 %s247, 1
      %p251 = scmp.eq.s32.totalorder %s40, 1
      %p252 = scmp.ne.s32.totalorder %s247, %s249
      %p253 = scmp.eq.s32.totalorder %s40, 0
      %p254 = por %p252, %p253
      %p255 = scmp.ne.s32.totalorder %s247, %s249
      %p256 = scmp.eq.s32.totalorder %s45, 1
      %p257 = por %p255, %p256
      %p258 = scmp.ne.s32.totalorder %s249, %s250
      %p259 = scmp.eq.s32.totalorder %s45, 0
      %p260 = por %p258, %p259
      %p261 = scmp.ne.s32.totalorder %s249, %s250
      %p262 = scmp.eq.s32.totalorder %s46, 1
      %p263 = por %p261, %p262
      %p265 = scmp.ne.s32.totalorder %s250, %s264
      %p266 = scmp.eq.s32.totalorder %s46, 0
      %p267 = por %p265, %p266
      %s269 = sadd.s32 %s268, 1
      %p272 = scmp.eq.s32.totalorder %s40, 1
      %p273 = scmp.ne.s32.totalorder %s268, %s270
      %p274 = scmp.eq.s32.totalorder %s40, 0
      %p275 = por %p273, %p274
      %p276 = scmp.ne.s32.totalorder %s268, %s270
      %p277 = scmp.eq.s32.totalorder %s45, 1
      %p278 = por %p276, %p277
      %p279 = scmp.ne.s32.totalorder %s270, %s271
      %p280 = scmp.eq.s32.totalorder %s45, 0
      %p281 = por %p279, %p280
      %p282 = scmp.ne.s32.totalorder %s270, %s271
      %p283 = scmp.eq.s32.totalorder %s46, 1
      %p284 = por %p282, %p283
      %p286 = scmp.ne.s32.totalorder %s271, %s285
      %p287 = scmp.eq.s32.totalorder %s46, 0
      %p288 = por %p286, %p287
      %s290 = sadd.s32 %s289, 1
      %p293 = scmp.eq.s32.totalorder %s40, 1
      %p294 = scmp.ne.s32.totalorder %s289, %s291
      %p295 = scmp.eq.s32.totalorder %s40, 0
      %p296 = por %p294, %p295
      %p297 = scmp.ne.s32.totalorder %s289, %s291
      %p298 = scmp.eq.s32.totalorder %s45, 1
      %p299 = por %p297, %p298
      %p300 = scmp.ne.s32.totalorder %s291, %s292
      %p301 = scmp.eq.s32.totalorder %s45, 0
      %p302 = por %p300, %p301
      %p303 = scmp.ne.s32.totalorder %s291, %s292
      %p304 = scmp.eq.s32.totalorder %s46, 1
      %p305 = por %p303, %p304
      %p307 = scmp.ne.s32.totalorder %s292, %s306
      %p308 = scmp.eq.s32.totalorder %s46, 0
      %p309 = por %p307, %p308
      %s311 = sadd.s32 %s310, 1
      %p314 = scmp.eq.s32.totalorder %s40, 1
      %p315 = scmp.ne.s32.totalorder %s310, %s312
      %p316 = scmp.eq.s32.totalorder %s40, 0
      %p317 = por %p315, %p316
      %p318 = scmp.ne.s32.totalorder %s310, %s312
      %p319 = scmp.eq.s32.totalorder %s45, 1
      %p320 = por %p318, %p319
      %p321 = scmp.ne.s32.totalorder %s312, %s313
      %p322 = scmp.eq.s32.totalorder %s45, 0
      %p323 = por %p321, %p322
      %p324 = scmp.ne.s32.totalorder %s312, %s313
      %p325 = scmp.eq.s32.totalorder %s46, 1
      %p326 = por %p324, %p325
      %p328 = scmp.ne.s32.totalorder %s313, %s327
      %p329 = scmp.eq.s32.totalorder %s46, 0
      %p330 = por %p328, %p329
      %s332 = sadd.s32 %s331, 1
      %p335 = scmp.eq.s32.totalorder %s40, 1
      %p336 = scmp.ne.s32.totalorder %s331, %s333
      %p337 = scmp.eq.s32.totalorder %s40, 0
      %p338 = por %p336, %p337
      %p339 = scmp.ne.s32.totalorder %s331, %s333
      %p340 = scmp.eq.s32.totalorder %s45, 1
      %p341 = por %p339, %p340
      %p342 = scmp.ne.s32.totalorder %s333, %s334
      %p343 = scmp.eq.s32.totalorder %s45, 0
      %p344 = por %p342, %p343
      %p345 = scmp.ne.s32.totalorder %s333, %s334
      %p346 = scmp.eq.s32.totalorder %s46, 1
      %p347 = por %p345, %p346
      %p349 = scmp.ne.s32.totalorder %s334, %s348
      %p350 = scmp.eq.s32.totalorder %s46, 0
      %p351 = por %p349, %p350
      %s353 = sadd.s32 %s352, 1
      %p356 = scmp.eq.s32.totalorder %s40, 1
      %p357 = scmp.ne.s32.totalorder %s352, %s354
      %p358 = scmp.eq.s32.totalorder %s40, 0
      %p359 = por %p357, %p358
      %p360 = scmp.ne.s32.totalorder %s352, %s354
      %p361 = scmp.eq.s32.totalorder %s45, 1
      %p362 = por %p360, %p361
      %p363 = scmp.ne.s32.totalorder %s354, %s355
      %p364 = scmp.eq.s32.totalorder %s45, 0
      %p365 = por %p363, %p364
      %p366 = scmp.ne.s32.totalorder %s354, %s355
      %p367 = scmp.eq.s32.totalorder %s46, 1
      %p368 = por %p366, %p367
      %p370 = scmp.ne.s32.totalorder %s355, %s369
      %p371 = scmp.eq.s32.totalorder %s46, 0
      %p372 = por %p370, %p371
      %s374 = sadd.s32 %s373, 1
      %p377 = scmp.eq.s32.totalorder %s40, 1
      %p378 = scmp.ne.s32.totalorder %s373, %s375
      %p379 = scmp.eq.s32.totalorder %s40, 0
      %p380 = por %p378, %p379
      %p381 = scmp.ne.s32.totalorder %s373, %s375
      %p382 = scmp.eq.s32.totalorder %s45, 1
      %p383 = por %p381, %p382
      %p384 = scmp.ne.s32.totalorder %s375, %s376
      %p385 = scmp.eq.s32.totalorder %s45, 0
      %p386 = por %p384, %p385
      %p387 = scmp.ne.s32.totalorder %s375, %s376
      %p388 = scmp.eq.s32.totalorder %s46, 1
      %p389 = por %p387, %p388
      %p391 = scmp.ne.s32.totalorder %s376, %s390
      %p392 = scmp.eq.s32.totalorder %s46, 0
      %p393 = por %p391, %p392
      %s395 = sadd.s32 %s394, 1
      %p398 = scmp.eq.s32.totalorder %s40, 1
      %p399 = scmp.ne.s32.totalorder %s394, %s396
      %p400 = scmp.eq.s32.totalorder %s40, 0
      %p401 = por %p399, %p400
      %p402 = scmp.ne.s32.totalorder %s394, %s396
      %p403 = scmp.eq.s32.totalorder %s45, 1
      %p404 = por %p402, %p403
      %p405 = scmp.ne.s32.totalorder %s396, %s397
      %p406 = scmp.eq.s32.totalorder %s45, 0
      %p407 = por %p405, %p406
      %p408 = scmp.ne.s32.totalorder %s396, %s397
      %p409 = scmp.eq.s32.totalorder %s46, 1
      %p410 = por %p408, %p409
      %p412 = scmp.ne.s32.totalorder %s397, %s411
      %p413 = scmp.eq.s32.totalorder %s46, 0
      %p414 = por %p412, %p413
      %s416 = sadd.s32 %s415, 1
      %p419 = scmp.eq.s32.totalorder %s40, 1
      %p420 = scmp.ne.s32.totalorder %s415, %s417
      %p421 = scmp.eq.s32.totalorder %s40, 0
      %p422 = por %p420, %p421
      %p423 = scmp.ne.s32.totalorder %s415, %s417
      %p424 = scmp.eq.s32.totalorder %s45, 1
      %p425 = por %p423, %p424
      %p426 = scmp.ne.s32.totalorder %s417, %s418
      %p427 = scmp.eq.s32.totalorder %s45, 0
      %p428 = por %p426, %p427
      %p429 = scmp.ne.s32.totalorder %s417, %s418
      %p430 = scmp.eq.s32.totalorder %s46, 1
      %p431 = por %p429, %p430
      %p433 = scmp.ne.s32.totalorder %s418, %s432
      %p434 = scmp.eq.s32.totalorder %s46, 0
      %p435 = por %p433, %p434
      %s437 = sadd.s32 %s436, 1
      %p440 = scmp.eq.s32.totalorder %s40, 1
      %p441 = scmp.ne.s32.totalorder %s436, %s438
      %p442 = scmp.eq.s32.totalorder %s40, 0
      %p443 = por %p441, %p442
      %p444 = scmp.ne.s32.totalorder %s436, %s438
      %p445 = scmp.eq.s32.totalorder %s45, 1
      %p446 = por %p444, %p445
      %p447 = scmp.ne.s32.totalorder %s438, %s439
      %p448 = scmp.eq.s32.totalorder %s45, 0
      %p449 = por %p447, %p448
      %p450 = scmp.ne.s32.totalorder %s438, %s439
      %p451 = scmp.eq.s32.totalorder %s46, 1
      %p452 = por %p450, %p451
      %p454 = scmp.ne.s32.totalorder %s439, %s453
      %p455 = scmp.eq.s32.totalorder %s46, 0
      %p456 = por %p454, %p455
      %s458 = sadd.s32 %s457, 1
      %p461 = scmp.eq.s32.totalorder %s40, 1
      %p462 = scmp.ne.s32.totalorder %s457, %s459
      %p463 = scmp.eq.s32.totalorder %s40, 0
      %p464 = por %p462, %p463
      %p465 = scmp.ne.s32.totalorder %s457, %s459
      %p466 = scmp.eq.s32.totalorder %s45, 1
      %p467 = por %p465, %p466
      %p468 = scmp.ne.s32.totalorder %s459, %s460
      %p469 = scmp.eq.s32.totalorder %s45, 0
      %p470 = por %p468, %p469
      %p471 = scmp.ne.s32.totalorder %s459, %s460
      %p472 = scmp.eq.s32.totalorder %s46, 1
      %p473 = por %p471, %p472
      %p475 = scmp.ne.s32.totalorder %s460, %s474
      %p476 = scmp.eq.s32.totalorder %s46, 0
      %p477 = por %p475, %p476
      %s479 = sadd.s32 %s478, 1
      %p482 = scmp.eq.s32.totalorder %s40, 1
      %p483 = scmp.ne.s32.totalorder %s478, %s480
      %p484 = scmp.eq.s32.totalorder %s40, 0
      %p485 = por %p483, %p484
      %p486 = scmp.ne.s32.totalorder %s478, %s480
      %p487 = scmp.eq.s32.totalorder %s45, 1
      %p488 = por %p486, %p487
      %p489 = scmp.ne.s32.totalorder %s480, %s481
      %p490 = scmp.eq.s32.totalorder %s45, 0
      %p491 = por %p489, %p490
      %p492 = scmp.ne.s32.totalorder %s480, %s481
      %p493 = scmp.eq.s32.totalorder %s46, 1
      %p494 = por %p492, %p493
      %p496 = scmp.ne.s32.totalorder %s481, %s495
      %p497 = scmp.eq.s32.totalorder %s46, 0
      %p498 = por %p496, %p497
      %s499 = ssub.s32 %s40, %s47
      %p500 = scmp.eq.s32.totalorder %s499, 0
      %s502 = sadd.s32 %s501, 1
      %s503 = scalar_select %p500, %s501, %s502
      %p506 = pneg %p500
      %p507 = scmp.eq.s32.totalorder %s40, 1
      %p508 = por %p506, %p507
      %p509 = scmp.ne.s32.totalorder %s501, %s504
      %p510 = scmp.eq.s32.totalorder %s40, 0
      %p511 = por %p509, %p510
      %p512 = scmp.ne.s32.totalorder %s501, %s504
      %p513 = scmp.eq.s32.totalorder %s45, 1
      %p514 = por %p512, %p513
      %p515 = scmp.ne.s32.totalorder %s504, %s505
      %p516 = scmp.eq.s32.totalorder %s45, 0
      %p517 = por %p515, %p516
      %p518 = scmp.ne.s32.totalorder %s504, %s505
      %p519 = scmp.eq.s32.totalorder %s46, 1
      %p520 = por %p518, %p519
      %p522 = scmp.ne.s32.totalorder %s505, %s521
      %p523 = scmp.eq.s32.totalorder %s46, 0
      %p524 = por %p522, %p523
      %p525 = scmp.le.s32.totalorder 1, %s40
      %p526 = scmp.lt.s32.totalorder %s40, 3
      %p527 = pnand %p525, %p526
      %p528 = pneg %p527
      // Predicated region
      $region9: #{tpu_custom_call.1} parent=5 // pred_check
        _
      $region10: #{tpu_custom_call.1} parent=5 // pred_check_branch
        %530 = sbr.rel (%p527) target = $region12
      $region11: #{tpu_custom_call.1} parent=5 // pred_region
        %s531 = ssub.s32 %s40, 1
        // Predicated region
        $region13: #{tpu_custom_call.1} parent=11 // pred_check
          %p532 = pneg %p113
        $region14: #{tpu_custom_call.1} parent=11 // pred_check_branch
          %534 = sbr.rel (%p532) target = $region16
        $region15: #{tpu_custom_call.1} parent=11 // pred_region
          _
        $region16: #{tpu_custom_call.1} parent=11 // pred_fallthru
          _
        // Predicated region
        $region17: #{tpu_custom_call.1} parent=11 // pred_check
          %p535 = pneg %p134
        $region18: #{tpu_custom_call.1} parent=11 // pred_check_branch
          %537 = sbr.rel (%p535) target = $region20
        $region19: #{tpu_custom_call.1} parent=11 // pred_region
          %539 = vsyncadd [#allocation6], 0
          %s541 = sshll.u32 %s3, 4
          %s542 = int_to_ptr.hbm [resolvable:$true] %s541
          %s543 = sshll.u32 [#allocation5], 4
          %s544 = int_to_ptr.vmem [resolvable:$true] %s543
          %546 = dma.hbm_to_vmem [thread:$0]  %s542, 16, %s544, [#allocation6]
        $region20: #{tpu_custom_call.1} parent=11 // pred_fallthru
          _
        // Predicated region
        $region21: #{tpu_custom_call.1} parent=11 // pred_check
          %p547 = pneg %p155
        $region22: #{tpu_custom_call.1} parent=11 // pred_check_branch
          %549 = sbr.rel (%p547) target = $region24
        $region23: #{tpu_custom_call.1} parent=11 // pred_region
          _
        $region24: #{tpu_custom_call.1} parent=11 // pred_fallthru
          _
        // Predicated region
        $region25: #{tpu_custom_call.1} parent=11 // pred_check
          %p550 = pneg %p176
        $region26: #{tpu_custom_call.1} parent=11 // pred_check_branch
          %552 = sbr.rel (%p550) target = $region28
        $region27: #{tpu_custom_call.1} parent=11 // pred_region
          %554 = vsyncadd [#allocation6], 0
          %s555 = sshll.u32 %s5, 4
          %s556 = int_to_ptr.hbm [resolvable:$true] %s555
          %s557 = sshll.u32 [#allocation7], 4
          %s558 = int_to_ptr.vmem [resolvable:$true] %s557
          %563 = dma.hbm_to_vmem [thread:$0]  %s556, 32, %s558, [#allocation6], 16, 16, 1
        $region28: #{tpu_custom_call.1} parent=11 // pred_fallthru
          _
        // Predicated region
        $region29: #{tpu_custom_call.1} parent=11 // pred_check
          %p564 = pneg %p197
        $region30: #{tpu_custom_call.1} parent=11 // pred_check_branch
          %566 = sbr.rel (%p564) target = $region32
        $region31: #{tpu_custom_call.1} parent=11 // pred_region
          %568 = vsyncadd [#allocation9], 0
          %s569 = sshll.u32 %s6, 4
          %s570 = int_to_ptr.hbm [resolvable:$true] %s569
          %s571 = sshll.u32 [#allocation8], 4
          %s572 = int_to_ptr.vmem [resolvable:$true] %s571
          %577 = dma.hbm_to_vmem [thread:$0]  %s570, 512, %s572, [#allocation9], 64, 64, 4
        $region32: #{tpu_custom_call.1} parent=11 // pred_fallthru
          _
        // Predicated region
        $region33: #{tpu_custom_call.1} parent=11 // pred_check
          %p578 = pneg %p218
        $region34: #{tpu_custom_call.1} parent=11 // pred_check_branch
          %580 = sbr.rel (%p578) target = $region36
        $region35: #{tpu_custom_call.1} parent=11 // pred_region
          %582 = vsyncadd [#allocation9], 0
          %s583 = sshll.u32 %s7, 4
          %s584 = int_to_ptr.hbm [resolvable:$true] %s583
          %s585 = sshll.u32 [#allocation10], 4
          %s586 = int_to_ptr.vmem [resolvable:$true] %s585
          %591 = dma.hbm_to_vmem [thread:$0]  %s584, 32, %s586, [#allocation9], 16, 16, 1
        $region36: #{tpu_custom_call.1} parent=11 // pred_fallthru
          _
        // Predicated region
        $region37: #{tpu_custom_call.1} parent=11 // pred_check
          %p592 = pneg %p239
        $region38: #{tpu_custom_call.1} parent=11 // pred_check_branch
          %594 = sbr.rel (%p592) target = $region40
        $region39: #{tpu_custom_call.1} parent=11 // pred_region
          %596 = vsyncadd [#allocation12], 0
          %s597 = sshll.u32 %s8, 4
          %s598 = int_to_ptr.hbm [resolvable:$true] %s597
          %s599 = sshll.u32 [#allocation11], 4
          %s600 = int_to_ptr.vmem [resolvable:$true] %s599
          %605 = dma.hbm_to_vmem [thread:$0]  %s598, 32, %s600, [#allocation12], 16, 16, 1
        $region40: #{tpu_custom_call.1} parent=11 // pred_fallthru
          _
        // Predicated region
        $region41: #{tpu_custom_call.1} parent=11 // pred_check
          %p606 = pneg %p260
        $region42: #{tpu_custom_call.1} parent=11 // pred_check_branch
          %608 = sbr.rel (%p606) target = $region44
        $region43: #{tpu_custom_call.1} parent=11 // pred_region
          %610 = vsyncadd [#allocation12], 0
          %s611 = sshll.u32 %s9, 4
          %s612 = int_to_ptr.hbm [resolvable:$true] %s611
          %s613 = sshll.u32 [#allocation13], 4
          %s614 = int_to_ptr.vmem [resolvable:$true] %s613
          %619 = dma.hbm_to_vmem [thread:$0]  %s612, 32, %s614, [#allocation12], 16, 16, 1
        $region44: #{tpu_custom_call.1} parent=11 // pred_fallthru
          _
        // Predicated region
        $region45: #{tpu_custom_call.1} parent=11 // pred_check
          %p620 = pneg %p281
        $region46: #{tpu_custom_call.1} parent=11 // pred_check_branch
          %622 = sbr.rel (%p620) target = $region48
        $region47: #{tpu_custom_call.1} parent=11 // pred_region
          %624 = vsyncadd [#allocation15], 0
          %s625 = sshll.u32 %s10, 4
          %s626 = int_to_ptr.hbm [resolvable:$true] %s625
          %s627 = sshll.u32 [#allocation14], 4
          %s628 = int_to_ptr.vmem [resolvable:$true] %s627
          %633 = dma.hbm_to_vmem [thread:$0]  %s626, 512, %s628, [#allocation15], 64, 64, 4
        $region48: #{tpu_custom_call.1} parent=11 // pred_fallthru
          _
        // Predicated region
        $region49: #{tpu_custom_call.1} parent=11 // pred_check
          %p634 = pneg %p302
        $region50: #{tpu_custom_call.1} parent=11 // pred_check_branch
          %636 = sbr.rel (%p634) target = $region52
        $region51: #{tpu_custom_call.1} parent=11 // pred_region
          %638 = vsyncadd [#allocation15], 0
          %s639 = sshll.u32 %s11, 4
          %s640 = int_to_ptr.hbm [resolvable:$true] %s639
          %s641 = sshll.u32 [#allocation16], 4
          %s642 = int_to_ptr.vmem [resolvable:$true] %s641
          %647 = dma.hbm_to_vmem [thread:$0]  %s640, 32, %s642, [#allocation15], 16, 16, 1
        $region52: #{tpu_custom_call.1} parent=11 // pred_fallthru
          _
        // Predicated region
        $region53: #{tpu_custom_call.1} parent=11 // pred_check
          %p648 = pneg %p323
        $region54: #{tpu_custom_call.1} parent=11 // pred_check_branch
          %650 = sbr.rel (%p648) target = $region56
        $region55: #{tpu_custom_call.1} parent=11 // pred_region
          _
        $region56: #{tpu_custom_call.1} parent=11 // pred_fallthru
          _
        // Predicated region
        $region57: #{tpu_custom_call.1} parent=11 // pred_check
          %p651 = pneg %p344
        $region58: #{tpu_custom_call.1} parent=11 // pred_check_branch
          %653 = sbr.rel (%p651) target = $region60
        $region59: #{tpu_custom_call.1} parent=11 // pred_region
          %655 = vsyncadd [#allocation18], 0
          %s656 = sshll.u32 %s13, 4
          %s657 = int_to_ptr.hbm [resolvable:$true] %s656
          %s658 = sshll.u32 [#allocation17], 4
          %s659 = int_to_ptr.vmem [resolvable:$true] %s658
          %664 = dma.hbm_to_vmem [thread:$0]  %s657, 32, %s659, [#allocation18], 16, 16, 1
        $region60: #{tpu_custom_call.1} parent=11 // pred_fallthru
          _
        // Predicated region
        $region61: #{tpu_custom_call.1} parent=11 // pred_check
          %p665 = pneg %p365
        $region62: #{tpu_custom_call.1} parent=11 // pred_check_branch
          %667 = sbr.rel (%p665) target = $region64
        $region63: #{tpu_custom_call.1} parent=11 // pred_region
          %669 = vsyncadd [#allocation18], 0
          %s670 = sshll.u32 %s14, 4
          %s671 = int_to_ptr.hbm [resolvable:$true] %s670
          %s672 = sshll.u32 [#allocation19], 4
          %s673 = int_to_ptr.vmem [resolvable:$true] %s672
          %678 = dma.hbm_to_vmem [thread:$0]  %s671, 32, %s673, [#allocation18], 16, 16, 1
        $region64: #{tpu_custom_call.1} parent=11 // pred_fallthru
          _
        // Predicated region
        $region65: #{tpu_custom_call.1} parent=11 // pred_check
          %p679 = pneg %p386
        $region66: #{tpu_custom_call.1} parent=11 // pred_check_branch
          %681 = sbr.rel (%p679) target = $region68
        $region67: #{tpu_custom_call.1} parent=11 // pred_region
          %683 = vsyncadd [#allocation21], 0
          %s684 = sshll.u32 %s15, 4
          %s685 = int_to_ptr.hbm [resolvable:$true] %s684
          %s686 = sshll.u32 [#allocation20], 4
          %s687 = int_to_ptr.vmem [resolvable:$true] %s686
          %692 = dma.hbm_to_vmem [thread:$0]  %s685, 32, %s687, [#allocation21], 16, 16, 1
        $region68: #{tpu_custom_call.1} parent=11 // pred_fallthru
          _
        // Predicated region
        $region69: #{tpu_custom_call.1} parent=11 // pred_check
          %p693 = pneg %p407
        $region70: #{tpu_custom_call.1} parent=11 // pred_check_branch
          %695 = sbr.rel (%p693) target = $region72
        $region71: #{tpu_custom_call.1} parent=11 // pred_region
          %697 = vsyncadd [#allocation21], 0
          %s698 = sshll.u32 %s16, 4
          %s699 = int_to_ptr.hbm [resolvable:$true] %s698
          %s700 = sshll.u32 [#allocation22], 4
          %s701 = int_to_ptr.vmem [resolvable:$true] %s700
          %706 = dma.hbm_to_vmem [thread:$0]  %s699, 256, %s701, [#allocation21], 64, 64, 4
        $region72: #{tpu_custom_call.1} parent=11 // pred_fallthru
          _
        // Predicated region
        $region73: #{tpu_custom_call.1} parent=11 // pred_check
          %p707 = pneg %p428
        $region74: #{tpu_custom_call.1} parent=11 // pred_check_branch
          %709 = sbr.rel (%p707) target = $region76
        $region75: #{tpu_custom_call.1} parent=11 // pred_region
          %711 = vsyncadd [#allocation24], 0
          %s712 = sshll.u32 %s17, 4
          %s713 = int_to_ptr.hbm [resolvable:$true] %s712
          %s714 = sshll.u32 [#allocation23], 4
          %s715 = int_to_ptr.vmem [resolvable:$true] %s714
          %720 = dma.hbm_to_vmem [thread:$0]  %s713, 128, %s715, [#allocation24], 64, 64, 4
        $region76: #{tpu_custom_call.1} parent=11 // pred_fallthru
          _
        // Predicated region
        $region77: #{tpu_custom_call.1} parent=11 // pred_check
          %p721 = pneg %p449
        $region78: #{tpu_custom_call.1} parent=11 // pred_check_branch
          %723 = sbr.rel (%p721) target = $region80
        $region79: #{tpu_custom_call.1} parent=11 // pred_region
          %725 = vsyncadd [#allocation24], 0
          %s727 = sshll.u32 %s18, 4
          %s728 = int_to_ptr.hbm [resolvable:$true] %s727
          %s729 = sshll.u32 [#allocation25], 4
          %s730 = int_to_ptr.vmem [resolvable:$true] %s729
          %732 = dma.hbm_to_vmem [thread:$0]  %s728, 16, %s730, [#allocation24]
        $region80: #{tpu_custom_call.1} parent=11 // pred_fallthru
          _
        // Predicated region
        $region81: #{tpu_custom_call.1} parent=11 // pred_check
          %p733 = pneg %p470
        $region82: #{tpu_custom_call.1} parent=11 // pred_check_branch
          %735 = sbr.rel (%p733) target = $region84
        $region83: #{tpu_custom_call.1} parent=11 // pred_region
          _
        $region84: #{tpu_custom_call.1} parent=11 // pred_fallthru
          _
        // Predicated region
        $region85: #{tpu_custom_call.1} parent=11 // pred_check
          %p736 = pneg %p491
        $region86: #{tpu_custom_call.1} parent=11 // pred_check_branch
          %738 = sbr.rel (%p736) target = $region88
        $region87: #{tpu_custom_call.1} parent=11 // pred_region
          _
        $region88: #{tpu_custom_call.1} parent=11 // pred_fallthru
          _
      $region12: #{tpu_custom_call.1} parent=5 // pred_fallthru
        _
      %p739 = scmp.lt.s32.totalorder %s40, 2
      // Predicated region
      $region89: #{tpu_custom_call.1} parent=5 // pred_check
        %p740 = pneg %p739
      $region90: #{tpu_custom_call.1} parent=5 // pred_check_branch
        %742 = sbr.rel (%p740) target = $region92
      $region91: #{tpu_custom_call.1} parent=5 // pred_region
        // Predicated region
        $region93: #{tpu_custom_call.1} parent=91 // pred_check
          %p743 = pneg %p60
        $region94: #{tpu_custom_call.1} parent=91 // pred_check_branch
          %745 = sbr.rel (%p743) target = $region96
        $region95: #{tpu_custom_call.1} parent=91 // pred_region
          %s746 = smul.u32 4, %s40
          %p747 = scmp.lt.s32.totalorder %s746, 7
          %s748 = scalar_select %p747, %s746, 7
          %s749 = smul.addr %s748, 8
          %s750 = scalar_lea.vmem %s0, %s749
          %s751 = smul.u32 4, %s40
        $region96: #{tpu_custom_call.1} parent=91 // pred_fallthru
          _
        // Predicated region
        $region97: #{tpu_custom_call.1} parent=91 // pred_check
          %p752 = pneg %p86
        $region98: #{tpu_custom_call.1} parent=91 // pred_check_branch
          %754 = sbr.rel (%p752) target = $region100
        $region99: #{tpu_custom_call.1} parent=91 // pred_region
          %s755 = sand.u32 %s76, 1
          %s756 = scalar_lea.sflag [#allocation3], %s755
          %s757 = sand.u32 %s76, 1
          %s758 = smul.addr %s757, 4
          %s759 = scalar_lea.vmem [#allocation2], %s758
          %s760 = smul.u32 4, %s40
          %762 = vsyncadd %s756, 0
          %s763 = scalar_lea.hbm %s1, %s760
          %s764 = sshll.u32 %s763, 4
          %s765 = int_to_ptr.hbm [resolvable:$true] %s764
          %s766 = sshll.u32 %s759, 4
          %s767 = int_to_ptr.vmem [resolvable:$true] %s766
          %772 = dma.hbm_to_vmem [thread:$0]  %s765, 64, %s767, %s756, 16, 16, 1
        $region100: #{tpu_custom_call.1} parent=91 // pred_fallthru
          _
      $region92: #{tpu_custom_call.1} parent=5 // pred_fallthru
        _
      %p773 = scmp.le.s32.totalorder 1, %s40
      %p774 = scmp.lt.s32.totalorder %s40, 3
      %p775 = pnand %p773, %p774
      %p776 = pneg %p775
      // Predicated region
      $region101: #{tpu_custom_call.1} parent=5 // pred_check
        _
      $region102: #{tpu_custom_call.1} parent=5 // pred_check_branch
        %778 = sbr.rel (%p775) target = $region104
      $region103: #{tpu_custom_call.1} parent=5 // pred_region
        %s779 = ssub.s32 %s40, 1
        %s780 = sand.u32 %s79, 1
        %s781 = scalar_lea.sflag [#allocation3], %s780
        %s782 = sand.u32 %s79, 1
        %s783 = smul.addr %s782, 4
        %s784 = scalar_lea.vmem [#allocation2], %s783
        // Predicated region
        $region105: #{tpu_custom_call.1} parent=103 // pred_check
          %p785 = pneg %p92
        $region106: #{tpu_custom_call.1} parent=103 // pred_check_branch
          %787 = sbr.rel (%p785) target = $region108
        $region107: #{tpu_custom_call.1} parent=103 // pred_region
          %789 = dma.done %s781, 64
        $region108: #{tpu_custom_call.1} parent=103 // pred_fallthru
          _
        // Predicated region
        $region109: #{tpu_custom_call.1} parent=103 // pred_check
          %p790 = pneg %p134
        $region110: #{tpu_custom_call.1} parent=103 // pred_check_branch
          %792 = sbr.rel (%p790) target = $region112
        $region111: #{tpu_custom_call.1} parent=103 // pred_region
          %794 = dma.done [#allocation6], 16
        $region112: #{tpu_custom_call.1} parent=103 // pred_fallthru
          _
        // Predicated region
        $region113: #{tpu_custom_call.1} parent=103 // pred_check
          %p795 = pneg %p176
        $region114: #{tpu_custom_call.1} parent=103 // pred_check_branch
          %797 = sbr.rel (%p795) target = $region116
        $region115: #{tpu_custom_call.1} parent=103 // pred_region
          %799 = dma.done [#allocation6], 32
        $region116: #{tpu_custom_call.1} parent=103 // pred_fallthru
          _
        // Predicated region
        $region117: #{tpu_custom_call.1} parent=103 // pred_check
          %p800 = pneg %p197
        $region118: #{tpu_custom_call.1} parent=103 // pred_check_branch
          %802 = sbr.rel (%p800) target = $region120
        $region119: #{tpu_custom_call.1} parent=103 // pred_region
          %804 = dma.done [#allocation9], 512
        $region120: #{tpu_custom_call.1} parent=103 // pred_fallthru
          _
        // Predicated region
        $region121: #{tpu_custom_call.1} parent=103 // pred_check
          %p805 = pneg %p218
        $region122: #{tpu_custom_call.1} parent=103 // pred_check_branch
          %807 = sbr.rel (%p805) target = $region124
        $region123: #{tpu_custom_call.1} parent=103 // pred_region
          %809 = dma.done [#allocation9], 32
        $region124: #{tpu_custom_call.1} parent=103 // pred_fallthru
          _
        // Predicated region
        $region125: #{tpu_custom_call.1} parent=103 // pred_check
          %p810 = pneg %p239
        $region126: #{tpu_custom_call.1} parent=103 // pred_check_branch
          %812 = sbr.rel (%p810) target = $region128
        $region127: #{tpu_custom_call.1} parent=103 // pred_region
          %814 = dma.done [#allocation12], 32
        $region128: #{tpu_custom_call.1} parent=103 // pred_fallthru
          _
        // Predicated region
        $region129: #{tpu_custom_call.1} parent=103 // pred_check
          %p815 = pneg %p260
        $region130: #{tpu_custom_call.1} parent=103 // pred_check_branch
          %817 = sbr.rel (%p815) target = $region132
        $region131: #{tpu_custom_call.1} parent=103 // pred_region
          %819 = dma.done [#allocation12], 32
        $region132: #{tpu_custom_call.1} parent=103 // pred_fallthru
          _
        // Predicated region
        $region133: #{tpu_custom_call.1} parent=103 // pred_check
          %p820 = pneg %p281
        $region134: #{tpu_custom_call.1} parent=103 // pred_check_branch
          %822 = sbr.rel (%p820) target = $region136
        $region135: #{tpu_custom_call.1} parent=103 // pred_region
          %824 = dma.done [#allocation15], 512
        $region136: #{tpu_custom_call.1} parent=103 // pred_fallthru
          _
        // Predicated region
        $region137: #{tpu_custom_call.1} parent=103 // pred_check
          %p825 = pneg %p302
        $region138: #{tpu_custom_call.1} parent=103 // pred_check_branch
          %827 = sbr.rel (%p825) target = $region140
        $region139: #{tpu_custom_call.1} parent=103 // pred_region
          %829 = dma.done [#allocation15], 32
        $region140: #{tpu_custom_call.1} parent=103 // pred_fallthru
          _
        // Predicated region
        $region141: #{tpu_custom_call.1} parent=103 // pred_check
          %p830 = pneg %p344
        $region142: #{tpu_custom_call.1} parent=103 // pred_check_branch
          %832 = sbr.rel (%p830) target = $region144
        $region143: #{tpu_custom_call.1} parent=103 // pred_region
          %834 = dma.done [#allocation18], 32
        $region144: #{tpu_custom_call.1} parent=103 // pred_fallthru
          _
        // Predicated region
        $region145: #{tpu_custom_call.1} parent=103 // pred_check
          %p835 = pneg %p365
        $region146: #{tpu_custom_call.1} parent=103 // pred_check_branch
          %837 = sbr.rel (%p835) target = $region148
        $region147: #{tpu_custom_call.1} parent=103 // pred_region
          %839 = dma.done [#allocation18], 32
        $region148: #{tpu_custom_call.1} parent=103 // pred_fallthru
          _
        // Predicated region
        $region149: #{tpu_custom_call.1} parent=103 // pred_check
          %p840 = pneg %p386
        $region150: #{tpu_custom_call.1} parent=103 // pred_check_branch
          %842 = sbr.rel (%p840) target = $region152
        $region151: #{tpu_custom_call.1} parent=103 // pred_region
          %844 = dma.done [#allocation21], 32
        $region152: #{tpu_custom_call.1} parent=103 // pred_fallthru
          _
        // Predicated region
        $region153: #{tpu_custom_call.1} parent=103 // pred_check
          %p845 = pneg %p407
        $region154: #{tpu_custom_call.1} parent=103 // pred_check_branch
          %847 = sbr.rel (%p845) target = $region156
        $region155: #{tpu_custom_call.1} parent=103 // pred_region
          %849 = dma.done [#allocation21], 256
        $region156: #{tpu_custom_call.1} parent=103 // pred_fallthru
          _
        // Predicated region
        $region157: #{tpu_custom_call.1} parent=103 // pred_check
          %p850 = pneg %p428
        $region158: #{tpu_custom_call.1} parent=103 // pred_check_branch
          %852 = sbr.rel (%p850) target = $region160
        $region159: #{tpu_custom_call.1} parent=103 // pred_region
          %854 = dma.done [#allocation24], 128
        $region160: #{tpu_custom_call.1} parent=103 // pred_fallthru
          _
        // Predicated region
        $region161: #{tpu_custom_call.1} parent=103 // pred_check
          %p855 = pneg %p449
        $region162: #{tpu_custom_call.1} parent=103 // pred_check_branch
          %857 = sbr.rel (%p855) target = $region164
        $region163: #{tpu_custom_call.1} parent=103 // pred_region
          %859 = dma.done [#allocation24], 16
        $region164: #{tpu_custom_call.1} parent=103 // pred_fallthru
          _
        %s860 = smul.u32 4, %s45
        %p861 = scmp.lt.s32.totalorder %s860, 7
        %s862 = scalar_select %p861, %s860, 7
        %s863 = smul.addr %s862, 8
        %s864 = scalar_lea.vmem %s0, %s863
        %p865 = pneg %p66
        %p866 = pneg %p63
        %s867 = sand.u32 %s79, 1
        %s868 = scalar_lea.sflag [#allocation3], %s867
        %s869 = sand.u32 %s79, 1
        %s870 = smul.addr %s869, 4
        %s871 = scalar_lea.vmem [#allocation2], %s870
        %p872 = pneg %p92
        %p873 = pneg %p89
        %p874 = pneg %p113
        %p875 = pneg %p110
        %p876 = pneg %p134
        %p877 = pneg %p131
        %p878 = pneg %p155
        %p879 = pneg %p152
        %p880 = pneg %p176
        %p881 = pneg %p173
        %p882 = pneg %p197
        %p883 = pneg %p194
        %p884 = pneg %p218
        %p885 = pneg %p215
        %p886 = pneg %p239
        %p887 = pneg %p236
        %p888 = pneg %p260
        %p889 = pneg %p257
        %p890 = pneg %p281
        %p891 = pneg %p278
        %p892 = pneg %p302
        %p893 = pneg %p299
        %p894 = pneg %p323
        %p895 = pneg %p320
        %p896 = pneg %p344
        %p897 = pneg %p341
        %p898 = pneg %p365
        %p899 = pneg %p362
        %p900 = pneg %p386
        %p901 = pneg %p383
        %p902 = pneg %p407
        %p903 = pneg %p404
        %p904 = pneg %p428
        %p905 = pneg %p425
        %p906 = pneg %p449
        %p907 = pneg %p446
        %p908 = pneg %p470
        %p909 = pneg %p467
        %p910 = pneg %p491
        %p911 = pneg %p488
        %p912 = pneg %p517
        %p913 = pneg %p514
        %s914 = sand.u32 %s504, 1
        %s915 = scalar_lea.sflag [#allocation4], %s914
        %s916 = sand.u32 %s504, 1
        %s917 = smul.addr %s916, 4
        %s918 = scalar_lea.vmem [#allocation26], %s917
        %s919 = smul.u32 4, %s45
        %p920 = scmp.lt.s32.totalorder %s919, 7
        %s921 = scalar_select %p920, %s919, 7
        %s922 = smul.addr %s921, 8
        %s923 = scalar_lea.vmem %s0, %s922
        %s924 = smul.u32 4, %s45
        %s925 = smul.u32 4, %s45
        %s926 = smul.u32 4, %s45
        %v928 = vld [vmem:[%s784] sm:$0x1]
        %v929 = vld [vmem:[%s784 + $0x1] sm:$0x1]
        %v930 = vld [vmem:[%s784 + $0x2] sm:$0x1]
        %v931 = vld [vmem:[%s784 + $0x3] sm:$0x1]
        %v932 = vld [vmem:[%s923] sm:$0xff]
        %v933 = vld [vmem:[%s923 + $0x8] sm:$0xff]
        %v934 = vld [vmem:[%s923 + $0x10] sm:$0xff]
        %v935 = vld [vmem:[%s923 + $0x18] sm:$0xff]
        %v936 = vld [vmem:[%s2] sm:$0x1]
        %v937 = vld [vmem:[#allocation5] sm:$0x1]
        %vm938 = vcmask 261120
        %v939 = vsel %vm938, %v932, 0.0
        %940 = vadd.xlane.f32.xlu0 %v939
        %v941 = vpop.xlane.xlu0 %940
        %v942 = vsel %vm938, %v933, 0.0
        %943 = vadd.xlane.f32.xlu0 %v942
        %v944 = vpop.xlane.xlu0 %943
        %v945 = vsel %vm938, %v934, 0.0
        %946 = vadd.xlane.f32.xlu0 %v945
        %v947 = vpop.xlane.xlu0 %946
        %v948 = vsel %vm938, %v935, 0.0
        %949 = vadd.xlane.f32.xlu0 %v948
        %v950 = vpop.xlane.xlu0 %949
        %v951 = vrcp.pop 32.0
        %v952 = vmul.f32 32.0, %v951
        %v953 = vsub.f32 1.0, %v952
        %v954 = vmul.f32 %v951, %v953
        %v955 = vadd.f32 %v951, %v954
        %vm956 = vweird.f32 %v951
        %v957 = vsel %vm956, %v951, %v955
        %v958 = vmul.f32 %v941, %v957
        %v959 = vmul.f32 %v944, %v957
        %v960 = vmul.f32 %v947, %v957
        %v961 = vmul.f32 %v950, %v957
        %v962 = vsub.f32 %v932, %v958
        %v963 = vsub.f32 %v933, %v959
        %v964 = vsub.f32 %v934, %v960
        %v965 = vsub.f32 %v935, %v961
        %v966 = vmul.f32 %v962, %v962
        %v967 = vmul.f32 %v963, %v963
        %v968 = vmul.f32 %v964, %v964
        %v969 = vmul.f32 %v965, %v965
        %v970 = vsel %vm938, %v966, 0.0
        %971 = vadd.xlane.f32.xlu0 %v970
        %v972 = vpop.xlane.xlu0 %971
        %v973 = vsel %vm938, %v967, 0.0
        %974 = vadd.xlane.f32.xlu0 %v973
        %v975 = vpop.xlane.xlu0 %974
        %v976 = vsel %vm938, %v968, 0.0
        %977 = vadd.xlane.f32.xlu0 %v976
        %v978 = vpop.xlane.xlu0 %977
        %v979 = vsel %vm938, %v969, 0.0
        %980 = vadd.xlane.f32.xlu0 %v979
        %v981 = vpop.xlane.xlu0 %980
        %v982 = vmul.f32 %v972, %v957
        %v983 = vmul.f32 %v975, %v957
        %v984 = vmul.f32 %v978, %v957
        %v985 = vmul.f32 %v981, %v957
        %v986 = vadd.f32 %v982, 1e-12
        %v987 = vadd.f32 %v983, 1e-12
        %v988 = vadd.f32 %v984, 1e-12
        %v989 = vadd.f32 %v985, 1e-12
        %v990 = vrsqrt.pop %v986
        %v991 = vmul.f32 %v990, %v986
        %v992 = vmul.f32 %v991, %v990
        %v993 = vmul.f32 0.5, %v992
        %v994 = vsub.f32 1.5, %v993
        %v995 = vmul.f32 %v990, %v994
        %vm996 = vweird.f32 %v986
        %vm997 = vweird.f32 %v990
        %vm998 = vmor %vm996, %vm997
        %v999 = vsel %vm998, %v990, %v995
        %v1000 = vrsqrt.pop %v987
        %v1001 = vmul.f32 %v1000, %v987
        %v1002 = vmul.f32 %v1001, %v1000
        %v1003 = vmul.f32 0.5, %v1002
        %v1004 = vsub.f32 1.5, %v1003
        %v1005 = vmul.f32 %v1000, %v1004
        %vm1006 = vweird.f32 %v987
        %vm1007 = vweird.f32 %v1000
        %vm1008 = vmor %vm1006, %vm1007
        %v1009 = vsel %vm1008, %v1000, %v1005
        %v1010 = vrsqrt.pop %v988
        %v1011 = vmul.f32 %v1010, %v988
        %v1012 = vmul.f32 %v1011, %v1010
        %v1013 = vmul.f32 0.5, %v1012
        %v1014 = vsub.f32 1.5, %v1013
        %v1015 = vmul.f32 %v1010, %v1014
        %vm1016 = vweird.f32 %v988
        %vm1017 = vweird.f32 %v1010
        %vm1018 = vmor %vm1016, %vm1017
        %v1019 = vsel %vm1018, %v1010, %v1015
        %v1020 = vrsqrt.pop %v989
        %v1021 = vmul.f32 %v1020, %v989
        %v1022 = vmul.f32 %v1021, %v1020
        %v1023 = vmul.f32 0.5, %v1022
        %v1024 = vsub.f32 1.5, %v1023
        %v1025 = vmul.f32 %v1020, %v1024
        %vm1026 = vweird.f32 %v989
        %vm1027 = vweird.f32 %v1020
        %vm1028 = vmor %vm1026, %vm1027
        %v1029 = vsel %vm1028, %v1020, %v1025
        %v1030 = vmul.f32 %v962, %v999
        %v1031 = vmul.f32 %v963, %v1009
        %v1032 = vmul.f32 %v964, %v1019
        %v1033 = vmul.f32 %v965, %v1029
        %v1035 = vperm.slane %v936, 0
        %v1037 = vmul.f32 %v1030, %v1035
        %v1038 = vmul.f32 %v1031, %v1035
        %v1039 = vmul.f32 %v1032, %v1035
        %v1040 = vmul.f32 %v1033, %v1035
        %v1042 = vperm.slane %v937, 0
        %v1044 = vadd.f32 %v1037, %v1042
        %v1045 = vadd.f32 %v1038, %v1042
        %v1046 = vadd.f32 %v1039, %v1042
        %v1047 = vadd.f32 %v1040, %v1042
        %v1048 = vld [vmem:[%s4] sm:$0xf]
        %v1049 = vld [vmem:[%s4 + $0x4] sm:$0xf]
        %v1050 = vld [vmem:[%s4 + $0x8] sm:$0xf]
        %v1051 = vld [vmem:[%s4 + $0xc] sm:$0xf]
        %v1052 = vpack.c.bf16 %v1045, %v1044
        %v1053 = vpack.c.bf16 %v1047, %v1046
        %v1054 = vld [vmem:[#allocation7] sm:$0x1]
        %v1056 = vperm.slane %v1054, 0
        %v1062 = vunpack.c.l.b16 %v1048
        %v1063 = vunpack.c.l.b16 %v1049
        %v1064 = vunpack.c.l.b16 %v1050
        %v1065 = vunpack.c.l.b16 %v1051
        %v1066 = vpack.c.b16 %v1063, %v1062
        %v1067 = vpack.c.b16 %v1065, %v1064
        %v1071 = vsel %vm938, %v1052, 0
        %v1074 = vsel %vm938, %v1053, 0
        %1076 = vmatpush.bf16.msra.mxu0 0
        %1077 = vmatpush.bf16.msra.mxu0 0
        %1078 = vmatpush.bf16.msra.mxu0 0
        %1079 = vmatpush.bf16.msra.mxu0 0
        %1080 = vmatpush.bf16.msra.mxu0 0
        %1081 = vmatpush.bf16.msra.mxu0 0
        %1082 = vmatpush.bf16.msra.mxu0 %v1067
        %1083 = vmatpush.bf16.msra.mxu0 %v1066
        %1084 = vmatmul.bf16.gmra.mxu0 %v1071
        %v1085 = vpop.f32.mrf.mxu0
        %v1086 = vadd.f32 %v1056, %v1085
        %v1087 = vpop.f32.mrf.mxu0
        %v1088 = vadd.f32 %v1056, %v1087
        %1089 = vmatmul.bf16.gmra.mxu0 %v1074
        %v1090 = vpop.f32.mrf.mxu0
        %v1091 = vadd.f32 %v1056, %v1090
        %v1092 = vpop.f32.mrf.mxu0
        %v1093 = vadd.f32 %v1056, %v1092
        %1094 = vdwg.mxu0
        %v1095 = vld [vmem:[#allocation8] sm:$0xf]
        %v1096 = vld [vmem:[#allocation8 + $0x4] sm:$0xf]
        %v1097 = vld [vmem:[#allocation8 + $0x8] sm:$0xf]
        %v1098 = vld [vmem:[#allocation8 + $0xc] sm:$0xf]
        %v1099 = vpack.c.bf16 %v1086, %v1086
        %v1100 = vpack.c.bf16 %v1088, %v1088
        %v1101 = vpack.c.bf16 %v1091, %v1091
        %v1102 = vpack.c.bf16 %v1093, %v1093
        %v1107 = vperm.slane %v928, 0
        %v1108 = vperm.slane %v929, 0
        %v1109 = vperm.slane %v930, 0
        %v1110 = vperm.slane %v931, 0
        %v1116 = vunpack.c.l.b16 %v1099
        %v1117 = vpack.c.b16 %v1116, %v1116
        %1118 = vrot.lane.b32.xlu0 %v1117, 96
        %v1119 = vpop.permute.xlu0 %1118
        %vm1120 = vcmask 64512
        %v1122 = vsel %vm1120, %v1099, 0
        %v1125 = vsel %vm1120, %v1119, 0
        %1127 = vmatpush.bf16.xpose.msra.mxu0 0
        %1128 = vmatpush.bf16.xpose.msra.mxu0 0
        %1129 = vmatpush.bf16.xpose.msra.mxu0 0
        %1130 = vmatpush.bf16.xpose.msra.mxu0 0
        %1131 = vmatpush.bf16.xpose.msra.mxu0 0
        %1132 = vmatpush.bf16.xpose.msra.mxu0 0
        %1133 = vmatpush.bf16.xpose.msra.mxu0 0
        %1134 = vmatpush.bf16.xpose.msra.mxu0 %v1125
        %1135 = vmatmul.bf16.gmra.mxu0 %v1122
        %v1136 = vpop.f32.mrf.mxu0
        %v1137 = vadd.f32 %v1107, %v1136
        %v1138 = vpop.f32.mrf.mxu0
        %1139 = vdwg.mxu0
        %v1141 = vunpack.c.l.b16 %v1100
        %v1142 = vpack.c.b16 %v1141, %v1141
        %1143 = vrot.lane.b32.xlu0 %v1142, 96
        %v1144 = vpop.permute.xlu0 %1143
        %v1146 = vsel %vm1120, %v1100, 0
        %v1149 = vsel %vm1120, %v1144, 0
        %1151 = vmatpush.bf16.xpose.msra.mxu0 0
        %1152 = vmatpush.bf16.xpose.msra.mxu0 0
        %1153 = vmatpush.bf16.xpose.msra.mxu0 0
        %1154 = vmatpush.bf16.xpose.msra.mxu0 0
        %1155 = vmatpush.bf16.xpose.msra.mxu0 0
        %1156 = vmatpush.bf16.xpose.msra.mxu0 0
        %1157 = vmatpush.bf16.xpose.msra.mxu0 0
        %1158 = vmatpush.bf16.xpose.msra.mxu0 %v1149
        %1159 = vmatmul.bf16.gmra.mxu0 %v1146
        %v1160 = vpop.f32.mrf.mxu0
        %v1161 = vadd.f32 %v1108, %v1160
        %v1162 = vpop.f32.mrf.mxu0
        %1163 = vdwg.mxu0
        %v1165 = vunpack.c.l.b16 %v1101
        %v1166 = vpack.c.b16 %v1165, %v1165
        %1167 = vrot.lane.b32.xlu0 %v1166, 96
        %v1168 = vpop.permute.xlu0 %1167
        %v1170 = vsel %vm1120, %v1101, 0
        %v1173 = vsel %vm1120, %v1168, 0
        %1175 = vmatpush.bf16.xpose.msra.mxu0 0
        %1176 = vmatpush.bf16.xpose.msra.mxu0 0
        %1177 = vmatpush.bf16.xpose.msra.mxu0 0
        %1178 = vmatpush.bf16.xpose.msra.mxu0 0
        %1179 = vmatpush.bf16.xpose.msra.mxu0 0
        %1180 = vmatpush.bf16.xpose.msra.mxu0 0
        %1181 = vmatpush.bf16.xpose.msra.mxu0 0
        %1182 = vmatpush.bf16.xpose.msra.mxu0 %v1173
        %1183 = vmatmul.bf16.gmra.mxu0 %v1170
        %v1184 = vpop.f32.mrf.mxu0
        %v1185 = vadd.f32 %v1109, %v1184
        %v1186 = vpop.f32.mrf.mxu0
        %1187 = vdwg.mxu0
        %v1189 = vunpack.c.l.b16 %v1102
        %v1190 = vpack.c.b16 %v1189, %v1189
        %1191 = vrot.lane.b32.xlu0 %v1190, 96
        %v1192 = vpop.permute.xlu0 %1191
        %v1194 = vsel %vm1120, %v1102, 0
        %v1197 = vsel %vm1120, %v1192, 0
        %1199 = vmatpush.bf16.xpose.msra.mxu0 0
        %1200 = vmatpush.bf16.xpose.msra.mxu0 0
        %1201 = vmatpush.bf16.xpose.msra.mxu0 0
        %1202 = vmatpush.bf16.xpose.msra.mxu0 0
        %1203 = vmatpush.bf16.xpose.msra.mxu0 0
        %1204 = vmatpush.bf16.xpose.msra.mxu0 0
        %1205 = vmatpush.bf16.xpose.msra.mxu0 0
        %1206 = vmatpush.bf16.xpose.msra.mxu0 %v1197
        %1207 = vmatmul.bf16.gmra.mxu0 %v1194
        %v1208 = vpop.f32.mrf.mxu0
        %v1209 = vadd.f32 %v1110, %v1208
        %v1210 = vpop.f32.mrf.mxu0
        %1211 = vdwg.mxu0
        %v1212 = vsel %vm1120, %v1137, -inf
        %1213 = vmax.xlane.f32.xlu0 %v1212
        %v1214 = vpop.xlane.xlu0 %1213
        %v1215 = vsel %vm1120, %v1161, -inf
        %1216 = vmax.xlane.f32.xlu0 %v1215
        %v1217 = vpop.xlane.xlu0 %1216
        %v1218 = vsel %vm1120, %v1185, -inf
        %1219 = vmax.xlane.f32.xlu0 %v1218
        %v1220 = vpop.xlane.xlu0 %1219
        %v1221 = vsel %vm1120, %v1209, -inf
        %1222 = vmax.xlane.f32.xlu0 %v1221
        %v1223 = vpop.xlane.xlu0 %1222
        %v1224 = vsub.f32 %v1137, %v1214
        %v1225 = vsub.f32 %v1161, %v1217
        %v1226 = vsub.f32 %v1185, %v1220
        %v1227 = vsub.f32 %v1209, %v1223
        %v1228 = vmul.f32 %v1224, 1.442695
        %v1229 = vpow.pop %v1228
        %v1230 = vmul.f32 %v1225, 1.442695
        %v1231 = vpow.pop %v1230
        %v1232 = vmul.f32 %v1226, 1.442695
        %v1233 = vpow.pop %v1232
        %v1234 = vmul.f32 %v1227, 1.442695
        %v1235 = vpow.pop %v1234
        %v1236 = vsel %vm1120, %v1229, 0.0
        %1237 = vadd.xlane.f32.xlu0 %v1236
        %v1238 = vpop.xlane.xlu0 %1237
        %v1239 = vsel %vm1120, %v1231, 0.0
        %1240 = vadd.xlane.f32.xlu0 %v1239
        %v1241 = vpop.xlane.xlu0 %1240
        %v1242 = vsel %vm1120, %v1233, 0.0
        %1243 = vadd.xlane.f32.xlu0 %v1242
        %v1244 = vpop.xlane.xlu0 %1243
        %v1245 = vsel %vm1120, %v1235, 0.0
        %1246 = vadd.xlane.f32.xlu0 %v1245
        %v1247 = vpop.xlane.xlu0 %1246
        %v1248 = vrcp.pop %v1238
        %v1249 = vrcp.pop %v1241
        %v1250 = vrcp.pop %v1244
        %v1251 = vrcp.pop %v1247
        %v1252 = vmul.f32 %v1229, %v1248
        %v1253 = vmul.f32 %v1231, %v1249
        %v1254 = vmul.f32 %v1233, %v1250
        %v1255 = vmul.f32 %v1235, %v1251
        %v1256 = vpack.c.bf16 %v1252, %v1252
        %v1257 = vpack.c.bf16 %v1253, %v1253
        %v1258 = vpack.c.bf16 %v1254, %v1254
        %v1259 = vpack.c.bf16 %v1255, %v1255
        %1260 = vrot.lane.b32.xlu0 %v1117, 64
        %v1261 = vpop.permute.xlu0 %1260
        %v1263 = vsel %vm1120, %v1256, 0
        %vm1265 = vcmask 1043456
        %v1267 = vsel %vm1265, %v1261, 0
        %1269 = vmatpush.bf16.msra.mxu0 0
        %1270 = vmatpush.bf16.msra.mxu0 0
        %1271 = vmatpush.bf16.msra.mxu0 0
        %1272 = vmatpush.bf16.msra.mxu0 0
        %1273 = vmatpush.bf16.msra.mxu0 0
        %1274 = vmatpush.bf16.msra.mxu0 0
        %1275 = vmatpush.bf16.msra.mxu0 0
        %1276 = vmatpush.bf16.msra.mxu0 %v1267
        %1277 = vmatmul.bf16.gmra.mxu0 %v1263
        %v1278 = vpop.f32.mrf.mxu0
        %v1279 = vadd.f32 0.0, %v1278
        %v1280 = vpop.f32.mrf.mxu0
        %1281 = vdwg.mxu0
        %1282 = vrot.lane.b32.xlu0 %v1142, 64
        %v1283 = vpop.permute.xlu0 %1282
        %v1285 = vsel %vm1120, %v1257, 0
        %v1288 = vsel %vm1265, %v1283, 0
        %1290 = vmatpush.bf16.msra.mxu0 0
        %1291 = vmatpush.bf16.msra.mxu0 0
        %1292 = vmatpush.bf16.msra.mxu0 0
        %1293 = vmatpush.bf16.msra.mxu0 0
        %1294 = vmatpush.bf16.msra.mxu0 0
        %1295 = vmatpush.bf16.msra.mxu0 0
        %1296 = vmatpush.bf16.msra.mxu0 0
        %1297 = vmatpush.bf16.msra.mxu0 %v1288
        %1298 = vmatmul.bf16.gmra.mxu0 %v1285
        %v1299 = vpop.f32.mrf.mxu0
        %v1300 = vadd.f32 0.0, %v1299
        %v1301 = vpop.f32.mrf.mxu0
        %1302 = vdwg.mxu0
        %1303 = vrot.lane.b32.xlu0 %v1166, 64
        %v1304 = vpop.permute.xlu0 %1303
        %v1306 = vsel %vm1120, %v1258, 0
        %v1309 = vsel %vm1265, %v1304, 0
        %1311 = vmatpush.bf16.msra.mxu0 0
        %1312 = vmatpush.bf16.msra.mxu0 0
        %1313 = vmatpush.bf16.msra.mxu0 0
        %1314 = vmatpush.bf16.msra.mxu0 0
        %1315 = vmatpush.bf16.msra.mxu0 0
        %1316 = vmatpush.bf16.msra.mxu0 0
        %1317 = vmatpush.bf16.msra.mxu0 0
        %1318 = vmatpush.bf16.msra.mxu0 %v1309
        %1319 = vmatmul.bf16.gmra.mxu0 %v1306
        %v1320 = vpop.f32.mrf.mxu0
        %v1321 = vadd.f32 0.0, %v1320
        %v1322 = vpop.f32.mrf.mxu0
        %1323 = vdwg.mxu0
        %1324 = vrot.lane.b32.xlu0 %v1190, 64
        %v1325 = vpop.permute.xlu0 %1324
        %v1327 = vsel %vm1120, %v1259, 0
        %v1330 = vsel %vm1265, %v1325, 0
        %1332 = vmatpush.bf16.msra.mxu0 0
        %1333 = vmatpush.bf16.msra.mxu0 0
        %1334 = vmatpush.bf16.msra.mxu0 0
        %1335 = vmatpush.bf16.msra.mxu0 0
        %1336 = vmatpush.bf16.msra.mxu0 0
        %1337 = vmatpush.bf16.msra.mxu0 0
        %1338 = vmatpush.bf16.msra.mxu0 0
        %1339 = vmatpush.bf16.msra.mxu0 %v1330
        %1340 = vmatmul.bf16.gmra.mxu0 %v1327
        %v1341 = vpop.f32.mrf.mxu0
        %v1342 = vadd.f32 0.0, %v1341
        %v1343 = vpop.f32.mrf.mxu0
        %1344 = vdwg.mxu0
        %v1345 = vpack.c.bf16 %v1300, %v1279
        %v1346 = vpack.c.bf16 %v1342, %v1321
        %1347 = vrot.lane.b32.xlu0 %v1117, 120
        %v1348 = vpop.permute.xlu0 %1347
        %1349 = vrot.lane.b32.xlu0 %v1117, 88
        %v1350 = vpop.permute.xlu0 %1349
        %v1352 = vsel %vm1120, %v1348, 0
        %v1355 = vsel %vm1120, %v1350, 0
        %1357 = vmatpush.bf16.xpose.msra.mxu0 0
        %1358 = vmatpush.bf16.xpose.msra.mxu0 0
        %1359 = vmatpush.bf16.xpose.msra.mxu0 0
        %1360 = vmatpush.bf16.xpose.msra.mxu0 0
        %1361 = vmatpush.bf16.xpose.msra.mxu0 0
        %1362 = vmatpush.bf16.xpose.msra.mxu0 0
        %1363 = vmatpush.bf16.xpose.msra.mxu0 0
        %1364 = vmatpush.bf16.xpose.msra.mxu0 %v1355
        %1365 = vmatmul.bf16.gmra.mxu0 %v1352
        %v1366 = vpop.f32.mrf.mxu0
        %v1367 = vadd.f32 %v1107, %v1366
        %v1368 = vpop.f32.mrf.mxu0
        %1369 = vdwg.mxu0
        %1370 = vrot.lane.b32.xlu0 %v1142, 120
        %v1371 = vpop.permute.xlu0 %1370
        %1372 = vrot.lane.b32.xlu0 %v1142, 88
        %v1373 = vpop.permute.xlu0 %1372
        %v1375 = vsel %vm1120, %v1371, 0
        %v1378 = vsel %vm1120, %v1373, 0
        %1380 = vmatpush.bf16.xpose.msra.mxu0 0
        %1381 = vmatpush.bf16.xpose.msra.mxu0 0
        %1382 = vmatpush.bf16.xpose.msra.mxu0 0
        %1383 = vmatpush.bf16.xpose.msra.mxu0 0
        %1384 = vmatpush.bf16.xpose.msra.mxu0 0
        %1385 = vmatpush.bf16.xpose.msra.mxu0 0
        %1386 = vmatpush.bf16.xpose.msra.mxu0 0
        %1387 = vmatpush.bf16.xpose.msra.mxu0 %v1378
        %1388 = vmatmul.bf16.gmra.mxu0 %v1375
        %v1389 = vpop.f32.mrf.mxu0
        %v1390 = vadd.f32 %v1108, %v1389
        %v1391 = vpop.f32.mrf.mxu0
        %1392 = vdwg.mxu0
        %1393 = vrot.lane.b32.xlu0 %v1166, 120
        %v1394 = vpop.permute.xlu0 %1393
        %1395 = vrot.lane.b32.xlu0 %v1166, 88
        %v1396 = vpop.permute.xlu0 %1395
        %v1398 = vsel %vm1120, %v1394, 0
        %v1401 = vsel %vm1120, %v1396, 0
        %1403 = vmatpush.bf16.xpose.msra.mxu0 0
        %1404 = vmatpush.bf16.xpose.msra.mxu0 0
        %1405 = vmatpush.bf16.xpose.msra.mxu0 0
        %1406 = vmatpush.bf16.xpose.msra.mxu0 0
        %1407 = vmatpush.bf16.xpose.msra.mxu0 0
        %1408 = vmatpush.bf16.xpose.msra.mxu0 0
        %1409 = vmatpush.bf16.xpose.msra.mxu0 0
        %1410 = vmatpush.bf16.xpose.msra.mxu0 %v1401
        %1411 = vmatmul.bf16.gmra.mxu0 %v1398
        %v1412 = vpop.f32.mrf.mxu0
        %v1413 = vadd.f32 %v1109, %v1412
        %v1414 = vpop.f32.mrf.mxu0
        %1415 = vdwg.mxu0
        %1416 = vrot.lane.b32.xlu0 %v1190, 120
        %v1417 = vpop.permute.xlu0 %1416
        %1418 = vrot.lane.b32.xlu0 %v1190, 88
        %v1419 = vpop.permute.xlu0 %1418
        %v1421 = vsel %vm1120, %v1417, 0
        %v1424 = vsel %vm1120, %v1419, 0
        %1426 = vmatpush.bf16.xpose.msra.mxu0 0
        %1427 = vmatpush.bf16.xpose.msra.mxu0 0
        %1428 = vmatpush.bf16.xpose.msra.mxu0 0
        %1429 = vmatpush.bf16.xpose.msra.mxu0 0
        %1430 = vmatpush.bf16.xpose.msra.mxu0 0
        %1431 = vmatpush.bf16.xpose.msra.mxu0 0
        %1432 = vmatpush.bf16.xpose.msra.mxu0 0
        %1433 = vmatpush.bf16.xpose.msra.mxu0 %v1424
        %1434 = vmatmul.bf16.gmra.mxu0 %v1421
        %v1435 = vpop.f32.mrf.mxu0
        %v1436 = vadd.f32 %v1110, %v1435
        %v1437 = vpop.f32.mrf.mxu0
        %1438 = vdwg.mxu0
        %v1439 = vsel %vm1120, %v1367, -inf
        %1440 = vmax.xlane.f32.xlu0 %v1439
        %v1441 = vpop.xlane.xlu0 %1440
        %v1442 = vsel %vm1120, %v1390, -inf
        %1443 = vmax.xlane.f32.xlu0 %v1442
        %v1444 = vpop.xlane.xlu0 %1443
        %v1445 = vsel %vm1120, %v1413, -inf
        %1446 = vmax.xlane.f32.xlu0 %v1445
        %v1447 = vpop.xlane.xlu0 %1446
        %v1448 = vsel %vm1120, %v1436, -inf
        %1449 = vmax.xlane.f32.xlu0 %v1448
        %v1450 = vpop.xlane.xlu0 %1449
        %v1451 = vsub.f32 %v1367, %v1441
        %v1452 = vsub.f32 %v1390, %v1444
        %v1453 = vsub.f32 %v1413, %v1447
        %v1454 = vsub.f32 %v1436, %v1450
        %v1455 = vmul.f32 %v1451, 1.442695
        %v1456 = vpow.pop %v1455
        %v1457 = vmul.f32 %v1452, 1.442695
        %v1458 = vpow.pop %v1457
        %v1459 = vmul.f32 %v1453, 1.442695
        %v1460 = vpow.pop %v1459
        %v1461 = vmul.f32 %v1454, 1.442695
        %v1462 = vpow.pop %v1461
        %v1463 = vsel %vm1120, %v1456, 0.0
        %1464 = vadd.xlane.f32.xlu0 %v1463
        %v1465 = vpop.xlane.xlu0 %1464
        %v1466 = vsel %vm1120, %v1458, 0.0
        %1467 = vadd.xlane.f32.xlu0 %v1466
        %v1468 = vpop.xlane.xlu0 %1467
        %v1469 = vsel %vm1120, %v1460, 0.0
        %1470 = vadd.xlane.f32.xlu0 %v1469
        %v1471 = vpop.xlane.xlu0 %1470
        %v1472 = vsel %vm1120, %v1462, 0.0
        %1473 = vadd.xlane.f32.xlu0 %v1472
        %v1474 = vpop.xlane.xlu0 %1473
        %v1475 = vrcp.pop %v1465
        %v1476 = vrcp.pop %v1468
        %v1477 = vrcp.pop %v1471
        %v1478 = vrcp.pop %v1474
        %v1479 = vmul.f32 %v1456, %v1475
        %v1480 = vmul.f32 %v1458, %v1476
        %v1481 = vmul.f32 %v1460, %v1477
        %v1482 = vmul.f32 %v1462, %v1478
        %v1483 = vpack.c.bf16 %v1479, %v1479
        %v1484 = vpack.c.bf16 %v1480, %v1480
        %v1485 = vpack.c.bf16 %v1481, %v1481
        %v1486 = vpack.c.bf16 %v1482, %v1482
        %1487 = vrot.lane.b32.xlu0 %v1117, 56
        %v1488 = vpop.permute.xlu0 %1487
        %v1490 = vsel %vm1120, %v1483, 0
        %v1493 = vsel %vm1265, %v1488, 0
        %1495 = vmatpush.bf16.msra.mxu0 0
        %1496 = vmatpush.bf16.msra.mxu0 0
        %1497 = vmatpush.bf16.msra.mxu0 0
        %1498 = vmatpush.bf16.msra.mxu0 0
        %1499 = vmatpush.bf16.msra.mxu0 0
        %1500 = vmatpush.bf16.msra.mxu0 0
        %1501 = vmatpush.bf16.msra.mxu0 0
        %1502 = vmatpush.bf16.msra.mxu0 %v1493
        %1503 = vmatmul.bf16.gmra.mxu0 %v1490
        %v1504 = vpop.f32.mrf.mxu0
        %v1505 = vadd.f32 0.0, %v1504
        %v1506 = vpop.f32.mrf.mxu0
        %1507 = vdwg.mxu0
        %1508 = vrot.lane.b32.xlu0 %v1142, 56
        %v1509 = vpop.permute.xlu0 %1508
        %v1511 = vsel %vm1120, %v1484, 0
        %v1514 = vsel %vm1265, %v1509, 0
        %1516 = vmatpush.bf16.msra.mxu0 0
        %1517 = vmatpush.bf16.msra.mxu0 0
        %1518 = vmatpush.bf16.msra.mxu0 0
        %1519 = vmatpush.bf16.msra.mxu0 0
        %1520 = vmatpush.bf16.msra.mxu0 0
        %1521 = vmatpush.bf16.msra.mxu0 0
        %1522 = vmatpush.bf16.msra.mxu0 0
        %1523 = vmatpush.bf16.msra.mxu0 %v1514
        %1524 = vmatmul.bf16.gmra.mxu0 %v1511
        %v1525 = vpop.f32.mrf.mxu0
        %v1526 = vadd.f32 0.0, %v1525
        %v1527 = vpop.f32.mrf.mxu0
        %1528 = vdwg.mxu0
        %1529 = vrot.lane.b32.xlu0 %v1166, 56
        %v1530 = vpop.permute.xlu0 %1529
        %v1532 = vsel %vm1120, %v1485, 0
        %v1535 = vsel %vm1265, %v1530, 0
        %1537 = vmatpush.bf16.msra.mxu0 0
        %1538 = vmatpush.bf16.msra.mxu0 0
        %1539 = vmatpush.bf16.msra.mxu0 0
        %1540 = vmatpush.bf16.msra.mxu0 0
        %1541 = vmatpush.bf16.msra.mxu0 0
        %1542 = vmatpush.bf16.msra.mxu0 0
        %1543 = vmatpush.bf16.msra.mxu0 0
        %1544 = vmatpush.bf16.msra.mxu0 %v1535
        %1545 = vmatmul.bf16.gmra.mxu0 %v1532
        %v1546 = vpop.f32.mrf.mxu0
        %v1547 = vadd.f32 0.0, %v1546
        %v1548 = vpop.f32.mrf.mxu0
        %1549 = vdwg.mxu0
        %1550 = vrot.lane.b32.xlu0 %v1190, 56
        %v1551 = vpop.permute.xlu0 %1550
        %v1553 = vsel %vm1120, %v1486, 0
        %v1556 = vsel %vm1265, %v1551, 0
        %1558 = vmatpush.bf16.msra.mxu0 0
        %1559 = vmatpush.bf16.msra.mxu0 0
        %1560 = vmatpush.bf16.msra.mxu0 0
        %1561 = vmatpush.bf16.msra.mxu0 0
        %1562 = vmatpush.bf16.msra.mxu0 0
        %1563 = vmatpush.bf16.msra.mxu0 0
        %1564 = vmatpush.bf16.msra.mxu0 0
        %1565 = vmatpush.bf16.msra.mxu0 %v1556
        %1566 = vmatmul.bf16.gmra.mxu0 %v1553
        %v1567 = vpop.f32.mrf.mxu0
        %v1568 = vadd.f32 0.0, %v1567
        %v1569 = vpop.f32.mrf.mxu0
        %1570 = vdwg.mxu0
        %v1571 = vpack.c.bf16 %v1526, %v1505
        %v1572 = vpack.c.bf16 %v1568, %v1547
        %v1574 = vsel %vm1120, %v1571, 0
        %v1577 = vsel %vm1120, %v1572, 0
        %v1580 = vsel %vm1265, %v1096, 0
        %1582 = vmatpush.bf16.msra.mxu0 0
        %1583 = vmatpush.bf16.msra.mxu0 0
        %1584 = vmatpush.bf16.msra.mxu0 0
        %1585 = vmatpush.bf16.msra.mxu0 0
        %1586 = vmatpush.bf16.msra.mxu0 0
        %1587 = vmatpush.bf16.msra.mxu0 0
        %1588 = vmatpush.bf16.msra.mxu0 0
        %1589 = vmatpush.bf16.msra.mxu0 %v1580
        %1590 = vmatmul.bf16.gmra.mxu0 %v1574
        %v1591 = vpop.f32.mrf.mxu0
        %v1592 = vadd.f32 0.0, %v1591
        %v1593 = vpop.f32.mrf.mxu0
        %v1594 = vadd.f32 0.0, %v1593
        %1595 = vmatmul.bf16.gmra.mxu0 %v1577
        %v1596 = vpop.f32.mrf.mxu0
        %v1597 = vadd.f32 0.0, %v1596
        %v1598 = vpop.f32.mrf.mxu0
        %v1599 = vadd.f32 0.0, %v1598
        %1600 = vdwg.mxu0
        %v1602 = vsel %vm1120, %v1345, 0
        %v1605 = vsel %vm1120, %v1346, 0
        %v1608 = vsel %vm1265, %v1095, 0
        %1610 = vmatpush.bf16.msra.mxu0 0
        %1611 = vmatpush.bf16.msra.mxu0 0
        %1612 = vmatpush.bf16.msra.mxu0 0
        %1613 = vmatpush.bf16.msra.mxu0 0
        %1614 = vmatpush.bf16.msra.mxu0 0
        %1615 = vmatpush.bf16.msra.mxu0 0
        %1616 = vmatpush.bf16.msra.mxu0 0
        %1617 = vmatpush.bf16.msra.mxu0 %v1608
        %1618 = vmatmul.bf16.gmra.mxu0 %v1602
        %v1619 = vpop.f32.mrf.mxu0
        %v1620 = vadd.f32 %v1592, %v1619
        %v1621 = vpop.f32.mrf.mxu0
        %v1622 = vadd.f32 %v1594, %v1621
        %1623 = vmatmul.bf16.gmra.mxu0 %v1605
        %v1624 = vpop.f32.mrf.mxu0
        %v1625 = vadd.f32 %v1597, %v1624
        %v1626 = vpop.f32.mrf.mxu0
        %v1627 = vadd.f32 %v1599, %v1626
        %1628 = vdwg.mxu0
        %1629 = vrot.lane.b32.xlu0 %v1117, 112
        %v1630 = vpop.permute.xlu0 %1629
        %1631 = vrot.lane.b32.xlu0 %v1117, 80
        %v1632 = vpop.permute.xlu0 %1631
        %v1634 = vsel %vm1120, %v1630, 0
        %v1637 = vsel %vm1120, %v1632, 0
        %1639 = vmatpush.bf16.xpose.msra.mxu0 0
        %1640 = vmatpush.bf16.xpose.msra.mxu0 0
        %1641 = vmatpush.bf16.xpose.msra.mxu0 0
        %1642 = vmatpush.bf16.xpose.msra.mxu0 0
        %1643 = vmatpush.bf16.xpose.msra.mxu0 0
        %1644 = vmatpush.bf16.xpose.msra.mxu0 0
        %1645 = vmatpush.bf16.xpose.msra.mxu0 0
        %1646 = vmatpush.bf16.xpose.msra.mxu0 %v1637
        %1647 = vmatmul.bf16.gmra.mxu0 %v1634
        %v1648 = vpop.f32.mrf.mxu0
        %v1649 = vadd.f32 %v1107, %v1648
        %v1650 = vpop.f32.mrf.mxu0
        %1651 = vdwg.mxu0
        %1652 = vrot.lane.b32.xlu0 %v1142, 112
        %v1653 = vpop.permute.xlu0 %1652
        %1654 = vrot.lane.b32.xlu0 %v1142, 80
        %v1655 = vpop.permute.xlu0 %1654
        %v1657 = vsel %vm1120, %v1653, 0
        %v1660 = vsel %vm1120, %v1655, 0
        %1662 = vmatpush.bf16.xpose.msra.mxu0 0
        %1663 = vmatpush.bf16.xpose.msra.mxu0 0
        %1664 = vmatpush.bf16.xpose.msra.mxu0 0
        %1665 = vmatpush.bf16.xpose.msra.mxu0 0
        %1666 = vmatpush.bf16.xpose.msra.mxu0 0
        %1667 = vmatpush.bf16.xpose.msra.mxu0 0
        %1668 = vmatpush.bf16.xpose.msra.mxu0 0
        %1669 = vmatpush.bf16.xpose.msra.mxu0 %v1660
        %1670 = vmatmul.bf16.gmra.mxu0 %v1657
        %v1671 = vpop.f32.mrf.mxu0
        %v1672 = vadd.f32 %v1108, %v1671
        %v1673 = vpop.f32.mrf.mxu0
        %1674 = vdwg.mxu0
        %1675 = vrot.lane.b32.xlu0 %v1166, 112
        %v1676 = vpop.permute.xlu0 %1675
        %1677 = vrot.lane.b32.xlu0 %v1166, 80
        %v1678 = vpop.permute.xlu0 %1677
        %v1680 = vsel %vm1120, %v1676, 0
        %v1683 = vsel %vm1120, %v1678, 0
        %1685 = vmatpush.bf16.xpose.msra.mxu0 0
        %1686 = vmatpush.bf16.xpose.msra.mxu0 0
        %1687 = vmatpush.bf16.xpose.msra.mxu0 0
        %1688 = vmatpush.bf16.xpose.msra.mxu0 0
        %1689 = vmatpush.bf16.xpose.msra.mxu0 0
        %1690 = vmatpush.bf16.xpose.msra.mxu0 0
        %1691 = vmatpush.bf16.xpose.msra.mxu0 0
        %1692 = vmatpush.bf16.xpose.msra.mxu0 %v1683
        %1693 = vmatmul.bf16.gmra.mxu0 %v1680
        %v1694 = vpop.f32.mrf.mxu0
        %v1695 = vadd.f32 %v1109, %v1694
        %v1696 = vpop.f32.mrf.mxu0
        %1697 = vdwg.mxu0
        %1698 = vrot.lane.b32.xlu0 %v1190, 112
        %v1699 = vpop.permute.xlu0 %1698
        %1700 = vrot.lane.b32.xlu0 %v1190, 80
        %v1701 = vpop.permute.xlu0 %1700
        %v1703 = vsel %vm1120, %v1699, 0
        %v1706 = vsel %vm1120, %v1701, 0
        %1708 = vmatpush.bf16.xpose.msra.mxu0 0
        %1709 = vmatpush.bf16.xpose.msra.mxu0 0
        %1710 = vmatpush.bf16.xpose.msra.mxu0 0
        %1711 = vmatpush.bf16.xpose.msra.mxu0 0
        %1712 = vmatpush.bf16.xpose.msra.mxu0 0
        %1713 = vmatpush.bf16.xpose.msra.mxu0 0
        %1714 = vmatpush.bf16.xpose.msra.mxu0 0
        %1715 = vmatpush.bf16.xpose.msra.mxu0 %v1706
        %1716 = vmatmul.bf16.gmra.mxu0 %v1703
        %v1717 = vpop.f32.mrf.mxu0
        %v1718 = vadd.f32 %v1110, %v1717
        %v1719 = vpop.f32.mrf.mxu0
        %1720 = vdwg.mxu0
        %v1721 = vsel %vm1120, %v1649, -inf
        %1722 = vmax.xlane.f32.xlu0 %v1721
        %v1723 = vpop.xlane.xlu0 %1722
        %v1724 = vsel %vm1120, %v1672, -inf
        %1725 = vmax.xlane.f32.xlu0 %v1724
        %v1726 = vpop.xlane.xlu0 %1725
        %v1727 = vsel %vm1120, %v1695, -inf
        %1728 = vmax.xlane.f32.xlu0 %v1727
        %v1729 = vpop.xlane.xlu0 %1728
        %v1730 = vsel %vm1120, %v1718, -inf
        %1731 = vmax.xlane.f32.xlu0 %v1730
        %v1732 = vpop.xlane.xlu0 %1731
        %v1733 = vsub.f32 %v1649, %v1723
        %v1734 = vsub.f32 %v1672, %v1726
        %v1735 = vsub.f32 %v1695, %v1729
        %v1736 = vsub.f32 %v1718, %v1732
        %v1737 = vmul.f32 %v1733, 1.442695
        %v1738 = vpow.pop %v1737
        %v1739 = vmul.f32 %v1734, 1.442695
        %v1740 = vpow.pop %v1739
        %v1741 = vmul.f32 %v1735, 1.442695
        %v1742 = vpow.pop %v1741
        %v1743 = vmul.f32 %v1736, 1.442695
        %v1744 = vpow.pop %v1743
        %v1745 = vsel %vm1120, %v1738, 0.0
        %1746 = vadd.xlane.f32.xlu0 %v1745
        %v1747 = vpop.xlane.xlu0 %1746
        %v1748 = vsel %vm1120, %v1740, 0.0
        %1749 = vadd.xlane.f32.xlu0 %v1748
        %v1750 = vpop.xlane.xlu0 %1749
        %v1751 = vsel %vm1120, %v1742, 0.0
        %1752 = vadd.xlane.f32.xlu0 %v1751
        %v1753 = vpop.xlane.xlu0 %1752
        %v1754 = vsel %vm1120, %v1744, 0.0
        %1755 = vadd.xlane.f32.xlu0 %v1754
        %v1756 = vpop.xlane.xlu0 %1755
        %v1757 = vrcp.pop %v1747
        %v1758 = vrcp.pop %v1750
        %v1759 = vrcp.pop %v1753
        %v1760 = vrcp.pop %v1756
        %v1761 = vmul.f32 %v1738, %v1757
        %v1762 = vmul.f32 %v1740, %v1758
        %v1763 = vmul.f32 %v1742, %v1759
        %v1764 = vmul.f32 %v1744, %v1760
        %v1765 = vpack.c.bf16 %v1761, %v1761
        %v1766 = vpack.c.bf16 %v1762, %v1762
        %v1767 = vpack.c.bf16 %v1763, %v1763
        %v1768 = vpack.c.bf16 %v1764, %v1764
        %1769 = vrot.lane.b32.xlu0 %v1117, 48
        %v1770 = vpop.permute.xlu0 %1769
        %v1772 = vsel %vm1120, %v1765, 0
        %v1775 = vsel %vm1265, %v1770, 0
        %1777 = vmatpush.bf16.msra.mxu0 0
        %1778 = vmatpush.bf16.msra.mxu0 0
        %1779 = vmatpush.bf16.msra.mxu0 0
        %1780 = vmatpush.bf16.msra.mxu0 0
        %1781 = vmatpush.bf16.msra.mxu0 0
        %1782 = vmatpush.bf16.msra.mxu0 0
        %1783 = vmatpush.bf16.msra.mxu0 0
        %1784 = vmatpush.bf16.msra.mxu0 %v1775
        %1785 = vmatmul.bf16.gmra.mxu0 %v1772
        %v1786 = vpop.f32.mrf.mxu0
        %v1787 = vadd.f32 0.0, %v1786
        %v1788 = vpop.f32.mrf.mxu0
        %1789 = vdwg.mxu0
        %1790 = vrot.lane.b32.xlu0 %v1142, 48
        %v1791 = vpop.permute.xlu0 %1790
        %v1793 = vsel %vm1120, %v1766, 0
        %v1796 = vsel %vm1265, %v1791, 0
        %1798 = vmatpush.bf16.msra.mxu0 0
        %1799 = vmatpush.bf16.msra.mxu0 0
        %1800 = vmatpush.bf16.msra.mxu0 0
        %1801 = vmatpush.bf16.msra.mxu0 0
        %1802 = vmatpush.bf16.msra.mxu0 0
        %1803 = vmatpush.bf16.msra.mxu0 0
        %1804 = vmatpush.bf16.msra.mxu0 0
        %1805 = vmatpush.bf16.msra.mxu0 %v1796
        %1806 = vmatmul.bf16.gmra.mxu0 %v1793
        %v1807 = vpop.f32.mrf.mxu0
        %v1808 = vadd.f32 0.0, %v1807
        %v1809 = vpop.f32.mrf.mxu0
        %1810 = vdwg.mxu0
        %1811 = vrot.lane.b32.xlu0 %v1166, 48
        %v1812 = vpop.permute.xlu0 %1811
        %v1814 = vsel %vm1120, %v1767, 0
        %v1817 = vsel %vm1265, %v1812, 0
        %1819 = vmatpush.bf16.msra.mxu0 0
        %1820 = vmatpush.bf16.msra.mxu0 0
        %1821 = vmatpush.bf16.msra.mxu0 0
        %1822 = vmatpush.bf16.msra.mxu0 0
        %1823 = vmatpush.bf16.msra.mxu0 0
        %1824 = vmatpush.bf16.msra.mxu0 0
        %1825 = vmatpush.bf16.msra.mxu0 0
        %1826 = vmatpush.bf16.msra.mxu0 %v1817
        %1827 = vmatmul.bf16.gmra.mxu0 %v1814
        %v1828 = vpop.f32.mrf.mxu0
        %v1829 = vadd.f32 0.0, %v1828
        %v1830 = vpop.f32.mrf.mxu0
        %1831 = vdwg.mxu0
        %1832 = vrot.lane.b32.xlu0 %v1190, 48
        %v1833 = vpop.permute.xlu0 %1832
        %v1835 = vsel %vm1120, %v1768, 0
        %v1838 = vsel %vm1265, %v1833, 0
        %1840 = vmatpush.bf16.msra.mxu0 0
        %1841 = vmatpush.bf16.msra.mxu0 0
        %1842 = vmatpush.bf16.msra.mxu0 0
        %1843 = vmatpush.bf16.msra.mxu0 0
        %1844 = vmatpush.bf16.msra.mxu0 0
        %1845 = vmatpush.bf16.msra.mxu0 0
        %1846 = vmatpush.bf16.msra.mxu0 0
        %1847 = vmatpush.bf16.msra.mxu0 %v1838
        %1848 = vmatmul.bf16.gmra.mxu0 %v1835
        %v1849 = vpop.f32.mrf.mxu0
        %v1850 = vadd.f32 0.0, %v1849
        %v1851 = vpop.f32.mrf.mxu0
        %1852 = vdwg.mxu0
        %v1853 = vpack.c.bf16 %v1808, %v1787
        %v1854 = vpack.c.bf16 %v1850, %v1829
        %v1856 = vsel %vm1120, %v1853, 0
        %v1859 = vsel %vm1120, %v1854, 0
        %v1862 = vsel %vm1265, %v1097, 0
        %1864 = vmatpush.bf16.msra.mxu0 0
        %1865 = vmatpush.bf16.msra.mxu0 0
        %1866 = vmatpush.bf16.msra.mxu0 0
        %1867 = vmatpush.bf16.msra.mxu0 0
        %1868 = vmatpush.bf16.msra.mxu0 0
        %1869 = vmatpush.bf16.msra.mxu0 0
        %1870 = vmatpush.bf16.msra.mxu0 0
        %1871 = vmatpush.bf16.msra.mxu0 %v1862
        %1872 = vmatmul.bf16.gmra.mxu0 %v1856
        %v1873 = vpop.f32.mrf.mxu0
        %v1874 = vadd.f32 0.0, %v1873
        %v1875 = vpop.f32.mrf.mxu0
        %v1876 = vadd.f32 0.0, %v1875
        %1877 = vmatmul.bf16.gmra.mxu0 %v1859
        %v1878 = vpop.f32.mrf.mxu0
        %v1879 = vadd.f32 0.0, %v1878
        %v1880 = vpop.f32.mrf.mxu0
        %v1881 = vadd.f32 0.0, %v1880
        %1882 = vdwg.mxu0
        %v1883 = vadd.f32 %v1620, %v1874
        %v1884 = vadd.f32 %v1622, %v1876
        %v1885 = vadd.f32 %v1625, %v1879
        %v1886 = vadd.f32 %v1627, %v1881
        %1887 = vrot.lane.b32.xlu0 %v1117, 104
        %v1888 = vpop.permute.xlu0 %1887
        %1889 = vrot.lane.b32.xlu0 %v1117, 72
        %v1890 = vpop.permute.xlu0 %1889
        %v1892 = vsel %vm1120, %v1888, 0
        %v1895 = vsel %vm1120, %v1890, 0
        %1897 = vmatpush.bf16.xpose.msra.mxu0 0
        %1898 = vmatpush.bf16.xpose.msra.mxu0 0
        %1899 = vmatpush.bf16.xpose.msra.mxu0 0
        %1900 = vmatpush.bf16.xpose.msra.mxu0 0
        %1901 = vmatpush.bf16.xpose.msra.mxu0 0
        %1902 = vmatpush.bf16.xpose.msra.mxu0 0
        %1903 = vmatpush.bf16.xpose.msra.mxu0 0
        %1904 = vmatpush.bf16.xpose.msra.mxu0 %v1895
        %1905 = vmatmul.bf16.gmra.mxu0 %v1892
        %v1906 = vpop.f32.mrf.mxu0
        %v1907 = vadd.f32 %v1107, %v1906
        %v1908 = vpop.f32.mrf.mxu0
        %1909 = vdwg.mxu0
        %1910 = vrot.lane.b32.xlu0 %v1142, 104
        %v1911 = vpop.permute.xlu0 %1910
        %1912 = vrot.lane.b32.xlu0 %v1142, 72
        %v1913 = vpop.permute.xlu0 %1912
        %v1915 = vsel %vm1120, %v1911, 0
        %v1918 = vsel %vm1120, %v1913, 0
        %1920 = vmatpush.bf16.xpose.msra.mxu0 0
        %1921 = vmatpush.bf16.xpose.msra.mxu0 0
        %1922 = vmatpush.bf16.xpose.msra.mxu0 0
        %1923 = vmatpush.bf16.xpose.msra.mxu0 0
        %1924 = vmatpush.bf16.xpose.msra.mxu0 0
        %1925 = vmatpush.bf16.xpose.msra.mxu0 0
        %1926 = vmatpush.bf16.xpose.msra.mxu0 0
        %1927 = vmatpush.bf16.xpose.msra.mxu0 %v1918
        %1928 = vmatmul.bf16.gmra.mxu0 %v1915
        %v1929 = vpop.f32.mrf.mxu0
        %v1930 = vadd.f32 %v1108, %v1929
        %v1931 = vpop.f32.mrf.mxu0
        %1932 = vdwg.mxu0
        %1933 = vrot.lane.b32.xlu0 %v1166, 104
        %v1934 = vpop.permute.xlu0 %1933
        %1935 = vrot.lane.b32.xlu0 %v1166, 72
        %v1936 = vpop.permute.xlu0 %1935
        %v1938 = vsel %vm1120, %v1934, 0
        %v1941 = vsel %vm1120, %v1936, 0
        %1943 = vmatpush.bf16.xpose.msra.mxu0 0
        %1944 = vmatpush.bf16.xpose.msra.mxu0 0
        %1945 = vmatpush.bf16.xpose.msra.mxu0 0
        %1946 = vmatpush.bf16.xpose.msra.mxu0 0
        %1947 = vmatpush.bf16.xpose.msra.mxu0 0
        %1948 = vmatpush.bf16.xpose.msra.mxu0 0
        %1949 = vmatpush.bf16.xpose.msra.mxu0 0
        %1950 = vmatpush.bf16.xpose.msra.mxu0 %v1941
        %1951 = vmatmul.bf16.gmra.mxu0 %v1938
        %v1952 = vpop.f32.mrf.mxu0
        %v1953 = vadd.f32 %v1109, %v1952
        %v1954 = vpop.f32.mrf.mxu0
        %1955 = vdwg.mxu0
        %1956 = vrot.lane.b32.xlu0 %v1190, 104
        %v1957 = vpop.permute.xlu0 %1956
        %1958 = vrot.lane.b32.xlu0 %v1190, 72
        %v1959 = vpop.permute.xlu0 %1958
        %v1961 = vsel %vm1120, %v1957, 0
        %v1964 = vsel %vm1120, %v1959, 0
        %1966 = vmatpush.bf16.xpose.msra.mxu0 0
        %1967 = vmatpush.bf16.xpose.msra.mxu0 0
        %1968 = vmatpush.bf16.xpose.msra.mxu0 0
        %1969 = vmatpush.bf16.xpose.msra.mxu0 0
        %1970 = vmatpush.bf16.xpose.msra.mxu0 0
        %1971 = vmatpush.bf16.xpose.msra.mxu0 0
        %1972 = vmatpush.bf16.xpose.msra.mxu0 0
        %1973 = vmatpush.bf16.xpose.msra.mxu0 %v1964
        %1974 = vmatmul.bf16.gmra.mxu0 %v1961
        %v1975 = vpop.f32.mrf.mxu0
        %v1976 = vadd.f32 %v1110, %v1975
        %v1977 = vpop.f32.mrf.mxu0
        %1978 = vdwg.mxu0
        %v1979 = vsel %vm1120, %v1907, -inf
        %1980 = vmax.xlane.f32.xlu0 %v1979
        %v1981 = vpop.xlane.xlu0 %1980
        %v1982 = vsel %vm1120, %v1930, -inf
        %1983 = vmax.xlane.f32.xlu0 %v1982
        %v1984 = vpop.xlane.xlu0 %1983
        %v1985 = vsel %vm1120, %v1953, -inf
        %1986 = vmax.xlane.f32.xlu0 %v1985
        %v1987 = vpop.xlane.xlu0 %1986
        %v1988 = vsel %vm1120, %v1976, -inf
        %1989 = vmax.xlane.f32.xlu0 %v1988
        %v1990 = vpop.xlane.xlu0 %1989
        %v1991 = vsub.f32 %v1907, %v1981
        %v1992 = vsub.f32 %v1930, %v1984
        %v1993 = vsub.f32 %v1953, %v1987
        %v1994 = vsub.f32 %v1976, %v1990
        %v1995 = vmul.f32 %v1991, 1.442695
        %v1996 = vpow.pop %v1995
        %v1997 = vmul.f32 %v1992, 1.442695
        %v1998 = vpow.pop %v1997
        %v1999 = vmul.f32 %v1993, 1.442695
        %v2000 = vpow.pop %v1999
        %v2001 = vmul.f32 %v1994, 1.442695
        %v2002 = vpow.pop %v2001
        %v2003 = vsel %vm1120, %v1996, 0.0
        %2004 = vadd.xlane.f32.xlu0 %v2003
        %v2005 = vpop.xlane.xlu0 %2004
        %v2006 = vsel %vm1120, %v1998, 0.0
        %2007 = vadd.xlane.f32.xlu0 %v2006
        %v2008 = vpop.xlane.xlu0 %2007
        %v2009 = vsel %vm1120, %v2000, 0.0
        %2010 = vadd.xlane.f32.xlu0 %v2009
        %v2011 = vpop.xlane.xlu0 %2010
        %v2012 = vsel %vm1120, %v2002, 0.0
        %2013 = vadd.xlane.f32.xlu0 %v2012
        %v2014 = vpop.xlane.xlu0 %2013
        %v2015 = vrcp.pop %v2005
        %v2016 = vrcp.pop %v2008
        %v2017 = vrcp.pop %v2011
        %v2018 = vrcp.pop %v2014
        %v2019 = vmul.f32 %v1996, %v2015
        %v2020 = vmul.f32 %v1998, %v2016
        %v2021 = vmul.f32 %v2000, %v2017
        %v2022 = vmul.f32 %v2002, %v2018
        %v2023 = vpack.c.bf16 %v2019, %v2019
        %v2024 = vpack.c.bf16 %v2020, %v2020
        %v2025 = vpack.c.bf16 %v2021, %v2021
        %v2026 = vpack.c.bf16 %v2022, %v2022
        %2027 = vrot.lane.b32.xlu0 %v1117, 40
        %v2028 = vpop.permute.xlu0 %2027
        %v2030 = vsel %vm1120, %v2023, 0
        %v2033 = vsel %vm1265, %v2028, 0
        %2035 = vmatpush.bf16.msra.mxu0 0
        %2036 = vmatpush.bf16.msra.mxu0 0
        %2037 = vmatpush.bf16.msra.mxu0 0
        %2038 = vmatpush.bf16.msra.mxu0 0
        %2039 = vmatpush.bf16.msra.mxu0 0
        %2040 = vmatpush.bf16.msra.mxu0 0
        %2041 = vmatpush.bf16.msra.mxu0 0
        %2042 = vmatpush.bf16.msra.mxu0 %v2033
        %2043 = vmatmul.bf16.gmra.mxu0 %v2030
        %v2044 = vpop.f32.mrf.mxu0
        %v2045 = vadd.f32 0.0, %v2044
        %v2046 = vpop.f32.mrf.mxu0
        %2047 = vdwg.mxu0
        %2048 = vrot.lane.b32.xlu0 %v1142, 40
        %v2049 = vpop.permute.xlu0 %2048
        %v2051 = vsel %vm1120, %v2024, 0
        %v2054 = vsel %vm1265, %v2049, 0
        %2056 = vmatpush.bf16.msra.mxu0 0
        %2057 = vmatpush.bf16.msra.mxu0 0
        %2058 = vmatpush.bf16.msra.mxu0 0
        %2059 = vmatpush.bf16.msra.mxu0 0
        %2060 = vmatpush.bf16.msra.mxu0 0
        %2061 = vmatpush.bf16.msra.mxu0 0
        %2062 = vmatpush.bf16.msra.mxu0 0
        %2063 = vmatpush.bf16.msra.mxu0 %v2054
        %2064 = vmatmul.bf16.gmra.mxu0 %v2051
        %v2065 = vpop.f32.mrf.mxu0
        %v2066 = vadd.f32 0.0, %v2065
        %v2067 = vpop.f32.mrf.mxu0
        %2068 = vdwg.mxu0
        %2069 = vrot.lane.b32.xlu0 %v1166, 40
        %v2070 = vpop.permute.xlu0 %2069
        %v2072 = vsel %vm1120, %v2025, 0
        %v2075 = vsel %vm1265, %v2070, 0
        %2077 = vmatpush.bf16.msra.mxu0 0
        %2078 = vmatpush.bf16.msra.mxu0 0
        %2079 = vmatpush.bf16.msra.mxu0 0
        %2080 = vmatpush.bf16.msra.mxu0 0
        %2081 = vmatpush.bf16.msra.mxu0 0
        %2082 = vmatpush.bf16.msra.mxu0 0
        %2083 = vmatpush.bf16.msra.mxu0 0
        %2084 = vmatpush.bf16.msra.mxu0 %v2075
        %2085 = vmatmul.bf16.gmra.mxu0 %v2072
        %v2086 = vpop.f32.mrf.mxu0
        %v2087 = vadd.f32 0.0, %v2086
        %v2088 = vpop.f32.mrf.mxu0
        %2089 = vdwg.mxu0
        %2090 = vrot.lane.b32.xlu0 %v1190, 40
        %v2091 = vpop.permute.xlu0 %2090
        %v2093 = vsel %vm1120, %v2026, 0
        %v2096 = vsel %vm1265, %v2091, 0
        %2098 = vmatpush.bf16.msra.mxu0 0
        %2099 = vmatpush.bf16.msra.mxu0 0
        %2100 = vmatpush.bf16.msra.mxu0 0
        %2101 = vmatpush.bf16.msra.mxu0 0
        %2102 = vmatpush.bf16.msra.mxu0 0
        %2103 = vmatpush.bf16.msra.mxu0 0
        %2104 = vmatpush.bf16.msra.mxu0 0
        %2105 = vmatpush.bf16.msra.mxu0 %v2096
        %2106 = vmatmul.bf16.gmra.mxu0 %v2093
        %v2107 = vpop.f32.mrf.mxu0
        %v2108 = vadd.f32 0.0, %v2107
        %v2109 = vpop.f32.mrf.mxu0
        %2110 = vdwg.mxu0
        %v2111 = vpack.c.bf16 %v2066, %v2045
        %v2112 = vpack.c.bf16 %v2108, %v2087
        %v2114 = vsel %vm1120, %v2111, 0
        %v2117 = vsel %vm1120, %v2112, 0
        %v2120 = vsel %vm1265, %v1098, 0
        %2122 = vmatpush.bf16.msra.mxu0 0
        %2123 = vmatpush.bf16.msra.mxu0 0
        %2124 = vmatpush.bf16.msra.mxu0 0
        %2125 = vmatpush.bf16.msra.mxu0 0
        %2126 = vmatpush.bf16.msra.mxu0 0
        %2127 = vmatpush.bf16.msra.mxu0 0
        %2128 = vmatpush.bf16.msra.mxu0 0
        %2129 = vmatpush.bf16.msra.mxu0 %v2120
        %2130 = vmatmul.bf16.gmra.mxu0 %v2114
        %v2131 = vpop.f32.mrf.mxu0
        %v2132 = vadd.f32 0.0, %v2131
        %v2133 = vpop.f32.mrf.mxu0
        %v2134 = vadd.f32 0.0, %v2133
        %2135 = vmatmul.bf16.gmra.mxu0 %v2117
        %v2136 = vpop.f32.mrf.mxu0
        %v2137 = vadd.f32 0.0, %v2136
        %v2138 = vpop.f32.mrf.mxu0
        %v2139 = vadd.f32 0.0, %v2138
        %2140 = vdwg.mxu0
        %v2141 = vadd.f32 %v1883, %v2132
        %v2142 = vadd.f32 %v1884, %v2134
        %v2143 = vadd.f32 %v1885, %v2137
        %v2144 = vadd.f32 %v1886, %v2139
        %v2145 = vld [vmem:[#allocation10] sm:$0x1]
        %v2147 = vperm.slane %v2145, 0
        %v2149 = vadd.f32 %v2141, %v2147
        %v2150 = vadd.f32 %v2142, %v2147
        %v2151 = vadd.f32 %v2143, %v2147
        %v2152 = vadd.f32 %v2144, %v2147
        %v2153 = vadd.f32 %v2149, %v1044
        %v2154 = vadd.f32 %v2150, %v1045
        %v2155 = vadd.f32 %v2151, %v1046
        %v2156 = vadd.f32 %v2152, %v1047
        %v2157 = vld [vmem:[#allocation11] sm:$0x1]
        %v2158 = vld [vmem:[#allocation13] sm:$0x1]
        %v2159 = vsel %vm938, %v2153, 0.0
        %2160 = vadd.xlane.f32.xlu0 %v2159
        %v2161 = vpop.xlane.xlu0 %2160
        %v2162 = vsel %vm938, %v2154, 0.0
        %2163 = vadd.xlane.f32.xlu0 %v2162
        %v2164 = vpop.xlane.xlu0 %2163
        %v2165 = vsel %vm938, %v2155, 0.0
        %2166 = vadd.xlane.f32.xlu0 %v2165
        %v2167 = vpop.xlane.xlu0 %2166
        %v2168 = vsel %vm938, %v2156, 0.0
        %2169 = vadd.xlane.f32.xlu0 %v2168
        %v2170 = vpop.xlane.xlu0 %2169
        %v2171 = vmul.f32 %v2161, %v957
        %v2172 = vmul.f32 %v2164, %v957
        %v2173 = vmul.f32 %v2167, %v957
        %v2174 = vmul.f32 %v2170, %v957
        %v2175 = vsub.f32 %v2153, %v2171
        %v2176 = vsub.f32 %v2154, %v2172
        %v2177 = vsub.f32 %v2155, %v2173
        %v2178 = vsub.f32 %v2156, %v2174
        %v2179 = vmul.f32 %v2175, %v2175
        %v2180 = vmul.f32 %v2176, %v2176
        %v2181 = vmul.f32 %v2177, %v2177
        %v2182 = vmul.f32 %v2178, %v2178
        %v2183 = vsel %vm938, %v2179, 0.0
        %2184 = vadd.xlane.f32.xlu0 %v2183
        %v2185 = vpop.xlane.xlu0 %2184
        %v2186 = vsel %vm938, %v2180, 0.0
        %2187 = vadd.xlane.f32.xlu0 %v2186
        %v2188 = vpop.xlane.xlu0 %2187
        %v2189 = vsel %vm938, %v2181, 0.0
        %2190 = vadd.xlane.f32.xlu0 %v2189
        %v2191 = vpop.xlane.xlu0 %2190
        %v2192 = vsel %vm938, %v2182, 0.0
        %2193 = vadd.xlane.f32.xlu0 %v2192
        %v2194 = vpop.xlane.xlu0 %2193
        %v2195 = vmul.f32 %v2185, %v957
        %v2196 = vmul.f32 %v2188, %v957
        %v2197 = vmul.f32 %v2191, %v957
        %v2198 = vmul.f32 %v2194, %v957
        %v2199 = vadd.f32 %v2195, 1e-12
        %v2200 = vadd.f32 %v2196, 1e-12
        %v2201 = vadd.f32 %v2197, 1e-12
        %v2202 = vadd.f32 %v2198, 1e-12
        %v2203 = vrsqrt.pop %v2199
        %v2204 = vmul.f32 %v2203, %v2199
        %v2205 = vmul.f32 %v2204, %v2203
        %v2206 = vmul.f32 0.5, %v2205
        %v2207 = vsub.f32 1.5, %v2206
        %v2208 = vmul.f32 %v2203, %v2207
        %vm2209 = vweird.f32 %v2199
        %vm2210 = vweird.f32 %v2203
        %vm2211 = vmor %vm2209, %vm2210
        %v2212 = vsel %vm2211, %v2203, %v2208
        %v2213 = vrsqrt.pop %v2200
        %v2214 = vmul.f32 %v2213, %v2200
        %v2215 = vmul.f32 %v2214, %v2213
        %v2216 = vmul.f32 0.5, %v2215
        %v2217 = vsub.f32 1.5, %v2216
        %v2218 = vmul.f32 %v2213, %v2217
        %vm2219 = vweird.f32 %v2200
        %vm2220 = vweird.f32 %v2213
        %vm2221 = vmor %vm2219, %vm2220
        %v2222 = vsel %vm2221, %v2213, %v2218
        %v2223 = vrsqrt.pop %v2201
        %v2224 = vmul.f32 %v2223, %v2201
        %v2225 = vmul.f32 %v2224, %v2223
        %v2226 = vmul.f32 0.5, %v2225
        %v2227 = vsub.f32 1.5, %v2226
        %v2228 = vmul.f32 %v2223, %v2227
        %vm2229 = vweird.f32 %v2201
        %vm2230 = vweird.f32 %v2223
        %vm2231 = vmor %vm2229, %vm2230
        %v2232 = vsel %vm2231, %v2223, %v2228
        %v2233 = vrsqrt.pop %v2202
        %v2234 = vmul.f32 %v2233, %v2202
        %v2235 = vmul.f32 %v2234, %v2233
        %v2236 = vmul.f32 0.5, %v2235
        %v2237 = vsub.f32 1.5, %v2236
        %v2238 = vmul.f32 %v2233, %v2237
        %vm2239 = vweird.f32 %v2202
        %vm2240 = vweird.f32 %v2233
        %vm2241 = vmor %vm2239, %vm2240
        %v2242 = vsel %vm2241, %v2233, %v2238
        %v2243 = vmul.f32 %v2175, %v2212
        %v2244 = vmul.f32 %v2176, %v2222
        %v2245 = vmul.f32 %v2177, %v2232
        %v2246 = vmul.f32 %v2178, %v2242
        %v2248 = vperm.slane %v2157, 0
        %v2250 = vmul.f32 %v2243, %v2248
        %v2251 = vmul.f32 %v2244, %v2248
        %v2252 = vmul.f32 %v2245, %v2248
        %v2253 = vmul.f32 %v2246, %v2248
        %v2255 = vperm.slane %v2158, 0
        %v2257 = vadd.f32 %v2250, %v2255
        %v2258 = vadd.f32 %v2251, %v2255
        %v2259 = vadd.f32 %v2252, %v2255
        %v2260 = vadd.f32 %v2253, %v2255
        %v2261 = vld [vmem:[#allocation14] sm:$0xf]
        %v2262 = vld [vmem:[#allocation14 + $0x4] sm:$0xf]
        %v2263 = vld [vmem:[#allocation14 + $0x8] sm:$0xf]
        %v2264 = vld [vmem:[#allocation14 + $0xc] sm:$0xf]
        %v2265 = vpack.c.bf16 %v2258, %v2257
        %v2266 = vpack.c.bf16 %v2260, %v2259
        %v2267 = vld [vmem:[#allocation16] sm:$0x1]
        %v2269 = vperm.slane %v2267, 0
        %v2275 = vunpack.c.l.b16 %v2261
        %v2276 = vunpack.c.l.b16 %v2262
        %v2277 = vunpack.c.l.b16 %v2263
        %v2278 = vunpack.c.l.b16 %v2264
        %v2279 = vpack.c.b16 %v2276, %v2275
        %v2280 = vpack.c.b16 %v2278, %v2277
        %v2284 = vsel %vm938, %v2265, 0
        %v2287 = vsel %vm938, %v2266, 0
        %2289 = vmatpush.bf16.msra.mxu0 0
        %2290 = vmatpush.bf16.msra.mxu0 0
        %2291 = vmatpush.bf16.msra.mxu0 0
        %2292 = vmatpush.bf16.msra.mxu0 0
        %2293 = vmatpush.bf16.msra.mxu0 0
        %2294 = vmatpush.bf16.msra.mxu0 0
        %2295 = vmatpush.bf16.msra.mxu0 %v2280
        %2296 = vmatpush.bf16.msra.mxu0 %v2279
        %2297 = vmatmul.bf16.gmra.mxu0 %v2284
        %v2298 = vpop.f32.mrf.mxu0
        %v2299 = vadd.f32 %v2269, %v2298
        %v2300 = vpop.f32.mrf.mxu0
        %v2301 = vadd.f32 %v2269, %v2300
        %2302 = vmatmul.bf16.gmra.mxu0 %v2287
        %v2303 = vpop.f32.mrf.mxu0
        %v2304 = vadd.f32 %v2269, %v2303
        %v2305 = vpop.f32.mrf.mxu0
        %v2306 = vadd.f32 %v2269, %v2305
        %2307 = vdwg.mxu0
        %v2308 = vmul.f32 %v2299, %v2299
        %v2309 = vmul.f32 %v2301, %v2301
        %v2310 = vmul.f32 %v2304, %v2304
        %v2311 = vmul.f32 %v2306, %v2306
        %v2312 = vmul.f32 %v2299, %v2308
        %v2313 = vmul.f32 %v2301, %v2309
        %v2314 = vmul.f32 %v2304, %v2310
        %v2315 = vmul.f32 %v2306, %v2311
        %v2316 = vmul.f32 %v2312, 0.044715
        %v2317 = vmul.f32 %v2313, 0.044715
        %v2318 = vmul.f32 %v2314, 0.044715
        %v2319 = vmul.f32 %v2315, 0.044715
        %v2320 = vadd.f32 %v2299, %v2316
        %v2321 = vadd.f32 %v2301, %v2317
        %v2322 = vadd.f32 %v2304, %v2318
        %v2323 = vadd.f32 %v2306, %v2319
        %v2324 = vmul.f32 %v2320, 0.7978846
        %v2325 = vmul.f32 %v2321, 0.7978846
        %v2326 = vmul.f32 %v2322, 0.7978846
        %v2327 = vmul.f32 %v2323, 0.7978846
        %v2328 = vtanh.pop %v2324
        %v2329 = vtanh.pop %v2325
        %v2330 = vtanh.pop %v2326
        %v2331 = vtanh.pop %v2327
        %v2332 = vadd.f32 %v2328, 1.0
        %v2333 = vadd.f32 %v2329, 1.0
        %v2334 = vadd.f32 %v2330, 1.0
        %v2335 = vadd.f32 %v2331, 1.0
        %v2336 = vmul.f32 %v2332, 0.5
        %v2337 = vmul.f32 %v2333, 0.5
        %v2338 = vmul.f32 %v2334, 0.5
        %v2339 = vmul.f32 %v2335, 0.5
        %v2340 = vmul.f32 %v2299, %v2336
        %v2341 = vmul.f32 %v2301, %v2337
        %v2342 = vmul.f32 %v2304, %v2338
        %v2343 = vmul.f32 %v2306, %v2339
        %v2344 = vld [vmem:[%s12] sm:$0xf]
        %v2345 = vld [vmem:[%s12 + $0x4] sm:$0xf]
        %v2346 = vld [vmem:[%s12 + $0x8] sm:$0xf]
        %v2347 = vld [vmem:[%s12 + $0xc] sm:$0xf]
        %v2348 = vld [vmem:[%s12 + $0x10] sm:$0xf]
        %v2349 = vld [vmem:[%s12 + $0x14] sm:$0xf]
        %v2350 = vld [vmem:[%s12 + $0x18] sm:$0xf]
        %v2351 = vld [vmem:[%s12 + $0x1c] sm:$0xf]
        %v2352 = vpack.c.bf16 %v2341, %v2340
        %v2353 = vpack.c.bf16 %v2343, %v2342
        %v2354 = vld [vmem:[#allocation17] sm:$0x1]
        %v2356 = vperm.slane %v2354, 0
        %v2366 = vunpack.c.l.b16 %v2344
        %v2367 = vunpack.c.l.b16 %v2345
        %v2368 = vunpack.c.l.b16 %v2346
        %v2369 = vunpack.c.l.b16 %v2347
        %v2370 = vunpack.c.l.b16 %v2348
        %v2371 = vunpack.c.l.b16 %v2349
        %v2372 = vunpack.c.l.b16 %v2350
        %v2373 = vunpack.c.l.b16 %v2351
        %v2374 = vpack.c.b16 %v2367, %v2366
        %v2375 = vpack.c.b16 %v2369, %v2368
        %v2376 = vpack.c.b16 %v2371, %v2370
        %v2377 = vpack.c.b16 %v2373, %v2372
        %vm2382 = vcmask 523264
        %v2384 = vsel %vm2382, %v2352, 0
        %v2387 = vsel %vm2382, %v2353, 0
        %2389 = vmatpush.bf16.msra.mxu0 0
        %2390 = vmatpush.bf16.msra.mxu0 0
        %2391 = vmatpush.bf16.msra.mxu0 0
        %2392 = vmatpush.bf16.msra.mxu0 0
        %2393 = vmatpush.bf16.msra.mxu0 %v2377
        %2394 = vmatpush.bf16.msra.mxu0 %v2376
        %2395 = vmatpush.bf16.msra.mxu0 %v2375
        %2396 = vmatpush.bf16.msra.mxu0 %v2374
        %2397 = vmatmul.bf16.gmra.mxu0 %v2384
        %v2398 = vpop.f32.mrf.mxu0
        %v2399 = vadd.f32 %v2356, %v2398
        %v2400 = vpop.f32.mrf.mxu0
        %v2401 = vadd.f32 %v2356, %v2400
        %2402 = vmatmul.bf16.gmra.mxu0 %v2387
        %v2403 = vpop.f32.mrf.mxu0
        %v2404 = vadd.f32 %v2356, %v2403
        %v2405 = vpop.f32.mrf.mxu0
        %v2406 = vadd.f32 %v2356, %v2405
        %2407 = vdwg.mxu0
        %v2408 = vadd.f32 %v2399, %v2257
        %v2409 = vadd.f32 %v2401, %v2258
        %v2410 = vadd.f32 %v2404, %v2259
        %v2411 = vadd.f32 %v2406, %v2260
        %v2412 = vld [vmem:[#allocation19] sm:$0x1]
        %v2413 = vld [vmem:[#allocation20] sm:$0x1]
        %v2414 = vsel %vm938, %v2408, 0.0
        %2415 = vadd.xlane.f32.xlu0 %v2414
        %v2416 = vpop.xlane.xlu0 %2415
        %v2417 = vsel %vm938, %v2409, 0.0
        %2418 = vadd.xlane.f32.xlu0 %v2417
        %v2419 = vpop.xlane.xlu0 %2418
        %v2420 = vsel %vm938, %v2410, 0.0
        %2421 = vadd.xlane.f32.xlu0 %v2420
        %v2422 = vpop.xlane.xlu0 %2421
        %v2423 = vsel %vm938, %v2411, 0.0
        %2424 = vadd.xlane.f32.xlu0 %v2423
        %v2425 = vpop.xlane.xlu0 %2424
        %v2426 = vmul.f32 %v2416, %v957
        %v2427 = vmul.f32 %v2419, %v957
        %v2428 = vmul.f32 %v2422, %v957
        %v2429 = vmul.f32 %v2425, %v957
        %v2430 = vsub.f32 %v2408, %v2426
        %v2431 = vsub.f32 %v2409, %v2427
        %v2432 = vsub.f32 %v2410, %v2428
        %v2433 = vsub.f32 %v2411, %v2429
        %v2434 = vmul.f32 %v2430, %v2430
        %v2435 = vmul.f32 %v2431, %v2431
        %v2436 = vmul.f32 %v2432, %v2432
        %v2437 = vmul.f32 %v2433, %v2433
        %v2438 = vsel %vm938, %v2434, 0.0
        %2439 = vadd.xlane.f32.xlu0 %v2438
        %v2440 = vpop.xlane.xlu0 %2439
        %v2441 = vsel %vm938, %v2435, 0.0
        %2442 = vadd.xlane.f32.xlu0 %v2441
        %v2443 = vpop.xlane.xlu0 %2442
        %v2444 = vsel %vm938, %v2436, 0.0
        %2445 = vadd.xlane.f32.xlu0 %v2444
        %v2446 = vpop.xlane.xlu0 %2445
        %v2447 = vsel %vm938, %v2437, 0.0
        %2448 = vadd.xlane.f32.xlu0 %v2447
        %v2449 = vpop.xlane.xlu0 %2448
        %v2450 = vmul.f32 %v2440, %v957
        %v2451 = vmul.f32 %v2443, %v957
        %v2452 = vmul.f32 %v2446, %v957
        %v2453 = vmul.f32 %v2449, %v957
        %v2454 = vadd.f32 %v2450, 1e-12
        %v2455 = vadd.f32 %v2451, 1e-12
        %v2456 = vadd.f32 %v2452, 1e-12
        %v2457 = vadd.f32 %v2453, 1e-12
        %v2458 = vrsqrt.pop %v2454
        %v2459 = vmul.f32 %v2458, %v2454
        %v2460 = vmul.f32 %v2459, %v2458
        %v2461 = vmul.f32 0.5, %v2460
        %v2462 = vsub.f32 1.5, %v2461
        %v2463 = vmul.f32 %v2458, %v2462
        %vm2464 = vweird.f32 %v2454
        %vm2465 = vweird.f32 %v2458
        %vm2466 = vmor %vm2464, %vm2465
        %v2467 = vsel %vm2466, %v2458, %v2463
        %v2468 = vrsqrt.pop %v2455
        %v2469 = vmul.f32 %v2468, %v2455
        %v2470 = vmul.f32 %v2469, %v2468
        %v2471 = vmul.f32 0.5, %v2470
        %v2472 = vsub.f32 1.5, %v2471
        %v2473 = vmul.f32 %v2468, %v2472
        %vm2474 = vweird.f32 %v2455
        %vm2475 = vweird.f32 %v2468
        %vm2476 = vmor %vm2474, %vm2475
        %v2477 = vsel %vm2476, %v2468, %v2473
        %v2478 = vrsqrt.pop %v2456
        %v2479 = vmul.f32 %v2478, %v2456
        %v2480 = vmul.f32 %v2479, %v2478
        %v2481 = vmul.f32 0.5, %v2480
        %v2482 = vsub.f32 1.5, %v2481
        %v2483 = vmul.f32 %v2478, %v2482
        %vm2484 = vweird.f32 %v2456
        %vm2485 = vweird.f32 %v2478
        %vm2486 = vmor %vm2484, %vm2485
        %v2487 = vsel %vm2486, %v2478, %v2483
        %v2488 = vrsqrt.pop %v2457
        %v2489 = vmul.f32 %v2488, %v2457
        %v2490 = vmul.f32 %v2489, %v2488
        %v2491 = vmul.f32 0.5, %v2490
        %v2492 = vsub.f32 1.5, %v2491
        %v2493 = vmul.f32 %v2488, %v2492
        %vm2494 = vweird.f32 %v2457
        %vm2495 = vweird.f32 %v2488
        %vm2496 = vmor %vm2494, %vm2495
        %v2497 = vsel %vm2496, %v2488, %v2493
        %v2498 = vmul.f32 %v2430, %v2467
        %v2499 = vmul.f32 %v2431, %v2477
        %v2500 = vmul.f32 %v2432, %v2487
        %v2501 = vmul.f32 %v2433, %v2497
        %v2503 = vperm.slane %v2412, 0
        %v2505 = vmul.f32 %v2498, %v2503
        %v2506 = vmul.f32 %v2499, %v2503
        %v2507 = vmul.f32 %v2500, %v2503
        %v2508 = vmul.f32 %v2501, %v2503
        %v2510 = vperm.slane %v2413, 0
        %v2512 = vadd.f32 %v2505, %v2510
        %v2513 = vadd.f32 %v2506, %v2510
        %v2514 = vadd.f32 %v2507, %v2510
        %v2515 = vadd.f32 %v2508, %v2510
        %s2516 = scalar_lea.vmem %s4, 16
        %v2517 = vld [vmem:[%s2516] sm:$0xf]
        %v2518 = vld [vmem:[%s2516 + $0x4] sm:$0xf]
        %v2519 = vld [vmem:[%s2516 + $0x8] sm:$0xf]
        %v2520 = vld [vmem:[%s2516 + $0xc] sm:$0xf]
        %v2521 = vpack.c.bf16 %v2513, %v2512
        %v2522 = vpack.c.bf16 %v2515, %v2514
        %s2523 = scalar_lea.vmem [#allocation7], 1
        %v2524 = vld [vmem:[%s2523] sm:$0x1]
        %v2526 = vperm.slane %v2524, 0
        %v2532 = vunpack.c.l.b16 %v2517
        %v2533 = vunpack.c.l.b16 %v2518
        %v2534 = vunpack.c.l.b16 %v2519
        %v2535 = vunpack.c.l.b16 %v2520
        %v2536 = vpack.c.b16 %v2533, %v2532
        %v2537 = vpack.c.b16 %v2535, %v2534
        %v2541 = vsel %vm938, %v2521, 0
        %v2544 = vsel %vm938, %v2522, 0
        %2546 = vmatpush.bf16.msra.mxu0 0
        %2547 = vmatpush.bf16.msra.mxu0 0
        %2548 = vmatpush.bf16.msra.mxu0 0
        %2549 = vmatpush.bf16.msra.mxu0 0
        %2550 = vmatpush.bf16.msra.mxu0 0
        %2551 = vmatpush.bf16.msra.mxu0 0
        %2552 = vmatpush.bf16.msra.mxu0 %v2537
        %2553 = vmatpush.bf16.msra.mxu0 %v2536
        %2554 = vmatmul.bf16.gmra.mxu0 %v2541
        %v2555 = vpop.f32.mrf.mxu0
        %v2556 = vadd.f32 %v2526, %v2555
        %v2557 = vpop.f32.mrf.mxu0
        %v2558 = vadd.f32 %v2526, %v2557
        %2559 = vmatmul.bf16.gmra.mxu0 %v2544
        %v2560 = vpop.f32.mrf.mxu0
        %v2561 = vadd.f32 %v2526, %v2560
        %v2562 = vpop.f32.mrf.mxu0
        %v2563 = vadd.f32 %v2526, %v2562
        %2564 = vdwg.mxu0
        %s2565 = scalar_lea.vmem [#allocation8], 16
        %v2566 = vld [vmem:[%s2565] sm:$0xf]
        %v2567 = vld [vmem:[%s2565 + $0x4] sm:$0xf]
        %v2568 = vld [vmem:[%s2565 + $0x8] sm:$0xf]
        %v2569 = vld [vmem:[%s2565 + $0xc] sm:$0xf]
        %v2570 = vpack.c.bf16 %v2556, %v2556
        %v2571 = vpack.c.bf16 %v2558, %v2558
        %v2572 = vpack.c.bf16 %v2561, %v2561
        %v2573 = vpack.c.bf16 %v2563, %v2563
        %v2575 = vunpack.c.l.b16 %v2570
        %v2576 = vpack.c.b16 %v2575, %v2575
        %2577 = vrot.lane.b32.xlu0 %v2576, 96
        %v2578 = vpop.permute.xlu0 %2577
        %v2580 = vsel %vm1120, %v2570, 0
        %v2583 = vsel %vm1120, %v2578, 0
        %2585 = vmatpush.bf16.xpose.msra.mxu0 0
        %2586 = vmatpush.bf16.xpose.msra.mxu0 0
        %2587 = vmatpush.bf16.xpose.msra.mxu0 0
        %2588 = vmatpush.bf16.xpose.msra.mxu0 0
        %2589 = vmatpush.bf16.xpose.msra.mxu0 0
        %2590 = vmatpush.bf16.xpose.msra.mxu0 0
        %2591 = vmatpush.bf16.xpose.msra.mxu0 0
        %2592 = vmatpush.bf16.xpose.msra.mxu0 %v2583
        %2593 = vmatmul.bf16.gmra.mxu0 %v2580
        %v2594 = vpop.f32.mrf.mxu0
        %v2595 = vadd.f32 %v1107, %v2594
        %v2596 = vpop.f32.mrf.mxu0
        %2597 = vdwg.mxu0
        %v2599 = vunpack.c.l.b16 %v2571
        %v2600 = vpack.c.b16 %v2599, %v2599
        %2601 = vrot.lane.b32.xlu0 %v2600, 96
        %v2602 = vpop.permute.xlu0 %2601
        %v2604 = vsel %vm1120, %v2571, 0
        %v2607 = vsel %vm1120, %v2602, 0
        %2609 = vmatpush.bf16.xpose.msra.mxu0 0
        %2610 = vmatpush.bf16.xpose.msra.mxu0 0
        %2611 = vmatpush.bf16.xpose.msra.mxu0 0
        %2612 = vmatpush.bf16.xpose.msra.mxu0 0
        %2613 = vmatpush.bf16.xpose.msra.mxu0 0
        %2614 = vmatpush.bf16.xpose.msra.mxu0 0
        %2615 = vmatpush.bf16.xpose.msra.mxu0 0
        %2616 = vmatpush.bf16.xpose.msra.mxu0 %v2607
        %2617 = vmatmul.bf16.gmra.mxu0 %v2604
        %v2618 = vpop.f32.mrf.mxu0
        %v2619 = vadd.f32 %v1108, %v2618
        %v2620 = vpop.f32.mrf.mxu0
        %2621 = vdwg.mxu0
        %v2623 = vunpack.c.l.b16 %v2572
        %v2624 = vpack.c.b16 %v2623, %v2623
        %2625 = vrot.lane.b32.xlu0 %v2624, 96
        %v2626 = vpop.permute.xlu0 %2625
        %v2628 = vsel %vm1120, %v2572, 0
        %v2631 = vsel %vm1120, %v2626, 0
        %2633 = vmatpush.bf16.xpose.msra.mxu0 0
        %2634 = vmatpush.bf16.xpose.msra.mxu0 0
        %2635 = vmatpush.bf16.xpose.msra.mxu0 0
        %2636 = vmatpush.bf16.xpose.msra.mxu0 0
        %2637 = vmatpush.bf16.xpose.msra.mxu0 0
        %2638 = vmatpush.bf16.xpose.msra.mxu0 0
        %2639 = vmatpush.bf16.xpose.msra.mxu0 0
        %2640 = vmatpush.bf16.xpose.msra.mxu0 %v2631
        %2641 = vmatmul.bf16.gmra.mxu0 %v2628
        %v2642 = vpop.f32.mrf.mxu0
        %v2643 = vadd.f32 %v1109, %v2642
        %v2644 = vpop.f32.mrf.mxu0
        %2645 = vdwg.mxu0
        %v2647 = vunpack.c.l.b16 %v2573
        %v2648 = vpack.c.b16 %v2647, %v2647
        %2649 = vrot.lane.b32.xlu0 %v2648, 96
        %v2650 = vpop.permute.xlu0 %2649
        %v2652 = vsel %vm1120, %v2573, 0
        %v2655 = vsel %vm1120, %v2650, 0
        %2657 = vmatpush.bf16.xpose.msra.mxu0 0
        %2658 = vmatpush.bf16.xpose.msra.mxu0 0
        %2659 = vmatpush.bf16.xpose.msra.mxu0 0
        %2660 = vmatpush.bf16.xpose.msra.mxu0 0
        %2661 = vmatpush.bf16.xpose.msra.mxu0 0
        %2662 = vmatpush.bf16.xpose.msra.mxu0 0
        %2663 = vmatpush.bf16.xpose.msra.mxu0 0
        %2664 = vmatpush.bf16.xpose.msra.mxu0 %v2655
        %2665 = vmatmul.bf16.gmra.mxu0 %v2652
        %v2666 = vpop.f32.mrf.mxu0
        %v2667 = vadd.f32 %v1110, %v2666
        %v2668 = vpop.f32.mrf.mxu0
        %2669 = vdwg.mxu0
        %v2670 = vsel %vm1120, %v2595, -inf
        %2671 = vmax.xlane.f32.xlu0 %v2670
        %v2672 = vpop.xlane.xlu0 %2671
        %v2673 = vsel %vm1120, %v2619, -inf
        %2674 = vmax.xlane.f32.xlu0 %v2673
        %v2675 = vpop.xlane.xlu0 %2674
        %v2676 = vsel %vm1120, %v2643, -inf
        %2677 = vmax.xlane.f32.xlu0 %v2676
        %v2678 = vpop.xlane.xlu0 %2677
        %v2679 = vsel %vm1120, %v2667, -inf
        %2680 = vmax.xlane.f32.xlu0 %v2679
        %v2681 = vpop.xlane.xlu0 %2680
        %v2682 = vsub.f32 %v2595, %v2672
        %v2683 = vsub.f32 %v2619, %v2675
        %v2684 = vsub.f32 %v2643, %v2678
        %v2685 = vsub.f32 %v2667, %v2681
        %v2686 = vmul.f32 %v2682, 1.442695
        %v2687 = vpow.pop %v2686
        %v2688 = vmul.f32 %v2683, 1.442695
        %v2689 = vpow.pop %v2688
        %v2690 = vmul.f32 %v2684, 1.442695
        %v2691 = vpow.pop %v2690
        %v2692 = vmul.f32 %v2685, 1.442695
        %v2693 = vpow.pop %v2692
        %v2694 = vsel %vm1120, %v2687, 0.0
        %2695 = vadd.xlane.f32.xlu0 %v2694
        %v2696 = vpop.xlane.xlu0 %2695
        %v2697 = vsel %vm1120, %v2689, 0.0
        %2698 = vadd.xlane.f32.xlu0 %v2697
        %v2699 = vpop.xlane.xlu0 %2698
        %v2700 = vsel %vm1120, %v2691, 0.0
        %2701 = vadd.xlane.f32.xlu0 %v2700
        %v2702 = vpop.xlane.xlu0 %2701
        %v2703 = vsel %vm1120, %v2693, 0.0
        %2704 = vadd.xlane.f32.xlu0 %v2703
        %v2705 = vpop.xlane.xlu0 %2704
        %v2706 = vrcp.pop %v2696
        %v2707 = vrcp.pop %v2699
        %v2708 = vrcp.pop %v2702
        %v2709 = vrcp.pop %v2705
        %v2710 = vmul.f32 %v2687, %v2706
        %v2711 = vmul.f32 %v2689, %v2707
        %v2712 = vmul.f32 %v2691, %v2708
        %v2713 = vmul.f32 %v2693, %v2709
        %v2714 = vpack.c.bf16 %v2710, %v2710
        %v2715 = vpack.c.bf16 %v2711, %v2711
        %v2716 = vpack.c.bf16 %v2712, %v2712
        %v2717 = vpack.c.bf16 %v2713, %v2713
        %2718 = vrot.lane.b32.xlu0 %v2576, 64
        %v2719 = vpop.permute.xlu0 %2718
        %v2721 = vsel %vm1120, %v2714, 0
        %v2724 = vsel %vm1265, %v2719, 0
        %2726 = vmatpush.bf16.msra.mxu0 0
        %2727 = vmatpush.bf16.msra.mxu0 0
        %2728 = vmatpush.bf16.msra.mxu0 0
        %2729 = vmatpush.bf16.msra.mxu0 0
        %2730 = vmatpush.bf16.msra.mxu0 0
        %2731 = vmatpush.bf16.msra.mxu0 0
        %2732 = vmatpush.bf16.msra.mxu0 0
        %2733 = vmatpush.bf16.msra.mxu0 %v2724
        %2734 = vmatmul.bf16.gmra.mxu0 %v2721
        %v2735 = vpop.f32.mrf.mxu0
        %v2736 = vadd.f32 0.0, %v2735
        %v2737 = vpop.f32.mrf.mxu0
        %2738 = vdwg.mxu0
        %2739 = vrot.lane.b32.xlu0 %v2600, 64
        %v2740 = vpop.permute.xlu0 %2739
        %v2742 = vsel %vm1120, %v2715, 0
        %v2745 = vsel %vm1265, %v2740, 0
        %2747 = vmatpush.bf16.msra.mxu0 0
        %2748 = vmatpush.bf16.msra.mxu0 0
        %2749 = vmatpush.bf16.msra.mxu0 0
        %2750 = vmatpush.bf16.msra.mxu0 0
        %2751 = vmatpush.bf16.msra.mxu0 0
        %2752 = vmatpush.bf16.msra.mxu0 0
        %2753 = vmatpush.bf16.msra.mxu0 0
        %2754 = vmatpush.bf16.msra.mxu0 %v2745
        %2755 = vmatmul.bf16.gmra.mxu0 %v2742
        %v2756 = vpop.f32.mrf.mxu0
        %v2757 = vadd.f32 0.0, %v2756
        %v2758 = vpop.f32.mrf.mxu0
        %2759 = vdwg.mxu0
        %2760 = vrot.lane.b32.xlu0 %v2624, 64
        %v2761 = vpop.permute.xlu0 %2760
        %v2763 = vsel %vm1120, %v2716, 0
        %v2766 = vsel %vm1265, %v2761, 0
        %2768 = vmatpush.bf16.msra.mxu0 0
        %2769 = vmatpush.bf16.msra.mxu0 0
        %2770 = vmatpush.bf16.msra.mxu0 0
        %2771 = vmatpush.bf16.msra.mxu0 0
        %2772 = vmatpush.bf16.msra.mxu0 0
        %2773 = vmatpush.bf16.msra.mxu0 0
        %2774 = vmatpush.bf16.msra.mxu0 0
        %2775 = vmatpush.bf16.msra.mxu0 %v2766
        %2776 = vmatmul.bf16.gmra.mxu0 %v2763
        %v2777 = vpop.f32.mrf.mxu0
        %v2778 = vadd.f32 0.0, %v2777
        %v2779 = vpop.f32.mrf.mxu0
        %2780 = vdwg.mxu0
        %2781 = vrot.lane.b32.xlu0 %v2648, 64
        %v2782 = vpop.permute.xlu0 %2781
        %v2784 = vsel %vm1120, %v2717, 0
        %v2787 = vsel %vm1265, %v2782, 0
        %2789 = vmatpush.bf16.msra.mxu0 0
        %2790 = vmatpush.bf16.msra.mxu0 0
        %2791 = vmatpush.bf16.msra.mxu0 0
        %2792 = vmatpush.bf16.msra.mxu0 0
        %2793 = vmatpush.bf16.msra.mxu0 0
        %2794 = vmatpush.bf16.msra.mxu0 0
        %2795 = vmatpush.bf16.msra.mxu0 0
        %2796 = vmatpush.bf16.msra.mxu0 %v2787
        %2797 = vmatmul.bf16.gmra.mxu0 %v2784
        %v2798 = vpop.f32.mrf.mxu0
        %v2799 = vadd.f32 0.0, %v2798
        %v2800 = vpop.f32.mrf.mxu0
        %2801 = vdwg.mxu0
        %v2802 = vpack.c.bf16 %v2757, %v2736
        %v2803 = vpack.c.bf16 %v2799, %v2778
        %2804 = vrot.lane.b32.xlu0 %v2576, 120
        %v2805 = vpop.permute.xlu0 %2804
        %2806 = vrot.lane.b32.xlu0 %v2576, 88
        %v2807 = vpop.permute.xlu0 %2806
        %v2809 = vsel %vm1120, %v2805, 0
        %v2812 = vsel %vm1120, %v2807, 0
        %2814 = vmatpush.bf16.xpose.msra.mxu0 0
        %2815 = vmatpush.bf16.xpose.msra.mxu0 0
        %2816 = vmatpush.bf16.xpose.msra.mxu0 0
        %2817 = vmatpush.bf16.xpose.msra.mxu0 0
        %2818 = vmatpush.bf16.xpose.msra.mxu0 0
        %2819 = vmatpush.bf16.xpose.msra.mxu0 0
        %2820 = vmatpush.bf16.xpose.msra.mxu0 0
        %2821 = vmatpush.bf16.xpose.msra.mxu0 %v2812
        %2822 = vmatmul.bf16.gmra.mxu0 %v2809
        %v2823 = vpop.f32.mrf.mxu0
        %v2824 = vadd.f32 %v1107, %v2823
        %v2825 = vpop.f32.mrf.mxu0
        %2826 = vdwg.mxu0
        %2827 = vrot.lane.b32.xlu0 %v2600, 120
        %v2828 = vpop.permute.xlu0 %2827
        %2829 = vrot.lane.b32.xlu0 %v2600, 88
        %v2830 = vpop.permute.xlu0 %2829
        %v2832 = vsel %vm1120, %v2828, 0
        %v2835 = vsel %vm1120, %v2830, 0
        %2837 = vmatpush.bf16.xpose.msra.mxu0 0
        %2838 = vmatpush.bf16.xpose.msra.mxu0 0
        %2839 = vmatpush.bf16.xpose.msra.mxu0 0
        %2840 = vmatpush.bf16.xpose.msra.mxu0 0
        %2841 = vmatpush.bf16.xpose.msra.mxu0 0
        %2842 = vmatpush.bf16.xpose.msra.mxu0 0
        %2843 = vmatpush.bf16.xpose.msra.mxu0 0
        %2844 = vmatpush.bf16.xpose.msra.mxu0 %v2835
        %2845 = vmatmul.bf16.gmra.mxu0 %v2832
        %v2846 = vpop.f32.mrf.mxu0
        %v2847 = vadd.f32 %v1108, %v2846
        %v2848 = vpop.f32.mrf.mxu0
        %2849 = vdwg.mxu0
        %2850 = vrot.lane.b32.xlu0 %v2624, 120
        %v2851 = vpop.permute.xlu0 %2850
        %2852 = vrot.lane.b32.xlu0 %v2624, 88
        %v2853 = vpop.permute.xlu0 %2852
        %v2855 = vsel %vm1120, %v2851, 0
        %v2858 = vsel %vm1120, %v2853, 0
        %2860 = vmatpush.bf16.xpose.msra.mxu0 0
        %2861 = vmatpush.bf16.xpose.msra.mxu0 0
        %2862 = vmatpush.bf16.xpose.msra.mxu0 0
        %2863 = vmatpush.bf16.xpose.msra.mxu0 0
        %2864 = vmatpush.bf16.xpose.msra.mxu0 0
        %2865 = vmatpush.bf16.xpose.msra.mxu0 0
        %2866 = vmatpush.bf16.xpose.msra.mxu0 0
        %2867 = vmatpush.bf16.xpose.msra.mxu0 %v2858
        %2868 = vmatmul.bf16.gmra.mxu0 %v2855
        %v2869 = vpop.f32.mrf.mxu0
        %v2870 = vadd.f32 %v1109, %v2869
        %v2871 = vpop.f32.mrf.mxu0
        %2872 = vdwg.mxu0
        %2873 = vrot.lane.b32.xlu0 %v2648, 120
        %v2874 = vpop.permute.xlu0 %2873
        %2875 = vrot.lane.b32.xlu0 %v2648, 88
        %v2876 = vpop.permute.xlu0 %2875
        %v2878 = vsel %vm1120, %v2874, 0
        %v2881 = vsel %vm1120, %v2876, 0
        %2883 = vmatpush.bf16.xpose.msra.mxu0 0
        %2884 = vmatpush.bf16.xpose.msra.mxu0 0
        %2885 = vmatpush.bf16.xpose.msra.mxu0 0
        %2886 = vmatpush.bf16.xpose.msra.mxu0 0
        %2887 = vmatpush.bf16.xpose.msra.mxu0 0
        %2888 = vmatpush.bf16.xpose.msra.mxu0 0
        %2889 = vmatpush.bf16.xpose.msra.mxu0 0
        %2890 = vmatpush.bf16.xpose.msra.mxu0 %v2881
        %2891 = vmatmul.bf16.gmra.mxu0 %v2878
        %v2892 = vpop.f32.mrf.mxu0
        %v2893 = vadd.f32 %v1110, %v2892
        %v2894 = vpop.f32.mrf.mxu0
        %2895 = vdwg.mxu0
        %v2896 = vsel %vm1120, %v2824, -inf
        %2897 = vmax.xlane.f32.xlu0 %v2896
        %v2898 = vpop.xlane.xlu0 %2897
        %v2899 = vsel %vm1120, %v2847, -inf
        %2900 = vmax.xlane.f32.xlu0 %v2899
        %v2901 = vpop.xlane.xlu0 %2900
        %v2902 = vsel %vm1120, %v2870, -inf
        %2903 = vmax.xlane.f32.xlu0 %v2902
        %v2904 = vpop.xlane.xlu0 %2903
        %v2905 = vsel %vm1120, %v2893, -inf
        %2906 = vmax.xlane.f32.xlu0 %v2905
        %v2907 = vpop.xlane.xlu0 %2906
        %v2908 = vsub.f32 %v2824, %v2898
        %v2909 = vsub.f32 %v2847, %v2901
        %v2910 = vsub.f32 %v2870, %v2904
        %v2911 = vsub.f32 %v2893, %v2907
        %v2912 = vmul.f32 %v2908, 1.442695
        %v2913 = vpow.pop %v2912
        %v2914 = vmul.f32 %v2909, 1.442695
        %v2915 = vpow.pop %v2914
        %v2916 = vmul.f32 %v2910, 1.442695
        %v2917 = vpow.pop %v2916
        %v2918 = vmul.f32 %v2911, 1.442695
        %v2919 = vpow.pop %v2918
        %v2920 = vsel %vm1120, %v2913, 0.0
        %2921 = vadd.xlane.f32.xlu0 %v2920
        %v2922 = vpop.xlane.xlu0 %2921
        %v2923 = vsel %vm1120, %v2915, 0.0
        %2924 = vadd.xlane.f32.xlu0 %v2923
        %v2925 = vpop.xlane.xlu0 %2924
        %v2926 = vsel %vm1120, %v2917, 0.0
        %2927 = vadd.xlane.f32.xlu0 %v2926
        %v2928 = vpop.xlane.xlu0 %2927
        %v2929 = vsel %vm1120, %v2919, 0.0
        %2930 = vadd.xlane.f32.xlu0 %v2929
        %v2931 = vpop.xlane.xlu0 %2930
        %v2932 = vrcp.pop %v2922
        %v2933 = vrcp.pop %v2925
        %v2934 = vrcp.pop %v2928
        %v2935 = vrcp.pop %v2931
        %v2936 = vmul.f32 %v2913, %v2932
        %v2937 = vmul.f32 %v2915, %v2933
        %v2938 = vmul.f32 %v2917, %v2934
        %v2939 = vmul.f32 %v2919, %v2935
        %v2940 = vpack.c.bf16 %v2936, %v2936
        %v2941 = vpack.c.bf16 %v2937, %v2937
        %v2942 = vpack.c.bf16 %v2938, %v2938
        %v2943 = vpack.c.bf16 %v2939, %v2939
        %2944 = vrot.lane.b32.xlu0 %v2576, 56
        %v2945 = vpop.permute.xlu0 %2944
        %v2947 = vsel %vm1120, %v2940, 0
        %v2950 = vsel %vm1265, %v2945, 0
        %2952 = vmatpush.bf16.msra.mxu0 0
        %2953 = vmatpush.bf16.msra.mxu0 0
        %2954 = vmatpush.bf16.msra.mxu0 0
        %2955 = vmatpush.bf16.msra.mxu0 0
        %2956 = vmatpush.bf16.msra.mxu0 0
        %2957 = vmatpush.bf16.msra.mxu0 0
        %2958 = vmatpush.bf16.msra.mxu0 0
        %2959 = vmatpush.bf16.msra.mxu0 %v2950
        %2960 = vmatmul.bf16.gmra.mxu0 %v2947
        %v2961 = vpop.f32.mrf.mxu0
        %v2962 = vadd.f32 0.0, %v2961
        %v2963 = vpop.f32.mrf.mxu0
        %2964 = vdwg.mxu0
        %2965 = vrot.lane.b32.xlu0 %v2600, 56
        %v2966 = vpop.permute.xlu0 %2965
        %v2968 = vsel %vm1120, %v2941, 0
        %v2971 = vsel %vm1265, %v2966, 0
        %2973 = vmatpush.bf16.msra.mxu0 0
        %2974 = vmatpush.bf16.msra.mxu0 0
        %2975 = vmatpush.bf16.msra.mxu0 0
        %2976 = vmatpush.bf16.msra.mxu0 0
        %2977 = vmatpush.bf16.msra.mxu0 0
        %2978 = vmatpush.bf16.msra.mxu0 0
        %2979 = vmatpush.bf16.msra.mxu0 0
        %2980 = vmatpush.bf16.msra.mxu0 %v2971
        %2981 = vmatmul.bf16.gmra.mxu0 %v2968
        %v2982 = vpop.f32.mrf.mxu0
        %v2983 = vadd.f32 0.0, %v2982
        %v2984 = vpop.f32.mrf.mxu0
        %2985 = vdwg.mxu0
        %2986 = vrot.lane.b32.xlu0 %v2624, 56
        %v2987 = vpop.permute.xlu0 %2986
        %v2989 = vsel %vm1120, %v2942, 0
        %v2992 = vsel %vm1265, %v2987, 0
        %2994 = vmatpush.bf16.msra.mxu0 0
        %2995 = vmatpush.bf16.msra.mxu0 0
        %2996 = vmatpush.bf16.msra.mxu0 0
        %2997 = vmatpush.bf16.msra.mxu0 0
        %2998 = vmatpush.bf16.msra.mxu0 0
        %2999 = vmatpush.bf16.msra.mxu0 0
        %3000 = vmatpush.bf16.msra.mxu0 0
        %3001 = vmatpush.bf16.msra.mxu0 %v2992
        %3002 = vmatmul.bf16.gmra.mxu0 %v2989
        %v3003 = vpop.f32.mrf.mxu0
        %v3004 = vadd.f32 0.0, %v3003
        %v3005 = vpop.f32.mrf.mxu0
        %3006 = vdwg.mxu0
        %3007 = vrot.lane.b32.xlu0 %v2648, 56
        %v3008 = vpop.permute.xlu0 %3007
        %v3010 = vsel %vm1120, %v2943, 0
        %v3013 = vsel %vm1265, %v3008, 0
        %3015 = vmatpush.bf16.msra.mxu0 0
        %3016 = vmatpush.bf16.msra.mxu0 0
        %3017 = vmatpush.bf16.msra.mxu0 0
        %3018 = vmatpush.bf16.msra.mxu0 0
        %3019 = vmatpush.bf16.msra.mxu0 0
        %3020 = vmatpush.bf16.msra.mxu0 0
        %3021 = vmatpush.bf16.msra.mxu0 0
        %3022 = vmatpush.bf16.msra.mxu0 %v3013
        %3023 = vmatmul.bf16.gmra.mxu0 %v3010
        %v3024 = vpop.f32.mrf.mxu0
        %v3025 = vadd.f32 0.0, %v3024
        %v3026 = vpop.f32.mrf.mxu0
        %3027 = vdwg.mxu0
        %v3028 = vpack.c.bf16 %v2983, %v2962
        %v3029 = vpack.c.bf16 %v3025, %v3004
        %v3031 = vsel %vm1120, %v3028, 0
        %v3034 = vsel %vm1120, %v3029, 0
        %v3037 = vsel %vm1265, %v2567, 0
        %3039 = vmatpush.bf16.msra.mxu0 0
        %3040 = vmatpush.bf16.msra.mxu0 0
        %3041 = vmatpush.bf16.msra.mxu0 0
        %3042 = vmatpush.bf16.msra.mxu0 0
        %3043 = vmatpush.bf16.msra.mxu0 0
        %3044 = vmatpush.bf16.msra.mxu0 0
        %3045 = vmatpush.bf16.msra.mxu0 0
        %3046 = vmatpush.bf16.msra.mxu0 %v3037
        %3047 = vmatmul.bf16.gmra.mxu0 %v3031
        %v3048 = vpop.f32.mrf.mxu0
        %v3049 = vadd.f32 0.0, %v3048
        %v3050 = vpop.f32.mrf.mxu0
        %v3051 = vadd.f32 0.0, %v3050
        %3052 = vmatmul.bf16.gmra.mxu0 %v3034
        %v3053 = vpop.f32.mrf.mxu0
        %v3054 = vadd.f32 0.0, %v3053
        %v3055 = vpop.f32.mrf.mxu0
        %v3056 = vadd.f32 0.0, %v3055
        %3057 = vdwg.mxu0
        %v3059 = vsel %vm1120, %v2802, 0
        %v3062 = vsel %vm1120, %v2803, 0
        %v3065 = vsel %vm1265, %v2566, 0
        %3067 = vmatpush.bf16.msra.mxu0 0
        %3068 = vmatpush.bf16.msra.mxu0 0
        %3069 = vmatpush.bf16.msra.mxu0 0
        %3070 = vmatpush.bf16.msra.mxu0 0
        %3071 = vmatpush.bf16.msra.mxu0 0
        %3072 = vmatpush.bf16.msra.mxu0 0
        %3073 = vmatpush.bf16.msra.mxu0 0
        %3074 = vmatpush.bf16.msra.mxu0 %v3065
        %3075 = vmatmul.bf16.gmra.mxu0 %v3059
        %v3076 = vpop.f32.mrf.mxu0
        %v3077 = vadd.f32 %v3049, %v3076
        %v3078 = vpop.f32.mrf.mxu0
        %v3079 = vadd.f32 %v3051, %v3078
        %3080 = vmatmul.bf16.gmra.mxu0 %v3062
        %v3081 = vpop.f32.mrf.mxu0
        %v3082 = vadd.f32 %v3054, %v3081
        %v3083 = vpop.f32.mrf.mxu0
        %v3084 = vadd.f32 %v3056, %v3083
        %3085 = vdwg.mxu0
        %3086 = vrot.lane.b32.xlu0 %v2576, 112
        %v3087 = vpop.permute.xlu0 %3086
        %3088 = vrot.lane.b32.xlu0 %v2576, 80
        %v3089 = vpop.permute.xlu0 %3088
        %v3091 = vsel %vm1120, %v3087, 0
        %v3094 = vsel %vm1120, %v3089, 0
        %3096 = vmatpush.bf16.xpose.msra.mxu0 0
        %3097 = vmatpush.bf16.xpose.msra.mxu0 0
        %3098 = vmatpush.bf16.xpose.msra.mxu0 0
        %3099 = vmatpush.bf16.xpose.msra.mxu0 0
        %3100 = vmatpush.bf16.xpose.msra.mxu0 0
        %3101 = vmatpush.bf16.xpose.msra.mxu0 0
        %3102 = vmatpush.bf16.xpose.msra.mxu0 0
        %3103 = vmatpush.bf16.xpose.msra.mxu0 %v3094
        %3104 = vmatmul.bf16.gmra.mxu0 %v3091
        %v3105 = vpop.f32.mrf.mxu0
        %v3106 = vadd.f32 %v1107, %v3105
        %v3107 = vpop.f32.mrf.mxu0
        %3108 = vdwg.mxu0
        %3109 = vrot.lane.b32.xlu0 %v2600, 112
        %v3110 = vpop.permute.xlu0 %3109
        %3111 = vrot.lane.b32.xlu0 %v2600, 80
        %v3112 = vpop.permute.xlu0 %3111
        %v3114 = vsel %vm1120, %v3110, 0
        %v3117 = vsel %vm1120, %v3112, 0
        %3119 = vmatpush.bf16.xpose.msra.mxu0 0
        %3120 = vmatpush.bf16.xpose.msra.mxu0 0
        %3121 = vmatpush.bf16.xpose.msra.mxu0 0
        %3122 = vmatpush.bf16.xpose.msra.mxu0 0
        %3123 = vmatpush.bf16.xpose.msra.mxu0 0
        %3124 = vmatpush.bf16.xpose.msra.mxu0 0
        %3125 = vmatpush.bf16.xpose.msra.mxu0 0
        %3126 = vmatpush.bf16.xpose.msra.mxu0 %v3117
        %3127 = vmatmul.bf16.gmra.mxu0 %v3114
        %v3128 = vpop.f32.mrf.mxu0
        %v3129 = vadd.f32 %v1108, %v3128
        %v3130 = vpop.f32.mrf.mxu0
        %3131 = vdwg.mxu0
        %3132 = vrot.lane.b32.xlu0 %v2624, 112
        %v3133 = vpop.permute.xlu0 %3132
        %3134 = vrot.lane.b32.xlu0 %v2624, 80
        %v3135 = vpop.permute.xlu0 %3134
        %v3137 = vsel %vm1120, %v3133, 0
        %v3140 = vsel %vm1120, %v3135, 0
        %3142 = vmatpush.bf16.xpose.msra.mxu0 0
        %3143 = vmatpush.bf16.xpose.msra.mxu0 0
        %3144 = vmatpush.bf16.xpose.msra.mxu0 0
        %3145 = vmatpush.bf16.xpose.msra.mxu0 0
        %3146 = vmatpush.bf16.xpose.msra.mxu0 0
        %3147 = vmatpush.bf16.xpose.msra.mxu0 0
        %3148 = vmatpush.bf16.xpose.msra.mxu0 0
        %3149 = vmatpush.bf16.xpose.msra.mxu0 %v3140
        %3150 = vmatmul.bf16.gmra.mxu0 %v3137
        %v3151 = vpop.f32.mrf.mxu0
        %v3152 = vadd.f32 %v1109, %v3151
        %v3153 = vpop.f32.mrf.mxu0
        %3154 = vdwg.mxu0
        %3155 = vrot.lane.b32.xlu0 %v2648, 112
        %v3156 = vpop.permute.xlu0 %3155
        %3157 = vrot.lane.b32.xlu0 %v2648, 80
        %v3158 = vpop.permute.xlu0 %3157
        %v3160 = vsel %vm1120, %v3156, 0
        %v3163 = vsel %vm1120, %v3158, 0
        %3165 = vmatpush.bf16.xpose.msra.mxu0 0
        %3166 = vmatpush.bf16.xpose.msra.mxu0 0
        %3167 = vmatpush.bf16.xpose.msra.mxu0 0
        %3168 = vmatpush.bf16.xpose.msra.mxu0 0
        %3169 = vmatpush.bf16.xpose.msra.mxu0 0
        %3170 = vmatpush.bf16.xpose.msra.mxu0 0
        %3171 = vmatpush.bf16.xpose.msra.mxu0 0
        %3172 = vmatpush.bf16.xpose.msra.mxu0 %v3163
        %3173 = vmatmul.bf16.gmra.mxu0 %v3160
        %v3174 = vpop.f32.mrf.mxu0
        %v3175 = vadd.f32 %v1110, %v3174
        %v3176 = vpop.f32.mrf.mxu0
        %3177 = vdwg.mxu0
        %v3178 = vsel %vm1120, %v3106, -inf
        %3179 = vmax.xlane.f32.xlu0 %v3178
        %v3180 = vpop.xlane.xlu0 %3179
        %v3181 = vsel %vm1120, %v3129, -inf
        %3182 = vmax.xlane.f32.xlu0 %v3181
        %v3183 = vpop.xlane.xlu0 %3182
        %v3184 = vsel %vm1120, %v3152, -inf
        %3185 = vmax.xlane.f32.xlu0 %v3184
        %v3186 = vpop.xlane.xlu0 %3185
        %v3187 = vsel %vm1120, %v3175, -inf
        %3188 = vmax.xlane.f32.xlu0 %v3187
        %v3189 = vpop.xlane.xlu0 %3188
        %v3190 = vsub.f32 %v3106, %v3180
        %v3191 = vsub.f32 %v3129, %v3183
        %v3192 = vsub.f32 %v3152, %v3186
        %v3193 = vsub.f32 %v3175, %v3189
        %v3194 = vmul.f32 %v3190, 1.442695
        %v3195 = vpow.pop %v3194
        %v3196 = vmul.f32 %v3191, 1.442695
        %v3197 = vpow.pop %v3196
        %v3198 = vmul.f32 %v3192, 1.442695
        %v3199 = vpow.pop %v3198
        %v3200 = vmul.f32 %v3193, 1.442695
        %v3201 = vpow.pop %v3200
        %v3202 = vsel %vm1120, %v3195, 0.0
        %3203 = vadd.xlane.f32.xlu0 %v3202
        %v3204 = vpop.xlane.xlu0 %3203
        %v3205 = vsel %vm1120, %v3197, 0.0
        %3206 = vadd.xlane.f32.xlu0 %v3205
        %v3207 = vpop.xlane.xlu0 %3206
        %v3208 = vsel %vm1120, %v3199, 0.0
        %3209 = vadd.xlane.f32.xlu0 %v3208
        %v3210 = vpop.xlane.xlu0 %3209
        %v3211 = vsel %vm1120, %v3201, 0.0
        %3212 = vadd.xlane.f32.xlu0 %v3211
        %v3213 = vpop.xlane.xlu0 %3212
        %v3214 = vrcp.pop %v3204
        %v3215 = vrcp.pop %v3207
        %v3216 = vrcp.pop %v3210
        %v3217 = vrcp.pop %v3213
        %v3218 = vmul.f32 %v3195, %v3214
        %v3219 = vmul.f32 %v3197, %v3215
        %v3220 = vmul.f32 %v3199, %v3216
        %v3221 = vmul.f32 %v3201, %v3217
        %v3222 = vpack.c.bf16 %v3218, %v3218
        %v3223 = vpack.c.bf16 %v3219, %v3219
        %v3224 = vpack.c.bf16 %v3220, %v3220
        %v3225 = vpack.c.bf16 %v3221, %v3221
        %3226 = vrot.lane.b32.xlu0 %v2576, 48
        %v3227 = vpop.permute.xlu0 %3226
        %v3229 = vsel %vm1120, %v3222, 0
        %v3232 = vsel %vm1265, %v3227, 0
        %3234 = vmatpush.bf16.msra.mxu0 0
        %3235 = vmatpush.bf16.msra.mxu0 0
        %3236 = vmatpush.bf16.msra.mxu0 0
        %3237 = vmatpush.bf16.msra.mxu0 0
        %3238 = vmatpush.bf16.msra.mxu0 0
        %3239 = vmatpush.bf16.msra.mxu0 0
        %3240 = vmatpush.bf16.msra.mxu0 0
        %3241 = vmatpush.bf16.msra.mxu0 %v3232
        %3242 = vmatmul.bf16.gmra.mxu0 %v3229
        %v3243 = vpop.f32.mrf.mxu0
        %v3244 = vadd.f32 0.0, %v3243
        %v3245 = vpop.f32.mrf.mxu0
        %3246 = vdwg.mxu0
        %3247 = vrot.lane.b32.xlu0 %v2600, 48
        %v3248 = vpop.permute.xlu0 %3247
        %v3250 = vsel %vm1120, %v3223, 0
        %v3253 = vsel %vm1265, %v3248, 0
        %3255 = vmatpush.bf16.msra.mxu0 0
        %3256 = vmatpush.bf16.msra.mxu0 0
        %3257 = vmatpush.bf16.msra.mxu0 0
        %3258 = vmatpush.bf16.msra.mxu0 0
        %3259 = vmatpush.bf16.msra.mxu0 0
        %3260 = vmatpush.bf16.msra.mxu0 0
        %3261 = vmatpush.bf16.msra.mxu0 0
        %3262 = vmatpush.bf16.msra.mxu0 %v3253
        %3263 = vmatmul.bf16.gmra.mxu0 %v3250
        %v3264 = vpop.f32.mrf.mxu0
        %v3265 = vadd.f32 0.0, %v3264
        %v3266 = vpop.f32.mrf.mxu0
        %3267 = vdwg.mxu0
        %3268 = vrot.lane.b32.xlu0 %v2624, 48
        %v3269 = vpop.permute.xlu0 %3268
        %v3271 = vsel %vm1120, %v3224, 0
        %v3274 = vsel %vm1265, %v3269, 0
        %3276 = vmatpush.bf16.msra.mxu0 0
        %3277 = vmatpush.bf16.msra.mxu0 0
        %3278 = vmatpush.bf16.msra.mxu0 0
        %3279 = vmatpush.bf16.msra.mxu0 0
        %3280 = vmatpush.bf16.msra.mxu0 0
        %3281 = vmatpush.bf16.msra.mxu0 0
        %3282 = vmatpush.bf16.msra.mxu0 0
        %3283 = vmatpush.bf16.msra.mxu0 %v3274
        %3284 = vmatmul.bf16.gmra.mxu0 %v3271
        %v3285 = vpop.f32.mrf.mxu0
        %v3286 = vadd.f32 0.0, %v3285
        %v3287 = vpop.f32.mrf.mxu0
        %3288 = vdwg.mxu0
        %3289 = vrot.lane.b32.xlu0 %v2648, 48
        %v3290 = vpop.permute.xlu0 %3289
        %v3292 = vsel %vm1120, %v3225, 0
        %v3295 = vsel %vm1265, %v3290, 0
        %3297 = vmatpush.bf16.msra.mxu0 0
        %3298 = vmatpush.bf16.msra.mxu0 0
        %3299 = vmatpush.bf16.msra.mxu0 0
        %3300 = vmatpush.bf16.msra.mxu0 0
        %3301 = vmatpush.bf16.msra.mxu0 0
        %3302 = vmatpush.bf16.msra.mxu0 0
        %3303 = vmatpush.bf16.msra.mxu0 0
        %3304 = vmatpush.bf16.msra.mxu0 %v3295
        %3305 = vmatmul.bf16.gmra.mxu0 %v3292
        %v3306 = vpop.f32.mrf.mxu0
        %v3307 = vadd.f32 0.0, %v3306
        %v3308 = vpop.f32.mrf.mxu0
        %3309 = vdwg.mxu0
        %v3310 = vpack.c.bf16 %v3265, %v3244
        %v3311 = vpack.c.bf16 %v3307, %v3286
        %v3313 = vsel %vm1120, %v3310, 0
        %v3316 = vsel %vm1120, %v3311, 0
        %v3319 = vsel %vm1265, %v2568, 0
        %3321 = vmatpush.bf16.msra.mxu0 0
        %3322 = vmatpush.bf16.msra.mxu0 0
        %3323 = vmatpush.bf16.msra.mxu0 0
        %3324 = vmatpush.bf16.msra.mxu0 0
        %3325 = vmatpush.bf16.msra.mxu0 0
        %3326 = vmatpush.bf16.msra.mxu0 0
        %3327 = vmatpush.bf16.msra.mxu0 0
        %3328 = vmatpush.bf16.msra.mxu0 %v3319
        %3329 = vmatmul.bf16.gmra.mxu0 %v3313
        %v3330 = vpop.f32.mrf.mxu0
        %v3331 = vadd.f32 0.0, %v3330
        %v3332 = vpop.f32.mrf.mxu0
        %v3333 = vadd.f32 0.0, %v3332
        %3334 = vmatmul.bf16.gmra.mxu0 %v3316
        %v3335 = vpop.f32.mrf.mxu0
        %v3336 = vadd.f32 0.0, %v3335
        %v3337 = vpop.f32.mrf.mxu0
        %v3338 = vadd.f32 0.0, %v3337
        %3339 = vdwg.mxu0
        %v3340 = vadd.f32 %v3077, %v3331
        %v3341 = vadd.f32 %v3079, %v3333
        %v3342 = vadd.f32 %v3082, %v3336
        %v3343 = vadd.f32 %v3084, %v3338
        %3344 = vrot.lane.b32.xlu0 %v2576, 104
        %v3345 = vpop.permute.xlu0 %3344
        %3346 = vrot.lane.b32.xlu0 %v2576, 72
        %v3347 = vpop.permute.xlu0 %3346
        %v3349 = vsel %vm1120, %v3345, 0
        %v3352 = vsel %vm1120, %v3347, 0
        %3354 = vmatpush.bf16.xpose.msra.mxu0 0
        %3355 = vmatpush.bf16.xpose.msra.mxu0 0
        %3356 = vmatpush.bf16.xpose.msra.mxu0 0
        %3357 = vmatpush.bf16.xpose.msra.mxu0 0
        %3358 = vmatpush.bf16.xpose.msra.mxu0 0
        %3359 = vmatpush.bf16.xpose.msra.mxu0 0
        %3360 = vmatpush.bf16.xpose.msra.mxu0 0
        %3361 = vmatpush.bf16.xpose.msra.mxu0 %v3352
        %3362 = vmatmul.bf16.gmra.mxu0 %v3349
        %v3363 = vpop.f32.mrf.mxu0
        %v3364 = vadd.f32 %v1107, %v3363
        %v3365 = vpop.f32.mrf.mxu0
        %3366 = vdwg.mxu0
        %3367 = vrot.lane.b32.xlu0 %v2600, 104
        %v3368 = vpop.permute.xlu0 %3367
        %3369 = vrot.lane.b32.xlu0 %v2600, 72
        %v3370 = vpop.permute.xlu0 %3369
        %v3372 = vsel %vm1120, %v3368, 0
        %v3375 = vsel %vm1120, %v3370, 0
        %3377 = vmatpush.bf16.xpose.msra.mxu0 0
        %3378 = vmatpush.bf16.xpose.msra.mxu0 0
        %3379 = vmatpush.bf16.xpose.msra.mxu0 0
        %3380 = vmatpush.bf16.xpose.msra.mxu0 0
        %3381 = vmatpush.bf16.xpose.msra.mxu0 0
        %3382 = vmatpush.bf16.xpose.msra.mxu0 0
        %3383 = vmatpush.bf16.xpose.msra.mxu0 0
        %3384 = vmatpush.bf16.xpose.msra.mxu0 %v3375
        %3385 = vmatmul.bf16.gmra.mxu0 %v3372
        %v3386 = vpop.f32.mrf.mxu0
        %v3387 = vadd.f32 %v1108, %v3386
        %v3388 = vpop.f32.mrf.mxu0
        %3389 = vdwg.mxu0
        %3390 = vrot.lane.b32.xlu0 %v2624, 104
        %v3391 = vpop.permute.xlu0 %3390
        %3392 = vrot.lane.b32.xlu0 %v2624, 72
        %v3393 = vpop.permute.xlu0 %3392
        %v3395 = vsel %vm1120, %v3391, 0
        %v3398 = vsel %vm1120, %v3393, 0
        %3400 = vmatpush.bf16.xpose.msra.mxu0 0
        %3401 = vmatpush.bf16.xpose.msra.mxu0 0
        %3402 = vmatpush.bf16.xpose.msra.mxu0 0
        %3403 = vmatpush.bf16.xpose.msra.mxu0 0
        %3404 = vmatpush.bf16.xpose.msra.mxu0 0
        %3405 = vmatpush.bf16.xpose.msra.mxu0 0
        %3406 = vmatpush.bf16.xpose.msra.mxu0 0
        %3407 = vmatpush.bf16.xpose.msra.mxu0 %v3398
        %3408 = vmatmul.bf16.gmra.mxu0 %v3395
        %v3409 = vpop.f32.mrf.mxu0
        %v3410 = vadd.f32 %v1109, %v3409
        %v3411 = vpop.f32.mrf.mxu0
        %3412 = vdwg.mxu0
        %3413 = vrot.lane.b32.xlu0 %v2648, 104
        %v3414 = vpop.permute.xlu0 %3413
        %3415 = vrot.lane.b32.xlu0 %v2648, 72
        %v3416 = vpop.permute.xlu0 %3415
        %v3418 = vsel %vm1120, %v3414, 0
        %v3421 = vsel %vm1120, %v3416, 0
        %3423 = vmatpush.bf16.xpose.msra.mxu0 0
        %3424 = vmatpush.bf16.xpose.msra.mxu0 0
        %3425 = vmatpush.bf16.xpose.msra.mxu0 0
        %3426 = vmatpush.bf16.xpose.msra.mxu0 0
        %3427 = vmatpush.bf16.xpose.msra.mxu0 0
        %3428 = vmatpush.bf16.xpose.msra.mxu0 0
        %3429 = vmatpush.bf16.xpose.msra.mxu0 0
        %3430 = vmatpush.bf16.xpose.msra.mxu0 %v3421
        %3431 = vmatmul.bf16.gmra.mxu0 %v3418
        %v3432 = vpop.f32.mrf.mxu0
        %v3433 = vadd.f32 %v1110, %v3432
        %v3434 = vpop.f32.mrf.mxu0
        %3435 = vdwg.mxu0
        %v3436 = vsel %vm1120, %v3364, -inf
        %3437 = vmax.xlane.f32.xlu0 %v3436
        %v3438 = vpop.xlane.xlu0 %3437
        %v3439 = vsel %vm1120, %v3387, -inf
        %3440 = vmax.xlane.f32.xlu0 %v3439
        %v3441 = vpop.xlane.xlu0 %3440
        %v3442 = vsel %vm1120, %v3410, -inf
        %3443 = vmax.xlane.f32.xlu0 %v3442
        %v3444 = vpop.xlane.xlu0 %3443
        %v3445 = vsel %vm1120, %v3433, -inf
        %3446 = vmax.xlane.f32.xlu0 %v3445
        %v3447 = vpop.xlane.xlu0 %3446
        %v3448 = vsub.f32 %v3364, %v3438
        %v3449 = vsub.f32 %v3387, %v3441
        %v3450 = vsub.f32 %v3410, %v3444
        %v3451 = vsub.f32 %v3433, %v3447
        %v3452 = vmul.f32 %v3448, 1.442695
        %v3453 = vpow.pop %v3452
        %v3454 = vmul.f32 %v3449, 1.442695
        %v3455 = vpow.pop %v3454
        %v3456 = vmul.f32 %v3450, 1.442695
        %v3457 = vpow.pop %v3456
        %v3458 = vmul.f32 %v3451, 1.442695
        %v3459 = vpow.pop %v3458
        %v3460 = vsel %vm1120, %v3453, 0.0
        %3461 = vadd.xlane.f32.xlu0 %v3460
        %v3462 = vpop.xlane.xlu0 %3461
        %v3463 = vsel %vm1120, %v3455, 0.0
        %3464 = vadd.xlane.f32.xlu0 %v3463
        %v3465 = vpop.xlane.xlu0 %3464
        %v3466 = vsel %vm1120, %v3457, 0.0
        %3467 = vadd.xlane.f32.xlu0 %v3466
        %v3468 = vpop.xlane.xlu0 %3467
        %v3469 = vsel %vm1120, %v3459, 0.0
        %3470 = vadd.xlane.f32.xlu0 %v3469
        %v3471 = vpop.xlane.xlu0 %3470
        %v3472 = vrcp.pop %v3462
        %v3473 = vrcp.pop %v3465
        %v3474 = vrcp.pop %v3468
        %v3475 = vrcp.pop %v3471
        %v3476 = vmul.f32 %v3453, %v3472
        %v3477 = vmul.f32 %v3455, %v3473
        %v3478 = vmul.f32 %v3457, %v3474
        %v3479 = vmul.f32 %v3459, %v3475
        %v3480 = vpack.c.bf16 %v3476, %v3476
        %v3481 = vpack.c.bf16 %v3477, %v3477
        %v3482 = vpack.c.bf16 %v3478, %v3478
        %v3483 = vpack.c.bf16 %v3479, %v3479
        %3484 = vrot.lane.b32.xlu0 %v2576, 40
        %v3485 = vpop.permute.xlu0 %3484
        %v3487 = vsel %vm1120, %v3480, 0
        %v3490 = vsel %vm1265, %v3485, 0
        %3492 = vmatpush.bf16.msra.mxu0 0
        %3493 = vmatpush.bf16.msra.mxu0 0
        %3494 = vmatpush.bf16.msra.mxu0 0
        %3495 = vmatpush.bf16.msra.mxu0 0
        %3496 = vmatpush.bf16.msra.mxu0 0
        %3497 = vmatpush.bf16.msra.mxu0 0
        %3498 = vmatpush.bf16.msra.mxu0 0
        %3499 = vmatpush.bf16.msra.mxu0 %v3490
        %3500 = vmatmul.bf16.gmra.mxu0 %v3487
        %v3501 = vpop.f32.mrf.mxu0
        %v3502 = vadd.f32 0.0, %v3501
        %v3503 = vpop.f32.mrf.mxu0
        %3504 = vdwg.mxu0
        %3505 = vrot.lane.b32.xlu0 %v2600, 40
        %v3506 = vpop.permute.xlu0 %3505
        %v3508 = vsel %vm1120, %v3481, 0
        %v3511 = vsel %vm1265, %v3506, 0
        %3513 = vmatpush.bf16.msra.mxu0 0
        %3514 = vmatpush.bf16.msra.mxu0 0
        %3515 = vmatpush.bf16.msra.mxu0 0
        %3516 = vmatpush.bf16.msra.mxu0 0
        %3517 = vmatpush.bf16.msra.mxu0 0
        %3518 = vmatpush.bf16.msra.mxu0 0
        %3519 = vmatpush.bf16.msra.mxu0 0
        %3520 = vmatpush.bf16.msra.mxu0 %v3511
        %3521 = vmatmul.bf16.gmra.mxu0 %v3508
        %v3522 = vpop.f32.mrf.mxu0
        %v3523 = vadd.f32 0.0, %v3522
        %v3524 = vpop.f32.mrf.mxu0
        %3525 = vdwg.mxu0
        %3526 = vrot.lane.b32.xlu0 %v2624, 40
        %v3527 = vpop.permute.xlu0 %3526
        %v3529 = vsel %vm1120, %v3482, 0
        %v3532 = vsel %vm1265, %v3527, 0
        %3534 = vmatpush.bf16.msra.mxu0 0
        %3535 = vmatpush.bf16.msra.mxu0 0
        %3536 = vmatpush.bf16.msra.mxu0 0
        %3537 = vmatpush.bf16.msra.mxu0 0
        %3538 = vmatpush.bf16.msra.mxu0 0
        %3539 = vmatpush.bf16.msra.mxu0 0
        %3540 = vmatpush.bf16.msra.mxu0 0
        %3541 = vmatpush.bf16.msra.mxu0 %v3532
        %3542 = vmatmul.bf16.gmra.mxu0 %v3529
        %v3543 = vpop.f32.mrf.mxu0
        %v3544 = vadd.f32 0.0, %v3543
        %v3545 = vpop.f32.mrf.mxu0
        %3546 = vdwg.mxu0
        %3547 = vrot.lane.b32.xlu0 %v2648, 40
        %v3548 = vpop.permute.xlu0 %3547
        %v3550 = vsel %vm1120, %v3483, 0
        %v3553 = vsel %vm1265, %v3548, 0
        %3555 = vmatpush.bf16.msra.mxu0 0
        %3556 = vmatpush.bf16.msra.mxu0 0
        %3557 = vmatpush.bf16.msra.mxu0 0
        %3558 = vmatpush.bf16.msra.mxu0 0
        %3559 = vmatpush.bf16.msra.mxu0 0
        %3560 = vmatpush.bf16.msra.mxu0 0
        %3561 = vmatpush.bf16.msra.mxu0 0
        %3562 = vmatpush.bf16.msra.mxu0 %v3553
        %3563 = vmatmul.bf16.gmra.mxu0 %v3550
        %v3564 = vpop.f32.mrf.mxu0
        %v3565 = vadd.f32 0.0, %v3564
        %v3566 = vpop.f32.mrf.mxu0
        %3567 = vdwg.mxu0
        %v3568 = vpack.c.bf16 %v3523, %v3502
        %v3569 = vpack.c.bf16 %v3565, %v3544
        %v3571 = vsel %vm1120, %v3568, 0
        %v3574 = vsel %vm1120, %v3569, 0
        %v3577 = vsel %vm1265, %v2569, 0
        %3579 = vmatpush.bf16.msra.mxu0 0
        %3580 = vmatpush.bf16.msra.mxu0 0
        %3581 = vmatpush.bf16.msra.mxu0 0
        %3582 = vmatpush.bf16.msra.mxu0 0
        %3583 = vmatpush.bf16.msra.mxu0 0
        %3584 = vmatpush.bf16.msra.mxu0 0
        %3585 = vmatpush.bf16.msra.mxu0 0
        %3586 = vmatpush.bf16.msra.mxu0 %v3577
        %3587 = vmatmul.bf16.gmra.mxu0 %v3571
        %v3588 = vpop.f32.mrf.mxu0
        %v3589 = vadd.f32 0.0, %v3588
        %v3590 = vpop.f32.mrf.mxu0
        %v3591 = vadd.f32 0.0, %v3590
        %3592 = vmatmul.bf16.gmra.mxu0 %v3574
        %v3593 = vpop.f32.mrf.mxu0
        %v3594 = vadd.f32 0.0, %v3593
        %v3595 = vpop.f32.mrf.mxu0
        %v3596 = vadd.f32 0.0, %v3595
        %3597 = vdwg.mxu0
        %v3598 = vadd.f32 %v3340, %v3589
        %v3599 = vadd.f32 %v3341, %v3591
        %v3600 = vadd.f32 %v3342, %v3594
        %v3601 = vadd.f32 %v3343, %v3596
        %s3602 = scalar_lea.vmem [#allocation10], 1
        %v3603 = vld [vmem:[%s3602] sm:$0x1]
        %v3605 = vperm.slane %v3603, 0
        %v3607 = vadd.f32 %v3598, %v3605
        %v3608 = vadd.f32 %v3599, %v3605
        %v3609 = vadd.f32 %v3600, %v3605
        %v3610 = vadd.f32 %v3601, %v3605
        %v3611 = vadd.f32 %v3607, %v2512
        %v3612 = vadd.f32 %v3608, %v2513
        %v3613 = vadd.f32 %v3609, %v2514
        %v3614 = vadd.f32 %v3610, %v2515
        %s3615 = scalar_lea.vmem [#allocation11], 1
        %v3616 = vld [vmem:[%s3615] sm:$0x1]
        %s3617 = scalar_lea.vmem [#allocation13], 1
        %v3618 = vld [vmem:[%s3617] sm:$0x1]
        %v3619 = vsel %vm938, %v3611, 0.0
        %3620 = vadd.xlane.f32.xlu0 %v3619
        %v3621 = vpop.xlane.xlu0 %3620
        %v3622 = vsel %vm938, %v3612, 0.0
        %3623 = vadd.xlane.f32.xlu0 %v3622
        %v3624 = vpop.xlane.xlu0 %3623
        %v3625 = vsel %vm938, %v3613, 0.0
        %3626 = vadd.xlane.f32.xlu0 %v3625
        %v3627 = vpop.xlane.xlu0 %3626
        %v3628 = vsel %vm938, %v3614, 0.0
        %3629 = vadd.xlane.f32.xlu0 %v3628
        %v3630 = vpop.xlane.xlu0 %3629
        %v3631 = vmul.f32 %v3621, %v957
        %v3632 = vmul.f32 %v3624, %v957
        %v3633 = vmul.f32 %v3627, %v957
        %v3634 = vmul.f32 %v3630, %v957
        %v3635 = vsub.f32 %v3611, %v3631
        %v3636 = vsub.f32 %v3612, %v3632
        %v3637 = vsub.f32 %v3613, %v3633
        %v3638 = vsub.f32 %v3614, %v3634
        %v3639 = vmul.f32 %v3635, %v3635
        %v3640 = vmul.f32 %v3636, %v3636
        %v3641 = vmul.f32 %v3637, %v3637
        %v3642 = vmul.f32 %v3638, %v3638
        %v3643 = vsel %vm938, %v3639, 0.0
        %3644 = vadd.xlane.f32.xlu0 %v3643
        %v3645 = vpop.xlane.xlu0 %3644
        %v3646 = vsel %vm938, %v3640, 0.0
        %3647 = vadd.xlane.f32.xlu0 %v3646
        %v3648 = vpop.xlane.xlu0 %3647
        %v3649 = vsel %vm938, %v3641, 0.0
        %3650 = vadd.xlane.f32.xlu0 %v3649
        %v3651 = vpop.xlane.xlu0 %3650
        %v3652 = vsel %vm938, %v3642, 0.0
        %3653 = vadd.xlane.f32.xlu0 %v3652
        %v3654 = vpop.xlane.xlu0 %3653
        %v3655 = vmul.f32 %v3645, %v957
        %v3656 = vmul.f32 %v3648, %v957
        %v3657 = vmul.f32 %v3651, %v957
        %v3658 = vmul.f32 %v3654, %v957
        %v3659 = vadd.f32 %v3655, 1e-12
        %v3660 = vadd.f32 %v3656, 1e-12
        %v3661 = vadd.f32 %v3657, 1e-12
        %v3662 = vadd.f32 %v3658, 1e-12
        %v3663 = vrsqrt.pop %v3659
        %v3664 = vmul.f32 %v3663, %v3659
        %v3665 = vmul.f32 %v3664, %v3663
        %v3666 = vmul.f32 0.5, %v3665
        %v3667 = vsub.f32 1.5, %v3666
        %v3668 = vmul.f32 %v3663, %v3667
        %vm3669 = vweird.f32 %v3659
        %vm3670 = vweird.f32 %v3663
        %vm3671 = vmor %vm3669, %vm3670
        %v3672 = vsel %vm3671, %v3663, %v3668
        %v3673 = vrsqrt.pop %v3660
        %v3674 = vmul.f32 %v3673, %v3660
        %v3675 = vmul.f32 %v3674, %v3673
        %v3676 = vmul.f32 0.5, %v3675
        %v3677 = vsub.f32 1.5, %v3676
        %v3678 = vmul.f32 %v3673, %v3677
        %vm3679 = vweird.f32 %v3660
        %vm3680 = vweird.f32 %v3673
        %vm3681 = vmor %vm3679, %vm3680
        %v3682 = vsel %vm3681, %v3673, %v3678
        %v3683 = vrsqrt.pop %v3661
        %v3684 = vmul.f32 %v3683, %v3661
        %v3685 = vmul.f32 %v3684, %v3683
        %v3686 = vmul.f32 0.5, %v3685
        %v3687 = vsub.f32 1.5, %v3686
        %v3688 = vmul.f32 %v3683, %v3687
        %vm3689 = vweird.f32 %v3661
        %vm3690 = vweird.f32 %v3683
        %vm3691 = vmor %vm3689, %vm3690
        %v3692 = vsel %vm3691, %v3683, %v3688
        %v3693 = vrsqrt.pop %v3662
        %v3694 = vmul.f32 %v3693, %v3662
        %v3695 = vmul.f32 %v3694, %v3693
        %v3696 = vmul.f32 0.5, %v3695
        %v3697 = vsub.f32 1.5, %v3696
        %v3698 = vmul.f32 %v3693, %v3697
        %vm3699 = vweird.f32 %v3662
        %vm3700 = vweird.f32 %v3693
        %vm3701 = vmor %vm3699, %vm3700
        %v3702 = vsel %vm3701, %v3693, %v3698
        %v3703 = vmul.f32 %v3635, %v3672
        %v3704 = vmul.f32 %v3636, %v3682
        %v3705 = vmul.f32 %v3637, %v3692
        %v3706 = vmul.f32 %v3638, %v3702
        %v3708 = vperm.slane %v3616, 0
        %v3710 = vmul.f32 %v3703, %v3708
        %v3711 = vmul.f32 %v3704, %v3708
        %v3712 = vmul.f32 %v3705, %v3708
        %v3713 = vmul.f32 %v3706, %v3708
        %v3715 = vperm.slane %v3618, 0
        %v3717 = vadd.f32 %v3710, %v3715
        %v3718 = vadd.f32 %v3711, %v3715
        %v3719 = vadd.f32 %v3712, %v3715
        %v3720 = vadd.f32 %v3713, %v3715
        %s3721 = scalar_lea.vmem [#allocation14], 16
        %v3722 = vld [vmem:[%s3721] sm:$0xf]
        %v3723 = vld [vmem:[%s3721 + $0x4] sm:$0xf]
        %v3724 = vld [vmem:[%s3721 + $0x8] sm:$0xf]
        %v3725 = vld [vmem:[%s3721 + $0xc] sm:$0xf]
        %v3726 = vpack.c.bf16 %v3718, %v3717
        %v3727 = vpack.c.bf16 %v3720, %v3719
        %s3728 = scalar_lea.vmem [#allocation16], 1
        %v3729 = vld [vmem:[%s3728] sm:$0x1]
        %v3731 = vperm.slane %v3729, 0
        %v3737 = vunpack.c.l.b16 %v3722
        %v3738 = vunpack.c.l.b16 %v3723
        %v3739 = vunpack.c.l.b16 %v3724
        %v3740 = vunpack.c.l.b16 %v3725
        %v3741 = vpack.c.b16 %v3738, %v3737
        %v3742 = vpack.c.b16 %v3740, %v3739
        %v3746 = vsel %vm938, %v3726, 0
        %v3749 = vsel %vm938, %v3727, 0
        %3751 = vmatpush.bf16.msra.mxu0 0
        %3752 = vmatpush.bf16.msra.mxu0 0
        %3753 = vmatpush.bf16.msra.mxu0 0
        %3754 = vmatpush.bf16.msra.mxu0 0
        %3755 = vmatpush.bf16.msra.mxu0 0
        %3756 = vmatpush.bf16.msra.mxu0 0
        %3757 = vmatpush.bf16.msra.mxu0 %v3742
        %3758 = vmatpush.bf16.msra.mxu0 %v3741
        %3759 = vmatmul.bf16.gmra.mxu0 %v3746
        %v3760 = vpop.f32.mrf.mxu0
        %v3761 = vadd.f32 %v3731, %v3760
        %v3762 = vpop.f32.mrf.mxu0
        %v3763 = vadd.f32 %v3731, %v3762
        %3764 = vmatmul.bf16.gmra.mxu0 %v3749
        %v3765 = vpop.f32.mrf.mxu0
        %v3766 = vadd.f32 %v3731, %v3765
        %v3767 = vpop.f32.mrf.mxu0
        %v3768 = vadd.f32 %v3731, %v3767
        %3769 = vdwg.mxu0
        %v3770 = vmul.f32 %v3761, %v3761
        %v3771 = vmul.f32 %v3763, %v3763
        %v3772 = vmul.f32 %v3766, %v3766
        %v3773 = vmul.f32 %v3768, %v3768
        %v3774 = vmul.f32 %v3761, %v3770
        %v3775 = vmul.f32 %v3763, %v3771
        %v3776 = vmul.f32 %v3766, %v3772
        %v3777 = vmul.f32 %v3768, %v3773
        %v3778 = vmul.f32 %v3774, 0.044715
        %v3779 = vmul.f32 %v3775, 0.044715
        %v3780 = vmul.f32 %v3776, 0.044715
        %v3781 = vmul.f32 %v3777, 0.044715
        %v3782 = vadd.f32 %v3761, %v3778
        %v3783 = vadd.f32 %v3763, %v3779
        %v3784 = vadd.f32 %v3766, %v3780
        %v3785 = vadd.f32 %v3768, %v3781
        %v3786 = vmul.f32 %v3782, 0.7978846
        %v3787 = vmul.f32 %v3783, 0.7978846
        %v3788 = vmul.f32 %v3784, 0.7978846
        %v3789 = vmul.f32 %v3785, 0.7978846
        %v3790 = vtanh.pop %v3786
        %v3791 = vtanh.pop %v3787
        %v3792 = vtanh.pop %v3788
        %v3793 = vtanh.pop %v3789
        %v3794 = vadd.f32 %v3790, 1.0
        %v3795 = vadd.f32 %v3791, 1.0
        %v3796 = vadd.f32 %v3792, 1.0
        %v3797 = vadd.f32 %v3793, 1.0
        %v3798 = vmul.f32 %v3794, 0.5
        %v3799 = vmul.f32 %v3795, 0.5
        %v3800 = vmul.f32 %v3796, 0.5
        %v3801 = vmul.f32 %v3797, 0.5
        %v3802 = vmul.f32 %v3761, %v3798
        %v3803 = vmul.f32 %v3763, %v3799
        %v3804 = vmul.f32 %v3766, %v3800
        %v3805 = vmul.f32 %v3768, %v3801
        %s3806 = scalar_lea.vmem %s12, 32
        %v3807 = vld [vmem:[%s3806] sm:$0xf]
        %v3808 = vld [vmem:[%s3806 + $0x4] sm:$0xf]
        %v3809 = vld [vmem:[%s3806 + $0x8] sm:$0xf]
        %v3810 = vld [vmem:[%s3806 + $0xc] sm:$0xf]
        %v3811 = vld [vmem:[%s3806 + $0x10] sm:$0xf]
        %v3812 = vld [vmem:[%s3806 + $0x14] sm:$0xf]
        %v3813 = vld [vmem:[%s3806 + $0x18] sm:$0xf]
        %v3814 = vld [vmem:[%s3806 + $0x1c] sm:$0xf]
        %v3815 = vpack.c.bf16 %v3803, %v3802
        %v3816 = vpack.c.bf16 %v3805, %v3804
        %s3817 = scalar_lea.vmem [#allocation17], 1
        %v3818 = vld [vmem:[%s3817] sm:$0x1]
        %v3820 = vperm.slane %v3818, 0
        %v3830 = vunpack.c.l.b16 %v3807
        %v3831 = vunpack.c.l.b16 %v3808
        %v3832 = vunpack.c.l.b16 %v3809
        %v3833 = vunpack.c.l.b16 %v3810
        %v3834 = vunpack.c.l.b16 %v3811
        %v3835 = vunpack.c.l.b16 %v3812
        %v3836 = vunpack.c.l.b16 %v3813
        %v3837 = vunpack.c.l.b16 %v3814
        %v3838 = vpack.c.b16 %v3831, %v3830
        %v3839 = vpack.c.b16 %v3833, %v3832
        %v3840 = vpack.c.b16 %v3835, %v3834
        %v3841 = vpack.c.b16 %v3837, %v3836
        %v3847 = vsel %vm2382, %v3815, 0
        %v3850 = vsel %vm2382, %v3816, 0
        %3852 = vmatpush.bf16.msra.mxu0 0
        %3853 = vmatpush.bf16.msra.mxu0 0
        %3854 = vmatpush.bf16.msra.mxu0 0
        %3855 = vmatpush.bf16.msra.mxu0 0
        %3856 = vmatpush.bf16.msra.mxu0 %v3841
        %3857 = vmatpush.bf16.msra.mxu0 %v3840
        %3858 = vmatpush.bf16.msra.mxu0 %v3839
        %3859 = vmatpush.bf16.msra.mxu0 %v3838
        %3860 = vmatmul.bf16.gmra.mxu0 %v3847
        %v3861 = vpop.f32.mrf.mxu0
        %v3862 = vadd.f32 %v3820, %v3861
        %v3863 = vpop.f32.mrf.mxu0
        %v3864 = vadd.f32 %v3820, %v3863
        %3865 = vmatmul.bf16.gmra.mxu0 %v3850
        %v3866 = vpop.f32.mrf.mxu0
        %v3867 = vadd.f32 %v3820, %v3866
        %v3868 = vpop.f32.mrf.mxu0
        %v3869 = vadd.f32 %v3820, %v3868
        %3870 = vdwg.mxu0
        %v3871 = vadd.f32 %v3862, %v3717
        %v3872 = vadd.f32 %v3864, %v3718
        %v3873 = vadd.f32 %v3867, %v3719
        %v3874 = vadd.f32 %v3869, %v3720
        %s3875 = scalar_lea.vmem [#allocation19], 1
        %v3876 = vld [vmem:[%s3875] sm:$0x1]
        %s3877 = scalar_lea.vmem [#allocation20], 1
        %v3878 = vld [vmem:[%s3877] sm:$0x1]
        %v3879 = vsel %vm938, %v3871, 0.0
        %3880 = vadd.xlane.f32.xlu0 %v3879
        %v3881 = vpop.xlane.xlu0 %3880
        %v3882 = vsel %vm938, %v3872, 0.0
        %3883 = vadd.xlane.f32.xlu0 %v3882
        %v3884 = vpop.xlane.xlu0 %3883
        %v3885 = vsel %vm938, %v3873, 0.0
        %3886 = vadd.xlane.f32.xlu0 %v3885
        %v3887 = vpop.xlane.xlu0 %3886
        %v3888 = vsel %vm938, %v3874, 0.0
        %3889 = vadd.xlane.f32.xlu0 %v3888
        %v3890 = vpop.xlane.xlu0 %3889
        %v3891 = vmul.f32 %v3881, %v957
        %v3892 = vmul.f32 %v3884, %v957
        %v3893 = vmul.f32 %v3887, %v957
        %v3894 = vmul.f32 %v3890, %v957
        %v3895 = vsub.f32 %v3871, %v3891
        %v3896 = vsub.f32 %v3872, %v3892
        %v3897 = vsub.f32 %v3873, %v3893
        %v3898 = vsub.f32 %v3874, %v3894
        %v3899 = vmul.f32 %v3895, %v3895
        %v3900 = vmul.f32 %v3896, %v3896
        %v3901 = vmul.f32 %v3897, %v3897
        %v3902 = vmul.f32 %v3898, %v3898
        %v3903 = vsel %vm938, %v3899, 0.0
        %3904 = vadd.xlane.f32.xlu0 %v3903
        %v3905 = vpop.xlane.xlu0 %3904
        %v3906 = vsel %vm938, %v3900, 0.0
        %3907 = vadd.xlane.f32.xlu0 %v3906
        %v3908 = vpop.xlane.xlu0 %3907
        %v3909 = vsel %vm938, %v3901, 0.0
        %3910 = vadd.xlane.f32.xlu0 %v3909
        %v3911 = vpop.xlane.xlu0 %3910
        %v3912 = vsel %vm938, %v3902, 0.0
        %3913 = vadd.xlane.f32.xlu0 %v3912
        %v3914 = vpop.xlane.xlu0 %3913
        %v3915 = vmul.f32 %v3905, %v957
        %v3916 = vmul.f32 %v3908, %v957
        %v3917 = vmul.f32 %v3911, %v957
        %v3918 = vmul.f32 %v3914, %v957
        %v3919 = vadd.f32 %v3915, 1e-12
        %v3920 = vadd.f32 %v3916, 1e-12
        %v3921 = vadd.f32 %v3917, 1e-12
        %v3922 = vadd.f32 %v3918, 1e-12
        %v3923 = vrsqrt.pop %v3919
        %v3924 = vmul.f32 %v3923, %v3919
        %v3925 = vmul.f32 %v3924, %v3923
        %v3926 = vmul.f32 0.5, %v3925
        %v3927 = vsub.f32 1.5, %v3926
        %v3928 = vmul.f32 %v3923, %v3927
        %vm3929 = vweird.f32 %v3919
        %vm3930 = vweird.f32 %v3923
        %vm3931 = vmor %vm3929, %vm3930
        %v3932 = vsel %vm3931, %v3923, %v3928
        %v3933 = vrsqrt.pop %v3920
        %v3934 = vmul.f32 %v3933, %v3920
        %v3935 = vmul.f32 %v3934, %v3933
        %v3936 = vmul.f32 0.5, %v3935
        %v3937 = vsub.f32 1.5, %v3936
        %v3938 = vmul.f32 %v3933, %v3937
        %vm3939 = vweird.f32 %v3920
        %vm3940 = vweird.f32 %v3933
        %vm3941 = vmor %vm3939, %vm3940
        %v3942 = vsel %vm3941, %v3933, %v3938
        %v3943 = vrsqrt.pop %v3921
        %v3944 = vmul.f32 %v3943, %v3921
        %v3945 = vmul.f32 %v3944, %v3943
        %v3946 = vmul.f32 0.5, %v3945
        %v3947 = vsub.f32 1.5, %v3946
        %v3948 = vmul.f32 %v3943, %v3947
        %vm3949 = vweird.f32 %v3921
        %vm3950 = vweird.f32 %v3943
        %vm3951 = vmor %vm3949, %vm3950
        %v3952 = vsel %vm3951, %v3943, %v3948
        %v3953 = vrsqrt.pop %v3922
        %v3954 = vmul.f32 %v3953, %v3922
        %v3955 = vmul.f32 %v3954, %v3953
        %v3956 = vmul.f32 0.5, %v3955
        %v3957 = vsub.f32 1.5, %v3956
        %v3958 = vmul.f32 %v3953, %v3957
        %vm3959 = vweird.f32 %v3922
        %vm3960 = vweird.f32 %v3953
        %vm3961 = vmor %vm3959, %vm3960
        %v3962 = vsel %vm3961, %v3953, %v3958
        %v3963 = vmul.f32 %v3895, %v3932
        %v3964 = vmul.f32 %v3896, %v3942
        %v3965 = vmul.f32 %v3897, %v3952
        %v3966 = vmul.f32 %v3898, %v3962
        %v3968 = vperm.slane %v3876, 0
        %v3970 = vmul.f32 %v3963, %v3968
        %v3971 = vmul.f32 %v3964, %v3968
        %v3972 = vmul.f32 %v3965, %v3968
        %v3973 = vmul.f32 %v3966, %v3968
        %v3975 = vperm.slane %v3878, 0
        %v3977 = vadd.f32 %v3970, %v3975
        %v3978 = vadd.f32 %v3971, %v3975
        %v3979 = vadd.f32 %v3972, %v3975
        %v3980 = vadd.f32 %v3973, %v3975
        %v3981 = vld [vmem:[#allocation22] sm:$0xf]
        %v3982 = vld [vmem:[#allocation22 + $0x4] sm:$0xf]
        %v3983 = vld [vmem:[#allocation22 + $0x8] sm:$0xf]
        %v3984 = vld [vmem:[#allocation22 + $0xc] sm:$0xf]
        %v3985 = vpack.c.bf16 %v3978, %v3977
        %v3986 = vpack.c.bf16 %v3980, %v3979
        %v3987 = vld [vmem:[#allocation25] sm:$0x1]
        %v3989 = vperm.slane %v3987, 0
        %v3995 = vunpack.c.l.b16 %v3981
        %v3996 = vunpack.c.l.b16 %v3982
        %v3997 = vunpack.c.l.b16 %v3983
        %v3998 = vunpack.c.l.b16 %v3984
        %v3999 = vpack.c.b16 %v3996, %v3995
        %v4000 = vpack.c.b16 %v3998, %v3997
        %v4004 = vsel %vm938, %v3985, 0
        %v4007 = vsel %vm938, %v3986, 0
        %4009 = vmatpush.bf16.msra.mxu0 0
        %4010 = vmatpush.bf16.msra.mxu0 0
        %4011 = vmatpush.bf16.msra.mxu0 0
        %4012 = vmatpush.bf16.msra.mxu0 0
        %4013 = vmatpush.bf16.msra.mxu0 0
        %4014 = vmatpush.bf16.msra.mxu0 0
        %4015 = vmatpush.bf16.msra.mxu0 %v4000
        %4016 = vmatpush.bf16.msra.mxu0 %v3999
        %4017 = vmatmul.bf16.gmra.mxu0 %v4004
        %v4018 = vpop.f32.mrf.mxu0
        %v4019 = vadd.f32 %v3989, %v4018
        %v4020 = vpop.f32.mrf.mxu0
        %v4021 = vadd.f32 %v3989, %v4020
        %4022 = vmatmul.bf16.gmra.mxu0 %v4007
        %v4023 = vpop.f32.mrf.mxu0
        %v4024 = vadd.f32 %v3989, %v4023
        %v4025 = vpop.f32.mrf.mxu0
        %v4026 = vadd.f32 %v3989, %v4025
        %4027 = vdwg.mxu0
        %v4028 = vld [vmem:[#allocation23] sm:$0xf]
        %v4029 = vld [vmem:[#allocation23 + $0x4] sm:$0xf]
        %v4032 = vunpack.c.l.b16 %v4028
        %v4033 = vunpack.c.l.b16 %v4029
        %v4034 = vpack.c.b16 %v4033, %v4032
        %vm4036 = vcmask 130048
        %v4038 = vsel %vm4036, 0, 0
        %4040 = vmatpush.bf16.msra.mxu0 0
        %4041 = vmatpush.bf16.msra.mxu0 0
        %4042 = vmatpush.bf16.msra.mxu0 0
        %4043 = vmatpush.bf16.msra.mxu0 0
        %4044 = vmatpush.bf16.msra.mxu0 0
        %4045 = vmatpush.bf16.msra.mxu0 0
        %4046 = vmatpush.bf16.msra.mxu0 0
        %4047 = vmatpush.bf16.msra.mxu0 %v4034
        %4048 = vmatmul.bf16.gmra.mxu0 %v4038
        %v4049 = vpop.f32.mrf.mxu0
        %v4050 = vadd.f32 0.0, %v4049
        %v4051 = vpop.f32.mrf.mxu0
        %4052 = vdwg.mxu0
        %v4054 = vrot.slane %v4050, 1
        %v4055 = vrot.slane %v4050, 2
        %v4056 = vrot.slane %v4050, 3
        %v4061 = vadd.f32 %v4019, %v4050
        %v4062 = vadd.f32 %v4021, %v4054
        %v4063 = vadd.f32 %v4024, %v4055
        %v4064 = vadd.f32 %v4026, %v4056
        %v4065 = vxor.u32 %v4061, 2147483648
        %v4066 = vxor.u32 %v4062, 2147483648
        %v4067 = vxor.u32 %v4063, 2147483648
        %v4068 = vxor.u32 %v4064, 2147483648
        %v4069 = vmul.f32 %v4065, 1.442695
        %v4070 = vpow.pop %v4069
        %v4071 = vmul.f32 %v4066, 1.442695
        %v4072 = vpow.pop %v4071
        %v4073 = vmul.f32 %v4067, 1.442695
        %v4074 = vpow.pop %v4073
        %v4075 = vmul.f32 %v4068, 1.442695
        %v4076 = vpow.pop %v4075
        %v4077 = vadd.f32 %v4070, 1.0
        %v4078 = vadd.f32 %v4072, 1.0
        %v4079 = vadd.f32 %v4074, 1.0
        %v4080 = vadd.f32 %v4076, 1.0
        %v4081 = vrcp.pop %v4077
        %v4082 = vmul.f32 %v4077, %v4081
        %v4083 = vsub.f32 1.0, %v4082
        %v4084 = vmul.f32 %v4081, %v4083
        %v4085 = vadd.f32 %v4081, %v4084
        %vm4086 = vweird.f32 %v4077
        %vm4087 = vweird.f32 %v4081
        %vm4088 = vmor %vm4086, %vm4087
        %v4089 = vsel %vm4088, %v4081, %v4085
        %v4090 = vand.u32 2147483647, %v4077
        %vm4091 = vcmp.eq.f32.partialorder %v4090, 8.507059e+37
        %v4092 = vand.u32 %v4077, 2147483648
        %v4093 = vor.u32 1.1754944e-38, %v4092
        %v4094 = vsel %vm4091, %v4093, %v4089
        %v4095 = vmul.f32 1.0, %v4094
        %v4096 = vrcp.pop %v4078
        %v4097 = vmul.f32 %v4078, %v4096
        %v4098 = vsub.f32 1.0, %v4097
        %v4099 = vmul.f32 %v4096, %v4098
        %v4100 = vadd.f32 %v4096, %v4099
        %vm4101 = vweird.f32 %v4078
        %vm4102 = vweird.f32 %v4096
        %vm4103 = vmor %vm4101, %vm4102
        %v4104 = vsel %vm4103, %v4096, %v4100
        %v4105 = vand.u32 2147483647, %v4078
        %vm4106 = vcmp.eq.f32.partialorder %v4105, 8.507059e+37
        %v4107 = vand.u32 %v4078, 2147483648
        %v4108 = vor.u32 1.1754944e-38, %v4107
        %v4109 = vsel %vm4106, %v4108, %v4104
        %v4110 = vmul.f32 1.0, %v4109
        %v4111 = vrcp.pop %v4079
        %v4112 = vmul.f32 %v4079, %v4111
        %v4113 = vsub.f32 1.0, %v4112
        %v4114 = vmul.f32 %v4111, %v4113
        %v4115 = vadd.f32 %v4111, %v4114
        %vm4116 = vweird.f32 %v4079
        %vm4117 = vweird.f32 %v4111
        %vm4118 = vmor %vm4116, %vm4117
        %v4119 = vsel %vm4118, %v4111, %v4115
        %v4120 = vand.u32 2147483647, %v4079
        %vm4121 = vcmp.eq.f32.partialorder %v4120, 8.507059e+37
        %v4122 = vand.u32 %v4079, 2147483648
        %v4123 = vor.u32 1.1754944e-38, %v4122
        %v4124 = vsel %vm4121, %v4123, %v4119
        %v4125 = vmul.f32 1.0, %v4124
        %v4126 = vrcp.pop %v4080
        %v4127 = vmul.f32 %v4080, %v4126
        %v4128 = vsub.f32 1.0, %v4127
        %v4129 = vmul.f32 %v4126, %v4128
        %v4130 = vadd.f32 %v4126, %v4129
        %vm4131 = vweird.f32 %v4080
        %vm4132 = vweird.f32 %v4126
        %vm4133 = vmor %vm4131, %vm4132
        %v4134 = vsel %vm4133, %v4126, %v4130
        %v4135 = vand.u32 2147483647, %v4080
        %vm4136 = vcmp.eq.f32.partialorder %v4135, 8.507059e+37
        %v4137 = vand.u32 %v4080, 2147483648
        %v4138 = vor.u32 1.1754944e-38, %v4137
        %v4139 = vsel %vm4136, %v4138, %v4134
        %v4140 = vmul.f32 1.0, %v4139
        %v4141 = vtanh.pop %v4061
        %v4142 = vtanh.pop %v4062
        %v4143 = vtanh.pop %v4063
        %v4144 = vtanh.pop %v4064
        %v4145 = vmul.f32 %v4095, 0.0
        %v4146 = vmul.f32 %v4110, 0.0
        %v4147 = vmul.f32 %v4125, 0.0
        %v4148 = vmul.f32 %v4140, 0.0
        %4153 = vrot.lane.b32.xlu0 %v4141, 96
        %v4154 = vpop.permute.xlu0 %4153
        %4155 = vrot.lane.b32.xlu0 %v4142, 96
        %v4156 = vpop.permute.xlu0 %4155
        %4157 = vrot.lane.b32.xlu0 %v4143, 96
        %v4158 = vpop.permute.xlu0 %4157
        %4159 = vrot.lane.b32.xlu0 %v4144, 96
        %v4160 = vpop.permute.xlu0 %4159
        %v4165 = vmul.f32 %v4095, %v4154
        %v4166 = vmul.f32 %v4110, %v4156
        %v4167 = vmul.f32 %v4125, %v4158
        %v4168 = vmul.f32 %v4140, %v4160
        %4173 = vrot.lane.b32.xlu0 %v4165, 16
        %v4174 = vpop.permute.xlu0 %4173
        %4175 = vrot.lane.b32.xlu0 %v4166, 16
        %v4176 = vpop.permute.xlu0 %4175
        %4177 = vrot.lane.b32.xlu0 %v4167, 16
        %v4178 = vpop.permute.xlu0 %4177
        %4179 = vrot.lane.b32.xlu0 %v4168, 16
        %v4180 = vpop.permute.xlu0 %4179
        %v4185 = vadd.f32 %v4145, %v4174
        %v4186 = vadd.f32 %v4146, %v4176
        %v4187 = vadd.f32 %v4147, %v4178
        %v4188 = vadd.f32 %v4148, %v4180
        %v4189 = vtanh.pop %v4185
        %v4190 = vtanh.pop %v4186
        %v4191 = vtanh.pop %v4187
        %v4192 = vtanh.pop %v4188
        %4197 = vrot.lane.b32.xlu0 %v4189, 32
        %v4198 = vpop.permute.xlu0 %4197
        %4199 = vrot.lane.b32.xlu0 %v4190, 32
        %v4200 = vpop.permute.xlu0 %4199
        %4201 = vrot.lane.b32.xlu0 %v4191, 32
        %v4202 = vpop.permute.xlu0 %4201
        %4203 = vrot.lane.b32.xlu0 %v4192, 32
        %v4204 = vpop.permute.xlu0 %4203
        %v4209 = vmul.f32 %v4095, %v4198
        %v4210 = vmul.f32 %v4110, %v4200
        %v4211 = vmul.f32 %v4125, %v4202
        %v4212 = vmul.f32 %v4140, %v4204
        %v4213 = vpack.c.bf16 %v4209, %v4209
        %v4214 = vpack.c.bf16 %v4210, %v4210
        %v4215 = vpack.c.bf16 %v4211, %v4211
        %v4216 = vpack.c.bf16 %v4212, %v4212
        %v4221 = vunpack.c.l.b16 %v4213
        %v4222 = vunpack.c.l.b16 %v4214
        %v4223 = vunpack.c.l.b16 %v4215
        %v4224 = vunpack.c.l.b16 %v4216
        %v4225 = vrot.slane %v4222, 7
        %vm4226 = vcmask 1041409
        %v4227 = vsel %vm4226, %v4225, %v4221
        %v4228 = vrot.slane %v4223, 6
        %vm4229 = vcmask 1042434
        %v4230 = vsel %vm4229, %v4228, %v4227
        %v4231 = vrot.slane %v4224, 5
        %vm4232 = vcmask 1043459
        %v4233 = vsel %vm4232, %v4231, %v4230
        %v4234 = vpack.c.b16 %v4233, %v4233
        %4235 = vrot.lane.b32.xlu0 %v4234, 80
        %v4236 = vpop.permute.xlu0 %4235
        %v4238 = vsel %vm4036, %v4236, 0
        %4240 = vmatpush.bf16.msra.mxu0 0
        %4241 = vmatpush.bf16.msra.mxu0 0
        %4242 = vmatpush.bf16.msra.mxu0 0
        %4243 = vmatpush.bf16.msra.mxu0 0
        %4244 = vmatpush.bf16.msra.mxu0 0
        %4245 = vmatpush.bf16.msra.mxu0 0
        %4246 = vmatpush.bf16.msra.mxu0 0
        %4247 = vmatpush.bf16.msra.mxu0 %v4034
        %4248 = vmatmul.bf16.gmra.mxu0 %v4238
        %v4249 = vpop.f32.mrf.mxu0
        %v4250 = vadd.f32 0.0, %v4249
        %v4251 = vpop.f32.mrf.mxu0
        %4252 = vdwg.mxu0
        %v4254 = vrot.slane %v4250, 7
        %v4255 = vrot.slane %v4250, 1
        %v4256 = vrot.slane %v4250, 2
        %v4261 = vadd.f32 %v4019, %v4254
        %v4262 = vadd.f32 %v4021, %v4250
        %v4263 = vadd.f32 %v4024, %v4255
        %v4264 = vadd.f32 %v4026, %v4256
        %v4265 = vxor.u32 %v4261, 2147483648
        %v4266 = vxor.u32 %v4262, 2147483648
        %v4267 = vxor.u32 %v4263, 2147483648
        %v4268 = vxor.u32 %v4264, 2147483648
        %v4269 = vmul.f32 %v4265, 1.442695
        %v4270 = vpow.pop %v4269
        %v4271 = vmul.f32 %v4266, 1.442695
        %v4272 = vpow.pop %v4271
        %v4273 = vmul.f32 %v4267, 1.442695
        %v4274 = vpow.pop %v4273
        %v4275 = vmul.f32 %v4268, 1.442695
        %v4276 = vpow.pop %v4275
        %v4277 = vadd.f32 %v4270, 1.0
        %v4278 = vadd.f32 %v4272, 1.0
        %v4279 = vadd.f32 %v4274, 1.0
        %v4280 = vadd.f32 %v4276, 1.0
        %v4281 = vrcp.pop %v4277
        %v4282 = vmul.f32 %v4277, %v4281
        %v4283 = vsub.f32 1.0, %v4282
        %v4284 = vmul.f32 %v4281, %v4283
        %v4285 = vadd.f32 %v4281, %v4284
        %vm4286 = vweird.f32 %v4277
        %vm4287 = vweird.f32 %v4281
        %vm4288 = vmor %vm4286, %vm4287
        %v4289 = vsel %vm4288, %v4281, %v4285
        %v4290 = vand.u32 2147483647, %v4277
        %vm4291 = vcmp.eq.f32.partialorder %v4290, 8.507059e+37
        %v4292 = vand.u32 %v4277, 2147483648
        %v4293 = vor.u32 1.1754944e-38, %v4292
        %v4294 = vsel %vm4291, %v4293, %v4289
        %v4295 = vmul.f32 1.0, %v4294
        %v4296 = vrcp.pop %v4278
        %v4297 = vmul.f32 %v4278, %v4296
        %v4298 = vsub.f32 1.0, %v4297
        %v4299 = vmul.f32 %v4296, %v4298
        %v4300 = vadd.f32 %v4296, %v4299
        %vm4301 = vweird.f32 %v4278
        %vm4302 = vweird.f32 %v4296
        %vm4303 = vmor %vm4301, %vm4302
        %v4304 = vsel %vm4303, %v4296, %v4300
        %v4305 = vand.u32 2147483647, %v4278
        %vm4306 = vcmp.eq.f32.partialorder %v4305, 8.507059e+37
        %v4307 = vand.u32 %v4278, 2147483648
        %v4308 = vor.u32 1.1754944e-38, %v4307
        %v4309 = vsel %vm4306, %v4308, %v4304
        %v4310 = vmul.f32 1.0, %v4309
        %v4311 = vrcp.pop %v4279
        %v4312 = vmul.f32 %v4279, %v4311
        %v4313 = vsub.f32 1.0, %v4312
        %v4314 = vmul.f32 %v4311, %v4313
        %v4315 = vadd.f32 %v4311, %v4314
        %vm4316 = vweird.f32 %v4279
        %vm4317 = vweird.f32 %v4311
        %vm4318 = vmor %vm4316, %vm4317
        %v4319 = vsel %vm4318, %v4311, %v4315
        %v4320 = vand.u32 2147483647, %v4279
        %vm4321 = vcmp.eq.f32.partialorder %v4320, 8.507059e+37
        %v4322 = vand.u32 %v4279, 2147483648
        %v4323 = vor.u32 1.1754944e-38, %v4322
        %v4324 = vsel %vm4321, %v4323, %v4319
        %v4325 = vmul.f32 1.0, %v4324
        %v4326 = vrcp.pop %v4280
        %v4327 = vmul.f32 %v4280, %v4326
        %v4328 = vsub.f32 1.0, %v4327
        %v4329 = vmul.f32 %v4326, %v4328
        %v4330 = vadd.f32 %v4326, %v4329
        %vm4331 = vweird.f32 %v4280
        %vm4332 = vweird.f32 %v4326
        %vm4333 = vmor %vm4331, %vm4332
        %v4334 = vsel %vm4333, %v4326, %v4330
        %v4335 = vand.u32 2147483647, %v4280
        %vm4336 = vcmp.eq.f32.partialorder %v4335, 8.507059e+37
        %v4337 = vand.u32 %v4280, 2147483648
        %v4338 = vor.u32 1.1754944e-38, %v4337
        %v4339 = vsel %vm4336, %v4338, %v4334
        %v4340 = vmul.f32 1.0, %v4339
        %v4341 = vtanh.pop %v4261
        %v4342 = vtanh.pop %v4262
        %v4343 = vtanh.pop %v4263
        %v4344 = vtanh.pop %v4264
        %v4349 = vrot.slane %v4185, 7
        %v4350 = vrot.slane %v4186, 7
        %v4351 = vrot.slane %v4187, 7
        %v4352 = vrot.slane %v4188, 7
        %v4357 = vmul.f32 %v4295, %v4349
        %v4358 = vmul.f32 %v4310, %v4350
        %v4359 = vmul.f32 %v4325, %v4351
        %v4360 = vmul.f32 %v4340, %v4352
        %4365 = vrot.lane.b32.xlu0 %v4341, 96
        %v4366 = vpop.permute.xlu0 %4365
        %4367 = vrot.lane.b32.xlu0 %v4342, 96
        %v4368 = vpop.permute.xlu0 %4367
        %4369 = vrot.lane.b32.xlu0 %v4343, 96
        %v4370 = vpop.permute.xlu0 %4369
        %4371 = vrot.lane.b32.xlu0 %v4344, 96
        %v4372 = vpop.permute.xlu0 %4371
        %v4377 = vmul.f32 %v4295, %v4366
        %v4378 = vmul.f32 %v4310, %v4368
        %v4379 = vmul.f32 %v4325, %v4370
        %v4380 = vmul.f32 %v4340, %v4372
        %4385 = vrot.lane.b32.xlu0 %v4377, 16
        %v4386 = vpop.permute.xlu0 %4385
        %4387 = vrot.lane.b32.xlu0 %v4378, 16
        %v4388 = vpop.permute.xlu0 %4387
        %4389 = vrot.lane.b32.xlu0 %v4379, 16
        %v4390 = vpop.permute.xlu0 %4389
        %4391 = vrot.lane.b32.xlu0 %v4380, 16
        %v4392 = vpop.permute.xlu0 %4391
        %v4397 = vadd.f32 %v4357, %v4386
        %v4398 = vadd.f32 %v4358, %v4388
        %v4399 = vadd.f32 %v4359, %v4390
        %v4400 = vadd.f32 %v4360, %v4392
        %v4401 = vtanh.pop %v4397
        %v4402 = vtanh.pop %v4398
        %v4403 = vtanh.pop %v4399
        %v4404 = vtanh.pop %v4400
        %4409 = vrot.lane.b32.xlu0 %v4401, 32
        %v4410 = vpop.permute.xlu0 %4409
        %4411 = vrot.lane.b32.xlu0 %v4402, 32
        %v4412 = vpop.permute.xlu0 %4411
        %4413 = vrot.lane.b32.xlu0 %v4403, 32
        %v4414 = vpop.permute.xlu0 %4413
        %4415 = vrot.lane.b32.xlu0 %v4404, 32
        %v4416 = vpop.permute.xlu0 %4415
        %v4421 = vmul.f32 %v4295, %v4410
        %v4422 = vmul.f32 %v4310, %v4412
        %v4423 = vmul.f32 %v4325, %v4414
        %v4424 = vmul.f32 %v4340, %v4416
        %v4425 = vpack.c.bf16 %v4421, %v4421
        %v4426 = vpack.c.bf16 %v4422, %v4422
        %v4427 = vpack.c.bf16 %v4423, %v4423
        %v4428 = vpack.c.bf16 %v4424, %v4424
        %v4433 = vunpack.c.l.b16 %v4425
        %v4434 = vunpack.c.l.b16 %v4426
        %v4435 = vunpack.c.l.b16 %v4427
        %v4436 = vunpack.c.l.b16 %v4428
        %v4437 = vrot.slane %v4433, 1
        %v4438 = vsel %vm4226, %v4434, %v4437
        %v4439 = vrot.slane %v4435, 7
        %v4440 = vsel %vm4229, %v4439, %v4438
        %v4441 = vrot.slane %v4436, 6
        %v4442 = vsel %vm4232, %v4441, %v4440
        %v4443 = vpack.c.b16 %v4442, %v4442
        %4444 = vrot.lane.b32.xlu0 %v4443, 80
        %v4445 = vpop.permute.xlu0 %4444
        %v4447 = vsel %vm4036, %v4445, 0
        %4449 = vmatpush.bf16.msra.mxu0 0
        %4450 = vmatpush.bf16.msra.mxu0 0
        %4451 = vmatpush.bf16.msra.mxu0 0
        %4452 = vmatpush.bf16.msra.mxu0 0
        %4453 = vmatpush.bf16.msra.mxu0 0
        %4454 = vmatpush.bf16.msra.mxu0 0
        %4455 = vmatpush.bf16.msra.mxu0 0
        %4456 = vmatpush.bf16.msra.mxu0 %v4034
        %4457 = vmatmul.bf16.gmra.mxu0 %v4447
        %v4458 = vpop.f32.mrf.mxu0
        %v4459 = vadd.f32 0.0, %v4458
        %v4460 = vpop.f32.mrf.mxu0
        %4461 = vdwg.mxu0
        %v4463 = vrot.slane %v4459, 6
        %v4464 = vrot.slane %v4459, 7
        %v4465 = vrot.slane %v4459, 1
        %v4470 = vadd.f32 %v4019, %v4463
        %v4471 = vadd.f32 %v4021, %v4464
        %v4472 = vadd.f32 %v4024, %v4459
        %v4473 = vadd.f32 %v4026, %v4465
        %v4474 = vxor.u32 %v4470, 2147483648
        %v4475 = vxor.u32 %v4471, 2147483648
        %v4476 = vxor.u32 %v4472, 2147483648
        %v4477 = vxor.u32 %v4473, 2147483648
        %v4478 = vmul.f32 %v4474, 1.442695
        %v4479 = vpow.pop %v4478
        %v4480 = vmul.f32 %v4475, 1.442695
        %v4481 = vpow.pop %v4480
        %v4482 = vmul.f32 %v4476, 1.442695
        %v4483 = vpow.pop %v4482
        %v4484 = vmul.f32 %v4477, 1.442695
        %v4485 = vpow.pop %v4484
        %v4486 = vadd.f32 %v4479, 1.0
        %v4487 = vadd.f32 %v4481, 1.0
        %v4488 = vadd.f32 %v4483, 1.0
        %v4489 = vadd.f32 %v4485, 1.0
        %v4490 = vrcp.pop %v4486
        %v4491 = vmul.f32 %v4486, %v4490
        %v4492 = vsub.f32 1.0, %v4491
        %v4493 = vmul.f32 %v4490, %v4492
        %v4494 = vadd.f32 %v4490, %v4493
        %vm4495 = vweird.f32 %v4486
        %vm4496 = vweird.f32 %v4490
        %vm4497 = vmor %vm4495, %vm4496
        %v4498 = vsel %vm4497, %v4490, %v4494
        %v4499 = vand.u32 2147483647, %v4486
        %vm4500 = vcmp.eq.f32.partialorder %v4499, 8.507059e+37
        %v4501 = vand.u32 %v4486, 2147483648
        %v4502 = vor.u32 1.1754944e-38, %v4501
        %v4503 = vsel %vm4500, %v4502, %v4498
        %v4504 = vmul.f32 1.0, %v4503
        %v4505 = vrcp.pop %v4487
        %v4506 = vmul.f32 %v4487, %v4505
        %v4507 = vsub.f32 1.0, %v4506
        %v4508 = vmul.f32 %v4505, %v4507
        %v4509 = vadd.f32 %v4505, %v4508
        %vm4510 = vweird.f32 %v4487
        %vm4511 = vweird.f32 %v4505
        %vm4512 = vmor %vm4510, %vm4511
        %v4513 = vsel %vm4512, %v4505, %v4509
        %v4514 = vand.u32 2147483647, %v4487
        %vm4515 = vcmp.eq.f32.partialorder %v4514, 8.507059e+37
        %v4516 = vand.u32 %v4487, 2147483648
        %v4517 = vor.u32 1.1754944e-38, %v4516
        %v4518 = vsel %vm4515, %v4517, %v4513
        %v4519 = vmul.f32 1.0, %v4518
        %v4520 = vrcp.pop %v4488
        %v4521 = vmul.f32 %v4488, %v4520
        %v4522 = vsub.f32 1.0, %v4521
        %v4523 = vmul.f32 %v4520, %v4522
        %v4524 = vadd.f32 %v4520, %v4523
        %vm4525 = vweird.f32 %v4488
        %vm4526 = vweird.f32 %v4520
        %vm4527 = vmor %vm4525, %vm4526
        %v4528 = vsel %vm4527, %v4520, %v4524
        %v4529 = vand.u32 2147483647, %v4488
        %vm4530 = vcmp.eq.f32.partialorder %v4529, 8.507059e+37
        %v4531 = vand.u32 %v4488, 2147483648
        %v4532 = vor.u32 1.1754944e-38, %v4531
        %v4533 = vsel %vm4530, %v4532, %v4528
        %v4534 = vmul.f32 1.0, %v4533
        %v4535 = vrcp.pop %v4489
        %v4536 = vmul.f32 %v4489, %v4535
        %v4537 = vsub.f32 1.0, %v4536
        %v4538 = vmul.f32 %v4535, %v4537
        %v4539 = vadd.f32 %v4535, %v4538
        %vm4540 = vweird.f32 %v4489
        %vm4541 = vweird.f32 %v4535
        %vm4542 = vmor %vm4540, %vm4541
        %v4543 = vsel %vm4542, %v4535, %v4539
        %v4544 = vand.u32 2147483647, %v4489
        %vm4545 = vcmp.eq.f32.partialorder %v4544, 8.507059e+37
        %v4546 = vand.u32 %v4489, 2147483648
        %v4547 = vor.u32 1.1754944e-38, %v4546
        %v4548 = vsel %vm4545, %v4547, %v4543
        %v4549 = vmul.f32 1.0, %v4548
        %v4550 = vtanh.pop %v4470
        %v4551 = vtanh.pop %v4471
        %v4552 = vtanh.pop %v4472
        %v4553 = vtanh.pop %v4473
        %v4558 = vrot.slane %v4397, 7
        %v4559 = vrot.slane %v4398, 7
        %v4560 = vrot.slane %v4399, 7
        %v4561 = vrot.slane %v4400, 7
        %v4566 = vmul.f32 %v4504, %v4558
        %v4567 = vmul.f32 %v4519, %v4559
        %v4568 = vmul.f32 %v4534, %v4560
        %v4569 = vmul.f32 %v4549, %v4561
        %4574 = vrot.lane.b32.xlu0 %v4550, 96
        %v4575 = vpop.permute.xlu0 %4574
        %4576 = vrot.lane.b32.xlu0 %v4551, 96
        %v4577 = vpop.permute.xlu0 %4576
        %4578 = vrot.lane.b32.xlu0 %v4552, 96
        %v4579 = vpop.permute.xlu0 %4578
        %4580 = vrot.lane.b32.xlu0 %v4553, 96
        %v4581 = vpop.permute.xlu0 %4580
        %v4586 = vmul.f32 %v4504, %v4575
        %v4587 = vmul.f32 %v4519, %v4577
        %v4588 = vmul.f32 %v4534, %v4579
        %v4589 = vmul.f32 %v4549, %v4581
        %4594 = vrot.lane.b32.xlu0 %v4586, 16
        %v4595 = vpop.permute.xlu0 %4594
        %4596 = vrot.lane.b32.xlu0 %v4587, 16
        %v4597 = vpop.permute.xlu0 %4596
        %4598 = vrot.lane.b32.xlu0 %v4588, 16
        %v4599 = vpop.permute.xlu0 %4598
        %4600 = vrot.lane.b32.xlu0 %v4589, 16
        %v4601 = vpop.permute.xlu0 %4600
        %v4606 = vadd.f32 %v4566, %v4595
        %v4607 = vadd.f32 %v4567, %v4597
        %v4608 = vadd.f32 %v4568, %v4599
        %v4609 = vadd.f32 %v4569, %v4601
        %v4610 = vtanh.pop %v4606
        %v4611 = vtanh.pop %v4607
        %v4612 = vtanh.pop %v4608
        %v4613 = vtanh.pop %v4609
        %4618 = vrot.lane.b32.xlu0 %v4610, 32
        %v4619 = vpop.permute.xlu0 %4618
        %4620 = vrot.lane.b32.xlu0 %v4611, 32
        %v4621 = vpop.permute.xlu0 %4620
        %4622 = vrot.lane.b32.xlu0 %v4612, 32
        %v4623 = vpop.permute.xlu0 %4622
        %4624 = vrot.lane.b32.xlu0 %v4613, 32
        %v4625 = vpop.permute.xlu0 %4624
        %v4630 = vmul.f32 %v4504, %v4619
        %v4631 = vmul.f32 %v4519, %v4621
        %v4632 = vmul.f32 %v4534, %v4623
        %v4633 = vmul.f32 %v4549, %v4625
        %v4634 = vpack.c.bf16 %v4630, %v4630
        %v4635 = vpack.c.bf16 %v4631, %v4631
        %v4636 = vpack.c.bf16 %v4632, %v4632
        %v4637 = vpack.c.bf16 %v4633, %v4633
        %v4642 = vunpack.c.l.b16 %v4634
        %v4643 = vunpack.c.l.b16 %v4635
        %v4644 = vunpack.c.l.b16 %v4636
        %v4645 = vunpack.c.l.b16 %v4637
        %v4646 = vrot.slane %v4642, 2
        %v4647 = vrot.slane %v4643, 1
        %v4648 = vsel %vm4226, %v4647, %v4646
        %v4649 = vsel %vm4229, %v4644, %v4648
        %v4650 = vrot.slane %v4645, 7
        %v4651 = vsel %vm4232, %v4650, %v4649
        %v4652 = vpack.c.b16 %v4651, %v4651
        %4653 = vrot.lane.b32.xlu0 %v4652, 80
        %v4654 = vpop.permute.xlu0 %4653
        %v4656 = vsel %vm4036, %v4654, 0
        %4658 = vmatpush.bf16.msra.mxu0 0
        %4659 = vmatpush.bf16.msra.mxu0 0
        %4660 = vmatpush.bf16.msra.mxu0 0
        %4661 = vmatpush.bf16.msra.mxu0 0
        %4662 = vmatpush.bf16.msra.mxu0 0
        %4663 = vmatpush.bf16.msra.mxu0 0
        %4664 = vmatpush.bf16.msra.mxu0 0
        %4665 = vmatpush.bf16.msra.mxu0 %v4034
        %4666 = vmatmul.bf16.gmra.mxu0 %v4656
        %v4667 = vpop.f32.mrf.mxu0
        %v4668 = vadd.f32 0.0, %v4667
        %v4669 = vpop.f32.mrf.mxu0
        %4670 = vdwg.mxu0
        %v4672 = vrot.slane %v4668, 5
        %v4673 = vrot.slane %v4668, 6
        %v4674 = vrot.slane %v4668, 7
        %v4679 = vadd.f32 %v4019, %v4672
        %v4680 = vadd.f32 %v4021, %v4673
        %v4681 = vadd.f32 %v4024, %v4674
        %v4682 = vadd.f32 %v4026, %v4668
        %v4683 = vxor.u32 %v4679, 2147483648
        %v4684 = vxor.u32 %v4680, 2147483648
        %v4685 = vxor.u32 %v4681, 2147483648
        %v4686 = vxor.u32 %v4682, 2147483648
        %v4687 = vmul.f32 %v4683, 1.442695
        %v4688 = vpow.pop %v4687
        %v4689 = vmul.f32 %v4684, 1.442695
        %v4690 = vpow.pop %v4689
        %v4691 = vmul.f32 %v4685, 1.442695
        %v4692 = vpow.pop %v4691
        %v4693 = vmul.f32 %v4686, 1.442695
        %v4694 = vpow.pop %v4693
        %v4695 = vadd.f32 %v4688, 1.0
        %v4696 = vadd.f32 %v4690, 1.0
        %v4697 = vadd.f32 %v4692, 1.0
        %v4698 = vadd.f32 %v4694, 1.0
        %v4699 = vrcp.pop %v4695
        %v4700 = vmul.f32 %v4695, %v4699
        %v4701 = vsub.f32 1.0, %v4700
        %v4702 = vmul.f32 %v4699, %v4701
        %v4703 = vadd.f32 %v4699, %v4702
        %vm4704 = vweird.f32 %v4695
        %vm4705 = vweird.f32 %v4699
        %vm4706 = vmor %vm4704, %vm4705
        %v4707 = vsel %vm4706, %v4699, %v4703
        %v4708 = vand.u32 2147483647, %v4695
        %vm4709 = vcmp.eq.f32.partialorder %v4708, 8.507059e+37
        %v4710 = vand.u32 %v4695, 2147483648
        %v4711 = vor.u32 1.1754944e-38, %v4710
        %v4712 = vsel %vm4709, %v4711, %v4707
        %v4713 = vmul.f32 1.0, %v4712
        %v4714 = vrcp.pop %v4696
        %v4715 = vmul.f32 %v4696, %v4714
        %v4716 = vsub.f32 1.0, %v4715
        %v4717 = vmul.f32 %v4714, %v4716
        %v4718 = vadd.f32 %v4714, %v4717
        %vm4719 = vweird.f32 %v4696
        %vm4720 = vweird.f32 %v4714
        %vm4721 = vmor %vm4719, %vm4720
        %v4722 = vsel %vm4721, %v4714, %v4718
        %v4723 = vand.u32 2147483647, %v4696
        %vm4724 = vcmp.eq.f32.partialorder %v4723, 8.507059e+37
        %v4725 = vand.u32 %v4696, 2147483648
        %v4726 = vor.u32 1.1754944e-38, %v4725
        %v4727 = vsel %vm4724, %v4726, %v4722
        %v4728 = vmul.f32 1.0, %v4727
        %v4729 = vrcp.pop %v4697
        %v4730 = vmul.f32 %v4697, %v4729
        %v4731 = vsub.f32 1.0, %v4730
        %v4732 = vmul.f32 %v4729, %v4731
        %v4733 = vadd.f32 %v4729, %v4732
        %vm4734 = vweird.f32 %v4697
        %vm4735 = vweird.f32 %v4729
        %vm4736 = vmor %vm4734, %vm4735
        %v4737 = vsel %vm4736, %v4729, %v4733
        %v4738 = vand.u32 2147483647, %v4697
        %vm4739 = vcmp.eq.f32.partialorder %v4738, 8.507059e+37
        %v4740 = vand.u32 %v4697, 2147483648
        %v4741 = vor.u32 1.1754944e-38, %v4740
        %v4742 = vsel %vm4739, %v4741, %v4737
        %v4743 = vmul.f32 1.0, %v4742
        %v4744 = vrcp.pop %v4698
        %v4745 = vmul.f32 %v4698, %v4744
        %v4746 = vsub.f32 1.0, %v4745
        %v4747 = vmul.f32 %v4744, %v4746
        %v4748 = vadd.f32 %v4744, %v4747
        %vm4749 = vweird.f32 %v4698
        %vm4750 = vweird.f32 %v4744
        %vm4751 = vmor %vm4749, %vm4750
        %v4752 = vsel %vm4751, %v4744, %v4748
        %v4753 = vand.u32 2147483647, %v4698
        %vm4754 = vcmp.eq.f32.partialorder %v4753, 8.507059e+37
        %v4755 = vand.u32 %v4698, 2147483648
        %v4756 = vor.u32 1.1754944e-38, %v4755
        %v4757 = vsel %vm4754, %v4756, %v4752
        %v4758 = vmul.f32 1.0, %v4757
        %v4759 = vtanh.pop %v4679
        %v4760 = vtanh.pop %v4680
        %v4761 = vtanh.pop %v4681
        %v4762 = vtanh.pop %v4682
        %v4767 = vrot.slane %v4606, 7
        %v4768 = vrot.slane %v4607, 7
        %v4769 = vrot.slane %v4608, 7
        %v4770 = vrot.slane %v4609, 7
        %v4775 = vmul.f32 %v4713, %v4767
        %v4776 = vmul.f32 %v4728, %v4768
        %v4777 = vmul.f32 %v4743, %v4769
        %v4778 = vmul.f32 %v4758, %v4770
        %4783 = vrot.lane.b32.xlu0 %v4759, 96
        %v4784 = vpop.permute.xlu0 %4783
        %4785 = vrot.lane.b32.xlu0 %v4760, 96
        %v4786 = vpop.permute.xlu0 %4785
        %4787 = vrot.lane.b32.xlu0 %v4761, 96
        %v4788 = vpop.permute.xlu0 %4787
        %4789 = vrot.lane.b32.xlu0 %v4762, 96
        %v4790 = vpop.permute.xlu0 %4789
        %v4795 = vmul.f32 %v4713, %v4784
        %v4796 = vmul.f32 %v4728, %v4786
        %v4797 = vmul.f32 %v4743, %v4788
        %v4798 = vmul.f32 %v4758, %v4790
        %4803 = vrot.lane.b32.xlu0 %v4795, 16
        %v4804 = vpop.permute.xlu0 %4803
        %4805 = vrot.lane.b32.xlu0 %v4796, 16
        %v4806 = vpop.permute.xlu0 %4805
        %4807 = vrot.lane.b32.xlu0 %v4797, 16
        %v4808 = vpop.permute.xlu0 %4807
        %4809 = vrot.lane.b32.xlu0 %v4798, 16
        %v4810 = vpop.permute.xlu0 %4809
        %v4815 = vadd.f32 %v4775, %v4804
        %v4816 = vadd.f32 %v4776, %v4806
        %v4817 = vadd.f32 %v4777, %v4808
        %v4818 = vadd.f32 %v4778, %v4810
        %v4819 = vtanh.pop %v4815
        %v4820 = vtanh.pop %v4816
        %v4821 = vtanh.pop %v4817
        %v4822 = vtanh.pop %v4818
        %4827 = vrot.lane.b32.xlu0 %v4819, 32
        %v4828 = vpop.permute.xlu0 %4827
        %4829 = vrot.lane.b32.xlu0 %v4820, 32
        %v4830 = vpop.permute.xlu0 %4829
        %4831 = vrot.lane.b32.xlu0 %v4821, 32
        %v4832 = vpop.permute.xlu0 %4831
        %4833 = vrot.lane.b32.xlu0 %v4822, 32
        %v4834 = vpop.permute.xlu0 %4833
        %v4839 = vmul.f32 %v4713, %v4828
        %v4840 = vmul.f32 %v4728, %v4830
        %v4841 = vmul.f32 %v4743, %v4832
        %v4842 = vmul.f32 %v4758, %v4834
        %v4843 = vpack.c.bf16 %v4839, %v4839
        %v4844 = vpack.c.bf16 %v4840, %v4840
        %v4845 = vpack.c.bf16 %v4841, %v4841
        %v4846 = vpack.c.bf16 %v4842, %v4842
        %v4851 = vunpack.c.l.b16 %v4843
        %v4852 = vunpack.c.l.b16 %v4844
        %v4853 = vunpack.c.l.b16 %v4845
        %v4854 = vunpack.c.l.b16 %v4846
        %v4855 = vrot.slane %v4851, 3
        %v4856 = vrot.slane %v4852, 2
        %v4857 = vsel %vm4226, %v4856, %v4855
        %v4858 = vrot.slane %v4853, 1
        %v4859 = vsel %vm4229, %v4858, %v4857
        %v4860 = vsel %vm4232, %v4854, %v4859
        %v4861 = vpack.c.b16 %v4860, %v4860
        %4862 = vrot.lane.b32.xlu0 %v4861, 80
        %v4863 = vpop.permute.xlu0 %4862
        %v4865 = vsel %vm4036, %v4863, 0
        %4867 = vmatpush.bf16.msra.mxu0 0
        %4868 = vmatpush.bf16.msra.mxu0 0
        %4869 = vmatpush.bf16.msra.mxu0 0
        %4870 = vmatpush.bf16.msra.mxu0 0
        %4871 = vmatpush.bf16.msra.mxu0 0
        %4872 = vmatpush.bf16.msra.mxu0 0
        %4873 = vmatpush.bf16.msra.mxu0 0
        %4874 = vmatpush.bf16.msra.mxu0 %v4034
        %4875 = vmatmul.bf16.gmra.mxu0 %v4865
        %v4876 = vpop.f32.mrf.mxu0
        %v4877 = vadd.f32 0.0, %v4876
        %v4878 = vpop.f32.mrf.mxu0
        %4879 = vdwg.mxu0
        %v4881 = vrot.slane %v4877, 4
        %v4882 = vrot.slane %v4877, 5
        %v4883 = vrot.slane %v4877, 6
        %v4884 = vrot.slane %v4877, 7
        %v4889 = vadd.f32 %v4019, %v4881
        %v4890 = vadd.f32 %v4021, %v4882
        %v4891 = vadd.f32 %v4024, %v4883
        %v4892 = vadd.f32 %v4026, %v4884
        %v4893 = vxor.u32 %v4889, 2147483648
        %v4894 = vxor.u32 %v4890, 2147483648
        %v4895 = vxor.u32 %v4891, 2147483648
        %v4896 = vxor.u32 %v4892, 2147483648
        %v4897 = vmul.f32 %v4893, 1.442695
        %v4898 = vpow.pop %v4897
        %v4899 = vmul.f32 %v4894, 1.442695
        %v4900 = vpow.pop %v4899
        %v4901 = vmul.f32 %v4895, 1.442695
        %v4902 = vpow.pop %v4901
        %v4903 = vmul.f32 %v4896, 1.442695
        %v4904 = vpow.pop %v4903
        %v4905 = vadd.f32 %v4898, 1.0
        %v4906 = vadd.f32 %v4900, 1.0
        %v4907 = vadd.f32 %v4902, 1.0
        %v4908 = vadd.f32 %v4904, 1.0
        %v4909 = vrcp.pop %v4905
        %v4910 = vmul.f32 %v4905, %v4909
        %v4911 = vsub.f32 1.0, %v4910
        %v4912 = vmul.f32 %v4909, %v4911
        %v4913 = vadd.f32 %v4909, %v4912
        %vm4914 = vweird.f32 %v4905
        %vm4915 = vweird.f32 %v4909
        %vm4916 = vmor %vm4914, %vm4915
        %v4917 = vsel %vm4916, %v4909, %v4913
        %v4918 = vand.u32 2147483647, %v4905
        %vm4919 = vcmp.eq.f32.partialorder %v4918, 8.507059e+37
        %v4920 = vand.u32 %v4905, 2147483648
        %v4921 = vor.u32 1.1754944e-38, %v4920
        %v4922 = vsel %vm4919, %v4921, %v4917
        %v4923 = vmul.f32 1.0, %v4922
        %v4924 = vrcp.pop %v4906
        %v4925 = vmul.f32 %v4906, %v4924
        %v4926 = vsub.f32 1.0, %v4925
        %v4927 = vmul.f32 %v4924, %v4926
        %v4928 = vadd.f32 %v4924, %v4927
        %vm4929 = vweird.f32 %v4906
        %vm4930 = vweird.f32 %v4924
        %vm4931 = vmor %vm4929, %vm4930
        %v4932 = vsel %vm4931, %v4924, %v4928
        %v4933 = vand.u32 2147483647, %v4906
        %vm4934 = vcmp.eq.f32.partialorder %v4933, 8.507059e+37
        %v4935 = vand.u32 %v4906, 2147483648
        %v4936 = vor.u32 1.1754944e-38, %v4935
        %v4937 = vsel %vm4934, %v4936, %v4932
        %v4938 = vmul.f32 1.0, %v4937
        %v4939 = vrcp.pop %v4907
        %v4940 = vmul.f32 %v4907, %v4939
        %v4941 = vsub.f32 1.0, %v4940
        %v4942 = vmul.f32 %v4939, %v4941
        %v4943 = vadd.f32 %v4939, %v4942
        %vm4944 = vweird.f32 %v4907
        %vm4945 = vweird.f32 %v4939
        %vm4946 = vmor %vm4944, %vm4945
        %v4947 = vsel %vm4946, %v4939, %v4943
        %v4948 = vand.u32 2147483647, %v4907
        %vm4949 = vcmp.eq.f32.partialorder %v4948, 8.507059e+37
        %v4950 = vand.u32 %v4907, 2147483648
        %v4951 = vor.u32 1.1754944e-38, %v4950
        %v4952 = vsel %vm4949, %v4951, %v4947
        %v4953 = vmul.f32 1.0, %v4952
        %v4954 = vrcp.pop %v4908
        %v4955 = vmul.f32 %v4908, %v4954
        %v4956 = vsub.f32 1.0, %v4955
        %v4957 = vmul.f32 %v4954, %v4956
        %v4958 = vadd.f32 %v4954, %v4957
        %vm4959 = vweird.f32 %v4908
        %vm4960 = vweird.f32 %v4954
        %vm4961 = vmor %vm4959, %vm4960
        %v4962 = vsel %vm4961, %v4954, %v4958
        %v4963 = vand.u32 2147483647, %v4908
        %vm4964 = vcmp.eq.f32.partialorder %v4963, 8.507059e+37
        %v4965 = vand.u32 %v4908, 2147483648
        %v4966 = vor.u32 1.1754944e-38, %v4965
        %v4967 = vsel %vm4964, %v4966, %v4962
        %v4968 = vmul.f32 1.0, %v4967
        %v4969 = vtanh.pop %v4889
        %v4970 = vtanh.pop %v4890
        %v4971 = vtanh.pop %v4891
        %v4972 = vtanh.pop %v4892
        %v4977 = vrot.slane %v4815, 7
        %v4978 = vrot.slane %v4816, 7
        %v4979 = vrot.slane %v4817, 7
        %v4980 = vrot.slane %v4818, 7
        %v4985 = vmul.f32 %v4923, %v4977
        %v4986 = vmul.f32 %v4938, %v4978
        %v4987 = vmul.f32 %v4953, %v4979
        %v4988 = vmul.f32 %v4968, %v4980
        %4993 = vrot.lane.b32.xlu0 %v4969, 96
        %v4994 = vpop.permute.xlu0 %4993
        %4995 = vrot.lane.b32.xlu0 %v4970, 96
        %v4996 = vpop.permute.xlu0 %4995
        %4997 = vrot.lane.b32.xlu0 %v4971, 96
        %v4998 = vpop.permute.xlu0 %4997
        %4999 = vrot.lane.b32.xlu0 %v4972, 96
        %v5000 = vpop.permute.xlu0 %4999
        %v5005 = vmul.f32 %v4923, %v4994
        %v5006 = vmul.f32 %v4938, %v4996
        %v5007 = vmul.f32 %v4953, %v4998
        %v5008 = vmul.f32 %v4968, %v5000
        %5013 = vrot.lane.b32.xlu0 %v5005, 16
        %v5014 = vpop.permute.xlu0 %5013
        %5015 = vrot.lane.b32.xlu0 %v5006, 16
        %v5016 = vpop.permute.xlu0 %5015
        %5017 = vrot.lane.b32.xlu0 %v5007, 16
        %v5018 = vpop.permute.xlu0 %5017
        %5019 = vrot.lane.b32.xlu0 %v5008, 16
        %v5020 = vpop.permute.xlu0 %5019
        %v5025 = vadd.f32 %v4985, %v5014
        %v5026 = vadd.f32 %v4986, %v5016
        %v5027 = vadd.f32 %v4987, %v5018
        %v5028 = vadd.f32 %v4988, %v5020
        %v5029 = vtanh.pop %v5025
        %v5030 = vtanh.pop %v5026
        %v5031 = vtanh.pop %v5027
        %v5032 = vtanh.pop %v5028
        %5037 = vrot.lane.b32.xlu0 %v5029, 32
        %v5038 = vpop.permute.xlu0 %5037
        %5039 = vrot.lane.b32.xlu0 %v5030, 32
        %v5040 = vpop.permute.xlu0 %5039
        %5041 = vrot.lane.b32.xlu0 %v5031, 32
        %v5042 = vpop.permute.xlu0 %5041
        %5043 = vrot.lane.b32.xlu0 %v5032, 32
        %v5044 = vpop.permute.xlu0 %5043
        %v5049 = vmul.f32 %v4923, %v5038
        %v5050 = vmul.f32 %v4938, %v5040
        %v5051 = vmul.f32 %v4953, %v5042
        %v5052 = vmul.f32 %v4968, %v5044
        %v5053 = vpack.c.bf16 %v5049, %v5049
        %v5054 = vpack.c.bf16 %v5050, %v5050
        %v5055 = vpack.c.bf16 %v5051, %v5051
        %v5056 = vpack.c.bf16 %v5052, %v5052
        %v5061 = vunpack.c.l.b16 %v5053
        %v5062 = vunpack.c.l.b16 %v5054
        %v5063 = vunpack.c.l.b16 %v5055
        %v5064 = vunpack.c.l.b16 %v5056
        %v5065 = vrot.slane %v5061, 4
        %v5066 = vrot.slane %v5062, 3
        %v5067 = vsel %vm4226, %v5066, %v5065
        %v5068 = vrot.slane %v5063, 2
        %v5069 = vsel %vm4229, %v5068, %v5067
        %v5070 = vrot.slane %v5064, 1
        %v5071 = vsel %vm4232, %v5070, %v5069
        %v5072 = vpack.c.b16 %v5071, %v5071
        %5073 = vrot.lane.b32.xlu0 %v5072, 80
        %v5074 = vpop.permute.xlu0 %5073
        %v5076 = vsel %vm4036, %v5074, 0
        %5078 = vmatpush.bf16.msra.mxu0 0
        %5079 = vmatpush.bf16.msra.mxu0 0
        %5080 = vmatpush.bf16.msra.mxu0 0
        %5081 = vmatpush.bf16.msra.mxu0 0
        %5082 = vmatpush.bf16.msra.mxu0 0
        %5083 = vmatpush.bf16.msra.mxu0 0
        %5084 = vmatpush.bf16.msra.mxu0 0
        %5085 = vmatpush.bf16.msra.mxu0 %v4034
        %5086 = vmatmul.bf16.gmra.mxu0 %v5076
        %v5087 = vpop.f32.mrf.mxu0
        %v5088 = vadd.f32 0.0, %v5087
        %v5089 = vpop.f32.mrf.mxu0
        %5090 = vdwg.mxu0
        %v5092 = vrot.slane %v5088, 3
        %v5093 = vrot.slane %v5088, 4
        %v5094 = vrot.slane %v5088, 5
        %v5095 = vrot.slane %v5088, 6
        %v5100 = vadd.f32 %v4019, %v5092
        %v5101 = vadd.f32 %v4021, %v5093
        %v5102 = vadd.f32 %v4024, %v5094
        %v5103 = vadd.f32 %v4026, %v5095
        %v5104 = vxor.u32 %v5100, 2147483648
        %v5105 = vxor.u32 %v5101, 2147483648
        %v5106 = vxor.u32 %v5102, 2147483648
        %v5107 = vxor.u32 %v5103, 2147483648
        %v5108 = vmul.f32 %v5104, 1.442695
        %v5109 = vpow.pop %v5108
        %v5110 = vmul.f32 %v5105, 1.442695
        %v5111 = vpow.pop %v5110
        %v5112 = vmul.f32 %v5106, 1.442695
        %v5113 = vpow.pop %v5112
        %v5114 = vmul.f32 %v5107, 1.442695
        %v5115 = vpow.pop %v5114
        %v5116 = vadd.f32 %v5109, 1.0
        %v5117 = vadd.f32 %v5111, 1.0
        %v5118 = vadd.f32 %v5113, 1.0
        %v5119 = vadd.f32 %v5115, 1.0
        %v5120 = vrcp.pop %v5116
        %v5121 = vmul.f32 %v5116, %v5120
        %v5122 = vsub.f32 1.0, %v5121
        %v5123 = vmul.f32 %v5120, %v5122
        %v5124 = vadd.f32 %v5120, %v5123
        %vm5125 = vweird.f32 %v5116
        %vm5126 = vweird.f32 %v5120
        %vm5127 = vmor %vm5125, %vm5126
        %v5128 = vsel %vm5127, %v5120, %v5124
        %v5129 = vand.u32 2147483647, %v5116
        %vm5130 = vcmp.eq.f32.partialorder %v5129, 8.507059e+37
        %v5131 = vand.u32 %v5116, 2147483648
        %v5132 = vor.u32 1.1754944e-38, %v5131
        %v5133 = vsel %vm5130, %v5132, %v5128
        %v5134 = vmul.f32 1.0, %v5133
        %v5135 = vrcp.pop %v5117
        %v5136 = vmul.f32 %v5117, %v5135
        %v5137 = vsub.f32 1.0, %v5136
        %v5138 = vmul.f32 %v5135, %v5137
        %v5139 = vadd.f32 %v5135, %v5138
        %vm5140 = vweird.f32 %v5117
        %vm5141 = vweird.f32 %v5135
        %vm5142 = vmor %vm5140, %vm5141
        %v5143 = vsel %vm5142, %v5135, %v5139
        %v5144 = vand.u32 2147483647, %v5117
        %vm5145 = vcmp.eq.f32.partialorder %v5144, 8.507059e+37
        %v5146 = vand.u32 %v5117, 2147483648
        %v5147 = vor.u32 1.1754944e-38, %v5146
        %v5148 = vsel %vm5145, %v5147, %v5143
        %v5149 = vmul.f32 1.0, %v5148
        %v5150 = vrcp.pop %v5118
        %v5151 = vmul.f32 %v5118, %v5150
        %v5152 = vsub.f32 1.0, %v5151
        %v5153 = vmul.f32 %v5150, %v5152
        %v5154 = vadd.f32 %v5150, %v5153
        %vm5155 = vweird.f32 %v5118
        %vm5156 = vweird.f32 %v5150
        %vm5157 = vmor %vm5155, %vm5156
        %v5158 = vsel %vm5157, %v5150, %v5154
        %v5159 = vand.u32 2147483647, %v5118
        %vm5160 = vcmp.eq.f32.partialorder %v5159, 8.507059e+37
        %v5161 = vand.u32 %v5118, 2147483648
        %v5162 = vor.u32 1.1754944e-38, %v5161
        %v5163 = vsel %vm5160, %v5162, %v5158
        %v5164 = vmul.f32 1.0, %v5163
        %v5165 = vrcp.pop %v5119
        %v5166 = vmul.f32 %v5119, %v5165
        %v5167 = vsub.f32 1.0, %v5166
        %v5168 = vmul.f32 %v5165, %v5167
        %v5169 = vadd.f32 %v5165, %v5168
        %vm5170 = vweird.f32 %v5119
        %vm5171 = vweird.f32 %v5165
        %vm5172 = vmor %vm5170, %vm5171
        %v5173 = vsel %vm5172, %v5165, %v5169
        %v5174 = vand.u32 2147483647, %v5119
        %vm5175 = vcmp.eq.f32.partialorder %v5174, 8.507059e+37
        %v5176 = vand.u32 %v5119, 2147483648
        %v5177 = vor.u32 1.1754944e-38, %v5176
        %v5178 = vsel %vm5175, %v5177, %v5173
        %v5179 = vmul.f32 1.0, %v5178
        %v5180 = vtanh.pop %v5100
        %v5181 = vtanh.pop %v5101
        %v5182 = vtanh.pop %v5102
        %v5183 = vtanh.pop %v5103
        %v5188 = vrot.slane %v5025, 7
        %v5189 = vrot.slane %v5026, 7
        %v5190 = vrot.slane %v5027, 7
        %v5191 = vrot.slane %v5028, 7
        %v5196 = vmul.f32 %v5134, %v5188
        %v5197 = vmul.f32 %v5149, %v5189
        %v5198 = vmul.f32 %v5164, %v5190
        %v5199 = vmul.f32 %v5179, %v5191
        %5204 = vrot.lane.b32.xlu0 %v5180, 96
        %v5205 = vpop.permute.xlu0 %5204
        %5206 = vrot.lane.b32.xlu0 %v5181, 96
        %v5207 = vpop.permute.xlu0 %5206
        %5208 = vrot.lane.b32.xlu0 %v5182, 96
        %v5209 = vpop.permute.xlu0 %5208
        %5210 = vrot.lane.b32.xlu0 %v5183, 96
        %v5211 = vpop.permute.xlu0 %5210
        %v5216 = vmul.f32 %v5134, %v5205
        %v5217 = vmul.f32 %v5149, %v5207
        %v5218 = vmul.f32 %v5164, %v5209
        %v5219 = vmul.f32 %v5179, %v5211
        %5224 = vrot.lane.b32.xlu0 %v5216, 16
        %v5225 = vpop.permute.xlu0 %5224
        %5226 = vrot.lane.b32.xlu0 %v5217, 16
        %v5227 = vpop.permute.xlu0 %5226
        %5228 = vrot.lane.b32.xlu0 %v5218, 16
        %v5229 = vpop.permute.xlu0 %5228
        %5230 = vrot.lane.b32.xlu0 %v5219, 16
        %v5231 = vpop.permute.xlu0 %5230
        %v5236 = vadd.f32 %v5196, %v5225
        %v5237 = vadd.f32 %v5197, %v5227
        %v5238 = vadd.f32 %v5198, %v5229
        %v5239 = vadd.f32 %v5199, %v5231
        %v5240 = vtanh.pop %v5236
        %v5241 = vtanh.pop %v5237
        %v5242 = vtanh.pop %v5238
        %v5243 = vtanh.pop %v5239
        %5248 = vrot.lane.b32.xlu0 %v5240, 32
        %v5249 = vpop.permute.xlu0 %5248
        %5250 = vrot.lane.b32.xlu0 %v5241, 32
        %v5251 = vpop.permute.xlu0 %5250
        %5252 = vrot.lane.b32.xlu0 %v5242, 32
        %v5253 = vpop.permute.xlu0 %5252
        %5254 = vrot.lane.b32.xlu0 %v5243, 32
        %v5255 = vpop.permute.xlu0 %5254
        %v5260 = vmul.f32 %v5134, %v5249
        %v5261 = vmul.f32 %v5149, %v5251
        %v5262 = vmul.f32 %v5164, %v5253
        %v5263 = vmul.f32 %v5179, %v5255
        %v5264 = vpack.c.bf16 %v5260, %v5260
        %v5265 = vpack.c.bf16 %v5261, %v5261
        %v5266 = vpack.c.bf16 %v5262, %v5262
        %v5267 = vpack.c.bf16 %v5263, %v5263
        %v5272 = vunpack.c.l.b16 %v5264
        %v5273 = vunpack.c.l.b16 %v5265
        %v5274 = vunpack.c.l.b16 %v5266
        %v5275 = vunpack.c.l.b16 %v5267
        %v5276 = vrot.slane %v5272, 5
        %v5277 = vrot.slane %v5273, 4
        %v5278 = vsel %vm4226, %v5277, %v5276
        %v5279 = vrot.slane %v5274, 3
        %v5280 = vsel %vm4229, %v5279, %v5278
        %v5281 = vrot.slane %v5275, 2
        %v5282 = vsel %vm4232, %v5281, %v5280
        %v5283 = vpack.c.b16 %v5282, %v5282
        %5284 = vrot.lane.b32.xlu0 %v5283, 80
        %v5285 = vpop.permute.xlu0 %5284
        %v5287 = vsel %vm4036, %v5285, 0
        %5289 = vmatpush.bf16.msra.mxu0 0
        %5290 = vmatpush.bf16.msra.mxu0 0
        %5291 = vmatpush.bf16.msra.mxu0 0
        %5292 = vmatpush.bf16.msra.mxu0 0
        %5293 = vmatpush.bf16.msra.mxu0 0
        %5294 = vmatpush.bf16.msra.mxu0 0
        %5295 = vmatpush.bf16.msra.mxu0 0
        %5296 = vmatpush.bf16.msra.mxu0 %v4034
        %5297 = vmatmul.bf16.gmra.mxu0 %v5287
        %v5298 = vpop.f32.mrf.mxu0
        %v5299 = vadd.f32 0.0, %v5298
        %v5300 = vpop.f32.mrf.mxu0
        %5301 = vdwg.mxu0
        %v5303 = vrot.slane %v5299, 2
        %v5304 = vrot.slane %v5299, 3
        %v5305 = vrot.slane %v5299, 4
        %v5306 = vrot.slane %v5299, 5
        %v5311 = vadd.f32 %v4019, %v5303
        %v5312 = vadd.f32 %v4021, %v5304
        %v5313 = vadd.f32 %v4024, %v5305
        %v5314 = vadd.f32 %v4026, %v5306
        %v5315 = vxor.u32 %v5311, 2147483648
        %v5316 = vxor.u32 %v5312, 2147483648
        %v5317 = vxor.u32 %v5313, 2147483648
        %v5318 = vxor.u32 %v5314, 2147483648
        %v5319 = vmul.f32 %v5315, 1.442695
        %v5320 = vpow.pop %v5319
        %v5321 = vmul.f32 %v5316, 1.442695
        %v5322 = vpow.pop %v5321
        %v5323 = vmul.f32 %v5317, 1.442695
        %v5324 = vpow.pop %v5323
        %v5325 = vmul.f32 %v5318, 1.442695
        %v5326 = vpow.pop %v5325
        %v5327 = vadd.f32 %v5320, 1.0
        %v5328 = vadd.f32 %v5322, 1.0
        %v5329 = vadd.f32 %v5324, 1.0
        %v5330 = vadd.f32 %v5326, 1.0
        %v5331 = vrcp.pop %v5327
        %v5332 = vmul.f32 %v5327, %v5331
        %v5333 = vsub.f32 1.0, %v5332
        %v5334 = vmul.f32 %v5331, %v5333
        %v5335 = vadd.f32 %v5331, %v5334
        %vm5336 = vweird.f32 %v5327
        %vm5337 = vweird.f32 %v5331
        %vm5338 = vmor %vm5336, %vm5337
        %v5339 = vsel %vm5338, %v5331, %v5335
        %v5340 = vand.u32 2147483647, %v5327
        %vm5341 = vcmp.eq.f32.partialorder %v5340, 8.507059e+37
        %v5342 = vand.u32 %v5327, 2147483648
        %v5343 = vor.u32 1.1754944e-38, %v5342
        %v5344 = vsel %vm5341, %v5343, %v5339
        %v5345 = vmul.f32 1.0, %v5344
        %v5346 = vrcp.pop %v5328
        %v5347 = vmul.f32 %v5328, %v5346
        %v5348 = vsub.f32 1.0, %v5347
        %v5349 = vmul.f32 %v5346, %v5348
        %v5350 = vadd.f32 %v5346, %v5349
        %vm5351 = vweird.f32 %v5328
        %vm5352 = vweird.f32 %v5346
        %vm5353 = vmor %vm5351, %vm5352
        %v5354 = vsel %vm5353, %v5346, %v5350
        %v5355 = vand.u32 2147483647, %v5328
        %vm5356 = vcmp.eq.f32.partialorder %v5355, 8.507059e+37
        %v5357 = vand.u32 %v5328, 2147483648
        %v5358 = vor.u32 1.1754944e-38, %v5357
        %v5359 = vsel %vm5356, %v5358, %v5354
        %v5360 = vmul.f32 1.0, %v5359
        %v5361 = vrcp.pop %v5329
        %v5362 = vmul.f32 %v5329, %v5361
        %v5363 = vsub.f32 1.0, %v5362
        %v5364 = vmul.f32 %v5361, %v5363
        %v5365 = vadd.f32 %v5361, %v5364
        %vm5366 = vweird.f32 %v5329
        %vm5367 = vweird.f32 %v5361
        %vm5368 = vmor %vm5366, %vm5367
        %v5369 = vsel %vm5368, %v5361, %v5365
        %v5370 = vand.u32 2147483647, %v5329
        %vm5371 = vcmp.eq.f32.partialorder %v5370, 8.507059e+37
        %v5372 = vand.u32 %v5329, 2147483648
        %v5373 = vor.u32 1.1754944e-38, %v5372
        %v5374 = vsel %vm5371, %v5373, %v5369
        %v5375 = vmul.f32 1.0, %v5374
        %v5376 = vrcp.pop %v5330
        %v5377 = vmul.f32 %v5330, %v5376
        %v5378 = vsub.f32 1.0, %v5377
        %v5379 = vmul.f32 %v5376, %v5378
        %v5380 = vadd.f32 %v5376, %v5379
        %vm5381 = vweird.f32 %v5330
        %vm5382 = vweird.f32 %v5376
        %vm5383 = vmor %vm5381, %vm5382
        %v5384 = vsel %vm5383, %v5376, %v5380
        %v5385 = vand.u32 2147483647, %v5330
        %vm5386 = vcmp.eq.f32.partialorder %v5385, 8.507059e+37
        %v5387 = vand.u32 %v5330, 2147483648
        %v5388 = vor.u32 1.1754944e-38, %v5387
        %v5389 = vsel %vm5386, %v5388, %v5384
        %v5390 = vmul.f32 1.0, %v5389
        %v5391 = vtanh.pop %v5311
        %v5392 = vtanh.pop %v5312
        %v5393 = vtanh.pop %v5313
        %v5394 = vtanh.pop %v5314
        %v5399 = vrot.slane %v5236, 7
        %v5400 = vrot.slane %v5237, 7
        %v5401 = vrot.slane %v5238, 7
        %v5402 = vrot.slane %v5239, 7
        %v5407 = vmul.f32 %v5345, %v5399
        %v5408 = vmul.f32 %v5360, %v5400
        %v5409 = vmul.f32 %v5375, %v5401
        %v5410 = vmul.f32 %v5390, %v5402
        %5415 = vrot.lane.b32.xlu0 %v5391, 96
        %v5416 = vpop.permute.xlu0 %5415
        %5417 = vrot.lane.b32.xlu0 %v5392, 96
        %v5418 = vpop.permute.xlu0 %5417
        %5419 = vrot.lane.b32.xlu0 %v5393, 96
        %v5420 = vpop.permute.xlu0 %5419
        %5421 = vrot.lane.b32.xlu0 %v5394, 96
        %v5422 = vpop.permute.xlu0 %5421
        %v5427 = vmul.f32 %v5345, %v5416
        %v5428 = vmul.f32 %v5360, %v5418
        %v5429 = vmul.f32 %v5375, %v5420
        %v5430 = vmul.f32 %v5390, %v5422
        %5435 = vrot.lane.b32.xlu0 %v5427, 16
        %v5436 = vpop.permute.xlu0 %5435
        %5437 = vrot.lane.b32.xlu0 %v5428, 16
        %v5438 = vpop.permute.xlu0 %5437
        %5439 = vrot.lane.b32.xlu0 %v5429, 16
        %v5440 = vpop.permute.xlu0 %5439
        %5441 = vrot.lane.b32.xlu0 %v5430, 16
        %v5442 = vpop.permute.xlu0 %5441
        %v5447 = vadd.f32 %v5407, %v5436
        %v5448 = vadd.f32 %v5408, %v5438
        %v5449 = vadd.f32 %v5409, %v5440
        %v5450 = vadd.f32 %v5410, %v5442
        %v5451 = vtanh.pop %v5447
        %v5452 = vtanh.pop %v5448
        %v5453 = vtanh.pop %v5449
        %v5454 = vtanh.pop %v5450
        %5459 = vrot.lane.b32.xlu0 %v5451, 32
        %v5460 = vpop.permute.xlu0 %5459
        %5461 = vrot.lane.b32.xlu0 %v5452, 32
        %v5462 = vpop.permute.xlu0 %5461
        %5463 = vrot.lane.b32.xlu0 %v5453, 32
        %v5464 = vpop.permute.xlu0 %5463
        %5465 = vrot.lane.b32.xlu0 %v5454, 32
        %v5466 = vpop.permute.xlu0 %5465
        %v5471 = vmul.f32 %v5345, %v5460
        %v5472 = vmul.f32 %v5360, %v5462
        %v5473 = vmul.f32 %v5375, %v5464
        %v5474 = vmul.f32 %v5390, %v5466
        %v5475 = vpack.c.bf16 %v5471, %v5471
        %v5476 = vpack.c.bf16 %v5472, %v5472
        %v5477 = vpack.c.bf16 %v5473, %v5473
        %v5478 = vpack.c.bf16 %v5474, %v5474
        %v5483 = vunpack.c.l.b16 %v5475
        %v5484 = vunpack.c.l.b16 %v5476
        %v5485 = vunpack.c.l.b16 %v5477
        %v5486 = vunpack.c.l.b16 %v5478
        %v5487 = vrot.slane %v5483, 6
        %v5488 = vrot.slane %v5484, 5
        %v5489 = vsel %vm4226, %v5488, %v5487
        %v5490 = vrot.slane %v5485, 4
        %v5491 = vsel %vm4229, %v5490, %v5489
        %v5492 = vrot.slane %v5486, 3
        %v5493 = vsel %vm4232, %v5492, %v5491
        %v5494 = vpack.c.b16 %v5493, %v5493
        %5495 = vrot.lane.b32.xlu0 %v5494, 80
        %v5496 = vpop.permute.xlu0 %5495
        %v5498 = vsel %vm4036, %v5496, 0
        %5500 = vmatpush.bf16.msra.mxu0 0
        %5501 = vmatpush.bf16.msra.mxu0 0
        %5502 = vmatpush.bf16.msra.mxu0 0
        %5503 = vmatpush.bf16.msra.mxu0 0
        %5504 = vmatpush.bf16.msra.mxu0 0
        %5505 = vmatpush.bf16.msra.mxu0 0
        %5506 = vmatpush.bf16.msra.mxu0 0
        %5507 = vmatpush.bf16.msra.mxu0 %v4034
        %5508 = vmatmul.bf16.gmra.mxu0 %v5498
        %v5509 = vpop.f32.mrf.mxu0
        %v5510 = vadd.f32 0.0, %v5509
        %v5511 = vpop.f32.mrf.mxu0
        %5512 = vdwg.mxu0
        %v5514 = vrot.slane %v5510, 1
        %v5515 = vrot.slane %v5510, 2
        %v5516 = vrot.slane %v5510, 3
        %v5517 = vrot.slane %v5510, 4
        %v5522 = vadd.f32 %v4019, %v5514
        %v5523 = vadd.f32 %v4021, %v5515
        %v5524 = vadd.f32 %v4024, %v5516
        %v5525 = vadd.f32 %v4026, %v5517
        %v5526 = vxor.u32 %v5522, 2147483648
        %v5527 = vxor.u32 %v5523, 2147483648
        %v5528 = vxor.u32 %v5524, 2147483648
        %v5529 = vxor.u32 %v5525, 2147483648
        %v5530 = vmul.f32 %v5526, 1.442695
        %v5531 = vpow.pop %v5530
        %v5532 = vmul.f32 %v5527, 1.442695
        %v5533 = vpow.pop %v5532
        %v5534 = vmul.f32 %v5528, 1.442695
        %v5535 = vpow.pop %v5534
        %v5536 = vmul.f32 %v5529, 1.442695
        %v5537 = vpow.pop %v5536
        %v5538 = vadd.f32 %v5531, 1.0
        %v5539 = vadd.f32 %v5533, 1.0
        %v5540 = vadd.f32 %v5535, 1.0
        %v5541 = vadd.f32 %v5537, 1.0
        %v5542 = vrcp.pop %v5538
        %v5543 = vmul.f32 %v5538, %v5542
        %v5544 = vsub.f32 1.0, %v5543
        %v5545 = vmul.f32 %v5542, %v5544
        %v5546 = vadd.f32 %v5542, %v5545
        %vm5547 = vweird.f32 %v5538
        %vm5548 = vweird.f32 %v5542
        %vm5549 = vmor %vm5547, %vm5548
        %v5550 = vsel %vm5549, %v5542, %v5546
        %v5551 = vand.u32 2147483647, %v5538
        %vm5552 = vcmp.eq.f32.partialorder %v5551, 8.507059e+37
        %v5553 = vand.u32 %v5538, 2147483648
        %v5554 = vor.u32 1.1754944e-38, %v5553
        %v5555 = vsel %vm5552, %v5554, %v5550
        %v5556 = vmul.f32 1.0, %v5555
        %v5557 = vrcp.pop %v5539
        %v5558 = vmul.f32 %v5539, %v5557
        %v5559 = vsub.f32 1.0, %v5558
        %v5560 = vmul.f32 %v5557, %v5559
        %v5561 = vadd.f32 %v5557, %v5560
        %vm5562 = vweird.f32 %v5539
        %vm5563 = vweird.f32 %v5557
        %vm5564 = vmor %vm5562, %vm5563
        %v5565 = vsel %vm5564, %v5557, %v5561
        %v5566 = vand.u32 2147483647, %v5539
        %vm5567 = vcmp.eq.f32.partialorder %v5566, 8.507059e+37
        %v5568 = vand.u32 %v5539, 2147483648
        %v5569 = vor.u32 1.1754944e-38, %v5568
        %v5570 = vsel %vm5567, %v5569, %v5565
        %v5571 = vmul.f32 1.0, %v5570
        %v5572 = vrcp.pop %v5540
        %v5573 = vmul.f32 %v5540, %v5572
        %v5574 = vsub.f32 1.0, %v5573
        %v5575 = vmul.f32 %v5572, %v5574
        %v5576 = vadd.f32 %v5572, %v5575
        %vm5577 = vweird.f32 %v5540
        %vm5578 = vweird.f32 %v5572
        %vm5579 = vmor %vm5577, %vm5578
        %v5580 = vsel %vm5579, %v5572, %v5576
        %v5581 = vand.u32 2147483647, %v5540
        %vm5582 = vcmp.eq.f32.partialorder %v5581, 8.507059e+37
        %v5583 = vand.u32 %v5540, 2147483648
        %v5584 = vor.u32 1.1754944e-38, %v5583
        %v5585 = vsel %vm5582, %v5584, %v5580
        %v5586 = vmul.f32 1.0, %v5585
        %v5587 = vrcp.pop %v5541
        %v5588 = vmul.f32 %v5541, %v5587
        %v5589 = vsub.f32 1.0, %v5588
        %v5590 = vmul.f32 %v5587, %v5589
        %v5591 = vadd.f32 %v5587, %v5590
        %vm5592 = vweird.f32 %v5541
        %vm5593 = vweird.f32 %v5587
        %vm5594 = vmor %vm5592, %vm5593
        %v5595 = vsel %vm5594, %v5587, %v5591
        %v5596 = vand.u32 2147483647, %v5541
        %vm5597 = vcmp.eq.f32.partialorder %v5596, 8.507059e+37
        %v5598 = vand.u32 %v5541, 2147483648
        %v5599 = vor.u32 1.1754944e-38, %v5598
        %v5600 = vsel %vm5597, %v5599, %v5595
        %v5601 = vmul.f32 1.0, %v5600
        %v5602 = vtanh.pop %v5522
        %v5603 = vtanh.pop %v5523
        %v5604 = vtanh.pop %v5524
        %v5605 = vtanh.pop %v5525
        %v5610 = vrot.slane %v5447, 7
        %v5611 = vrot.slane %v5448, 7
        %v5612 = vrot.slane %v5449, 7
        %v5613 = vrot.slane %v5450, 7
        %v5618 = vmul.f32 %v5556, %v5610
        %v5619 = vmul.f32 %v5571, %v5611
        %v5620 = vmul.f32 %v5586, %v5612
        %v5621 = vmul.f32 %v5601, %v5613
        %5626 = vrot.lane.b32.xlu0 %v5602, 96
        %v5627 = vpop.permute.xlu0 %5626
        %5628 = vrot.lane.b32.xlu0 %v5603, 96
        %v5629 = vpop.permute.xlu0 %5628
        %5630 = vrot.lane.b32.xlu0 %v5604, 96
        %v5631 = vpop.permute.xlu0 %5630
        %5632 = vrot.lane.b32.xlu0 %v5605, 96
        %v5633 = vpop.permute.xlu0 %5632
        %v5638 = vmul.f32 %v5556, %v5627
        %v5639 = vmul.f32 %v5571, %v5629
        %v5640 = vmul.f32 %v5586, %v5631
        %v5641 = vmul.f32 %v5601, %v5633
        %5646 = vrot.lane.b32.xlu0 %v5638, 16
        %v5647 = vpop.permute.xlu0 %5646
        %5648 = vrot.lane.b32.xlu0 %v5639, 16
        %v5649 = vpop.permute.xlu0 %5648
        %5650 = vrot.lane.b32.xlu0 %v5640, 16
        %v5651 = vpop.permute.xlu0 %5650
        %5652 = vrot.lane.b32.xlu0 %v5641, 16
        %v5653 = vpop.permute.xlu0 %5652
        %v5658 = vadd.f32 %v5618, %v5647
        %v5659 = vadd.f32 %v5619, %v5649
        %v5660 = vadd.f32 %v5620, %v5651
        %v5661 = vadd.f32 %v5621, %v5653
        %v5662 = vtanh.pop %v5658
        %v5663 = vtanh.pop %v5659
        %v5664 = vtanh.pop %v5660
        %v5665 = vtanh.pop %v5661
        %5670 = vrot.lane.b32.xlu0 %v5662, 32
        %v5671 = vpop.permute.xlu0 %5670
        %5672 = vrot.lane.b32.xlu0 %v5663, 32
        %v5673 = vpop.permute.xlu0 %5672
        %5674 = vrot.lane.b32.xlu0 %v5664, 32
        %v5675 = vpop.permute.xlu0 %5674
        %5676 = vrot.lane.b32.xlu0 %v5665, 32
        %v5677 = vpop.permute.xlu0 %5676
        %v5682 = vmul.f32 %v5556, %v5671
        %v5683 = vmul.f32 %v5571, %v5673
        %v5684 = vmul.f32 %v5586, %v5675
        %v5685 = vmul.f32 %v5601, %v5677
        %v5686 = vld [vmem:[%s19] sm:$0xf]
        %v5687 = vld [vmem:[%s19 + $0x4] sm:$0xf]
        %v5688 = vld [vmem:[%s19 + $0x8] sm:$0xf]
        %v5689 = vld [vmem:[%s19 + $0xc] sm:$0xf]
        %v5690 = vpack.c.bf16 %v3977, %v3977
        %v5691 = vpack.c.bf16 %v3978, %v3978
        %v5692 = vpack.c.bf16 %v3979, %v3979
        %v5693 = vpack.c.bf16 %v3980, %v3980
        %v5694 = vld [vmem:[%s20] sm:$0x1]
        %v5696 = vperm.slane %v5694, 0
        %v5702 = vunpack.c.l.b16 %v5690
        %v5703 = vunpack.c.l.b16 %v5691
        %v5704 = vunpack.c.l.b16 %v5692
        %v5705 = vunpack.c.l.b16 %v5693
        %v5706 = vrot.slane %v5702, 7
        %v5707 = vrot.slane %v5703, 6
        %v5708 = vsel %vm4226, %v5707, %v5706
        %v5709 = vrot.slane %v5704, 5
        %v5710 = vsel %vm4229, %v5709, %v5708
        %v5711 = vrot.slane %v5705, 4
        %v5712 = vsel %vm4232, %v5711, %v5710
        %v5713 = vpack.c.b16 %v5712, %v5712
        %v5718 = vunpack.c.l.b16 %v5686
        %v5719 = vunpack.c.l.b16 %v5687
        %v5720 = vunpack.c.l.b16 %v5688
        %v5721 = vunpack.c.l.b16 %v5689
        %v5722 = vpack.c.b16 %v5719, %v5718
        %v5723 = vpack.c.b16 %v5721, %v5720
        %v5727 = vsel %vm938, %v5713, 0
        %5729 = vmatpush.bf16.msra.mxu0 0
        %5730 = vmatpush.bf16.msra.mxu0 0
        %5731 = vmatpush.bf16.msra.mxu0 0
        %5732 = vmatpush.bf16.msra.mxu0 0
        %5733 = vmatpush.bf16.msra.mxu0 0
        %5734 = vmatpush.bf16.msra.mxu0 0
        %5735 = vmatpush.bf16.msra.mxu0 %v5723
        %5736 = vmatpush.bf16.msra.mxu0 %v5722
        %5737 = vmatmul.bf16.gmra.mxu0 %v5727
        %v5738 = vpop.f32.mrf.mxu0
        %v5739 = vadd.f32 %v5696, %v5738
        %v5740 = vpop.f32.mrf.mxu0
        %5741 = vdwg.mxu0
        %v5742 = vxor.u32 %v5739, 2147483648
        %v5743 = vmul.f32 %v5742, 1.442695
        %v5744 = vpow.pop %v5743
        %v5745 = vadd.f32 %v5744, 1.0
        %v5746 = vrcp.pop %v5745
        %v5747 = vmul.f32 %v5745, %v5746
        %v5748 = vsub.f32 1.0, %v5747
        %v5749 = vmul.f32 %v5746, %v5748
        %v5750 = vadd.f32 %v5746, %v5749
        %vm5751 = vweird.f32 %v5745
        %vm5752 = vweird.f32 %v5746
        %vm5753 = vmor %vm5751, %vm5752
        %v5754 = vsel %vm5753, %v5746, %v5750
        %v5755 = vand.u32 2147483647, %v5745
        %vm5756 = vcmp.eq.f32.partialorder %v5755, 8.507059e+37
        %v5757 = vand.u32 %v5745, 2147483648
        %v5758 = vor.u32 1.1754944e-38, %v5757
        %v5759 = vsel %vm5756, %v5758, %v5754
        %v5760 = vmul.f32 1.0, %v5759
        %v5761 = vtanh.pop %v5739
        %5763 = vrot.lane.b32.xlu0 %v5761, 96
        %v5764 = vpop.permute.xlu0 %5763
        %v5766 = vmul.f32 %v5760, %v5764
        %v5767 = vtanh.pop %v5766
        %5769 = vrot.lane.b32.xlu0 %v5767, 48
        %v5770 = vpop.permute.xlu0 %5769
        %v5772 = vmul.f32 %v5760, %v5770
        %v5777 = vrot.slane %v5683, 7
        %v5778 = vrot.slane %v5684, 6
        %v5779 = vsel %vm4226, %v5778, %v5777
        %v5780 = vrot.slane %v5685, 5
        %v5781 = vsel %vm4229, %v5780, %v5779
        %5782 = vrot.lane.b32.xlu0 %v5682, 80
        %v5783 = vpop.permute.xlu0 %5782
        %5784 = vrot.lane.b32.xlu0 %v5781, 80
        %v5785 = vpop.permute.xlu0 %5784
        %v5789 = vrot.slane %v5772, 1
        %5790 = vrot.lane.b32.xlu0 %v5789, 96
        %v5791 = vpop.permute.xlu0 %5790
        %v5793 = vsel %vm4036, %v5783, %v5791
        %v5794 = vsel %vm4036, %v5785, %v5791
        %v5795 = vtanh.pop %v5793
        %v5796 = vtanh.pop %v5794
        %5799 = vst [vmem:[#allocation1] sm:$0xff] %v5795
        %s5800 = scalar_lea.vmem [#allocation1], 7
        %v5801 = vld [vmem:[%s5800] ss:$9 sm:$0xff]
        %5802 = vst [vmem:[#allocation1] sm:$0xff] %v5796
        %v5803 = vld [vmem:[#allocation1] ss:$9 sm:$0xff]
        %s5804 = scalar_lea.vmem [#allocation1], 1
        %v5805 = vld [vmem:[%s5804] ss:$9 sm:$0xff]
        %s5806 = scalar_lea.vmem [#allocation1], 2
        %v5807 = vld [vmem:[%s5806] ss:$9 sm:$0xff]
        %vm5812 = vcmask 253952
        %5813 = vst.msk [vmem:[%s918] sm:$0x1] %vm5812, %v5801
        %5814 = vst.msk [vmem:[%s918 + $0x1] sm:$0x1] %vm5812, %v5803
        %5815 = vst.msk [vmem:[%s918 + $0x2] sm:$0x1] %vm5812, %v5805
        %5816 = vst.msk [vmem:[%s918 + $0x3] sm:$0x1] %vm5812, %v5807
        %s5817 = sand.u32 %s504, 1
        %s5818 = scalar_lea.sflag [#allocation4], %s5817
        %s5819 = sand.u32 %s504, 1
        %s5820 = smul.addr %s5819, 4
        %s5821 = scalar_lea.vmem [#allocation26], %s5820
        // Predicated region
        $region165: #{tpu_custom_call.1} parent=103 // pred_check
          %p5822 = pneg %p514
        $region166: #{tpu_custom_call.1} parent=103 // pred_check_branch
          %5824 = sbr.rel (%p5822) target = $region168
        $region167: #{tpu_custom_call.1} parent=103 // pred_region
          %s5825 = smul.u32 4, %s45
          %5827 = vsyncadd %s5818, 0
          %s5828 = scalar_lea.hbm %s21, %s5825
          %s5829 = sshll.u32 %s5821, 4
          %s5830 = int_to_ptr.vmem [resolvable:$true] %s5829
          %s5831 = sshll.u32 %s5828, 4
          %s5832 = int_to_ptr.hbm [resolvable:$true] %s5831
          %5837 = dma.vmem_to_hbm [thread:$0]  %s5830, 64, %s5832, %s5818, 16, 16, 1
        $region168: #{tpu_custom_call.1} parent=103 // pred_fallthru
          _
      $region104: #{tpu_custom_call.1} parent=5 // pred_fallthru
        _
      %p5838 = scmp.le.s32.totalorder 2, %s40
      // Predicated region
      $region169: #{tpu_custom_call.1} parent=5 // pred_check
        %p5839 = pneg %p5838
      $region170: #{tpu_custom_call.1} parent=5 // pred_check_branch
        %5841 = sbr.rel (%p5839) target = $region172
      $region171: #{tpu_custom_call.1} parent=5 // pred_region
        %s5842 = ssub.s32 %s40, 2
        // Predicated region
        $region173: #{tpu_custom_call.1} parent=171 // pred_check
          %p5843 = pneg %p520
        $region174: #{tpu_custom_call.1} parent=171 // pred_check_branch
          %5845 = sbr.rel (%p5843) target = $region176
        $region175: #{tpu_custom_call.1} parent=171 // pred_region
          %s5846 = sand.u32 %s505, 1
          %s5847 = scalar_lea.sflag [#allocation4], %s5846
          %s5848 = sand.u32 %s505, 1
          %s5849 = smul.addr %s5848, 4
          %s5850 = scalar_lea.vmem [#allocation26], %s5849
          %5852 = dma.done %s5847, 64
        $region176: #{tpu_custom_call.1} parent=171 // pred_fallthru
          _
      $region172: #{tpu_custom_call.1} parent=5 // pred_fallthru
        _
    $region6: #{tpu_custom_call.1} parent=1 // loop_footer
      %s44 = sadd.s32 1, %s40
    $region7: #{tpu_custom_call.1} parent=1 // loop_footer_branch
      %39 = sbr.rel target = $region3
    $region8: #{tpu_custom_call.1} parent=1 // loop_exit
      _
    %5853 = vsyncpa [#allocation3], 1
    %s5854 = scalar_lea.sflag [#allocation3], 1
    %5855 = vsyncpa %s5854, 1
    %5856 = vsyncpa [#allocation6], 1
    %5857 = vsyncpa [#allocation9], 1
    %5858 = vsyncpa [#allocation12], 1
    %5859 = vsyncpa [#allocation15], 1
    %5860 = vsyncpa [#allocation18], 1
    %5861 = vsyncpa [#allocation21], 1
    %5862 = vsyncpa [#allocation24], 1
    %5863 = vsyncpa [#allocation4], 1
    %s5864 = scalar_lea.sflag [#allocation4], 1
    %5865 = vsyncpa %s5864, 1

</llo_original>
